<compile_context>
chip_gen: v5e
topology: v5e:2x2
jax: 0.10.0
libtpu: 0.0.40
codegen_flags: <defaults>
</compile_context>

<pallas_src>
import functools
import math

import jax
import jax.numpy as jnp
from jax import lax
from jax.experimental import pallas as pl
from jax.experimental.pallas import tpu as pltpu

EPS = 1e-5


def _fused_kernel(patches_ref, w_ref, msk_ref, expand_ref, gamma_ref, beta_ref,
                  fold_ref, out_ref, sum_ref, sumsq_ref, c_ref, scale_ref,
                  shift_ref, *, inv_count, eps):
    phase = pl.program_id(0)       # 0 = batch-stats pass, 1 = normalize pass
    i = pl.program_id(1)           # M-tile index
    n_tiles = pl.num_programs(1)

    # MXU: lane-packed polyphase matmul, bf16 operands, f32 accumulation.
    y = jnp.dot(patches_ref[...], w_ref[...], preferred_element_type=jnp.float32)

    @pl.when(phase == 0)
    def _stats_pass():
        # Expand the compact per-row validity mask (tile_rows, PACK*4) to the full
        # lane width with a tiny 0/1 matmul (exact in bf16).
        mask = jnp.dot(msk_ref[...], expand_ref[...],
                       preferred_element_type=jnp.float32)

        @pl.when(i == 0)
        def _init():
            # Zero the parked output block so it never holds uninitialised VMEM.
            out_ref[...] = jnp.zeros_like(out_ref)
            sum_ref[...] = jnp.zeros_like(sum_ref)
            sumsq_ref[...] = jnp.zeros_like(sumsq_ref)
            # Cheap per-channel shift estimate from tile 0 (shifted-variance trick
            # against catastrophic cancellation).  These fold matmuls run once, so
            # f32 HIGHEST is free.
            ls0 = jnp.sum(y * mask, axis=0, keepdims=True)
            lc0 = jnp.sum(mask, axis=0, keepdims=True)
            ch0 = jnp.dot(ls0, fold_ref[...], preferred_element_type=jnp.float32,
                          precision=lax.Precision.HIGHEST)
            cc0 = jnp.dot(lc0, fold_ref[...], preferred_element_type=jnp.float32,
                          precision=lax.Precision.HIGHEST)
            c_ref[...] = ch0 / jnp.maximum(cc0, 1.0)

        d = (y - c_ref[...]) * mask
        sum_ref[...] += jnp.sum(d, axis=0, keepdims=True)
        sumsq_ref[...] += jnp.sum(d * d, axis=0, keepdims=True)

        @pl.when(i == n_tiles - 1)
        def _finalize():
            ch_sum = jnp.dot(sum_ref[...], fold_ref[...],
                             preferred_element_type=jnp.float32,
                             precision=lax.Precision.HIGHEST)
            ch_sumsq = jnp.dot(sumsq_ref[...], fold_ref[...],
                               preferred_element_type=jnp.float32,
                               precision=lax.Precision.HIGHEST)
            dmean = ch_sum * inv_count                      # E[y] - c
            mean = c_ref[...] + dmean
            var = jnp.maximum(ch_sumsq * inv_count - dmean * dmean, 0.0)
            inv = lax.rsqrt(var + eps)
            scale_ref[...] = gamma_ref[...] * inv
            shift_ref[...] = beta_ref[...] - mean * scale_ref[...]

    @pl.when(phase == 1)
    def _apply_pass():
        out_ref[...] = jnp.maximum(y * scale_ref[...] + shift_ref[...],
                                   0.0).astype(out_ref.dtype)


def _pack_factor(cin, cout):
    lane_pack = 128 // math.gcd(128, 4 * cout)   # makes LANES a multiple of 128
    k_pack = 128 // math.gcd(128, 4 * cin)       # makes KCOLS a multiple of 128
    pack = lane_pack * k_pack // math.gcd(lane_pack, k_pack)
    if pack * 4 * cout > 512:                    # bound fold / output lane width
        pack = lane_pack
    return max(pack, 1)


def transpose_x2(x_nchw, w_pt, bias, gamma, beta, *, tile_rows=1024):
    """ConvTranspose2d(k=4,s=2,p=1) + BatchNorm2d(training stats) + ReLU.

    x_nchw: (N, Cin, H, W);  w_pt: PyTorch ConvTranspose2d layout (Cin, Cout, 4, 4).
    `bias` is accepted for API parity but unused: training-mode BN cancels it.
    """
    del bias  # exactly cancelled by the batch-mean subtraction in BN (train mode)
    assert tile_rows % 8 == 0
    N, Cin, H, W = x_nchw.shape
    Cout = w_pt.shape[1]

    PACK = _pack_factor(Cin, Cout)     # logical rows folded into the lane dim
    LANES = PACK * 4 * Cout            # output lane width per packed row
    KCOLS = PACK * 4 * Cin             # contraction width per packed row

    # ---- glue: polyphase patches (M, 4*Cin), bf16 -----------------------------
    x_nhwc = jnp.transpose(x_nchw, (0, 2, 3, 1)).astype(jnp.bfloat16)
    xp = jnp.pad(x_nhwc, ((0, 0), (1, 1), (1, 1), (0, 0)))
    taps = [xp[:, dy:dy + H + 1, dx:dx + W + 1, :]
            for dy in (0, 1) for dx in (0, 1)]
    patches = jnp.stack(taps, axis=3)                    # (N, H+1, W+1, 4, Cin)
    M = N * (H + 1) * (W + 1)
    patches = patches.reshape(M, 4 * Cin)
    # TODO(synk): build the 4 taps in VMEM from a halo'd NHWC x block (grid over
    # (n, patch-row) tiles) instead of materializing the 4x-duplicated patches
    # array in HBM -- largest remaining HBM-byte reduction.

    # ---- glue: fused polyphase weight, block-diagonal lane packing, bf16 ------
    # Wf[(dy,dx,ci),(py,px,co)] = w_pt[ci, co, 3-py-2dy, 3-px-2dx]
    wa = w_pt[:, :, ::-1, ::-1].reshape(Cin, Cout, 2, 2, 2, 2)  # [ci,co,dy,py,dx,px]
    w_small = jnp.transpose(wa, (2, 4, 0, 3, 5, 1)).reshape(4 * Cin, 4 * Cout)
    w_big = jnp.kron(jnp.eye(PACK, dtype=jnp.bfloat16),
                     w_small.astype(jnp.bfloat16))

    # ---- glue: compact validity mask (one value per (patch, phase)) -----------
    # Phase (py,px) at patch (s,t) is a real output pixel iff
    #   (py==0 -> s<=H-1, py==1 -> s>=1) and (px==0 -> t<=W-1, px==1 -> t>=1).
    s_ok = jnp.stack([jnp.arange(H + 1) <= H - 1, jnp.arange(H + 1) >= 1], -1)
    t_ok = jnp.stack([jnp.arange(W + 1) <= W - 1, jnp.arange(W + 1) >= 1], -1)
    m4 = s_ok[:, None, :, None] & t_ok[None, :, None, :]        # (H+1,W+1,2,2)
    mask = jnp.broadcast_to(m4[None], (N, H + 1, W + 1, 2, 2)).reshape(M, 4)

    # ---- glue: pad M to a tile multiple, fold PACK rows into lanes ------------
    rows_needed = -(-M // PACK)
    tile_rows = min(tile_rows, ((rows_needed + 7) // 8) * 8)   # avoid huge padding
    rows_per_tile = tile_rows * PACK
    n_tiles = -(-M // rows_per_tile)
    M_pad = n_tiles * rows_per_tile
    patches = jnp.pad(patches, ((0, M_pad - M), (0, 0)))
    mask = jnp.pad(mask, ((0, M_pad - M), (0, 0)))
    patches_p = patches.reshape(M_pad // PACK, KCOLS)
    msk_p = mask.reshape(M_pad // PACK, PACK * 4).astype(jnp.bfloat16)
    R = M_pad // PACK

    # ---- glue: per-lane BN params, mask-expand and channel-fold matrices ------
    lane = jnp.arange(LANES)
    lane_ch = (lane % (4 * Cout)) % Cout
    gamma_l = gamma.astype(jnp.float32)[lane_ch][None, :]        # (1, LANES)
    beta_l = beta.astype(jnp.float32)[lane_ch][None, :]          # (1, LANES)
    expand = (jnp.arange(PACK * 4)[:, None] == (lane // Cout)[None, :]
              ).astype(jnp.bfloat16)                             # (PACK*4, LANES)
    fold = (lane_ch[:, None] == lane_ch[None, :]).astype(jnp.float32)

    inv_count = 1.0 / float(N * (2 * H) * (2 * W))
    kernel = functools.partial(_fused_kernel, inv_count=inv_count, eps=EPS)

    # Explicit VMEM budget: double-buffered blocks + resident constants + margin.
    need = (2 * tile_rows * KCOLS * 2 + 2 * tile_rows * PACK * 4 * 2
            + 2 * tile_rows * LANES * 4 + 2 * KCOLS * LANES * 2
            + 2 * PACK * 4 * LANES * 2 + 2 * LANES * LANES * 4
            + 4 * LANES * 4 + 5 * LANES * 4)
    vmem_limit = int(min(48 << 20, max(16 << 20, 2 * need)))

    out = pl.pallas_call(
        kernel,
        out_shape=jax.ShapeDtypeStruct((R, LANES), jnp.float32),
        grid_spec=pltpu.PrefetchScalarGridSpec(
            num_scalar_prefetch=0,
            grid=(2, n_tiles),   # (phase, M-tiles); last axis fastest
            in_specs=[
                pl.BlockSpec((tile_rows, KCOLS), lambda p, i: (i, 0)),    # patches
                pl.BlockSpec((KCOLS, LANES), lambda p, i: (0, 0)),        # weight
                # compact mask: only read in phase 0; park on block 0 in phase 1
                pl.BlockSpec((tile_rows, PACK * 4), lambda p, i: (i * (1 - p), 0)),
                pl.BlockSpec((PACK * 4, LANES), lambda p, i: (0, 0)),     # expand
                pl.BlockSpec((1, LANES), lambda p, i: (0, 0)),            # gamma
                pl.BlockSpec((1, LANES), lambda p, i: (0, 0)),            # beta
                pl.BlockSpec((LANES, LANES), lambda p, i: (0, 0)),        # fold mat
            ],
            # only written in phase 1; phase 0 stays parked on the zero-init block 0
            out_specs=pl.BlockSpec((tile_rows, LANES), lambda p, i: (i * p, 0)),
            scratch_shapes=[
                pltpu.VMEM((1, LANES), jnp.float32),   # shifted per-lane sum
                pltpu.VMEM((1, LANES), jnp.float32),   # shifted per-lane sum of sq
                pltpu.VMEM((1, LANES), jnp.float32),   # per-channel shift estimate
                pltpu.VMEM((1, LANES), jnp.float32),   # fused BN scale
                pltpu.VMEM((1, LANES), jnp.float32),   # fused BN shift
            ]),
        compiler_params=pltpu.CompilerParams(
            # Both axes sequential: tiles share the BN-stat accumulators and phase 1
            # depends on all of phase 0.
            # TODO(synk): v7x two-TensorCore split (per-core partial stats + combine,
            # then mark the M axis "parallel").
            dimension_semantics=("arbitrary", "arbitrary"),
            vmem_limit_bytes=vmem_limit),
    )(patches_p, w_big, msk_p, expand, gamma_l, beta_l, fold)

    # ---- glue: unpack lanes, drop padding, pixel-shuffle the 4 phases ----------
    # TODO(synk): optionally emit bf16 output to halve writeback (kept f32 to match
    # the module's f32 forward semantics).
    y = out.reshape(M_pad, 4 * Cout)[:M].reshape(N, H + 1, W + 1, 2, 2, Cout)
    q00 = y[:, 0:H,     0:W,     0, 0, :]
    q01 = y[:, 0:H,     1:W + 1, 0, 1, :]
    q10 = y[:, 1:H + 1, 0:W,     1, 0, :]
    q11 = y[:, 1:H + 1, 1:W + 1, 1, 1, :]
    top = jnp.stack([q00, q01], axis=3)          # (N, H, W, 2, C): px
    bot = jnp.stack([q10, q11], axis=3)
    o = jnp.stack([top, bot], axis=2)            # (N, H, 2, W, 2, C): [n,y,py,x,px,c]
    o = o.reshape(N, 2 * H, 2 * W, Cout)
    return jnp.transpose(o, (0, 3, 1, 2))        # back to NCHW


def reference(x_nchw, w_pt, bias, gamma, beta):
    """Pure-JAX reference (XLA conv) of ConvTranspose2d + BN(train) + ReLU."""
    w_conv = jnp.transpose(w_pt[:, :, ::-1, ::-1], (1, 0, 2, 3))  # (Cout, Cin, 4, 4)
    y = lax.conv_general_dilated(
        x_nchw, w_conv, window_strides=(1, 1), padding=((2, 2), (2, 2)),
        lhs_dilation=(2, 2), dimension_numbers=("NCHW", "OIHW", "NCHW"),
        precision=lax.Precision.HIGHEST)
    y = y + bias[None, :, None, None]
    mean = jnp.mean(y, axis=(0, 2, 3), keepdims=True)
    var = jnp.mean((y - mean) ** 2, axis=(0, 2, 3), keepdims=True)
    y = (y - mean) * lax.rsqrt(var + EPS)
    y = y * gamma[None, :, None, None] + beta[None, :, None, None]
    return jnp.maximum(y, 0.0)


if __name__ == "__main__":
    key = jax.random.PRNGKey(0)
    k_x, k_w, k_b, k_g, k_be = jax.random.split(key, 5)

    N, Cin, Cout, H, W = 2, 4, 8, 16, 16
    # Pre-quantize x / w to bf16 values (the kernel's matmul operands are bf16) so
    # the f32 reference sees the identical inputs and the comparison stays tight.
    x = jax.random.normal(k_x, (N, Cin, H, W), dtype=jnp.float32)
    x = x.astype(jnp.bfloat16).astype(jnp.float32)

    fan_in = Cin * 4 * 4
    w_pt = jax.random.normal(k_w, (Cin, Cout, 4, 4), dtype=jnp.float32) / jnp.sqrt(fan_in)
    w_pt = w_pt.astype(jnp.bfloat16).astype(jnp.float32)
    bias = jax.random.normal(k_b, (Cout,), dtype=jnp.float32) * 0.1
    gamma = 1.0 + 0.1 * jax.random.normal(k_g, (Cout,), dtype=jnp.float32)
    beta = 0.1 * jax.random.normal(k_be, (Cout,), dtype=jnp.float32)

    # tile_rows=64 -> 2 M-tiles at this shape, exercising the multi-tile stats path.
    out = jax.block_until_ready(transpose_x2(x, w_pt, bias, gamma, beta, tile_rows=64))
    ref = jax.block_until_ready(reference(x, w_pt, bias, gamma, beta))

    assert out.shape == (N, Cout, 2 * H, 2 * W), out.shape
    err = float(jnp.max(jnp.abs(out - ref)))
    assert jnp.allclose(out, ref, rtol=2e-3, atol=2e-3), err
    print("KERNEL_OK")
</pallas_src>

<mosaic_0001>
module attributes {stable_mosaic.version = 11 : i64} {
  func.func @_fused_kernel(%arg0: i32, %arg1: i32, %arg2: memref<64x128xbf16, #tpu.memory_space<vmem>>, %arg3: memref<128x256xbf16, #tpu.memory_space<vmem>>, %arg4: memref<64x32xbf16, #tpu.memory_space<vmem>>, %arg5: memref<32x256xbf16, #tpu.memory_space<vmem>>, %arg6: memref<1x256xf32, #tpu.memory_space<vmem>>, %arg7: memref<1x256xf32, #tpu.memory_space<vmem>>, %arg8: memref<256x256xf32, #tpu.memory_space<vmem>>, %arg9: memref<64x256xf32, #tpu.memory_space<vmem>>, %arg10: memref<1x256xf32, #tpu.memory_space<vmem>>, %arg11: memref<1x256xf32, #tpu.memory_space<vmem>>, %arg12: memref<1x256xf32, #tpu.memory_space<vmem>>, %arg13: memref<1x256xf32, #tpu.memory_space<vmem>>, %arg14: memref<1x256xf32, #tpu.memory_space<vmem>>) attributes {dimension_semantics = [#tpu.dimension_semantics<arbitrary>, #tpu.dimension_semantics<arbitrary>], iteration_bounds = array<i64: 2, 2>, scalar_prefetch = 0 : i64, scratch_operands = 5 : i64, tpu.core_type = #tpu.core_type<tc>, window_params = [{transform_indices = @transform_0, window_bounds = array<i64: 64, 128>}, {pipeline_mode = #tpu.pipeline_mode<synchronous>, transform_indices = @transform_1, window_bounds = array<i64: 128, 256>}, {transform_indices = @transform_2, window_bounds = array<i64: 64, 32>}, {pipeline_mode = #tpu.pipeline_mode<synchronous>, transform_indices = @transform_3, window_bounds = array<i64: 32, 256>}, {pipeline_mode = #tpu.pipeline_mode<synchronous>, transform_indices = @transform_4, window_bounds = array<i64: 1, 256>}, {pipeline_mode = #tpu.pipeline_mode<synchronous>, transform_indices = @transform_5, window_bounds = array<i64: 1, 256>}, {pipeline_mode = #tpu.pipeline_mode<synchronous>, transform_indices = @transform_6, window_bounds = array<i64: 256, 256>}, {transform_indices = @transform_7, window_bounds = array<i64: 64, 256>}]} {
    %c0 = arith.constant 0 : index
    %c0_0 = arith.constant 0 : index
    %0 = vector.load %arg2[%c0, %c0_0] : memref<64x128xbf16, #tpu.memory_space<vmem>>, vector<64x128xbf16>
    %c0_1 = arith.constant 0 : index
    %c0_2 = arith.constant 0 : index
    %1 = vector.load %arg3[%c0_1, %c0_2] : memref<128x256xbf16, #tpu.memory_space<vmem>>, vector<128x256xbf16>
    %cst = arith.constant dense<0.000000e+00> : vector<64x256xf32>
    %2 = tpu.matmul %0, %1, %cst {dimension_numbers = #tpu.dot_dimension_numbers<[1], [0], [0], [1], [0, 0, 1, 1], [], []>} : vector<64x128xbf16>, vector<128x256xbf16>, vector<64x256xf32> -> vector<64x256xf32>
    %c0_i32 = arith.constant 0 : i32
    %3 = arith.cmpi eq, %arg0, %c0_i32 : i32
    %4 = arith.extui %3 : i1 to i32
    %c0_i32_3 = arith.constant 0 : i32
    %5 = arith.cmpi ne, %4, %c0_i32_3 : i32
    scf.if %5 {
      %c0_5 = arith.constant 0 : index
      %c0_6 = arith.constant 0 : index
      %9 = vector.load %arg4[%c0_5, %c0_6] : memref<64x32xbf16, #tpu.memory_space<vmem>>, vector<64x32xbf16>
      %c0_7 = arith.constant 0 : index
      %c0_8 = arith.constant 0 : index
      %10 = vector.load %arg5[%c0_7, %c0_8] : memref<32x256xbf16, #tpu.memory_space<vmem>>, vector<32x256xbf16>
      %cst_9 = arith.constant dense<0.000000e+00> : vector<64x256xf32>
      %11 = tpu.matmul %9, %10, %cst_9 {dimension_numbers = #tpu.dot_dimension_numbers<[1], [0], [0], [1], [0, 0, 1, 1], [], []>} : vector<64x32xbf16>, vector<32x256xbf16>, vector<64x256xf32> -> vector<64x256xf32>
      %c0_i32_10 = arith.constant 0 : i32
      %12 = arith.cmpi eq, %arg1, %c0_i32_10 : i32
      %13 = arith.extui %12 : i1 to i32
      %c0_i32_11 = arith.constant 0 : i32
      %14 = arith.cmpi ne, %13, %c0_i32_11 : i32
      scf.if %14 {
        %cst_26 = arith.constant 0.000000e+00 : f32
        %33 = vector.broadcast %cst_26 : f32 to vector<64x256xf32>
        %c0_27 = arith.constant 0 : index
        %c0_28 = arith.constant 0 : index
        %34 = vector.load %arg9[%c0_27, %c0_28] : memref<64x256xf32, #tpu.memory_space<vmem>>, vector<64x256xf32>
        tpu.vector_store %arg9[%c0_27, %c0_28], %33 {strides = array<i32>} : memref<64x256xf32, #tpu.memory_space<vmem>>, vector<64x256xf32>,
        %cst_29 = arith.constant 0.000000e+00 : f32
        %35 = vector.broadcast %cst_29 : f32 to vector<1x256xf32>
        %c0_30 = arith.constant 0 : index
        %c0_31 = arith.constant 0 : index
        %36 = vector.load %arg10[%c0_30, %c0_31] : memref<1x256xf32, #tpu.memory_space<vmem>>, vector<1x256xf32>
        tpu.vector_store %arg10[%c0_30, %c0_31], %35 {strides = array<i32>} : memref<1x256xf32, #tpu.memory_space<vmem>>, vector<1x256xf32>,
        %cst_32 = arith.constant 0.000000e+00 : f32
        %37 = vector.broadcast %cst_32 : f32 to vector<1x256xf32>
        %c0_33 = arith.constant 0 : index
        %c0_34 = arith.constant 0 : index
        %38 = vector.load %arg11[%c0_33, %c0_34] : memref<1x256xf32, #tpu.memory_space<vmem>>, vector<1x256xf32>
        tpu.vector_store %arg11[%c0_33, %c0_34], %37 {strides = array<i32>} : memref<1x256xf32, #tpu.memory_space<vmem>>, vector<1x256xf32>,
        %39 = arith.mulf %2, %11 : vector<64x256xf32>
        %cst_35 = arith.constant dense<0.000000e+00> : vector<256xf32>
        %40 = vector.multi_reduction <add>, %39, %cst_35 [0] : vector<64x256xf32> to vector<256xf32>
        %41 = vector.shape_cast %40 : vector<256xf32> to vector<1x256xf32>
        %cst_36 = arith.constant dense<0.000000e+00> : vector<256xf32>
        %42 = vector.multi_reduction <add>, %11, %cst_36 [0] : vector<64x256xf32> to vector<256xf32>
        %43 = vector.shape_cast %42 : vector<256xf32> to vector<1x256xf32>
        %c0_37 = arith.constant 0 : index
        %c0_38 = arith.constant 0 : index
        %44 = vector.load %arg8[%c0_37, %c0_38] : memref<256x256xf32, #tpu.memory_space<vmem>>, vector<256x256xf32>
        %cst_39 = arith.constant dense<0.000000e+00> : vector<1x256xf32>
        %45 = tpu.matmul %41, %44, %cst_39 {dimension_numbers = #tpu.dot_dimension_numbers<[1], [0], [0], [1], [0, 0, 1, 1], [], []>, precision = #tpu.contract_precision<fp32>} : vector<1x256xf32>, vector<256x256xf32>, vector<1x256xf32> -> vector<1x256xf32>
        %c0_40 = arith.constant 0 : index
        %c0_41 = arith.constant 0 : index
        %46 = vector.load %arg8[%c0_40, %c0_41] : memref<256x256xf32, #tpu.memory_space<vmem>>, vector<256x256xf32>
        %cst_42 = arith.constant dense<0.000000e+00> : vector<1x256xf32>
        %47 = tpu.matmul %43, %46, %cst_42 {dimension_numbers = #tpu.dot_dimension_numbers<[1], [0], [0], [1], [0, 0, 1, 1], [], []>, precision = #tpu.contract_precision<fp32>} : vector<1x256xf32>, vector<256x256xf32>, vector<1x256xf32> -> vector<1x256xf32>
        %cst_43 = arith.constant 1.000000e+00 : f32
        %48 = vector.broadcast %cst_43 : f32 to vector<1x256xf32>
        %49 = arith.maximumf %47, %48 : vector<1x256xf32>
        %50 = arith.divf %45, %49 : vector<1x256xf32>
        %c0_44 = arith.constant 0 : index
        %c0_45 = arith.constant 0 : index
        %51 = vector.load %arg12[%c0_44, %c0_45] : memref<1x256xf32, #tpu.memory_space<vmem>>, vector<1x256xf32>
        tpu.vector_store %arg12[%c0_44, %c0_45], %50 {strides = array<i32>} : memref<1x256xf32, #tpu.memory_space<vmem>>, vector<1x256xf32>,
      } else {
      }
      %c0_12 = arith.constant 0 : index
      %c0_13 = arith.constant 0 : index
      %15 = vector.load %arg12[%c0_12, %c0_13] : memref<1x256xf32, #tpu.memory_space<vmem>>, vector<1x256xf32>
      %16 = vector.broadcast %15 : vector<1x256xf32> to vector<64x256xf32>
      %17 = arith.subf %2, %16 : vector<64x256xf32>
      %18 = arith.mulf %17, %11 : vector<64x256xf32>
      %c0_14 = arith.constant 0 : index
      %c0_15 = arith.constant 0 : index
      %19 = vector.load %arg10[%c0_14, %c0_15] : memref<1x256xf32, #tpu.memory_space<vmem>>, vector<1x256xf32>
      %cst_16 = arith.constant dense<0.000000e+00> : vector<256xf32>
      %20 = vector.multi_reduction <add>, %18, %cst_16 [0] : vector<64x256xf32> to vector<256xf32>
      %21 = vector.shape_cast %20 : vector<256xf32> to vector<1x256xf32>
      %22 = arith.addf %19, %21 : vector<1x256xf32>
      %c0_17 = arith.constant 0 : index
      %c0_18 = arith.constant 0 : index
      %23 = vector.load %arg10[%c0_17, %c0_18] : memref<1x256xf32, #tpu.memory_space<vmem>>, vector<1x256xf32>
      tpu.vector_store %arg10[%c0_17, %c0_18], %22 {strides = array<i32>} : memref<1x256xf32, #tpu.memory_space<vmem>>, vector<1x256xf32>,
      %c0_19 = arith.constant 0 : index
      %c0_20 = arith.constant 0 : index
      %24 = vector.load %arg11[%c0_19, %c0_20] : memref<1x256xf32, #tpu.memory_space<vmem>>, vector<1x256xf32>
      %25 = arith.mulf %18, %18 : vector<64x256xf32>
      %cst_21 = arith.constant dense<0.000000e+00> : vector<256xf32>
      %26 = vector.multi_reduction <add>, %25, %cst_21 [0] : vector<64x256xf32> to vector<256xf32>
      %27 = vector.shape_cast %26 : vector<256xf32> to vector<1x256xf32>
      %28 = arith.addf %24, %27 : vector<1x256xf32>
      %c0_22 = arith.constant 0 : index
      %c0_23 = arith.constant 0 : index
      %29 = vector.load %arg11[%c0_22, %c0_23] : memref<1x256xf32, #tpu.memory_space<vmem>>, vector<1x256xf32>
      tpu.vector_store %arg11[%c0_22, %c0_23], %28 {strides = array<i32>} : memref<1x256xf32, #tpu.memory_space<vmem>>, vector<1x256xf32>,
      %c1_i32_24 = arith.constant 1 : i32
      %30 = arith.cmpi eq, %arg1, %c1_i32_24 : i32
      %31 = arith.extui %30 : i1 to i32
      %c0_i32_25 = arith.constant 0 : i32
      %32 = arith.cmpi ne, %31, %c0_i32_25 : i32
      scf.if %32 {
        %c0_26 = arith.constant 0 : index
        %c0_27 = arith.constant 0 : index
        %33 = vector.load %arg10[%c0_26, %c0_27] : memref<1x256xf32, #tpu.memory_space<vmem>>, vector<1x256xf32>
        %c0_28 = arith.constant 0 : index
        %c0_29 = arith.constant 0 : index
        %34 = vector.load %arg8[%c0_28, %c0_29] : memref<256x256xf32, #tpu.memory_space<vmem>>, vector<256x256xf32>
        %cst_30 = arith.constant dense<0.000000e+00> : vector<1x256xf32>
        %35 = tpu.matmul %33, %34, %cst_30 {dimension_numbers = #tpu.dot_dimension_numbers<[1], [0], [0], [1], [0, 0, 1, 1], [], []>, precision = #tpu.contract_precision<fp32>} : vector<1x256xf32>, vector<256x256xf32>, vector<1x256xf32> -> vector<1x256xf32>
        %c0_31 = arith.constant 0 : index
        %c0_32 = arith.constant 0 : index
        %36 = vector.load %arg11[%c0_31, %c0_32] : memref<1x256xf32, #tpu.memory_space<vmem>>, vector<1x256xf32>
        %c0_33 = arith.constant 0 : index
        %c0_34 = arith.constant 0 : index
        %37 = vector.load %arg8[%c0_33, %c0_34] : memref<256x256xf32, #tpu.memory_space<vmem>>, vector<256x256xf32>
        %cst_35 = arith.constant dense<0.000000e+00> : vector<1x256xf32>
        %38 = tpu.matmul %36, %37, %cst_35 {dimension_numbers = #tpu.dot_dimension_numbers<[1], [0], [0], [1], [0, 0, 1, 1], [], []>, precision = #tpu.contract_precision<fp32>} : vector<1x256xf32>, vector<256x256xf32>, vector<1x256xf32> -> vector<1x256xf32>
        %cst_36 = arith.constant 4.8828125E-4 : f32
        %39 = vector.broadcast %cst_36 : f32 to vector<1x256xf32>
        %40 = arith.mulf %35, %39 : vector<1x256xf32>
        %c0_37 = arith.constant 0 : index
        %c0_38 = arith.constant 0 : index
        %41 = vector.load %arg12[%c0_37, %c0_38] : memref<1x256xf32, #tpu.memory_space<vmem>>, vector<1x256xf32>
        %42 = arith.addf %41, %40 : vector<1x256xf32>
        %cst_39 = arith.constant 4.8828125E-4 : f32
        %43 = vector.broadcast %cst_39 : f32 to vector<1x256xf32>
        %44 = arith.mulf %38, %43 : vector<1x256xf32>
        %45 = arith.mulf %40, %40 : vector<1x256xf32>
        %46 = arith.subf %44, %45 : vector<1x256xf32>
        %cst_40 = arith.constant 0.000000e+00 : f32
        %47 = vector.broadcast %cst_40 : f32 to vector<1x256xf32>
        %48 = arith.maximumf %46, %47 : vector<1x256xf32>
        %cst_41 = arith.constant 9.99999974E-6 : f32
        %49 = vector.broadcast %cst_41 : f32 to vector<1x256xf32>
        %50 = arith.addf %48, %49 : vector<1x256xf32>
        %51 = math.rsqrt %50 : vector<1x256xf32>
        %c0_42 = arith.constant 0 : index
        %c0_43 = arith.constant 0 : index
        %52 = vector.load %arg6[%c0_42, %c0_43] : memref<1x256xf32, #tpu.memory_space<vmem>>, vector<1x256xf32>
        %53 = arith.mulf %52, %51 : vector<1x256xf32>
        %c0_44 = arith.constant 0 : index
        %c0_45 = arith.constant 0 : index
        %54 = vector.load %arg13[%c0_44, %c0_45] : memref<1x256xf32, #tpu.memory_space<vmem>>, vector<1x256xf32>
        tpu.vector_store %arg13[%c0_44, %c0_45], %53 {strides = array<i32>} : memref<1x256xf32, #tpu.memory_space<vmem>>, vector<1x256xf32>,
        %c0_46 = arith.constant 0 : index
        %c0_47 = arith.constant 0 : index
        %55 = vector.load %arg7[%c0_46, %c0_47] : memref<1x256xf32, #tpu.memory_space<vmem>>, vector<1x256xf32>
        %c0_48 = arith.constant 0 : index
        %c0_49 = arith.constant 0 : index
        %56 = vector.load %arg13[%c0_48, %c0_49] : memref<1x256xf32, #tpu.memory_space<vmem>>, vector<1x256xf32>
        %57 = arith.mulf %42, %56 : vector<1x256xf32>
        %58 = arith.subf %55, %57 : vector<1x256xf32>
        %c0_50 = arith.constant 0 : index
        %c0_51 = arith.constant 0 : index
        %59 = vector.load %arg14[%c0_50, %c0_51] : memref<1x256xf32, #tpu.memory_space<vmem>>, vector<1x256xf32>
        tpu.vector_store %arg14[%c0_50, %c0_51], %58 {strides = array<i32>} : memref<1x256xf32, #tpu.memory_space<vmem>>, vector<1x256xf32>,
      } else {
      }
    } else {
    }
    %c1_i32 = arith.constant 1 : i32
    %6 = arith.cmpi eq, %arg0, %c1_i32 : i32
    %7 = arith.extui %6 : i1 to i32
    %c0_i32_4 = arith.constant 0 : i32
    %8 = arith.cmpi ne, %7, %c0_i32_4 : i32
    scf.if %8 {
      %c0_5 = arith.constant 0 : index
      %c0_6 = arith.constant 0 : index
      %9 = vector.load %arg13[%c0_5, %c0_6] : memref<1x256xf32, #tpu.memory_space<vmem>>, vector<1x256xf32>
      %10 = vector.broadcast %9 : vector<1x256xf32> to vector<64x256xf32>
      %11 = arith.mulf %2, %10 : vector<64x256xf32>
      %c0_7 = arith.constant 0 : index
      %c0_8 = arith.constant 0 : index
      %12 = vector.load %arg14[%c0_7, %c0_8] : memref<1x256xf32, #tpu.memory_space<vmem>>, vector<1x256xf32>
      %13 = vector.broadcast %12 : vector<1x256xf32> to vector<64x256xf32>
      %14 = arith.addf %11, %13 : vector<64x256xf32>
      %cst_9 = arith.constant 0.000000e+00 : f32
      %15 = vector.broadcast %cst_9 : f32 to vector<64x256xf32>
      %16 = arith.maximumf %14, %15 : vector<64x256xf32>
      %c0_10 = arith.constant 0 : index
      %c0_11 = arith.constant 0 : index
      %17 = vector.load %arg9[%c0_10, %c0_11] : memref<64x256xf32, #tpu.memory_space<vmem>>, vector<64x256xf32>
      tpu.vector_store %arg9[%c0_10, %c0_11], %16 {strides = array<i32>} : memref<64x256xf32, #tpu.memory_space<vmem>>, vector<64x256xf32>,
    } else {
    }
    return
  }
  func.func @transform_0(%arg0: i32, %arg1: i32) -> (i32, i32) {
    %c0_i32 = arith.constant 0 : i32
    %c0_i32_0 = arith.constant 0 : i32
    return %arg1, %c0_i32 : i32, i32
  }
  func.func @transform_1(%arg0: i32, %arg1: i32) -> (i32, i32) {
    %c0_i32 = arith.constant 0 : i32
    %c0_i32_0 = arith.constant 0 : i32
    %c0_i32_1 = arith.constant 0 : i32
    return %c0_i32, %c0_i32_0 : i32, i32
  }
  func.func @transform_2(%arg0: i32, %arg1: i32) -> (i32, i32) {
    %c1_i32 = arith.constant 1 : i32
    %0 = arith.subi %c1_i32, %arg0 : i32
    %1 = arith.muli %arg1, %0 : i32
    %c0_i32 = arith.constant 0 : i32
    %c0_i32_0 = arith.constant 0 : i32
    return %1, %c0_i32 : i32, i32
  }
  func.func @transform_3(%arg0: i32, %arg1: i32) -> (i32, i32) {
    %c0_i32 = arith.constant 0 : i32
    %c0_i32_0 = arith.constant 0 : i32
    %c0_i32_1 = arith.constant 0 : i32
    return %c0_i32, %c0_i32_0 : i32, i32
  }
  func.func @transform_4(%arg0: i32, %arg1: i32) -> (i32, i32) {
    %c0_i32 = arith.constant 0 : i32
    %c0_i32_0 = arith.constant 0 : i32
    %c0_i32_1 = arith.constant 0 : i32
    return %c0_i32, %c0_i32_0 : i32, i32
  }
  func.func @transform_5(%arg0: i32, %arg1: i32) -> (i32, i32) {
    %c0_i32 = arith.constant 0 : i32
    %c0_i32_0 = arith.constant 0 : i32
    %c0_i32_1 = arith.constant 0 : i32
    return %c0_i32, %c0_i32_0 : i32, i32
  }
  func.func @transform_6(%arg0: i32, %arg1: i32) -> (i32, i32) {
    %c0_i32 = arith.constant 0 : i32
    %c0_i32_0 = arith.constant 0 : i32
    %c0_i32_1 = arith.constant 0 : i32
    return %c0_i32, %c0_i32_0 : i32, i32
  }
  func.func @transform_7(%arg0: i32, %arg1: i32) -> (i32, i32) {
    %0 = arith.muli %arg1, %arg0 : i32
    %c0_i32 = arith.constant 0 : i32
    %c0_i32_0 = arith.constant 0 : i32
    return %0, %c0_i32 : i32, i32
  }
}

</mosaic_0001>

<llo_original>
// kernel: tpu_custom_call.1
$region0: #{tpu_custom_call.1}
  #allocation0 [shape = 'u32[]', space=smem, size = 0x4, offset = 0x4, fixed_abs, tag = 'smem constant byte address 0x4 - core index']
  #allocation1 [shape = 'u32[72,128]{1,0:T(1,128)}', space=vmem, size = 0x9000, scoped, tag = 'internal scratch']
  #allocation2 [shape = 'f32[1,256]{1,0:T(1,128)}', space=vmem, size = 0x400, scoped, tag = 'scratch operand']
  #allocation3 [shape = 'f32[1,256]{1,0:T(1,128)}', space=vmem, size = 0x400, scoped, tag = 'scratch operand']
  #allocation4 [shape = 'f32[1,256]{1,0:T(1,128)}', space=vmem, size = 0x400, scoped, tag = 'scratch operand']
  #allocation5 [shape = 'f32[1,256]{1,0:T(1,128)}', space=vmem, size = 0x400, scoped, tag = 'scratch operand']
  #allocation6 [shape = 'f32[1,256]{1,0:T(1,128)}', space=vmem, size = 0x400, scoped, tag = 'scratch operand']
  %s0 = inlined_call_operand.vmem [shape: bf16[128,128], index: 0, kind: input, shape index: {}]
  %s1 = inlined_call_operand.hbm [shape: bf16[128,256], index: 1, kind: input, shape index: {}]
  %s2 = inlined_call_operand.vmem [shape: bf16[128,32], index: 2, kind: input, shape index: {}]
  %s3 = inlined_call_operand.hbm [shape: bf16[32,256], index: 3, kind: input, shape index: {}]
  %s4 = inlined_call_operand.vmem [shape: f32[1,256], index: 4, kind: input, shape index: {}]
  %s5 = inlined_call_operand.vmem [shape: f32[1,256], index: 5, kind: input, shape index: {}]
  %s6 = inlined_call_operand.hbm [shape: f32[256,256], index: 6, kind: input, shape index: {}]
  %s7 = inlined_call_operand.hbm [shape: f32[128,256], index: 7, kind: output, shape index: {}]
  %s8 = sld [smem:[#allocation0]]
  $region89: #{tpu_custom_call.1} parent=0
    _
  %s10 = ssub.s32 1, %s8
  %s11 = scalar_select 0, %s10, %s8
  $region1: #{tpu_custom_call.1} parent=0
    #allocation7 [shape = 'u8[65536]{0}', space=vmem, size = 0x10000, scoped, tag = 'input window, operand 1, single buffered']
    #allocation8 [shape = 's32[2]{0}', space=sflag, size = 0x8, scoped, tag = 'scoped memory for tpu_custom_call.1']
    #allocation9 [shape = 's32[2]{0}', space=sflag, size = 0x8, scoped, tag = 'scoped memory for tpu_custom_call.1']
    #allocation10 [shape = 'u8[16384]{0}', space=vmem, size = 0x4000, scoped, tag = 'input window, operand 3, single buffered']
    #allocation11 [shape = 's32[1]{0}', space=sflag, size = 0x4, scoped, tag = 'scoped memory for tpu_custom_call.1']
    #allocation12 [shape = 'u8[262144]{0}', space=vmem, size = 0x40000, scoped, tag = 'input window, operand 6, single buffered']
    #allocation13 [shape = 'u8[131072]{0}', space=vmem, size = 0x20000, scoped, tag = 'output window, operand 0']
    %12 = vsyncpa [#allocation8], 0
    %13 = vsyncpa [#allocation11], 0
    %14 = vsyncpa [#allocation9], 0
    %s15 = scalar_lea.sflag [#allocation9], 1
    %16 = vsyncpa %s15, 0
    loop: start=0, step=1, limit=6
    $region2: #{tpu_custom_call.1} parent=1 // loop_pre_header
      _
    $region3: #{tpu_custom_call.1} parent=1 // loop_header
      %s18 = sphi 0, %s22
      %p19 = scmp.ge.s32.totalorder %s18, 6
      %s25 = sphi 0, %s37
      %s26 = sphi 0, %s33
      %s27 = sphi 0, %s25
      %s28 = sphi 0, %s26
      %s29 = sphi 0, %s27
      %s30 = sphi 0, %s28
      %s40 = sphi 0, %s42
      %s43 = sphi 0, %s40
      %s44 = sphi 0, %s43
      %s60 = sphi 0, %s44
      %s64 = sphi 0, %s64
      %s66 = sphi 0, %s64
      %s67 = sphi 0, %s66
      %s81 = sphi 0, %s67
      %s91 = sphi 0, %s93
      %s94 = sphi 0, %s91
      %s95 = sphi 0, %s94
      %s111 = sphi 0, %s95
      %s115 = sphi 0, %s115
      %s117 = sphi 0, %s115
      %s118 = sphi 0, %s117
      %s132 = sphi 0, %s118
      %s136 = sphi 0, %s136
      %s138 = sphi 0, %s136
      %s139 = sphi 0, %s138
      %s153 = sphi 0, %s139
      %s157 = sphi 0, %s157
      %s159 = sphi 0, %s157
      %s160 = sphi 0, %s159
      %s174 = sphi 0, %s160
      %s178 = sphi 0, %s178
      %s180 = sphi 0, %s178
      %s181 = sphi 0, %s180
      %s195 = sphi 0, %s181
      %s203 = sphi 0, %s205
      %s206 = sphi 0, %s203
      %s207 = sphi 0, %s206
      %s223 = sphi 0, %s207
    $region4: #{tpu_custom_call.1} parent=1 // loop_header_branch
      %21 = sbr.rel (%p19) target = $region8
    $region5: #{tpu_custom_call.1} parent=1 // loop_body
      %s23 = ssub.s32 %s18, 1
      %s24 = ssub.s32 %s18, 2
      %s31 = sadd.s32 1, %s26
      %p32 = scmp.ge.s32.totalorder %s31, 2
      %s33 = scalar_select %p32, 0, %s31
      %s34 = sadd.s32 1, %s25
      %s35 = scalar_select %p32, %s34, %s25
      %p36 = scmp.ge.s32.totalorder %s35, 2
      %s37 = scalar_select %p36, 0, %s35
      %s38 = ssub.s32 %s26, %s33
      %p39 = scmp.eq.s32.totalorder %s38, 0
      %s41 = sadd.s32 %s40, 1
      %s42 = scalar_select %p39, %s40, %s41
      %p45 = pneg %p39
      %p46 = scmp.eq.s32.totalorder %s18, 3
      %p47 = por %p45, %p46
      %p48 = scmp.ne.s32.totalorder %s40, %s43
      %p49 = scmp.eq.s32.totalorder %s18, 0
      %p50 = por %p48, %p49
      %p51 = scmp.ne.s32.totalorder %s40, %s43
      %p52 = scmp.eq.s32.totalorder %s23, 3
      %p53 = por %p51, %p52
      %p54 = scmp.ne.s32.totalorder %s43, %s44
      %p55 = scmp.eq.s32.totalorder %s23, 0
      %p56 = por %p54, %p55
      %p57 = scmp.ne.s32.totalorder %s43, %s44
      %p58 = scmp.eq.s32.totalorder %s24, 3
      %p59 = por %p57, %p58
      %p61 = scmp.ne.s32.totalorder %s44, %s60
      %p62 = scmp.eq.s32.totalorder %s24, 0
      %p63 = por %p61, %p62
      %s65 = sadd.s32 %s64, 1
      %p68 = scmp.eq.s32.totalorder %s18, 3
      %p69 = scmp.ne.s32.totalorder %s64, %s66
      %p70 = scmp.eq.s32.totalorder %s18, 0
      %p71 = por %p69, %p70
      %p72 = scmp.ne.s32.totalorder %s64, %s66
      %p73 = scmp.eq.s32.totalorder %s23, 3
      %p74 = por %p72, %p73
      %p75 = scmp.ne.s32.totalorder %s66, %s67
      %p76 = scmp.eq.s32.totalorder %s23, 0
      %p77 = por %p75, %p76
      %p78 = scmp.ne.s32.totalorder %s66, %s67
      %p79 = scmp.eq.s32.totalorder %s24, 3
      %p80 = por %p78, %p79
      %p82 = scmp.ne.s32.totalorder %s67, %s81
      %p83 = scmp.eq.s32.totalorder %s24, 0
      %p84 = por %p82, %p83
      %s85 = ssub.s32 1, %s25
      %s86 = smul.u32 %s26, %s85
      %s87 = ssub.s32 1, %s37
      %s88 = smul.u32 %s33, %s87
      %s89 = ssub.s32 %s86, %s88
      %p90 = scmp.eq.s32.totalorder %s89, 0
      %s92 = sadd.s32 %s91, 1
      %s93 = scalar_select %p90, %s91, %s92
      %p96 = pneg %p90
      %p97 = scmp.eq.s32.totalorder %s18, 3
      %p98 = por %p96, %p97
      %p99 = scmp.ne.s32.totalorder %s91, %s94
      %p100 = scmp.eq.s32.totalorder %s18, 0
      %p101 = por %p99, %p100
      %p102 = scmp.ne.s32.totalorder %s91, %s94
      %p103 = scmp.eq.s32.totalorder %s23, 3
      %p104 = por %p102, %p103
      %p105 = scmp.ne.s32.totalorder %s94, %s95
      %p106 = scmp.eq.s32.totalorder %s23, 0
      %p107 = por %p105, %p106
      %p108 = scmp.ne.s32.totalorder %s94, %s95
      %p109 = scmp.eq.s32.totalorder %s24, 3
      %p110 = por %p108, %p109
      %p112 = scmp.ne.s32.totalorder %s95, %s111
      %p113 = scmp.eq.s32.totalorder %s24, 0
      %p114 = por %p112, %p113
      %s116 = sadd.s32 %s115, 1
      %p119 = scmp.eq.s32.totalorder %s18, 3
      %p120 = scmp.ne.s32.totalorder %s115, %s117
      %p121 = scmp.eq.s32.totalorder %s18, 0
      %p122 = por %p120, %p121
      %p123 = scmp.ne.s32.totalorder %s115, %s117
      %p124 = scmp.eq.s32.totalorder %s23, 3
      %p125 = por %p123, %p124
      %p126 = scmp.ne.s32.totalorder %s117, %s118
      %p127 = scmp.eq.s32.totalorder %s23, 0
      %p128 = por %p126, %p127
      %p129 = scmp.ne.s32.totalorder %s117, %s118
      %p130 = scmp.eq.s32.totalorder %s24, 3
      %p131 = por %p129, %p130
      %p133 = scmp.ne.s32.totalorder %s118, %s132
      %p134 = scmp.eq.s32.totalorder %s24, 0
      %p135 = por %p133, %p134
      %s137 = sadd.s32 %s136, 1
      %p140 = scmp.eq.s32.totalorder %s18, 3
      %p141 = scmp.ne.s32.totalorder %s136, %s138
      %p142 = scmp.eq.s32.totalorder %s18, 0
      %p143 = por %p141, %p142
      %p144 = scmp.ne.s32.totalorder %s136, %s138
      %p145 = scmp.eq.s32.totalorder %s23, 3
      %p146 = por %p144, %p145
      %p147 = scmp.ne.s32.totalorder %s138, %s139
      %p148 = scmp.eq.s32.totalorder %s23, 0
      %p149 = por %p147, %p148
      %p150 = scmp.ne.s32.totalorder %s138, %s139
      %p151 = scmp.eq.s32.totalorder %s24, 3
      %p152 = por %p150, %p151
      %p154 = scmp.ne.s32.totalorder %s139, %s153
      %p155 = scmp.eq.s32.totalorder %s24, 0
      %p156 = por %p154, %p155
      %s158 = sadd.s32 %s157, 1
      %p161 = scmp.eq.s32.totalorder %s18, 3
      %p162 = scmp.ne.s32.totalorder %s157, %s159
      %p163 = scmp.eq.s32.totalorder %s18, 0
      %p164 = por %p162, %p163
      %p165 = scmp.ne.s32.totalorder %s157, %s159
      %p166 = scmp.eq.s32.totalorder %s23, 3
      %p167 = por %p165, %p166
      %p168 = scmp.ne.s32.totalorder %s159, %s160
      %p169 = scmp.eq.s32.totalorder %s23, 0
      %p170 = por %p168, %p169
      %p171 = scmp.ne.s32.totalorder %s159, %s160
      %p172 = scmp.eq.s32.totalorder %s24, 3
      %p173 = por %p171, %p172
      %p175 = scmp.ne.s32.totalorder %s160, %s174
      %p176 = scmp.eq.s32.totalorder %s24, 0
      %p177 = por %p175, %p176
      %s179 = sadd.s32 %s178, 1
      %p182 = scmp.eq.s32.totalorder %s18, 3
      %p183 = scmp.ne.s32.totalorder %s178, %s180
      %p184 = scmp.eq.s32.totalorder %s18, 0
      %p185 = por %p183, %p184
      %p186 = scmp.ne.s32.totalorder %s178, %s180
      %p187 = scmp.eq.s32.totalorder %s23, 3
      %p188 = por %p186, %p187
      %p189 = scmp.ne.s32.totalorder %s180, %s181
      %p190 = scmp.eq.s32.totalorder %s23, 0
      %p191 = por %p189, %p190
      %p192 = scmp.ne.s32.totalorder %s180, %s181
      %p193 = scmp.eq.s32.totalorder %s24, 3
      %p194 = por %p192, %p193
      %p196 = scmp.ne.s32.totalorder %s181, %s195
      %p197 = scmp.eq.s32.totalorder %s24, 0
      %p198 = por %p196, %p197
      %s199 = smul.u32 %s26, %s25
      %s200 = smul.u32 %s33, %s37
      %s201 = ssub.s32 %s199, %s200
      %p202 = scmp.eq.s32.totalorder %s201, 0
      %s204 = sadd.s32 %s203, 1
      %s205 = scalar_select %p202, %s203, %s204
      %p208 = pneg %p202
      %p209 = scmp.eq.s32.totalorder %s18, 3
      %p210 = por %p208, %p209
      %p211 = scmp.ne.s32.totalorder %s203, %s206
      %p212 = scmp.eq.s32.totalorder %s18, 0
      %p213 = por %p211, %p212
      %p214 = scmp.ne.s32.totalorder %s203, %s206
      %p215 = scmp.eq.s32.totalorder %s23, 3
      %p216 = por %p214, %p215
      %p217 = scmp.ne.s32.totalorder %s206, %s207
      %p218 = scmp.eq.s32.totalorder %s23, 0
      %p219 = por %p217, %p218
      %p220 = scmp.ne.s32.totalorder %s206, %s207
      %p221 = scmp.eq.s32.totalorder %s24, 3
      %p222 = por %p220, %p221
      %p224 = scmp.ne.s32.totalorder %s207, %s223
      %p225 = scmp.eq.s32.totalorder %s24, 0
      %p226 = por %p224, %p225
      %p227 = scmp.le.s32.totalorder 1, %s18
      %p228 = scmp.lt.s32.totalorder %s18, 5
      %p229 = pnand %p227, %p228
      %p230 = pneg %p229
      // Predicated region
      $region9: #{tpu_custom_call.1} parent=5 // pred_check
        _
      $region10: #{tpu_custom_call.1} parent=5 // pred_check_branch
        %232 = sbr.rel (%p229) target = $region12
      $region11: #{tpu_custom_call.1} parent=5 // pred_region
        %s233 = ssub.s32 %s18, 1
        // Predicated region
        $region13: #{tpu_custom_call.1} parent=11 // pred_check
          %p234 = pneg %p77
        $region14: #{tpu_custom_call.1} parent=11 // pred_check_branch
          %236 = sbr.rel (%p234) target = $region16
        $region15: #{tpu_custom_call.1} parent=11 // pred_region
          %238 = vsyncadd [#allocation8], 0
          %s239 = sshll.u32 %s1, 4
          %s240 = int_to_ptr.hbm [resolvable:$true] %s239
          %s241 = sshll.u32 [#allocation7], 4
          %s242 = int_to_ptr.vmem [resolvable:$true] %s241
          %247 = dma.hbm_to_vmem [thread:$0]  %s240, 2048, %s242, [#allocation8], 128, 128, 8
        $region16: #{tpu_custom_call.1} parent=11 // pred_fallthru
          _
        // Predicated region
        $region17: #{tpu_custom_call.1} parent=11 // pred_check
          %p248 = pneg %p128
        $region18: #{tpu_custom_call.1} parent=11 // pred_check_branch
          %250 = sbr.rel (%p248) target = $region20
        $region19: #{tpu_custom_call.1} parent=11 // pred_region
          %252 = vsyncadd [#allocation11], 0
          %s253 = sshll.u32 %s3, 4
          %s254 = int_to_ptr.hbm [resolvable:$true] %s253
          %s255 = sshll.u32 [#allocation10], 4
          %s256 = int_to_ptr.vmem [resolvable:$true] %s255
          %261 = dma.hbm_to_vmem [thread:$0]  %s254, 512, %s256, [#allocation11], 128, 128, 8
        $region20: #{tpu_custom_call.1} parent=11 // pred_fallthru
          _
        // Predicated region
        $region21: #{tpu_custom_call.1} parent=11 // pred_check
          %p262 = pneg %p149
        $region22: #{tpu_custom_call.1} parent=11 // pred_check_branch
          %264 = sbr.rel (%p262) target = $region24
        $region23: #{tpu_custom_call.1} parent=11 // pred_region
          _
        $region24: #{tpu_custom_call.1} parent=11 // pred_fallthru
          _
        // Predicated region
        $region25: #{tpu_custom_call.1} parent=11 // pred_check
          %p265 = pneg %p170
        $region26: #{tpu_custom_call.1} parent=11 // pred_check_branch
          %267 = sbr.rel (%p265) target = $region28
        $region27: #{tpu_custom_call.1} parent=11 // pred_region
          _
        $region28: #{tpu_custom_call.1} parent=11 // pred_fallthru
          _
        // Predicated region
        $region29: #{tpu_custom_call.1} parent=11 // pred_check
          %p268 = pneg %p191
        $region30: #{tpu_custom_call.1} parent=11 // pred_check_branch
          %270 = sbr.rel (%p268) target = $region32
        $region31: #{tpu_custom_call.1} parent=11 // pred_region
          %272 = vsyncadd [#allocation11], 0
          %s273 = sshll.u32 %s6, 4
          %s274 = int_to_ptr.hbm [resolvable:$true] %s273
          %s275 = sshll.u32 [#allocation12], 4
          %s276 = int_to_ptr.vmem [resolvable:$true] %s275
          %281 = dma.hbm_to_vmem [thread:$0]  %s274, 8192, %s276, [#allocation11], 256, 256, 16
        $region32: #{tpu_custom_call.1} parent=11 // pred_fallthru
          _
      $region12: #{tpu_custom_call.1} parent=5 // pred_fallthru
        _
      %p282 = scmp.lt.s32.totalorder %s18, 4
      // Predicated region
      $region33: #{tpu_custom_call.1} parent=5 // pred_check
        %p283 = pneg %p282
      $region34: #{tpu_custom_call.1} parent=5 // pred_check_branch
        %285 = sbr.rel (%p283) target = $region36
      $region35: #{tpu_custom_call.1} parent=5 // pred_region
        // Predicated region
        $region37: #{tpu_custom_call.1} parent=35 // pred_check
          %p286 = pneg %p50
        $region38: #{tpu_custom_call.1} parent=35 // pred_check_branch
          %288 = sbr.rel (%p286) target = $region40
        $region39: #{tpu_custom_call.1} parent=35 // pred_region
          %s289 = smul.u32 8, %s26
          %p290 = scmp.lt.s32.totalorder %s289, 15
          %s291 = scalar_select %p290, %s289, 15
          %s292 = smul.addr %s291, 4
          %s293 = scalar_lea.vmem %s0, %s292
          %s294 = smul.u32 8, %s26
        $region40: #{tpu_custom_call.1} parent=35 // pred_fallthru
          _
        // Predicated region
        $region41: #{tpu_custom_call.1} parent=35 // pred_check
          %p295 = pneg %p101
        $region42: #{tpu_custom_call.1} parent=35 // pred_check_branch
          %297 = sbr.rel (%p295) target = $region44
        $region43: #{tpu_custom_call.1} parent=35 // pred_region
          %s298 = ssub.s32 1, %s25
          %s299 = smul.u32 %s26, %s298
          %s300 = smul.u32 8, %s299
          %p301 = scmp.lt.s32.totalorder %s300, 15
          %s302 = scalar_select %p301, %s300, 15
          %s303 = smul.addr %s302, 4
          %s304 = scalar_lea.vmem %s2, %s303
          %s305 = ssub.s32 1, %s25
          %s306 = smul.u32 %s26, %s305
          %s307 = smul.u32 8, %s306
        $region44: #{tpu_custom_call.1} parent=35 // pred_fallthru
          _
      $region36: #{tpu_custom_call.1} parent=5 // pred_fallthru
        _
      %p308 = scmp.le.s32.totalorder 1, %s18
      %p309 = scmp.lt.s32.totalorder %s18, 5
      %p310 = pnand %p308, %p309
      %p311 = pneg %p310
      // Predicated region
      $region45: #{tpu_custom_call.1} parent=5 // pred_check
        _
      $region46: #{tpu_custom_call.1} parent=5 // pred_check_branch
        %313 = sbr.rel (%p310) target = $region48
      $region47: #{tpu_custom_call.1} parent=5 // pred_region
        %s314 = ssub.s32 %s18, 1
        // Predicated region
        $region49: #{tpu_custom_call.1} parent=47 // pred_check
          %p315 = pneg %p77
        $region50: #{tpu_custom_call.1} parent=47 // pred_check_branch
          %317 = sbr.rel (%p315) target = $region52
        $region51: #{tpu_custom_call.1} parent=47 // pred_region
          %319 = dma.done [#allocation8], 2048
        $region52: #{tpu_custom_call.1} parent=47 // pred_fallthru
          _
        // Predicated region
        $region53: #{tpu_custom_call.1} parent=47 // pred_check
          %p320 = pneg %p128
        $region54: #{tpu_custom_call.1} parent=47 // pred_check_branch
          %322 = sbr.rel (%p320) target = $region56
        $region55: #{tpu_custom_call.1} parent=47 // pred_region
          %324 = dma.done [#allocation11], 512
        $region56: #{tpu_custom_call.1} parent=47 // pred_fallthru
          _
        // Predicated region
        $region57: #{tpu_custom_call.1} parent=47 // pred_check
          %p325 = pneg %p191
        $region58: #{tpu_custom_call.1} parent=47 // pred_check_branch
          %327 = sbr.rel (%p325) target = $region60
        $region59: #{tpu_custom_call.1} parent=47 // pred_region
          %329 = dma.done [#allocation11], 8192
        $region60: #{tpu_custom_call.1} parent=47 // pred_fallthru
          _
        %s330 = smul.u32 8, %s28
        %p331 = scmp.lt.s32.totalorder %s330, 15
        %s332 = scalar_select %p331, %s330, 15
        %s333 = smul.addr %s332, 4
        %s334 = scalar_lea.vmem %s0, %s333
        %p335 = pneg %p56
        %p336 = pneg %p53
        %p337 = pneg %p77
        %p338 = pneg %p74
        %s339 = ssub.s32 1, %s27
        %s340 = smul.u32 %s28, %s339
        %s341 = smul.u32 8, %s340
        %p342 = scmp.lt.s32.totalorder %s341, 15
        %s343 = scalar_select %p342, %s341, 15
        %s344 = smul.addr %s343, 4
        %s345 = scalar_lea.vmem %s2, %s344
        %p346 = pneg %p107
        %p347 = pneg %p104
        %p348 = pneg %p128
        %p349 = pneg %p125
        %p350 = pneg %p149
        %p351 = pneg %p146
        %p352 = pneg %p170
        %p353 = pneg %p167
        %p354 = pneg %p191
        %p355 = pneg %p188
        %p356 = pneg %p219
        %p357 = pneg %p216
        %s358 = sand.u32 %s206, 1
        %s359 = scalar_lea.sflag [#allocation9], %s358
        %s360 = sand.u32 %s206, 1
        %s361 = smul.addr %s360, 128
        %s362 = scalar_lea.vmem [#allocation13], %s361
        %s363 = smul.u32 8, %s28
        %p364 = scmp.lt.s32.totalorder %s363, 15
        %s365 = scalar_select %p364, %s363, 15
        %s366 = smul.addr %s365, 4
        %s367 = scalar_lea.vmem %s0, %s366
        %s368 = smul.u32 8, %s28
        %s369 = ssub.s32 1, %s27
        %s370 = smul.u32 %s28, %s369
        %s371 = smul.u32 8, %s370
        %p372 = scmp.lt.s32.totalorder %s371, 15
        %s373 = scalar_select %p372, %s371, 15
        %s374 = smul.addr %s373, 4
        %s375 = scalar_lea.vmem %s2, %s374
        %s376 = ssub.s32 1, %s27
        %s377 = smul.u32 %s28, %s376
        %s378 = smul.u32 8, %s377
        %s379 = smul.u32 %s28, %s27
        %s380 = smul.u32 8, %s379
        %v382 = vld [vmem:[%s367] sm:$0xf]
        %v383 = vld [vmem:[%s367 + $0x4] sm:$0xf]
        %v384 = vld [vmem:[%s367 + $0x8] sm:$0xf]
        %v385 = vld [vmem:[%s367 + $0xc] sm:$0xf]
        %v386 = vld [vmem:[%s367 + $0x10] sm:$0xf]
        %v387 = vld [vmem:[%s367 + $0x14] sm:$0xf]
        %v388 = vld [vmem:[%s367 + $0x18] sm:$0xf]
        %v389 = vld [vmem:[%s367 + $0x1c] sm:$0xf]
        %v390 = vld [vmem:[#allocation7] sm:$0xff]
        %v391 = vld [vmem:[#allocation7 + $0x8] sm:$0xff]
        %v392 = vld [vmem:[#allocation7 + $0x10] sm:$0xff]
        %v393 = vld [vmem:[#allocation7 + $0x18] sm:$0xff]
        %v394 = vld [vmem:[#allocation7 + $0x20] sm:$0xff]
        %v395 = vld [vmem:[#allocation7 + $0x28] sm:$0xff]
        %v396 = vld [vmem:[#allocation7 + $0x30] sm:$0xff]
        %v397 = vld [vmem:[#allocation7 + $0x38] sm:$0xff]
        %v398 = vld [vmem:[#allocation7 + $0x40] sm:$0xff]
        %v399 = vld [vmem:[#allocation7 + $0x48] sm:$0xff]
        %v400 = vld [vmem:[#allocation7 + $0x50] sm:$0xff]
        %v401 = vld [vmem:[#allocation7 + $0x58] sm:$0xff]
        %v402 = vld [vmem:[#allocation7 + $0x60] sm:$0xff]
        %v403 = vld [vmem:[#allocation7 + $0x68] sm:$0xff]
        %v404 = vld [vmem:[#allocation7 + $0x70] sm:$0xff]
        %v405 = vld [vmem:[#allocation7 + $0x78] sm:$0xff]
        %v414 = vunpack.c.l.b16 %v382
        %v415 = vunpack.c.l.b16 %v383
        %v416 = vunpack.c.l.b16 %v384
        %v417 = vunpack.c.l.b16 %v385
        %v418 = vunpack.c.l.b16 %v386
        %v419 = vunpack.c.l.b16 %v387
        %v420 = vunpack.c.l.b16 %v388
        %v421 = vunpack.c.l.b16 %v389
        %v422 = vpack.c.b16 %v415, %v414
        %v423 = vpack.c.b16 %v417, %v416
        %v424 = vpack.c.b16 %v419, %v418
        %v425 = vpack.c.b16 %v421, %v420
        %v446 = vunpack.c.l.b16 %v390
        %v447 = vunpack.c.h.b16 %v390
        %v448 = vunpack.c.l.b16 %v391
        %v449 = vunpack.c.h.b16 %v391
        %v450 = vunpack.c.l.b16 %v392
        %v451 = vunpack.c.h.b16 %v392
        %v452 = vunpack.c.l.b16 %v393
        %v453 = vunpack.c.h.b16 %v393
        %v454 = vunpack.c.l.b16 %v394
        %v455 = vunpack.c.h.b16 %v394
        %v456 = vunpack.c.l.b16 %v395
        %v457 = vunpack.c.h.b16 %v395
        %v458 = vunpack.c.l.b16 %v396
        %v459 = vunpack.c.h.b16 %v396
        %v460 = vunpack.c.l.b16 %v397
        %v461 = vunpack.c.h.b16 %v397
        %v462 = vunpack.c.l.b16 %v398
        %v463 = vunpack.c.h.b16 %v398
        %v464 = vunpack.c.l.b16 %v399
        %v465 = vunpack.c.h.b16 %v399
        %v466 = vunpack.c.l.b16 %v400
        %v467 = vunpack.c.h.b16 %v400
        %v468 = vunpack.c.l.b16 %v401
        %v469 = vunpack.c.h.b16 %v401
        %v470 = vunpack.c.l.b16 %v402
        %v471 = vunpack.c.h.b16 %v402
        %v472 = vunpack.c.l.b16 %v403
        %v473 = vunpack.c.h.b16 %v403
        %v474 = vunpack.c.l.b16 %v404
        %v475 = vunpack.c.h.b16 %v404
        %v476 = vunpack.c.l.b16 %v405
        %v477 = vunpack.c.h.b16 %v405
        %v478 = vpack.c.b16 %v448, %v446
        %v479 = vpack.c.b16 %v449, %v447
        %v480 = vpack.c.b16 %v452, %v450
        %v481 = vpack.c.b16 %v453, %v451
        %v482 = vpack.c.b16 %v456, %v454
        %v483 = vpack.c.b16 %v457, %v455
        %v484 = vpack.c.b16 %v460, %v458
        %v485 = vpack.c.b16 %v461, %v459
        %v486 = vpack.c.b16 %v464, %v462
        %v487 = vpack.c.b16 %v465, %v463
        %v488 = vpack.c.b16 %v468, %v466
        %v489 = vpack.c.b16 %v469, %v467
        %v490 = vpack.c.b16 %v472, %v470
        %v491 = vpack.c.b16 %v473, %v471
        %v492 = vpack.c.b16 %v476, %v474
        %v493 = vpack.c.b16 %v477, %v475
        %510 = vmatpush.bf16.msra.mxu0 %v492
        %511 = vmatpush.bf16.msra.mxu0 %v490
        %512 = vmatpush.bf16.msra.mxu0 %v488
        %513 = vmatpush.bf16.msra.mxu0 %v486
        %514 = vmatpush.bf16.msra.mxu0 %v484
        %515 = vmatpush.bf16.msra.mxu0 %v482
        %516 = vmatpush.bf16.msra.mxu0 %v480
        %517 = vmatpush.bf16.msra.mxu0 %v478
        %518 = vmatmul.bf16.gmra.mxu0 %v422
        %v519 = vpop.f32.mrf.mxu0
        %v520 = vadd.f32 0.0, %v519
        %v521 = vpop.f32.mrf.mxu0
        %v522 = vadd.f32 0.0, %v521
        %523 = vmatmul.bf16.gmra.mxu0 %v423
        %v524 = vpop.f32.mrf.mxu0
        %v525 = vadd.f32 0.0, %v524
        %v526 = vpop.f32.mrf.mxu0
        %v527 = vadd.f32 0.0, %v526
        %528 = vmatmul.bf16.gmra.mxu0 %v424
        %v529 = vpop.f32.mrf.mxu0
        %v530 = vadd.f32 0.0, %v529
        %v531 = vpop.f32.mrf.mxu0
        %v532 = vadd.f32 0.0, %v531
        %533 = vmatmul.bf16.gmra.mxu0 %v425
        %v534 = vpop.f32.mrf.mxu0
        %v535 = vadd.f32 0.0, %v534
        %v536 = vpop.f32.mrf.mxu0
        %v537 = vadd.f32 0.0, %v536
        %538 = vdwg.mxu0
        %539 = vmatpush.bf16.msra.mxu0 %v493
        %540 = vmatpush.bf16.msra.mxu0 %v491
        %541 = vmatpush.bf16.msra.mxu0 %v489
        %542 = vmatpush.bf16.msra.mxu0 %v487
        %543 = vmatpush.bf16.msra.mxu0 %v485
        %544 = vmatpush.bf16.msra.mxu0 %v483
        %545 = vmatpush.bf16.msra.mxu0 %v481
        %546 = vmatpush.bf16.msra.mxu0 %v479
        %547 = vmatmul.bf16.gmra.mxu0 %v422
        %v548 = vpop.f32.mrf.mxu0
        %v549 = vadd.f32 0.0, %v548
        %v550 = vpop.f32.mrf.mxu0
        %v551 = vadd.f32 0.0, %v550
        %552 = vmatmul.bf16.gmra.mxu0 %v423
        %v553 = vpop.f32.mrf.mxu0
        %v554 = vadd.f32 0.0, %v553
        %v555 = vpop.f32.mrf.mxu0
        %v556 = vadd.f32 0.0, %v555
        %557 = vmatmul.bf16.gmra.mxu0 %v424
        %v558 = vpop.f32.mrf.mxu0
        %v559 = vadd.f32 0.0, %v558
        %v560 = vpop.f32.mrf.mxu0
        %v561 = vadd.f32 0.0, %v560
        %562 = vmatmul.bf16.gmra.mxu0 %v425
        %v563 = vpop.f32.mrf.mxu0
        %v564 = vadd.f32 0.0, %v563
        %v565 = vpop.f32.mrf.mxu0
        %v566 = vadd.f32 0.0, %v565
        %567 = vdwg.mxu0
        %p568 = scmp.eq.s32.totalorder %s27, 0
        // Predicated region
        $region61: #{tpu_custom_call.1} parent=47 // pred_check
          %p569 = pneg %p568
        $region62: #{tpu_custom_call.1} parent=47 // pred_check_branch
          %571 = sbr.rel (%p569) target = $region64
        $region63: #{tpu_custom_call.1} parent=47 // pred_region
          %v572 = vld [vmem:[%s375] sm:$0xf]
          %v573 = vld [vmem:[%s375 + $0x4] sm:$0xf]
          %v574 = vld [vmem:[%s375 + $0x8] sm:$0xf]
          %v575 = vld [vmem:[%s375 + $0xc] sm:$0xf]
          %v576 = vld [vmem:[%s375 + $0x10] sm:$0xf]
          %v577 = vld [vmem:[%s375 + $0x14] sm:$0xf]
          %v578 = vld [vmem:[%s375 + $0x18] sm:$0xf]
          %v579 = vld [vmem:[%s375 + $0x1c] sm:$0xf]
          %v580 = vld [vmem:[#allocation10] sm:$0xff]
          %v581 = vld [vmem:[#allocation10 + $0x8] sm:$0xff]
          %v582 = vld [vmem:[#allocation10 + $0x10] sm:$0xff]
          %v583 = vld [vmem:[#allocation10 + $0x18] sm:$0xff]
          %v592 = vunpack.c.l.b16 %v572
          %v593 = vunpack.c.l.b16 %v573
          %v594 = vunpack.c.l.b16 %v574
          %v595 = vunpack.c.l.b16 %v575
          %v596 = vunpack.c.l.b16 %v576
          %v597 = vunpack.c.l.b16 %v577
          %v598 = vunpack.c.l.b16 %v578
          %v599 = vunpack.c.l.b16 %v579
          %v600 = vpack.c.b16 %v593, %v592
          %v601 = vpack.c.b16 %v595, %v594
          %v602 = vpack.c.b16 %v597, %v596
          %v603 = vpack.c.b16 %v599, %v598
          %v608 = vunpack.c.l.b16 %v580
          %v609 = vunpack.c.h.b16 %v580
          %v610 = vunpack.c.l.b16 %v581
          %v611 = vunpack.c.h.b16 %v581
          %v612 = vunpack.c.l.b16 %v582
          %v613 = vunpack.c.h.b16 %v582
          %v614 = vunpack.c.l.b16 %v583
          %v615 = vunpack.c.h.b16 %v583
          %v616 = vpack.c.b16 %v610, %v608
          %v617 = vpack.c.b16 %v611, %v609
          %v618 = vpack.c.b16 %v614, %v612
          %v619 = vpack.c.b16 %v615, %v613
          %vm624 = vcmask 261120
          %v626 = vsel %vm624, %v600, 0
          %v629 = vsel %vm624, %v601, 0
          %v632 = vsel %vm624, %v602, 0
          %v635 = vsel %vm624, %v603, 0
          %637 = vmatpush.bf16.msra.mxu0 0
          %638 = vmatpush.bf16.msra.mxu0 0
          %639 = vmatpush.bf16.msra.mxu0 0
          %640 = vmatpush.bf16.msra.mxu0 0
          %641 = vmatpush.bf16.msra.mxu0 0
          %642 = vmatpush.bf16.msra.mxu0 0
          %643 = vmatpush.bf16.msra.mxu0 %v618
          %644 = vmatpush.bf16.msra.mxu0 %v616
          %645 = vmatmul.bf16.gmra.mxu0 %v626
          %v646 = vpop.f32.mrf.mxu0
          %v647 = vadd.f32 0.0, %v646
          %v648 = vpop.f32.mrf.mxu0
          %v649 = vadd.f32 0.0, %v648
          %650 = vmatmul.bf16.gmra.mxu0 %v629
          %v651 = vpop.f32.mrf.mxu0
          %v652 = vadd.f32 0.0, %v651
          %v653 = vpop.f32.mrf.mxu0
          %v654 = vadd.f32 0.0, %v653
          %655 = vmatmul.bf16.gmra.mxu0 %v632
          %v656 = vpop.f32.mrf.mxu0
          %v657 = vadd.f32 0.0, %v656
          %v658 = vpop.f32.mrf.mxu0
          %v659 = vadd.f32 0.0, %v658
          %660 = vmatmul.bf16.gmra.mxu0 %v635
          %v661 = vpop.f32.mrf.mxu0
          %v662 = vadd.f32 0.0, %v661
          %v663 = vpop.f32.mrf.mxu0
          %v664 = vadd.f32 0.0, %v663
          %665 = vdwg.mxu0
          %666 = vmatpush.bf16.msra.mxu0 0
          %667 = vmatpush.bf16.msra.mxu0 0
          %668 = vmatpush.bf16.msra.mxu0 0
          %669 = vmatpush.bf16.msra.mxu0 0
          %670 = vmatpush.bf16.msra.mxu0 0
          %671 = vmatpush.bf16.msra.mxu0 0
          %672 = vmatpush.bf16.msra.mxu0 %v619
          %673 = vmatpush.bf16.msra.mxu0 %v617
          %674 = vmatmul.bf16.gmra.mxu0 %v626
          %v675 = vpop.f32.mrf.mxu0
          %v676 = vadd.f32 0.0, %v675
          %v677 = vpop.f32.mrf.mxu0
          %v678 = vadd.f32 0.0, %v677
          %679 = vmatmul.bf16.gmra.mxu0 %v629
          %v680 = vpop.f32.mrf.mxu0
          %v681 = vadd.f32 0.0, %v680
          %v682 = vpop.f32.mrf.mxu0
          %v683 = vadd.f32 0.0, %v682
          %684 = vmatmul.bf16.gmra.mxu0 %v632
          %v685 = vpop.f32.mrf.mxu0
          %v686 = vadd.f32 0.0, %v685
          %v687 = vpop.f32.mrf.mxu0
          %v688 = vadd.f32 0.0, %v687
          %689 = vmatmul.bf16.gmra.mxu0 %v635
          %v690 = vpop.f32.mrf.mxu0
          %v691 = vadd.f32 0.0, %v690
          %v692 = vpop.f32.mrf.mxu0
          %v693 = vadd.f32 0.0, %v692
          %694 = vdwg.mxu0
          %p695 = scmp.eq.s32.totalorder %s28, 0
          // Predicated region
          $region65: #{tpu_custom_call.1} parent=63 // pred_check
            %p696 = pneg %p695
          $region66: #{tpu_custom_call.1} parent=63 // pred_check_branch
            %698 = sbr.rel (%p696) target = $region68
          $region67: #{tpu_custom_call.1} parent=63 // pred_region
            %699 = vst [vmem:[%s362] sm:$0xff] 0.0
            %700 = vst [vmem:[%s362 + $0x8] sm:$0xff] 0.0
            %701 = vst [vmem:[%s362 + $0x10] sm:$0xff] 0.0
            %702 = vst [vmem:[%s362 + $0x18] sm:$0xff] 0.0
            %703 = vst [vmem:[%s362 + $0x20] sm:$0xff] 0.0
            %704 = vst [vmem:[%s362 + $0x28] sm:$0xff] 0.0
            %705 = vst [vmem:[%s362 + $0x30] sm:$0xff] 0.0
            %706 = vst [vmem:[%s362 + $0x38] sm:$0xff] 0.0
            %707 = vst [vmem:[%s362 + $0x40] sm:$0xff] 0.0
            %708 = vst [vmem:[%s362 + $0x48] sm:$0xff] 0.0
            %709 = vst [vmem:[%s362 + $0x50] sm:$0xff] 0.0
            %710 = vst [vmem:[%s362 + $0x58] sm:$0xff] 0.0
            %711 = vst [vmem:[%s362 + $0x60] sm:$0xff] 0.0
            %712 = vst [vmem:[%s362 + $0x68] sm:$0xff] 0.0
            %713 = vst [vmem:[%s362 + $0x70] sm:$0xff] 0.0
            %714 = vst [vmem:[%s362 + $0x78] sm:$0xff] 0.0
            %v715 = vlaneseq
            %vm716 = vcmp.ge.s32.totalorder %v715, 0
            %vm717 = vcmp.lt.s32.totalorder %v715, 256
            %vm718 = vmand %vm716, %vm717
            %719 = vst.msk [vmem:[#allocation2] sm:$0x3] %vm718, 0.0
            %720 = vst.msk [vmem:[#allocation3] sm:$0x3] %vm718, 0.0
            %v721 = vmul.f32 %v520, %v647
            %v722 = vmul.f32 %v549, %v676
            %v723 = vmul.f32 %v522, %v649
            %v724 = vmul.f32 %v551, %v678
            %v725 = vmul.f32 %v525, %v652
            %v726 = vmul.f32 %v554, %v681
            %v727 = vmul.f32 %v527, %v654
            %v728 = vmul.f32 %v556, %v683
            %v729 = vmul.f32 %v530, %v657
            %v730 = vmul.f32 %v559, %v686
            %v731 = vmul.f32 %v532, %v659
            %v732 = vmul.f32 %v561, %v688
            %v733 = vmul.f32 %v535, %v662
            %v734 = vmul.f32 %v564, %v691
            %v735 = vmul.f32 %v537, %v664
            %v736 = vmul.f32 %v566, %v693
            %v737 = vadd.f32 %v721, %v723
            %v738 = vadd.f32 %v737, %v725
            %v739 = vadd.f32 %v738, %v727
            %v740 = vadd.f32 %v739, %v729
            %v741 = vadd.f32 %v740, %v731
            %v742 = vadd.f32 %v741, %v733
            %v743 = vadd.f32 %v742, %v735
            %v744 = vrot.slane %v743, 4
            %v745 = vadd.f32 %v743, %v744
            %v746 = vrot.slane %v745, 2
            %v747 = vadd.f32 %v745, %v746
            %v748 = vrot.slane %v747, 1
            %v749 = vadd.f32 %v747, %v748
            %v750 = vadd.f32 %v722, %v724
            %v751 = vadd.f32 %v750, %v726
            %v752 = vadd.f32 %v751, %v728
            %v753 = vadd.f32 %v752, %v730
            %v754 = vadd.f32 %v753, %v732
            %v755 = vadd.f32 %v754, %v734
            %v756 = vadd.f32 %v755, %v736
            %v757 = vrot.slane %v756, 4
            %v758 = vadd.f32 %v756, %v757
            %v759 = vrot.slane %v758, 2
            %v760 = vadd.f32 %v758, %v759
            %v761 = vrot.slane %v760, 1
            %v762 = vadd.f32 %v760, %v761
            %v763 = vadd.f32 %v647, %v649
            %v764 = vadd.f32 %v763, %v652
            %v765 = vadd.f32 %v764, %v654
            %v766 = vadd.f32 %v765, %v657
            %v767 = vadd.f32 %v766, %v659
            %v768 = vadd.f32 %v767, %v662
            %v769 = vadd.f32 %v768, %v664
            %v770 = vrot.slane %v769, 4
            %v771 = vadd.f32 %v769, %v770
            %v772 = vrot.slane %v771, 2
            %v773 = vadd.f32 %v771, %v772
            %v774 = vrot.slane %v773, 1
            %v775 = vadd.f32 %v773, %v774
            %v776 = vadd.f32 %v676, %v678
            %v777 = vadd.f32 %v776, %v681
            %v778 = vadd.f32 %v777, %v683
            %v779 = vadd.f32 %v778, %v686
            %v780 = vadd.f32 %v779, %v688
            %v781 = vadd.f32 %v780, %v691
            %v782 = vadd.f32 %v781, %v693
            %v783 = vrot.slane %v782, 4
            %v784 = vadd.f32 %v782, %v783
            %v785 = vrot.slane %v784, 2
            %v786 = vadd.f32 %v784, %v785
            %v787 = vrot.slane %v786, 1
            %v788 = vadd.f32 %v786, %v787
            %v789 = vld [vmem:[#allocation12] sm:$0xff]
            %v790 = vld [vmem:[#allocation12 + $0x8] sm:$0xff]
            %v791 = vld [vmem:[#allocation12 + $0x10] sm:$0xff]
            %v792 = vld [vmem:[#allocation12 + $0x18] sm:$0xff]
            %v793 = vld [vmem:[#allocation12 + $0x20] sm:$0xff]
            %v794 = vld [vmem:[#allocation12 + $0x28] sm:$0xff]
            %v795 = vld [vmem:[#allocation12 + $0x30] sm:$0xff]
            %v796 = vld [vmem:[#allocation12 + $0x38] sm:$0xff]
            %v797 = vld [vmem:[#allocation12 + $0x40] sm:$0xff]
            %v798 = vld [vmem:[#allocation12 + $0x48] sm:$0xff]
            %v799 = vld [vmem:[#allocation12 + $0x50] sm:$0xff]
            %v800 = vld [vmem:[#allocation12 + $0x58] sm:$0xff]
            %v801 = vld [vmem:[#allocation12 + $0x60] sm:$0xff]
            %v802 = vld [vmem:[#allocation12 + $0x68] sm:$0xff]
            %v803 = vld [vmem:[#allocation12 + $0x70] sm:$0xff]
            %v804 = vld [vmem:[#allocation12 + $0x78] sm:$0xff]
            %v805 = vld [vmem:[#allocation12 + $0x80] sm:$0xff]
            %v806 = vld [vmem:[#allocation12 + $0x88] sm:$0xff]
            %v807 = vld [vmem:[#allocation12 + $0x90] sm:$0xff]
            %v808 = vld [vmem:[#allocation12 + $0x98] sm:$0xff]
            %v809 = vld [vmem:[#allocation12 + $0xa0] sm:$0xff]
            %v810 = vld [vmem:[#allocation12 + $0xa8] sm:$0xff]
            %v811 = vld [vmem:[#allocation12 + $0xb0] sm:$0xff]
            %v812 = vld [vmem:[#allocation12 + $0xb8] sm:$0xff]
            %v813 = vld [vmem:[#allocation12 + $0xc0] sm:$0xff]
            %v814 = vld [vmem:[#allocation12 + $0xc8] sm:$0xff]
            %v815 = vld [vmem:[#allocation12 + $0xd0] sm:$0xff]
            %v816 = vld [vmem:[#allocation12 + $0xd8] sm:$0xff]
            %v817 = vld [vmem:[#allocation12 + $0xe0] sm:$0xff]
            %v818 = vld [vmem:[#allocation12 + $0xe8] sm:$0xff]
            %v819 = vld [vmem:[#allocation12 + $0xf0] sm:$0xff]
            %v820 = vld [vmem:[#allocation12 + $0xf8] sm:$0xff]
            %v821 = vld [vmem:[#allocation12 + $0x100] sm:$0xff]
            %v822 = vld [vmem:[#allocation12 + $0x108] sm:$0xff]
            %v823 = vld [vmem:[#allocation12 + $0x110] sm:$0xff]
            %v824 = vld [vmem:[#allocation12 + $0x118] sm:$0xff]
            %v825 = vld [vmem:[#allocation12 + $0x120] sm:$0xff]
            %v826 = vld [vmem:[#allocation12 + $0x128] sm:$0xff]
            %v827 = vld [vmem:[#allocation12 + $0x130] sm:$0xff]
            %v828 = vld [vmem:[#allocation12 + $0x138] sm:$0xff]
            %v829 = vld [vmem:[#allocation12 + $0x140] sm:$0xff]
            %v830 = vld [vmem:[#allocation12 + $0x148] sm:$0xff]
            %v831 = vld [vmem:[#allocation12 + $0x150] sm:$0xff]
            %v832 = vld [vmem:[#allocation12 + $0x158] sm:$0xff]
            %v833 = vld [vmem:[#allocation12 + $0x160] sm:$0xff]
            %v834 = vld [vmem:[#allocation12 + $0x168] sm:$0xff]
            %v835 = vld [vmem:[#allocation12 + $0x170] sm:$0xff]
            %v836 = vld [vmem:[#allocation12 + $0x178] sm:$0xff]
            %v837 = vld [vmem:[#allocation12 + $0x180] sm:$0xff]
            %v838 = vld [vmem:[#allocation12 + $0x188] sm:$0xff]
            %v839 = vld [vmem:[#allocation12 + $0x190] sm:$0xff]
            %v840 = vld [vmem:[#allocation12 + $0x198] sm:$0xff]
            %v841 = vld [vmem:[#allocation12 + $0x1a0] sm:$0xff]
            %v842 = vld [vmem:[#allocation12 + $0x1a8] sm:$0xff]
            %v843 = vld [vmem:[#allocation12 + $0x1b0] sm:$0xff]
            %v844 = vld [vmem:[#allocation12 + $0x1b8] sm:$0xff]
            %v845 = vld [vmem:[#allocation12 + $0x1c0] sm:$0xff]
            %v846 = vld [vmem:[#allocation12 + $0x1c8] sm:$0xff]
            %v847 = vld [vmem:[#allocation12 + $0x1d0] sm:$0xff]
            %v848 = vld [vmem:[#allocation12 + $0x1d8] sm:$0xff]
            %v849 = vld [vmem:[#allocation12 + $0x1e0] sm:$0xff]
            %v850 = vld [vmem:[#allocation12 + $0x1e8] sm:$0xff]
            %v851 = vld [vmem:[#allocation12 + $0x1f0] sm:$0xff]
            %v852 = vld [vmem:[#allocation12 + $0x1f8] sm:$0xff]
            %v853 = vand.u32 %v819, 4294901760
            %854 = vmatpush.msra.mxu0 %v853
            %v855 = vand.u32 %v817, 4294901760
            %856 = vmatpush.msra.mxu0 %v855
            %v857 = vand.u32 %v815, 4294901760
            %858 = vmatpush.msra.mxu0 %v857
            %v859 = vand.u32 %v813, 4294901760
            %860 = vmatpush.msra.mxu0 %v859
            %v861 = vand.u32 %v811, 4294901760
            %862 = vmatpush.msra.mxu0 %v861
            %v863 = vand.u32 %v809, 4294901760
            %864 = vmatpush.msra.mxu0 %v863
            %v865 = vand.u32 %v807, 4294901760
            %866 = vmatpush.msra.mxu0 %v865
            %v867 = vand.u32 %v805, 4294901760
            %868 = vmatpush.msra.mxu0 %v867
            %v869 = vand.u32 %v803, 4294901760
            %870 = vmatpush.msra.mxu0 %v869
            %v871 = vand.u32 %v801, 4294901760
            %872 = vmatpush.msra.mxu0 %v871
            %v873 = vand.u32 %v799, 4294901760
            %874 = vmatpush.msra.mxu0 %v873
            %v875 = vand.u32 %v797, 4294901760
            %876 = vmatpush.msra.mxu0 %v875
            %v877 = vand.u32 %v795, 4294901760
            %878 = vmatpush.msra.mxu0 %v877
            %v879 = vand.u32 %v793, 4294901760
            %880 = vmatpush.msra.mxu0 %v879
            %v881 = vand.u32 %v791, 4294901760
            %882 = vmatpush.msra.mxu0 %v881
            %v883 = vand.u32 %v789, 4294901760
            %884 = vmatpush.msra.mxu0 %v883
            %v885 = vand.u32 %v749, 4294901760
            %v886 = vsub.f32 %v749, %v885
            %v887 = vand.u32 %v886, 4294901760
            %v888 = vsub.f32 %v886, %v887
            %v889 = vand.u32 %v888, 4294901760
            %890 = vmatmul.f32.gmra.mxu0 %v889
            %v891 = vpop.f32.mrf.mxu0
            %v892 = vadd.f32 0.0, %v891
            %893 = vdwg.mxu0
            %v894 = vand.u32 %v819, 4294901760
            %v895 = vsub.f32 %v819, %v894
            %v896 = vand.u32 %v895, 4294901760
            %v897 = vsub.f32 %v895, %v896
            %v898 = vand.u32 %v897, 4294901760
            %899 = vmatpush.msra.mxu0 %v898
            %v900 = vand.u32 %v817, 4294901760
            %v901 = vsub.f32 %v817, %v900
            %v902 = vand.u32 %v901, 4294901760
            %v903 = vsub.f32 %v901, %v902
            %v904 = vand.u32 %v903, 4294901760
            %905 = vmatpush.msra.mxu0 %v904
            %v906 = vand.u32 %v815, 4294901760
            %v907 = vsub.f32 %v815, %v906
            %v908 = vand.u32 %v907, 4294901760
            %v909 = vsub.f32 %v907, %v908
            %v910 = vand.u32 %v909, 4294901760
            %911 = vmatpush.msra.mxu0 %v910
            %v912 = vand.u32 %v813, 4294901760
            %v913 = vsub.f32 %v813, %v912
            %v914 = vand.u32 %v913, 4294901760
            %v915 = vsub.f32 %v913, %v914
            %v916 = vand.u32 %v915, 4294901760
            %917 = vmatpush.msra.mxu0 %v916
            %v918 = vand.u32 %v811, 4294901760
            %v919 = vsub.f32 %v811, %v918
            %v920 = vand.u32 %v919, 4294901760
            %v921 = vsub.f32 %v919, %v920
            %v922 = vand.u32 %v921, 4294901760
            %923 = vmatpush.msra.mxu0 %v922
            %v924 = vand.u32 %v809, 4294901760
            %v925 = vsub.f32 %v809, %v924
            %v926 = vand.u32 %v925, 4294901760
            %v927 = vsub.f32 %v925, %v926
            %v928 = vand.u32 %v927, 4294901760
            %929 = vmatpush.msra.mxu0 %v928
            %v930 = vand.u32 %v807, 4294901760
            %v931 = vsub.f32 %v807, %v930
            %v932 = vand.u32 %v931, 4294901760
            %v933 = vsub.f32 %v931, %v932
            %v934 = vand.u32 %v933, 4294901760
            %935 = vmatpush.msra.mxu0 %v934
            %v936 = vand.u32 %v805, 4294901760
            %v937 = vsub.f32 %v805, %v936
            %v938 = vand.u32 %v937, 4294901760
            %v939 = vsub.f32 %v937, %v938
            %v940 = vand.u32 %v939, 4294901760
            %941 = vmatpush.msra.mxu0 %v940
            %v942 = vand.u32 %v803, 4294901760
            %v943 = vsub.f32 %v803, %v942
            %v944 = vand.u32 %v943, 4294901760
            %v945 = vsub.f32 %v943, %v944
            %v946 = vand.u32 %v945, 4294901760
            %947 = vmatpush.msra.mxu0 %v946
            %v948 = vand.u32 %v801, 4294901760
            %v949 = vsub.f32 %v801, %v948
            %v950 = vand.u32 %v949, 4294901760
            %v951 = vsub.f32 %v949, %v950
            %v952 = vand.u32 %v951, 4294901760
            %953 = vmatpush.msra.mxu0 %v952
            %v954 = vand.u32 %v799, 4294901760
            %v955 = vsub.f32 %v799, %v954
            %v956 = vand.u32 %v955, 4294901760
            %v957 = vsub.f32 %v955, %v956
            %v958 = vand.u32 %v957, 4294901760
            %959 = vmatpush.msra.mxu0 %v958
            %v960 = vand.u32 %v797, 4294901760
            %v961 = vsub.f32 %v797, %v960
            %v962 = vand.u32 %v961, 4294901760
            %v963 = vsub.f32 %v961, %v962
            %v964 = vand.u32 %v963, 4294901760
            %965 = vmatpush.msra.mxu0 %v964
            %v966 = vand.u32 %v795, 4294901760
            %v967 = vsub.f32 %v795, %v966
            %v968 = vand.u32 %v967, 4294901760
            %v969 = vsub.f32 %v967, %v968
            %v970 = vand.u32 %v969, 4294901760
            %971 = vmatpush.msra.mxu0 %v970
            %v972 = vand.u32 %v793, 4294901760
            %v973 = vsub.f32 %v793, %v972
            %v974 = vand.u32 %v973, 4294901760
            %v975 = vsub.f32 %v973, %v974
            %v976 = vand.u32 %v975, 4294901760
            %977 = vmatpush.msra.mxu0 %v976
            %v978 = vand.u32 %v791, 4294901760
            %v979 = vsub.f32 %v791, %v978
            %v980 = vand.u32 %v979, 4294901760
            %v981 = vsub.f32 %v979, %v980
            %v982 = vand.u32 %v981, 4294901760
            %983 = vmatpush.msra.mxu0 %v982
            %v984 = vand.u32 %v789, 4294901760
            %v985 = vsub.f32 %v789, %v984
            %v986 = vand.u32 %v985, 4294901760
            %v987 = vsub.f32 %v985, %v986
            %v988 = vand.u32 %v987, 4294901760
            %989 = vmatpush.msra.mxu0 %v988
            %v990 = vand.u32 %v749, 4294901760
            %991 = vmatmul.f32.gmra.mxu0 %v990
            %v992 = vpop.f32.mrf.mxu0
            %v993 = vadd.f32 %v892, %v992
            %994 = vdwg.mxu0
            %v995 = vand.u32 %v819, 4294901760
            %v996 = vsub.f32 %v819, %v995
            %997 = vmatpush.msra.mxu0 %v996
            %v998 = vand.u32 %v817, 4294901760
            %v999 = vsub.f32 %v817, %v998
            %1000 = vmatpush.msra.mxu0 %v999
            %v1001 = vand.u32 %v815, 4294901760
            %v1002 = vsub.f32 %v815, %v1001
            %1003 = vmatpush.msra.mxu0 %v1002
            %v1004 = vand.u32 %v813, 4294901760
            %v1005 = vsub.f32 %v813, %v1004
            %1006 = vmatpush.msra.mxu0 %v1005
            %v1007 = vand.u32 %v811, 4294901760
            %v1008 = vsub.f32 %v811, %v1007
            %1009 = vmatpush.msra.mxu0 %v1008
            %v1010 = vand.u32 %v809, 4294901760
            %v1011 = vsub.f32 %v809, %v1010
            %1012 = vmatpush.msra.mxu0 %v1011
            %v1013 = vand.u32 %v807, 4294901760
            %v1014 = vsub.f32 %v807, %v1013
            %1015 = vmatpush.msra.mxu0 %v1014
            %v1016 = vand.u32 %v805, 4294901760
            %v1017 = vsub.f32 %v805, %v1016
            %1018 = vmatpush.msra.mxu0 %v1017
            %v1019 = vand.u32 %v803, 4294901760
            %v1020 = vsub.f32 %v803, %v1019
            %1021 = vmatpush.msra.mxu0 %v1020
            %v1022 = vand.u32 %v801, 4294901760
            %v1023 = vsub.f32 %v801, %v1022
            %1024 = vmatpush.msra.mxu0 %v1023
            %v1025 = vand.u32 %v799, 4294901760
            %v1026 = vsub.f32 %v799, %v1025
            %1027 = vmatpush.msra.mxu0 %v1026
            %v1028 = vand.u32 %v797, 4294901760
            %v1029 = vsub.f32 %v797, %v1028
            %1030 = vmatpush.msra.mxu0 %v1029
            %v1031 = vand.u32 %v795, 4294901760
            %v1032 = vsub.f32 %v795, %v1031
            %1033 = vmatpush.msra.mxu0 %v1032
            %v1034 = vand.u32 %v793, 4294901760
            %v1035 = vsub.f32 %v793, %v1034
            %1036 = vmatpush.msra.mxu0 %v1035
            %v1037 = vand.u32 %v791, 4294901760
            %v1038 = vsub.f32 %v791, %v1037
            %1039 = vmatpush.msra.mxu0 %v1038
            %v1040 = vand.u32 %v789, 4294901760
            %v1041 = vsub.f32 %v789, %v1040
            %1042 = vmatpush.msra.mxu0 %v1041
            %v1043 = vand.u32 %v749, 4294901760
            %v1044 = vsub.f32 %v749, %v1043
            %1045 = vmatmul.f32.gmra.mxu0 %v1044
            %v1046 = vpop.f32.mrf.mxu0
            %v1047 = vadd.f32 %v993, %v1046
            %1048 = vdwg.mxu0
            %v1049 = vand.u32 %v819, 4294901760
            %1050 = vmatpush.msra.mxu0 %v1049
            %v1051 = vand.u32 %v817, 4294901760
            %1052 = vmatpush.msra.mxu0 %v1051
            %v1053 = vand.u32 %v815, 4294901760
            %1054 = vmatpush.msra.mxu0 %v1053
            %v1055 = vand.u32 %v813, 4294901760
            %1056 = vmatpush.msra.mxu0 %v1055
            %v1057 = vand.u32 %v811, 4294901760
            %1058 = vmatpush.msra.mxu0 %v1057
            %v1059 = vand.u32 %v809, 4294901760
            %1060 = vmatpush.msra.mxu0 %v1059
            %v1061 = vand.u32 %v807, 4294901760
            %1062 = vmatpush.msra.mxu0 %v1061
            %v1063 = vand.u32 %v805, 4294901760
            %1064 = vmatpush.msra.mxu0 %v1063
            %v1065 = vand.u32 %v803, 4294901760
            %1066 = vmatpush.msra.mxu0 %v1065
            %v1067 = vand.u32 %v801, 4294901760
            %1068 = vmatpush.msra.mxu0 %v1067
            %v1069 = vand.u32 %v799, 4294901760
            %1070 = vmatpush.msra.mxu0 %v1069
            %v1071 = vand.u32 %v797, 4294901760
            %1072 = vmatpush.msra.mxu0 %v1071
            %v1073 = vand.u32 %v795, 4294901760
            %1074 = vmatpush.msra.mxu0 %v1073
            %v1075 = vand.u32 %v793, 4294901760
            %1076 = vmatpush.msra.mxu0 %v1075
            %v1077 = vand.u32 %v791, 4294901760
            %1078 = vmatpush.msra.mxu0 %v1077
            %v1079 = vand.u32 %v789, 4294901760
            %1080 = vmatpush.msra.mxu0 %v1079
            %v1081 = vand.u32 %v749, 4294901760
            %v1082 = vsub.f32 %v749, %v1081
            %v1083 = vand.u32 %v1082, 4294901760
            %1084 = vmatmul.f32.gmra.mxu0 %v1083
            %v1085 = vpop.f32.mrf.mxu0
            %v1086 = vadd.f32 %v1047, %v1085
            %1087 = vdwg.mxu0
            %v1088 = vand.u32 %v819, 4294901760
            %v1089 = vsub.f32 %v819, %v1088
            %v1090 = vand.u32 %v1089, 4294901760
            %1091 = vmatpush.msra.mxu0 %v1090
            %v1092 = vand.u32 %v817, 4294901760
            %v1093 = vsub.f32 %v817, %v1092
            %v1094 = vand.u32 %v1093, 4294901760
            %1095 = vmatpush.msra.mxu0 %v1094
            %v1096 = vand.u32 %v815, 4294901760
            %v1097 = vsub.f32 %v815, %v1096
            %v1098 = vand.u32 %v1097, 4294901760
            %1099 = vmatpush.msra.mxu0 %v1098
            %v1100 = vand.u32 %v813, 4294901760
            %v1101 = vsub.f32 %v813, %v1100
            %v1102 = vand.u32 %v1101, 4294901760
            %1103 = vmatpush.msra.mxu0 %v1102
            %v1104 = vand.u32 %v811, 4294901760
            %v1105 = vsub.f32 %v811, %v1104
            %v1106 = vand.u32 %v1105, 4294901760
            %1107 = vmatpush.msra.mxu0 %v1106
            %v1108 = vand.u32 %v809, 4294901760
            %v1109 = vsub.f32 %v809, %v1108
            %v1110 = vand.u32 %v1109, 4294901760
            %1111 = vmatpush.msra.mxu0 %v1110
            %v1112 = vand.u32 %v807, 4294901760
            %v1113 = vsub.f32 %v807, %v1112
            %v1114 = vand.u32 %v1113, 4294901760
            %1115 = vmatpush.msra.mxu0 %v1114
            %v1116 = vand.u32 %v805, 4294901760
            %v1117 = vsub.f32 %v805, %v1116
            %v1118 = vand.u32 %v1117, 4294901760
            %1119 = vmatpush.msra.mxu0 %v1118
            %v1120 = vand.u32 %v803, 4294901760
            %v1121 = vsub.f32 %v803, %v1120
            %v1122 = vand.u32 %v1121, 4294901760
            %1123 = vmatpush.msra.mxu0 %v1122
            %v1124 = vand.u32 %v801, 4294901760
            %v1125 = vsub.f32 %v801, %v1124
            %v1126 = vand.u32 %v1125, 4294901760
            %1127 = vmatpush.msra.mxu0 %v1126
            %v1128 = vand.u32 %v799, 4294901760
            %v1129 = vsub.f32 %v799, %v1128
            %v1130 = vand.u32 %v1129, 4294901760
            %1131 = vmatpush.msra.mxu0 %v1130
            %v1132 = vand.u32 %v797, 4294901760
            %v1133 = vsub.f32 %v797, %v1132
            %v1134 = vand.u32 %v1133, 4294901760
            %1135 = vmatpush.msra.mxu0 %v1134
            %v1136 = vand.u32 %v795, 4294901760
            %v1137 = vsub.f32 %v795, %v1136
            %v1138 = vand.u32 %v1137, 4294901760
            %1139 = vmatpush.msra.mxu0 %v1138
            %v1140 = vand.u32 %v793, 4294901760
            %v1141 = vsub.f32 %v793, %v1140
            %v1142 = vand.u32 %v1141, 4294901760
            %1143 = vmatpush.msra.mxu0 %v1142
            %v1144 = vand.u32 %v791, 4294901760
            %v1145 = vsub.f32 %v791, %v1144
            %v1146 = vand.u32 %v1145, 4294901760
            %1147 = vmatpush.msra.mxu0 %v1146
            %v1148 = vand.u32 %v789, 4294901760
            %v1149 = vsub.f32 %v789, %v1148
            %v1150 = vand.u32 %v1149, 4294901760
            %1151 = vmatpush.msra.mxu0 %v1150
            %v1152 = vand.u32 %v749, 4294901760
            %1153 = vmatmul.f32.gmra.mxu0 %v1152
            %v1154 = vpop.f32.mrf.mxu0
            %v1155 = vadd.f32 %v1086, %v1154
            %1156 = vdwg.mxu0
            %v1157 = vand.u32 %v819, 4294901760
            %1158 = vmatpush.msra.mxu0 %v1157
            %v1159 = vand.u32 %v817, 4294901760
            %1160 = vmatpush.msra.mxu0 %v1159
            %v1161 = vand.u32 %v815, 4294901760
            %1162 = vmatpush.msra.mxu0 %v1161
            %v1163 = vand.u32 %v813, 4294901760
            %1164 = vmatpush.msra.mxu0 %v1163
            %v1165 = vand.u32 %v811, 4294901760
            %1166 = vmatpush.msra.mxu0 %v1165
            %v1167 = vand.u32 %v809, 4294901760
            %1168 = vmatpush.msra.mxu0 %v1167
            %v1169 = vand.u32 %v807, 4294901760
            %1170 = vmatpush.msra.mxu0 %v1169
            %v1171 = vand.u32 %v805, 4294901760
            %1172 = vmatpush.msra.mxu0 %v1171
            %v1173 = vand.u32 %v803, 4294901760
            %1174 = vmatpush.msra.mxu0 %v1173
            %v1175 = vand.u32 %v801, 4294901760
            %1176 = vmatpush.msra.mxu0 %v1175
            %v1177 = vand.u32 %v799, 4294901760
            %1178 = vmatpush.msra.mxu0 %v1177
            %v1179 = vand.u32 %v797, 4294901760
            %1180 = vmatpush.msra.mxu0 %v1179
            %v1181 = vand.u32 %v795, 4294901760
            %1182 = vmatpush.msra.mxu0 %v1181
            %v1183 = vand.u32 %v793, 4294901760
            %1184 = vmatpush.msra.mxu0 %v1183
            %v1185 = vand.u32 %v791, 4294901760
            %1186 = vmatpush.msra.mxu0 %v1185
            %v1187 = vand.u32 %v789, 4294901760
            %1188 = vmatpush.msra.mxu0 %v1187
            %v1189 = vand.u32 %v749, 4294901760
            %1190 = vmatmul.f32.gmra.mxu0 %v1189
            %v1191 = vpop.f32.mrf.mxu0
            %v1192 = vadd.f32 %v1155, %v1191
            %1193 = vdwg.mxu0
            %v1194 = vand.u32 %v851, 4294901760
            %1195 = vmatpush.msra.mxu0 %v1194
            %v1196 = vand.u32 %v849, 4294901760
            %1197 = vmatpush.msra.mxu0 %v1196
            %v1198 = vand.u32 %v847, 4294901760
            %1199 = vmatpush.msra.mxu0 %v1198
            %v1200 = vand.u32 %v845, 4294901760
            %1201 = vmatpush.msra.mxu0 %v1200
            %v1202 = vand.u32 %v843, 4294901760
            %1203 = vmatpush.msra.mxu0 %v1202
            %v1204 = vand.u32 %v841, 4294901760
            %1205 = vmatpush.msra.mxu0 %v1204
            %v1206 = vand.u32 %v839, 4294901760
            %1207 = vmatpush.msra.mxu0 %v1206
            %v1208 = vand.u32 %v837, 4294901760
            %1209 = vmatpush.msra.mxu0 %v1208
            %v1210 = vand.u32 %v835, 4294901760
            %1211 = vmatpush.msra.mxu0 %v1210
            %v1212 = vand.u32 %v833, 4294901760
            %1213 = vmatpush.msra.mxu0 %v1212
            %v1214 = vand.u32 %v831, 4294901760
            %1215 = vmatpush.msra.mxu0 %v1214
            %v1216 = vand.u32 %v829, 4294901760
            %1217 = vmatpush.msra.mxu0 %v1216
            %v1218 = vand.u32 %v827, 4294901760
            %1219 = vmatpush.msra.mxu0 %v1218
            %v1220 = vand.u32 %v825, 4294901760
            %1221 = vmatpush.msra.mxu0 %v1220
            %v1222 = vand.u32 %v823, 4294901760
            %1223 = vmatpush.msra.mxu0 %v1222
            %v1224 = vand.u32 %v821, 4294901760
            %1225 = vmatpush.msra.mxu0 %v1224
            %v1226 = vand.u32 %v762, 4294901760
            %v1227 = vsub.f32 %v762, %v1226
            %v1228 = vand.u32 %v1227, 4294901760
            %v1229 = vsub.f32 %v1227, %v1228
            %v1230 = vand.u32 %v1229, 4294901760
            %1231 = vmatmul.f32.gmra.mxu0 %v1230
            %v1232 = vpop.f32.mrf.mxu0
            %v1233 = vadd.f32 %v1192, %v1232
            %1234 = vdwg.mxu0
            %v1235 = vand.u32 %v851, 4294901760
            %v1236 = vsub.f32 %v851, %v1235
            %v1237 = vand.u32 %v1236, 4294901760
            %v1238 = vsub.f32 %v1236, %v1237
            %v1239 = vand.u32 %v1238, 4294901760
            %1240 = vmatpush.msra.mxu0 %v1239
            %v1241 = vand.u32 %v849, 4294901760
            %v1242 = vsub.f32 %v849, %v1241
            %v1243 = vand.u32 %v1242, 4294901760
            %v1244 = vsub.f32 %v1242, %v1243
            %v1245 = vand.u32 %v1244, 4294901760
            %1246 = vmatpush.msra.mxu0 %v1245
            %v1247 = vand.u32 %v847, 4294901760
            %v1248 = vsub.f32 %v847, %v1247
            %v1249 = vand.u32 %v1248, 4294901760
            %v1250 = vsub.f32 %v1248, %v1249
            %v1251 = vand.u32 %v1250, 4294901760
            %1252 = vmatpush.msra.mxu0 %v1251
            %v1253 = vand.u32 %v845, 4294901760
            %v1254 = vsub.f32 %v845, %v1253
            %v1255 = vand.u32 %v1254, 4294901760
            %v1256 = vsub.f32 %v1254, %v1255
            %v1257 = vand.u32 %v1256, 4294901760
            %1258 = vmatpush.msra.mxu0 %v1257
            %v1259 = vand.u32 %v843, 4294901760
            %v1260 = vsub.f32 %v843, %v1259
            %v1261 = vand.u32 %v1260, 4294901760
            %v1262 = vsub.f32 %v1260, %v1261
            %v1263 = vand.u32 %v1262, 4294901760
            %1264 = vmatpush.msra.mxu0 %v1263
            %v1265 = vand.u32 %v841, 4294901760
            %v1266 = vsub.f32 %v841, %v1265
            %v1267 = vand.u32 %v1266, 4294901760
            %v1268 = vsub.f32 %v1266, %v1267
            %v1269 = vand.u32 %v1268, 4294901760
            %1270 = vmatpush.msra.mxu0 %v1269
            %v1271 = vand.u32 %v839, 4294901760
            %v1272 = vsub.f32 %v839, %v1271
            %v1273 = vand.u32 %v1272, 4294901760
            %v1274 = vsub.f32 %v1272, %v1273
            %v1275 = vand.u32 %v1274, 4294901760
            %1276 = vmatpush.msra.mxu0 %v1275
            %v1277 = vand.u32 %v837, 4294901760
            %v1278 = vsub.f32 %v837, %v1277
            %v1279 = vand.u32 %v1278, 4294901760
            %v1280 = vsub.f32 %v1278, %v1279
            %v1281 = vand.u32 %v1280, 4294901760
            %1282 = vmatpush.msra.mxu0 %v1281
            %v1283 = vand.u32 %v835, 4294901760
            %v1284 = vsub.f32 %v835, %v1283
            %v1285 = vand.u32 %v1284, 4294901760
            %v1286 = vsub.f32 %v1284, %v1285
            %v1287 = vand.u32 %v1286, 4294901760
            %1288 = vmatpush.msra.mxu0 %v1287
            %v1289 = vand.u32 %v833, 4294901760
            %v1290 = vsub.f32 %v833, %v1289
            %v1291 = vand.u32 %v1290, 4294901760
            %v1292 = vsub.f32 %v1290, %v1291
            %v1293 = vand.u32 %v1292, 4294901760
            %1294 = vmatpush.msra.mxu0 %v1293
            %v1295 = vand.u32 %v831, 4294901760
            %v1296 = vsub.f32 %v831, %v1295
            %v1297 = vand.u32 %v1296, 4294901760
            %v1298 = vsub.f32 %v1296, %v1297
            %v1299 = vand.u32 %v1298, 4294901760
            %1300 = vmatpush.msra.mxu0 %v1299
            %v1301 = vand.u32 %v829, 4294901760
            %v1302 = vsub.f32 %v829, %v1301
            %v1303 = vand.u32 %v1302, 4294901760
            %v1304 = vsub.f32 %v1302, %v1303
            %v1305 = vand.u32 %v1304, 4294901760
            %1306 = vmatpush.msra.mxu0 %v1305
            %v1307 = vand.u32 %v827, 4294901760
            %v1308 = vsub.f32 %v827, %v1307
            %v1309 = vand.u32 %v1308, 4294901760
            %v1310 = vsub.f32 %v1308, %v1309
            %v1311 = vand.u32 %v1310, 4294901760
            %1312 = vmatpush.msra.mxu0 %v1311
            %v1313 = vand.u32 %v825, 4294901760
            %v1314 = vsub.f32 %v825, %v1313
            %v1315 = vand.u32 %v1314, 4294901760
            %v1316 = vsub.f32 %v1314, %v1315
            %v1317 = vand.u32 %v1316, 4294901760
            %1318 = vmatpush.msra.mxu0 %v1317
            %v1319 = vand.u32 %v823, 4294901760
            %v1320 = vsub.f32 %v823, %v1319
            %v1321 = vand.u32 %v1320, 4294901760
            %v1322 = vsub.f32 %v1320, %v1321
            %v1323 = vand.u32 %v1322, 4294901760
            %1324 = vmatpush.msra.mxu0 %v1323
            %v1325 = vand.u32 %v821, 4294901760
            %v1326 = vsub.f32 %v821, %v1325
            %v1327 = vand.u32 %v1326, 4294901760
            %v1328 = vsub.f32 %v1326, %v1327
            %v1329 = vand.u32 %v1328, 4294901760
            %1330 = vmatpush.msra.mxu0 %v1329
            %v1331 = vand.u32 %v762, 4294901760
            %1332 = vmatmul.f32.gmra.mxu0 %v1331
            %v1333 = vpop.f32.mrf.mxu0
            %v1334 = vadd.f32 %v1233, %v1333
            %1335 = vdwg.mxu0
            %v1336 = vand.u32 %v851, 4294901760
            %v1337 = vsub.f32 %v851, %v1336
            %1338 = vmatpush.msra.mxu0 %v1337
            %v1339 = vand.u32 %v849, 4294901760
            %v1340 = vsub.f32 %v849, %v1339
            %1341 = vmatpush.msra.mxu0 %v1340
            %v1342 = vand.u32 %v847, 4294901760
            %v1343 = vsub.f32 %v847, %v1342
            %1344 = vmatpush.msra.mxu0 %v1343
            %v1345 = vand.u32 %v845, 4294901760
            %v1346 = vsub.f32 %v845, %v1345
            %1347 = vmatpush.msra.mxu0 %v1346
            %v1348 = vand.u32 %v843, 4294901760
            %v1349 = vsub.f32 %v843, %v1348
            %1350 = vmatpush.msra.mxu0 %v1349
            %v1351 = vand.u32 %v841, 4294901760
            %v1352 = vsub.f32 %v841, %v1351
            %1353 = vmatpush.msra.mxu0 %v1352
            %v1354 = vand.u32 %v839, 4294901760
            %v1355 = vsub.f32 %v839, %v1354
            %1356 = vmatpush.msra.mxu0 %v1355
            %v1357 = vand.u32 %v837, 4294901760
            %v1358 = vsub.f32 %v837, %v1357
            %1359 = vmatpush.msra.mxu0 %v1358
            %v1360 = vand.u32 %v835, 4294901760
            %v1361 = vsub.f32 %v835, %v1360
            %1362 = vmatpush.msra.mxu0 %v1361
            %v1363 = vand.u32 %v833, 4294901760
            %v1364 = vsub.f32 %v833, %v1363
            %1365 = vmatpush.msra.mxu0 %v1364
            %v1366 = vand.u32 %v831, 4294901760
            %v1367 = vsub.f32 %v831, %v1366
            %1368 = vmatpush.msra.mxu0 %v1367
            %v1369 = vand.u32 %v829, 4294901760
            %v1370 = vsub.f32 %v829, %v1369
            %1371 = vmatpush.msra.mxu0 %v1370
            %v1372 = vand.u32 %v827, 4294901760
            %v1373 = vsub.f32 %v827, %v1372
            %1374 = vmatpush.msra.mxu0 %v1373
            %v1375 = vand.u32 %v825, 4294901760
            %v1376 = vsub.f32 %v825, %v1375
            %1377 = vmatpush.msra.mxu0 %v1376
            %v1378 = vand.u32 %v823, 4294901760
            %v1379 = vsub.f32 %v823, %v1378
            %1380 = vmatpush.msra.mxu0 %v1379
            %v1381 = vand.u32 %v821, 4294901760
            %v1382 = vsub.f32 %v821, %v1381
            %1383 = vmatpush.msra.mxu0 %v1382
            %v1384 = vand.u32 %v762, 4294901760
            %v1385 = vsub.f32 %v762, %v1384
            %1386 = vmatmul.f32.gmra.mxu0 %v1385
            %v1387 = vpop.f32.mrf.mxu0
            %v1388 = vadd.f32 %v1334, %v1387
            %1389 = vdwg.mxu0
            %v1390 = vand.u32 %v851, 4294901760
            %1391 = vmatpush.msra.mxu0 %v1390
            %v1392 = vand.u32 %v849, 4294901760
            %1393 = vmatpush.msra.mxu0 %v1392
            %v1394 = vand.u32 %v847, 4294901760
            %1395 = vmatpush.msra.mxu0 %v1394
            %v1396 = vand.u32 %v845, 4294901760
            %1397 = vmatpush.msra.mxu0 %v1396
            %v1398 = vand.u32 %v843, 4294901760
            %1399 = vmatpush.msra.mxu0 %v1398
            %v1400 = vand.u32 %v841, 4294901760
            %1401 = vmatpush.msra.mxu0 %v1400
            %v1402 = vand.u32 %v839, 4294901760
            %1403 = vmatpush.msra.mxu0 %v1402
            %v1404 = vand.u32 %v837, 4294901760
            %1405 = vmatpush.msra.mxu0 %v1404
            %v1406 = vand.u32 %v835, 4294901760
            %1407 = vmatpush.msra.mxu0 %v1406
            %v1408 = vand.u32 %v833, 4294901760
            %1409 = vmatpush.msra.mxu0 %v1408
            %v1410 = vand.u32 %v831, 4294901760
            %1411 = vmatpush.msra.mxu0 %v1410
            %v1412 = vand.u32 %v829, 4294901760
            %1413 = vmatpush.msra.mxu0 %v1412
            %v1414 = vand.u32 %v827, 4294901760
            %1415 = vmatpush.msra.mxu0 %v1414
            %v1416 = vand.u32 %v825, 4294901760
            %1417 = vmatpush.msra.mxu0 %v1416
            %v1418 = vand.u32 %v823, 4294901760
            %1419 = vmatpush.msra.mxu0 %v1418
            %v1420 = vand.u32 %v821, 4294901760
            %1421 = vmatpush.msra.mxu0 %v1420
            %v1422 = vand.u32 %v762, 4294901760
            %v1423 = vsub.f32 %v762, %v1422
            %v1424 = vand.u32 %v1423, 4294901760
            %1425 = vmatmul.f32.gmra.mxu0 %v1424
            %v1426 = vpop.f32.mrf.mxu0
            %v1427 = vadd.f32 %v1388, %v1426
            %1428 = vdwg.mxu0
            %v1429 = vand.u32 %v851, 4294901760
            %v1430 = vsub.f32 %v851, %v1429
            %v1431 = vand.u32 %v1430, 4294901760
            %1432 = vmatpush.msra.mxu0 %v1431
            %v1433 = vand.u32 %v849, 4294901760
            %v1434 = vsub.f32 %v849, %v1433
            %v1435 = vand.u32 %v1434, 4294901760
            %1436 = vmatpush.msra.mxu0 %v1435
            %v1437 = vand.u32 %v847, 4294901760
            %v1438 = vsub.f32 %v847, %v1437
            %v1439 = vand.u32 %v1438, 4294901760
            %1440 = vmatpush.msra.mxu0 %v1439
            %v1441 = vand.u32 %v845, 4294901760
            %v1442 = vsub.f32 %v845, %v1441
            %v1443 = vand.u32 %v1442, 4294901760
            %1444 = vmatpush.msra.mxu0 %v1443
            %v1445 = vand.u32 %v843, 4294901760
            %v1446 = vsub.f32 %v843, %v1445
            %v1447 = vand.u32 %v1446, 4294901760
            %1448 = vmatpush.msra.mxu0 %v1447
            %v1449 = vand.u32 %v841, 4294901760
            %v1450 = vsub.f32 %v841, %v1449
            %v1451 = vand.u32 %v1450, 4294901760
            %1452 = vmatpush.msra.mxu0 %v1451
            %v1453 = vand.u32 %v839, 4294901760
            %v1454 = vsub.f32 %v839, %v1453
            %v1455 = vand.u32 %v1454, 4294901760
            %1456 = vmatpush.msra.mxu0 %v1455
            %v1457 = vand.u32 %v837, 4294901760
            %v1458 = vsub.f32 %v837, %v1457
            %v1459 = vand.u32 %v1458, 4294901760
            %1460 = vmatpush.msra.mxu0 %v1459
            %v1461 = vand.u32 %v835, 4294901760
            %v1462 = vsub.f32 %v835, %v1461
            %v1463 = vand.u32 %v1462, 4294901760
            %1464 = vmatpush.msra.mxu0 %v1463
            %v1465 = vand.u32 %v833, 4294901760
            %v1466 = vsub.f32 %v833, %v1465
            %v1467 = vand.u32 %v1466, 4294901760
            %1468 = vmatpush.msra.mxu0 %v1467
            %v1469 = vand.u32 %v831, 4294901760
            %v1470 = vsub.f32 %v831, %v1469
            %v1471 = vand.u32 %v1470, 4294901760
            %1472 = vmatpush.msra.mxu0 %v1471
            %v1473 = vand.u32 %v829, 4294901760
            %v1474 = vsub.f32 %v829, %v1473
            %v1475 = vand.u32 %v1474, 4294901760
            %1476 = vmatpush.msra.mxu0 %v1475
            %v1477 = vand.u32 %v827, 4294901760
            %v1478 = vsub.f32 %v827, %v1477
            %v1479 = vand.u32 %v1478, 4294901760
            %1480 = vmatpush.msra.mxu0 %v1479
            %v1481 = vand.u32 %v825, 4294901760
            %v1482 = vsub.f32 %v825, %v1481
            %v1483 = vand.u32 %v1482, 4294901760
            %1484 = vmatpush.msra.mxu0 %v1483
            %v1485 = vand.u32 %v823, 4294901760
            %v1486 = vsub.f32 %v823, %v1485
            %v1487 = vand.u32 %v1486, 4294901760
            %1488 = vmatpush.msra.mxu0 %v1487
            %v1489 = vand.u32 %v821, 4294901760
            %v1490 = vsub.f32 %v821, %v1489
            %v1491 = vand.u32 %v1490, 4294901760
            %1492 = vmatpush.msra.mxu0 %v1491
            %v1493 = vand.u32 %v762, 4294901760
            %1494 = vmatmul.f32.gmra.mxu0 %v1493
            %v1495 = vpop.f32.mrf.mxu0
            %v1496 = vadd.f32 %v1427, %v1495
            %1497 = vdwg.mxu0
            %v1498 = vand.u32 %v851, 4294901760
            %1499 = vmatpush.msra.mxu0 %v1498
            %v1500 = vand.u32 %v849, 4294901760
            %1501 = vmatpush.msra.mxu0 %v1500
            %v1502 = vand.u32 %v847, 4294901760
            %1503 = vmatpush.msra.mxu0 %v1502
            %v1504 = vand.u32 %v845, 4294901760
            %1505 = vmatpush.msra.mxu0 %v1504
            %v1506 = vand.u32 %v843, 4294901760
            %1507 = vmatpush.msra.mxu0 %v1506
            %v1508 = vand.u32 %v841, 4294901760
            %1509 = vmatpush.msra.mxu0 %v1508
            %v1510 = vand.u32 %v839, 4294901760
            %1511 = vmatpush.msra.mxu0 %v1510
            %v1512 = vand.u32 %v837, 4294901760
            %1513 = vmatpush.msra.mxu0 %v1512
            %v1514 = vand.u32 %v835, 4294901760
            %1515 = vmatpush.msra.mxu0 %v1514
            %v1516 = vand.u32 %v833, 4294901760
            %1517 = vmatpush.msra.mxu0 %v1516
            %v1518 = vand.u32 %v831, 4294901760
            %1519 = vmatpush.msra.mxu0 %v1518
            %v1520 = vand.u32 %v829, 4294901760
            %1521 = vmatpush.msra.mxu0 %v1520
            %v1522 = vand.u32 %v827, 4294901760
            %1523 = vmatpush.msra.mxu0 %v1522
            %v1524 = vand.u32 %v825, 4294901760
            %1525 = vmatpush.msra.mxu0 %v1524
            %v1526 = vand.u32 %v823, 4294901760
            %1527 = vmatpush.msra.mxu0 %v1526
            %v1528 = vand.u32 %v821, 4294901760
            %1529 = vmatpush.msra.mxu0 %v1528
            %v1530 = vand.u32 %v762, 4294901760
            %1531 = vmatmul.f32.gmra.mxu0 %v1530
            %v1532 = vpop.f32.mrf.mxu0
            %v1533 = vadd.f32 %v1496, %v1532
            %1534 = vdwg.mxu0
            %v1535 = vand.u32 %v820, 4294901760
            %1536 = vmatpush.msra.mxu0 %v1535
            %v1537 = vand.u32 %v818, 4294901760
            %1538 = vmatpush.msra.mxu0 %v1537
            %v1539 = vand.u32 %v816, 4294901760
            %1540 = vmatpush.msra.mxu0 %v1539
            %v1541 = vand.u32 %v814, 4294901760
            %1542 = vmatpush.msra.mxu0 %v1541
            %v1543 = vand.u32 %v812, 4294901760
            %1544 = vmatpush.msra.mxu0 %v1543
            %v1545 = vand.u32 %v810, 4294901760
            %1546 = vmatpush.msra.mxu0 %v1545
            %v1547 = vand.u32 %v808, 4294901760
            %1548 = vmatpush.msra.mxu0 %v1547
            %v1549 = vand.u32 %v806, 4294901760
            %1550 = vmatpush.msra.mxu0 %v1549
            %v1551 = vand.u32 %v804, 4294901760
            %1552 = vmatpush.msra.mxu0 %v1551
            %v1553 = vand.u32 %v802, 4294901760
            %1554 = vmatpush.msra.mxu0 %v1553
            %v1555 = vand.u32 %v800, 4294901760
            %1556 = vmatpush.msra.mxu0 %v1555
            %v1557 = vand.u32 %v798, 4294901760
            %1558 = vmatpush.msra.mxu0 %v1557
            %v1559 = vand.u32 %v796, 4294901760
            %1560 = vmatpush.msra.mxu0 %v1559
            %v1561 = vand.u32 %v794, 4294901760
            %1562 = vmatpush.msra.mxu0 %v1561
            %v1563 = vand.u32 %v792, 4294901760
            %1564 = vmatpush.msra.mxu0 %v1563
            %v1565 = vand.u32 %v790, 4294901760
            %1566 = vmatpush.msra.mxu0 %v1565
            %v1567 = vand.u32 %v749, 4294901760
            %v1568 = vsub.f32 %v749, %v1567
            %v1569 = vand.u32 %v1568, 4294901760
            %v1570 = vsub.f32 %v1568, %v1569
            %v1571 = vand.u32 %v1570, 4294901760
            %1572 = vmatmul.f32.gmra.mxu0 %v1571
            %v1573 = vpop.f32.mrf.mxu0
            %v1574 = vadd.f32 0.0, %v1573
            %1575 = vdwg.mxu0
            %v1576 = vand.u32 %v820, 4294901760
            %v1577 = vsub.f32 %v820, %v1576
            %v1578 = vand.u32 %v1577, 4294901760
            %v1579 = vsub.f32 %v1577, %v1578
            %v1580 = vand.u32 %v1579, 4294901760
            %1581 = vmatpush.msra.mxu0 %v1580
            %v1582 = vand.u32 %v818, 4294901760
            %v1583 = vsub.f32 %v818, %v1582
            %v1584 = vand.u32 %v1583, 4294901760
            %v1585 = vsub.f32 %v1583, %v1584
            %v1586 = vand.u32 %v1585, 4294901760
            %1587 = vmatpush.msra.mxu0 %v1586
            %v1588 = vand.u32 %v816, 4294901760
            %v1589 = vsub.f32 %v816, %v1588
            %v1590 = vand.u32 %v1589, 4294901760
            %v1591 = vsub.f32 %v1589, %v1590
            %v1592 = vand.u32 %v1591, 4294901760
            %1593 = vmatpush.msra.mxu0 %v1592
            %v1594 = vand.u32 %v814, 4294901760
            %v1595 = vsub.f32 %v814, %v1594
            %v1596 = vand.u32 %v1595, 4294901760
            %v1597 = vsub.f32 %v1595, %v1596
            %v1598 = vand.u32 %v1597, 4294901760
            %1599 = vmatpush.msra.mxu0 %v1598
            %v1600 = vand.u32 %v812, 4294901760
            %v1601 = vsub.f32 %v812, %v1600
            %v1602 = vand.u32 %v1601, 4294901760
            %v1603 = vsub.f32 %v1601, %v1602
            %v1604 = vand.u32 %v1603, 4294901760
            %1605 = vmatpush.msra.mxu0 %v1604
            %v1606 = vand.u32 %v810, 4294901760
            %v1607 = vsub.f32 %v810, %v1606
            %v1608 = vand.u32 %v1607, 4294901760
            %v1609 = vsub.f32 %v1607, %v1608
            %v1610 = vand.u32 %v1609, 4294901760
            %1611 = vmatpush.msra.mxu0 %v1610
            %v1612 = vand.u32 %v808, 4294901760
            %v1613 = vsub.f32 %v808, %v1612
            %v1614 = vand.u32 %v1613, 4294901760
            %v1615 = vsub.f32 %v1613, %v1614
            %v1616 = vand.u32 %v1615, 4294901760
            %1617 = vmatpush.msra.mxu0 %v1616
            %v1618 = vand.u32 %v806, 4294901760
            %v1619 = vsub.f32 %v806, %v1618
            %v1620 = vand.u32 %v1619, 4294901760
            %v1621 = vsub.f32 %v1619, %v1620
            %v1622 = vand.u32 %v1621, 4294901760
            %1623 = vmatpush.msra.mxu0 %v1622
            %v1624 = vand.u32 %v804, 4294901760
            %v1625 = vsub.f32 %v804, %v1624
            %v1626 = vand.u32 %v1625, 4294901760
            %v1627 = vsub.f32 %v1625, %v1626
            %v1628 = vand.u32 %v1627, 4294901760
            %1629 = vmatpush.msra.mxu0 %v1628
            %v1630 = vand.u32 %v802, 4294901760
            %v1631 = vsub.f32 %v802, %v1630
            %v1632 = vand.u32 %v1631, 4294901760
            %v1633 = vsub.f32 %v1631, %v1632
            %v1634 = vand.u32 %v1633, 4294901760
            %1635 = vmatpush.msra.mxu0 %v1634
            %v1636 = vand.u32 %v800, 4294901760
            %v1637 = vsub.f32 %v800, %v1636
            %v1638 = vand.u32 %v1637, 4294901760
            %v1639 = vsub.f32 %v1637, %v1638
            %v1640 = vand.u32 %v1639, 4294901760
            %1641 = vmatpush.msra.mxu0 %v1640
            %v1642 = vand.u32 %v798, 4294901760
            %v1643 = vsub.f32 %v798, %v1642
            %v1644 = vand.u32 %v1643, 4294901760
            %v1645 = vsub.f32 %v1643, %v1644
            %v1646 = vand.u32 %v1645, 4294901760
            %1647 = vmatpush.msra.mxu0 %v1646
            %v1648 = vand.u32 %v796, 4294901760
            %v1649 = vsub.f32 %v796, %v1648
            %v1650 = vand.u32 %v1649, 4294901760
            %v1651 = vsub.f32 %v1649, %v1650
            %v1652 = vand.u32 %v1651, 4294901760
            %1653 = vmatpush.msra.mxu0 %v1652
            %v1654 = vand.u32 %v794, 4294901760
            %v1655 = vsub.f32 %v794, %v1654
            %v1656 = vand.u32 %v1655, 4294901760
            %v1657 = vsub.f32 %v1655, %v1656
            %v1658 = vand.u32 %v1657, 4294901760
            %1659 = vmatpush.msra.mxu0 %v1658
            %v1660 = vand.u32 %v792, 4294901760
            %v1661 = vsub.f32 %v792, %v1660
            %v1662 = vand.u32 %v1661, 4294901760
            %v1663 = vsub.f32 %v1661, %v1662
            %v1664 = vand.u32 %v1663, 4294901760
            %1665 = vmatpush.msra.mxu0 %v1664
            %v1666 = vand.u32 %v790, 4294901760
            %v1667 = vsub.f32 %v790, %v1666
            %v1668 = vand.u32 %v1667, 4294901760
            %v1669 = vsub.f32 %v1667, %v1668
            %v1670 = vand.u32 %v1669, 4294901760
            %1671 = vmatpush.msra.mxu0 %v1670
            %v1672 = vand.u32 %v749, 4294901760
            %1673 = vmatmul.f32.gmra.mxu0 %v1672
            %v1674 = vpop.f32.mrf.mxu0
            %v1675 = vadd.f32 %v1574, %v1674
            %1676 = vdwg.mxu0
            %v1677 = vand.u32 %v820, 4294901760
            %v1678 = vsub.f32 %v820, %v1677
            %1679 = vmatpush.msra.mxu0 %v1678
            %v1680 = vand.u32 %v818, 4294901760
            %v1681 = vsub.f32 %v818, %v1680
            %1682 = vmatpush.msra.mxu0 %v1681
            %v1683 = vand.u32 %v816, 4294901760
            %v1684 = vsub.f32 %v816, %v1683
            %1685 = vmatpush.msra.mxu0 %v1684
            %v1686 = vand.u32 %v814, 4294901760
            %v1687 = vsub.f32 %v814, %v1686
            %1688 = vmatpush.msra.mxu0 %v1687
            %v1689 = vand.u32 %v812, 4294901760
            %v1690 = vsub.f32 %v812, %v1689
            %1691 = vmatpush.msra.mxu0 %v1690
            %v1692 = vand.u32 %v810, 4294901760
            %v1693 = vsub.f32 %v810, %v1692
            %1694 = vmatpush.msra.mxu0 %v1693
            %v1695 = vand.u32 %v808, 4294901760
            %v1696 = vsub.f32 %v808, %v1695
            %1697 = vmatpush.msra.mxu0 %v1696
            %v1698 = vand.u32 %v806, 4294901760
            %v1699 = vsub.f32 %v806, %v1698
            %1700 = vmatpush.msra.mxu0 %v1699
            %v1701 = vand.u32 %v804, 4294901760
            %v1702 = vsub.f32 %v804, %v1701
            %1703 = vmatpush.msra.mxu0 %v1702
            %v1704 = vand.u32 %v802, 4294901760
            %v1705 = vsub.f32 %v802, %v1704
            %1706 = vmatpush.msra.mxu0 %v1705
            %v1707 = vand.u32 %v800, 4294901760
            %v1708 = vsub.f32 %v800, %v1707
            %1709 = vmatpush.msra.mxu0 %v1708
            %v1710 = vand.u32 %v798, 4294901760
            %v1711 = vsub.f32 %v798, %v1710
            %1712 = vmatpush.msra.mxu0 %v1711
            %v1713 = vand.u32 %v796, 4294901760
            %v1714 = vsub.f32 %v796, %v1713
            %1715 = vmatpush.msra.mxu0 %v1714
            %v1716 = vand.u32 %v794, 4294901760
            %v1717 = vsub.f32 %v794, %v1716
            %1718 = vmatpush.msra.mxu0 %v1717
            %v1719 = vand.u32 %v792, 4294901760
            %v1720 = vsub.f32 %v792, %v1719
            %1721 = vmatpush.msra.mxu0 %v1720
            %v1722 = vand.u32 %v790, 4294901760
            %v1723 = vsub.f32 %v790, %v1722
            %1724 = vmatpush.msra.mxu0 %v1723
            %v1725 = vand.u32 %v749, 4294901760
            %v1726 = vsub.f32 %v749, %v1725
            %1727 = vmatmul.f32.gmra.mxu0 %v1726
            %v1728 = vpop.f32.mrf.mxu0
            %v1729 = vadd.f32 %v1675, %v1728
            %1730 = vdwg.mxu0
            %v1731 = vand.u32 %v820, 4294901760
            %1732 = vmatpush.msra.mxu0 %v1731
            %v1733 = vand.u32 %v818, 4294901760
            %1734 = vmatpush.msra.mxu0 %v1733
            %v1735 = vand.u32 %v816, 4294901760
            %1736 = vmatpush.msra.mxu0 %v1735
            %v1737 = vand.u32 %v814, 4294901760
            %1738 = vmatpush.msra.mxu0 %v1737
            %v1739 = vand.u32 %v812, 4294901760
            %1740 = vmatpush.msra.mxu0 %v1739
            %v1741 = vand.u32 %v810, 4294901760
            %1742 = vmatpush.msra.mxu0 %v1741
            %v1743 = vand.u32 %v808, 4294901760
            %1744 = vmatpush.msra.mxu0 %v1743
            %v1745 = vand.u32 %v806, 4294901760
            %1746 = vmatpush.msra.mxu0 %v1745
            %v1747 = vand.u32 %v804, 4294901760
            %1748 = vmatpush.msra.mxu0 %v1747
            %v1749 = vand.u32 %v802, 4294901760
            %1750 = vmatpush.msra.mxu0 %v1749
            %v1751 = vand.u32 %v800, 4294901760
            %1752 = vmatpush.msra.mxu0 %v1751
            %v1753 = vand.u32 %v798, 4294901760
            %1754 = vmatpush.msra.mxu0 %v1753
            %v1755 = vand.u32 %v796, 4294901760
            %1756 = vmatpush.msra.mxu0 %v1755
            %v1757 = vand.u32 %v794, 4294901760
            %1758 = vmatpush.msra.mxu0 %v1757
            %v1759 = vand.u32 %v792, 4294901760
            %1760 = vmatpush.msra.mxu0 %v1759
            %v1761 = vand.u32 %v790, 4294901760
            %1762 = vmatpush.msra.mxu0 %v1761
            %v1763 = vand.u32 %v749, 4294901760
            %v1764 = vsub.f32 %v749, %v1763
            %v1765 = vand.u32 %v1764, 4294901760
            %1766 = vmatmul.f32.gmra.mxu0 %v1765
            %v1767 = vpop.f32.mrf.mxu0
            %v1768 = vadd.f32 %v1729, %v1767
            %1769 = vdwg.mxu0
            %v1770 = vand.u32 %v820, 4294901760
            %v1771 = vsub.f32 %v820, %v1770
            %v1772 = vand.u32 %v1771, 4294901760
            %1773 = vmatpush.msra.mxu0 %v1772
            %v1774 = vand.u32 %v818, 4294901760
            %v1775 = vsub.f32 %v818, %v1774
            %v1776 = vand.u32 %v1775, 4294901760
            %1777 = vmatpush.msra.mxu0 %v1776
            %v1778 = vand.u32 %v816, 4294901760
            %v1779 = vsub.f32 %v816, %v1778
            %v1780 = vand.u32 %v1779, 4294901760
            %1781 = vmatpush.msra.mxu0 %v1780
            %v1782 = vand.u32 %v814, 4294901760
            %v1783 = vsub.f32 %v814, %v1782
            %v1784 = vand.u32 %v1783, 4294901760
            %1785 = vmatpush.msra.mxu0 %v1784
            %v1786 = vand.u32 %v812, 4294901760
            %v1787 = vsub.f32 %v812, %v1786
            %v1788 = vand.u32 %v1787, 4294901760
            %1789 = vmatpush.msra.mxu0 %v1788
            %v1790 = vand.u32 %v810, 4294901760
            %v1791 = vsub.f32 %v810, %v1790
            %v1792 = vand.u32 %v1791, 4294901760
            %1793 = vmatpush.msra.mxu0 %v1792
            %v1794 = vand.u32 %v808, 4294901760
            %v1795 = vsub.f32 %v808, %v1794
            %v1796 = vand.u32 %v1795, 4294901760
            %1797 = vmatpush.msra.mxu0 %v1796
            %v1798 = vand.u32 %v806, 4294901760
            %v1799 = vsub.f32 %v806, %v1798
            %v1800 = vand.u32 %v1799, 4294901760
            %1801 = vmatpush.msra.mxu0 %v1800
            %v1802 = vand.u32 %v804, 4294901760
            %v1803 = vsub.f32 %v804, %v1802
            %v1804 = vand.u32 %v1803, 4294901760
            %1805 = vmatpush.msra.mxu0 %v1804
            %v1806 = vand.u32 %v802, 4294901760
            %v1807 = vsub.f32 %v802, %v1806
            %v1808 = vand.u32 %v1807, 4294901760
            %1809 = vmatpush.msra.mxu0 %v1808
            %v1810 = vand.u32 %v800, 4294901760
            %v1811 = vsub.f32 %v800, %v1810
            %v1812 = vand.u32 %v1811, 4294901760
            %1813 = vmatpush.msra.mxu0 %v1812
            %v1814 = vand.u32 %v798, 4294901760
            %v1815 = vsub.f32 %v798, %v1814
            %v1816 = vand.u32 %v1815, 4294901760
            %1817 = vmatpush.msra.mxu0 %v1816
            %v1818 = vand.u32 %v796, 4294901760
            %v1819 = vsub.f32 %v796, %v1818
            %v1820 = vand.u32 %v1819, 4294901760
            %1821 = vmatpush.msra.mxu0 %v1820
            %v1822 = vand.u32 %v794, 4294901760
            %v1823 = vsub.f32 %v794, %v1822
            %v1824 = vand.u32 %v1823, 4294901760
            %1825 = vmatpush.msra.mxu0 %v1824
            %v1826 = vand.u32 %v792, 4294901760
            %v1827 = vsub.f32 %v792, %v1826
            %v1828 = vand.u32 %v1827, 4294901760
            %1829 = vmatpush.msra.mxu0 %v1828
            %v1830 = vand.u32 %v790, 4294901760
            %v1831 = vsub.f32 %v790, %v1830
            %v1832 = vand.u32 %v1831, 4294901760
            %1833 = vmatpush.msra.mxu0 %v1832
            %v1834 = vand.u32 %v749, 4294901760
            %1835 = vmatmul.f32.gmra.mxu0 %v1834
            %v1836 = vpop.f32.mrf.mxu0
            %v1837 = vadd.f32 %v1768, %v1836
            %1838 = vdwg.mxu0
            %v1839 = vand.u32 %v820, 4294901760
            %1840 = vmatpush.msra.mxu0 %v1839
            %v1841 = vand.u32 %v818, 4294901760
            %1842 = vmatpush.msra.mxu0 %v1841
            %v1843 = vand.u32 %v816, 4294901760
            %1844 = vmatpush.msra.mxu0 %v1843
            %v1845 = vand.u32 %v814, 4294901760
            %1846 = vmatpush.msra.mxu0 %v1845
            %v1847 = vand.u32 %v812, 4294901760
            %1848 = vmatpush.msra.mxu0 %v1847
            %v1849 = vand.u32 %v810, 4294901760
            %1850 = vmatpush.msra.mxu0 %v1849
            %v1851 = vand.u32 %v808, 4294901760
            %1852 = vmatpush.msra.mxu0 %v1851
            %v1853 = vand.u32 %v806, 4294901760
            %1854 = vmatpush.msra.mxu0 %v1853
            %v1855 = vand.u32 %v804, 4294901760
            %1856 = vmatpush.msra.mxu0 %v1855
            %v1857 = vand.u32 %v802, 4294901760
            %1858 = vmatpush.msra.mxu0 %v1857
            %v1859 = vand.u32 %v800, 4294901760
            %1860 = vmatpush.msra.mxu0 %v1859
            %v1861 = vand.u32 %v798, 4294901760
            %1862 = vmatpush.msra.mxu0 %v1861
            %v1863 = vand.u32 %v796, 4294901760
            %1864 = vmatpush.msra.mxu0 %v1863
            %v1865 = vand.u32 %v794, 4294901760
            %1866 = vmatpush.msra.mxu0 %v1865
            %v1867 = vand.u32 %v792, 4294901760
            %1868 = vmatpush.msra.mxu0 %v1867
            %v1869 = vand.u32 %v790, 4294901760
            %1870 = vmatpush.msra.mxu0 %v1869
            %v1871 = vand.u32 %v749, 4294901760
            %1872 = vmatmul.f32.gmra.mxu0 %v1871
            %v1873 = vpop.f32.mrf.mxu0
            %v1874 = vadd.f32 %v1837, %v1873
            %1875 = vdwg.mxu0
            %v1876 = vand.u32 %v852, 4294901760
            %1877 = vmatpush.msra.mxu0 %v1876
            %v1878 = vand.u32 %v850, 4294901760
            %1879 = vmatpush.msra.mxu0 %v1878
            %v1880 = vand.u32 %v848, 4294901760
            %1881 = vmatpush.msra.mxu0 %v1880
            %v1882 = vand.u32 %v846, 4294901760
            %1883 = vmatpush.msra.mxu0 %v1882
            %v1884 = vand.u32 %v844, 4294901760
            %1885 = vmatpush.msra.mxu0 %v1884
            %v1886 = vand.u32 %v842, 4294901760
            %1887 = vmatpush.msra.mxu0 %v1886
            %v1888 = vand.u32 %v840, 4294901760
            %1889 = vmatpush.msra.mxu0 %v1888
            %v1890 = vand.u32 %v838, 4294901760
            %1891 = vmatpush.msra.mxu0 %v1890
            %v1892 = vand.u32 %v836, 4294901760
            %1893 = vmatpush.msra.mxu0 %v1892
            %v1894 = vand.u32 %v834, 4294901760
            %1895 = vmatpush.msra.mxu0 %v1894
            %v1896 = vand.u32 %v832, 4294901760
            %1897 = vmatpush.msra.mxu0 %v1896
            %v1898 = vand.u32 %v830, 4294901760
            %1899 = vmatpush.msra.mxu0 %v1898
            %v1900 = vand.u32 %v828, 4294901760
            %1901 = vmatpush.msra.mxu0 %v1900
            %v1902 = vand.u32 %v826, 4294901760
            %1903 = vmatpush.msra.mxu0 %v1902
            %v1904 = vand.u32 %v824, 4294901760
            %1905 = vmatpush.msra.mxu0 %v1904
            %v1906 = vand.u32 %v822, 4294901760
            %1907 = vmatpush.msra.mxu0 %v1906
            %v1908 = vand.u32 %v762, 4294901760
            %v1909 = vsub.f32 %v762, %v1908
            %v1910 = vand.u32 %v1909, 4294901760
            %v1911 = vsub.f32 %v1909, %v1910
            %v1912 = vand.u32 %v1911, 4294901760
            %1913 = vmatmul.f32.gmra.mxu0 %v1912
            %v1914 = vpop.f32.mrf.mxu0
            %v1915 = vadd.f32 %v1874, %v1914
            %1916 = vdwg.mxu0
            %v1917 = vand.u32 %v852, 4294901760
            %v1918 = vsub.f32 %v852, %v1917
            %v1919 = vand.u32 %v1918, 4294901760
            %v1920 = vsub.f32 %v1918, %v1919
            %v1921 = vand.u32 %v1920, 4294901760
            %1922 = vmatpush.msra.mxu0 %v1921
            %v1923 = vand.u32 %v850, 4294901760
            %v1924 = vsub.f32 %v850, %v1923
            %v1925 = vand.u32 %v1924, 4294901760
            %v1926 = vsub.f32 %v1924, %v1925
            %v1927 = vand.u32 %v1926, 4294901760
            %1928 = vmatpush.msra.mxu0 %v1927
            %v1929 = vand.u32 %v848, 4294901760
            %v1930 = vsub.f32 %v848, %v1929
            %v1931 = vand.u32 %v1930, 4294901760
            %v1932 = vsub.f32 %v1930, %v1931
            %v1933 = vand.u32 %v1932, 4294901760
            %1934 = vmatpush.msra.mxu0 %v1933
            %v1935 = vand.u32 %v846, 4294901760
            %v1936 = vsub.f32 %v846, %v1935
            %v1937 = vand.u32 %v1936, 4294901760
            %v1938 = vsub.f32 %v1936, %v1937
            %v1939 = vand.u32 %v1938, 4294901760
            %1940 = vmatpush.msra.mxu0 %v1939
            %v1941 = vand.u32 %v844, 4294901760
            %v1942 = vsub.f32 %v844, %v1941
            %v1943 = vand.u32 %v1942, 4294901760
            %v1944 = vsub.f32 %v1942, %v1943
            %v1945 = vand.u32 %v1944, 4294901760
            %1946 = vmatpush.msra.mxu0 %v1945
            %v1947 = vand.u32 %v842, 4294901760
            %v1948 = vsub.f32 %v842, %v1947
            %v1949 = vand.u32 %v1948, 4294901760
            %v1950 = vsub.f32 %v1948, %v1949
            %v1951 = vand.u32 %v1950, 4294901760
            %1952 = vmatpush.msra.mxu0 %v1951
            %v1953 = vand.u32 %v840, 4294901760
            %v1954 = vsub.f32 %v840, %v1953
            %v1955 = vand.u32 %v1954, 4294901760
            %v1956 = vsub.f32 %v1954, %v1955
            %v1957 = vand.u32 %v1956, 4294901760
            %1958 = vmatpush.msra.mxu0 %v1957
            %v1959 = vand.u32 %v838, 4294901760
            %v1960 = vsub.f32 %v838, %v1959
            %v1961 = vand.u32 %v1960, 4294901760
            %v1962 = vsub.f32 %v1960, %v1961
            %v1963 = vand.u32 %v1962, 4294901760
            %1964 = vmatpush.msra.mxu0 %v1963
            %v1965 = vand.u32 %v836, 4294901760
            %v1966 = vsub.f32 %v836, %v1965
            %v1967 = vand.u32 %v1966, 4294901760
            %v1968 = vsub.f32 %v1966, %v1967
            %v1969 = vand.u32 %v1968, 4294901760
            %1970 = vmatpush.msra.mxu0 %v1969
            %v1971 = vand.u32 %v834, 4294901760
            %v1972 = vsub.f32 %v834, %v1971
            %v1973 = vand.u32 %v1972, 4294901760
            %v1974 = vsub.f32 %v1972, %v1973
            %v1975 = vand.u32 %v1974, 4294901760
            %1976 = vmatpush.msra.mxu0 %v1975
            %v1977 = vand.u32 %v832, 4294901760
            %v1978 = vsub.f32 %v832, %v1977
            %v1979 = vand.u32 %v1978, 4294901760
            %v1980 = vsub.f32 %v1978, %v1979
            %v1981 = vand.u32 %v1980, 4294901760
            %1982 = vmatpush.msra.mxu0 %v1981
            %v1983 = vand.u32 %v830, 4294901760
            %v1984 = vsub.f32 %v830, %v1983
            %v1985 = vand.u32 %v1984, 4294901760
            %v1986 = vsub.f32 %v1984, %v1985
            %v1987 = vand.u32 %v1986, 4294901760
            %1988 = vmatpush.msra.mxu0 %v1987
            %v1989 = vand.u32 %v828, 4294901760
            %v1990 = vsub.f32 %v828, %v1989
            %v1991 = vand.u32 %v1990, 4294901760
            %v1992 = vsub.f32 %v1990, %v1991
            %v1993 = vand.u32 %v1992, 4294901760
            %1994 = vmatpush.msra.mxu0 %v1993
            %v1995 = vand.u32 %v826, 4294901760
            %v1996 = vsub.f32 %v826, %v1995
            %v1997 = vand.u32 %v1996, 4294901760
            %v1998 = vsub.f32 %v1996, %v1997
            %v1999 = vand.u32 %v1998, 4294901760
            %2000 = vmatpush.msra.mxu0 %v1999
            %v2001 = vand.u32 %v824, 4294901760
            %v2002 = vsub.f32 %v824, %v2001
            %v2003 = vand.u32 %v2002, 4294901760
            %v2004 = vsub.f32 %v2002, %v2003
            %v2005 = vand.u32 %v2004, 4294901760
            %2006 = vmatpush.msra.mxu0 %v2005
            %v2007 = vand.u32 %v822, 4294901760
            %v2008 = vsub.f32 %v822, %v2007
            %v2009 = vand.u32 %v2008, 4294901760
            %v2010 = vsub.f32 %v2008, %v2009
            %v2011 = vand.u32 %v2010, 4294901760
            %2012 = vmatpush.msra.mxu0 %v2011
            %v2013 = vand.u32 %v762, 4294901760
            %2014 = vmatmul.f32.gmra.mxu0 %v2013
            %v2015 = vpop.f32.mrf.mxu0
            %v2016 = vadd.f32 %v1915, %v2015
            %2017 = vdwg.mxu0
            %v2018 = vand.u32 %v852, 4294901760
            %v2019 = vsub.f32 %v852, %v2018
            %2020 = vmatpush.msra.mxu0 %v2019
            %v2021 = vand.u32 %v850, 4294901760
            %v2022 = vsub.f32 %v850, %v2021
            %2023 = vmatpush.msra.mxu0 %v2022
            %v2024 = vand.u32 %v848, 4294901760
            %v2025 = vsub.f32 %v848, %v2024
            %2026 = vmatpush.msra.mxu0 %v2025
            %v2027 = vand.u32 %v846, 4294901760
            %v2028 = vsub.f32 %v846, %v2027
            %2029 = vmatpush.msra.mxu0 %v2028
            %v2030 = vand.u32 %v844, 4294901760
            %v2031 = vsub.f32 %v844, %v2030
            %2032 = vmatpush.msra.mxu0 %v2031
            %v2033 = vand.u32 %v842, 4294901760
            %v2034 = vsub.f32 %v842, %v2033
            %2035 = vmatpush.msra.mxu0 %v2034
            %v2036 = vand.u32 %v840, 4294901760
            %v2037 = vsub.f32 %v840, %v2036
            %2038 = vmatpush.msra.mxu0 %v2037
            %v2039 = vand.u32 %v838, 4294901760
            %v2040 = vsub.f32 %v838, %v2039
            %2041 = vmatpush.msra.mxu0 %v2040
            %v2042 = vand.u32 %v836, 4294901760
            %v2043 = vsub.f32 %v836, %v2042
            %2044 = vmatpush.msra.mxu0 %v2043
            %v2045 = vand.u32 %v834, 4294901760
            %v2046 = vsub.f32 %v834, %v2045
            %2047 = vmatpush.msra.mxu0 %v2046
            %v2048 = vand.u32 %v832, 4294901760
            %v2049 = vsub.f32 %v832, %v2048
            %2050 = vmatpush.msra.mxu0 %v2049
            %v2051 = vand.u32 %v830, 4294901760
            %v2052 = vsub.f32 %v830, %v2051
            %2053 = vmatpush.msra.mxu0 %v2052
            %v2054 = vand.u32 %v828, 4294901760
            %v2055 = vsub.f32 %v828, %v2054
            %2056 = vmatpush.msra.mxu0 %v2055
            %v2057 = vand.u32 %v826, 4294901760
            %v2058 = vsub.f32 %v826, %v2057
            %2059 = vmatpush.msra.mxu0 %v2058
            %v2060 = vand.u32 %v824, 4294901760
            %v2061 = vsub.f32 %v824, %v2060
            %2062 = vmatpush.msra.mxu0 %v2061
            %v2063 = vand.u32 %v822, 4294901760
            %v2064 = vsub.f32 %v822, %v2063
            %2065 = vmatpush.msra.mxu0 %v2064
            %v2066 = vand.u32 %v762, 4294901760
            %v2067 = vsub.f32 %v762, %v2066
            %2068 = vmatmul.f32.gmra.mxu0 %v2067
            %v2069 = vpop.f32.mrf.mxu0
            %v2070 = vadd.f32 %v2016, %v2069
            %2071 = vdwg.mxu0
            %v2072 = vand.u32 %v852, 4294901760
            %2073 = vmatpush.msra.mxu0 %v2072
            %v2074 = vand.u32 %v850, 4294901760
            %2075 = vmatpush.msra.mxu0 %v2074
            %v2076 = vand.u32 %v848, 4294901760
            %2077 = vmatpush.msra.mxu0 %v2076
            %v2078 = vand.u32 %v846, 4294901760
            %2079 = vmatpush.msra.mxu0 %v2078
            %v2080 = vand.u32 %v844, 4294901760
            %2081 = vmatpush.msra.mxu0 %v2080
            %v2082 = vand.u32 %v842, 4294901760
            %2083 = vmatpush.msra.mxu0 %v2082
            %v2084 = vand.u32 %v840, 4294901760
            %2085 = vmatpush.msra.mxu0 %v2084
            %v2086 = vand.u32 %v838, 4294901760
            %2087 = vmatpush.msra.mxu0 %v2086
            %v2088 = vand.u32 %v836, 4294901760
            %2089 = vmatpush.msra.mxu0 %v2088
            %v2090 = vand.u32 %v834, 4294901760
            %2091 = vmatpush.msra.mxu0 %v2090
            %v2092 = vand.u32 %v832, 4294901760
            %2093 = vmatpush.msra.mxu0 %v2092
            %v2094 = vand.u32 %v830, 4294901760
            %2095 = vmatpush.msra.mxu0 %v2094
            %v2096 = vand.u32 %v828, 4294901760
            %2097 = vmatpush.msra.mxu0 %v2096
            %v2098 = vand.u32 %v826, 4294901760
            %2099 = vmatpush.msra.mxu0 %v2098
            %v2100 = vand.u32 %v824, 4294901760
            %2101 = vmatpush.msra.mxu0 %v2100
            %v2102 = vand.u32 %v822, 4294901760
            %2103 = vmatpush.msra.mxu0 %v2102
            %v2104 = vand.u32 %v762, 4294901760
            %v2105 = vsub.f32 %v762, %v2104
            %v2106 = vand.u32 %v2105, 4294901760
            %2107 = vmatmul.f32.gmra.mxu0 %v2106
            %v2108 = vpop.f32.mrf.mxu0
            %v2109 = vadd.f32 %v2070, %v2108
            %2110 = vdwg.mxu0
            %v2111 = vand.u32 %v852, 4294901760
            %v2112 = vsub.f32 %v852, %v2111
            %v2113 = vand.u32 %v2112, 4294901760
            %2114 = vmatpush.msra.mxu0 %v2113
            %v2115 = vand.u32 %v850, 4294901760
            %v2116 = vsub.f32 %v850, %v2115
            %v2117 = vand.u32 %v2116, 4294901760
            %2118 = vmatpush.msra.mxu0 %v2117
            %v2119 = vand.u32 %v848, 4294901760
            %v2120 = vsub.f32 %v848, %v2119
            %v2121 = vand.u32 %v2120, 4294901760
            %2122 = vmatpush.msra.mxu0 %v2121
            %v2123 = vand.u32 %v846, 4294901760
            %v2124 = vsub.f32 %v846, %v2123
            %v2125 = vand.u32 %v2124, 4294901760
            %2126 = vmatpush.msra.mxu0 %v2125
            %v2127 = vand.u32 %v844, 4294901760
            %v2128 = vsub.f32 %v844, %v2127
            %v2129 = vand.u32 %v2128, 4294901760
            %2130 = vmatpush.msra.mxu0 %v2129
            %v2131 = vand.u32 %v842, 4294901760
            %v2132 = vsub.f32 %v842, %v2131
            %v2133 = vand.u32 %v2132, 4294901760
            %2134 = vmatpush.msra.mxu0 %v2133
            %v2135 = vand.u32 %v840, 4294901760
            %v2136 = vsub.f32 %v840, %v2135
            %v2137 = vand.u32 %v2136, 4294901760
            %2138 = vmatpush.msra.mxu0 %v2137
            %v2139 = vand.u32 %v838, 4294901760
            %v2140 = vsub.f32 %v838, %v2139
            %v2141 = vand.u32 %v2140, 4294901760
            %2142 = vmatpush.msra.mxu0 %v2141
            %v2143 = vand.u32 %v836, 4294901760
            %v2144 = vsub.f32 %v836, %v2143
            %v2145 = vand.u32 %v2144, 4294901760
            %2146 = vmatpush.msra.mxu0 %v2145
            %v2147 = vand.u32 %v834, 4294901760
            %v2148 = vsub.f32 %v834, %v2147
            %v2149 = vand.u32 %v2148, 4294901760
            %2150 = vmatpush.msra.mxu0 %v2149
            %v2151 = vand.u32 %v832, 4294901760
            %v2152 = vsub.f32 %v832, %v2151
            %v2153 = vand.u32 %v2152, 4294901760
            %2154 = vmatpush.msra.mxu0 %v2153
            %v2155 = vand.u32 %v830, 4294901760
            %v2156 = vsub.f32 %v830, %v2155
            %v2157 = vand.u32 %v2156, 4294901760
            %2158 = vmatpush.msra.mxu0 %v2157
            %v2159 = vand.u32 %v828, 4294901760
            %v2160 = vsub.f32 %v828, %v2159
            %v2161 = vand.u32 %v2160, 4294901760
            %2162 = vmatpush.msra.mxu0 %v2161
            %v2163 = vand.u32 %v826, 4294901760
            %v2164 = vsub.f32 %v826, %v2163
            %v2165 = vand.u32 %v2164, 4294901760
            %2166 = vmatpush.msra.mxu0 %v2165
            %v2167 = vand.u32 %v824, 4294901760
            %v2168 = vsub.f32 %v824, %v2167
            %v2169 = vand.u32 %v2168, 4294901760
            %2170 = vmatpush.msra.mxu0 %v2169
            %v2171 = vand.u32 %v822, 4294901760
            %v2172 = vsub.f32 %v822, %v2171
            %v2173 = vand.u32 %v2172, 4294901760
            %2174 = vmatpush.msra.mxu0 %v2173
            %v2175 = vand.u32 %v762, 4294901760
            %2176 = vmatmul.f32.gmra.mxu0 %v2175
            %v2177 = vpop.f32.mrf.mxu0
            %v2178 = vadd.f32 %v2109, %v2177
            %2179 = vdwg.mxu0
            %v2180 = vand.u32 %v852, 4294901760
            %2181 = vmatpush.msra.mxu0 %v2180
            %v2182 = vand.u32 %v850, 4294901760
            %2183 = vmatpush.msra.mxu0 %v2182
            %v2184 = vand.u32 %v848, 4294901760
            %2185 = vmatpush.msra.mxu0 %v2184
            %v2186 = vand.u32 %v846, 4294901760
            %2187 = vmatpush.msra.mxu0 %v2186
            %v2188 = vand.u32 %v844, 4294901760
            %2189 = vmatpush.msra.mxu0 %v2188
            %v2190 = vand.u32 %v842, 4294901760
            %2191 = vmatpush.msra.mxu0 %v2190
            %v2192 = vand.u32 %v840, 4294901760
            %2193 = vmatpush.msra.mxu0 %v2192
            %v2194 = vand.u32 %v838, 4294901760
            %2195 = vmatpush.msra.mxu0 %v2194
            %v2196 = vand.u32 %v836, 4294901760
            %2197 = vmatpush.msra.mxu0 %v2196
            %v2198 = vand.u32 %v834, 4294901760
            %2199 = vmatpush.msra.mxu0 %v2198
            %v2200 = vand.u32 %v832, 4294901760
            %2201 = vmatpush.msra.mxu0 %v2200
            %v2202 = vand.u32 %v830, 4294901760
            %2203 = vmatpush.msra.mxu0 %v2202
            %v2204 = vand.u32 %v828, 4294901760
            %2205 = vmatpush.msra.mxu0 %v2204
            %v2206 = vand.u32 %v826, 4294901760
            %2207 = vmatpush.msra.mxu0 %v2206
            %v2208 = vand.u32 %v824, 4294901760
            %2209 = vmatpush.msra.mxu0 %v2208
            %v2210 = vand.u32 %v822, 4294901760
            %2211 = vmatpush.msra.mxu0 %v2210
            %v2212 = vand.u32 %v762, 4294901760
            %2213 = vmatmul.f32.gmra.mxu0 %v2212
            %v2214 = vpop.f32.mrf.mxu0
            %v2215 = vadd.f32 %v2178, %v2214
            %2216 = vdwg.mxu0
            %v2217 = vand.u32 %v819, 4294901760
            %2218 = vmatpush.msra.mxu0 %v2217
            %v2219 = vand.u32 %v817, 4294901760
            %2220 = vmatpush.msra.mxu0 %v2219
            %v2221 = vand.u32 %v815, 4294901760
            %2222 = vmatpush.msra.mxu0 %v2221
            %v2223 = vand.u32 %v813, 4294901760
            %2224 = vmatpush.msra.mxu0 %v2223
            %v2225 = vand.u32 %v811, 4294901760
            %2226 = vmatpush.msra.mxu0 %v2225
            %v2227 = vand.u32 %v809, 4294901760
            %2228 = vmatpush.msra.mxu0 %v2227
            %v2229 = vand.u32 %v807, 4294901760
            %2230 = vmatpush.msra.mxu0 %v2229
            %v2231 = vand.u32 %v805, 4294901760
            %2232 = vmatpush.msra.mxu0 %v2231
            %v2233 = vand.u32 %v803, 4294901760
            %2234 = vmatpush.msra.mxu0 %v2233
            %v2235 = vand.u32 %v801, 4294901760
            %2236 = vmatpush.msra.mxu0 %v2235
            %v2237 = vand.u32 %v799, 4294901760
            %2238 = vmatpush.msra.mxu0 %v2237
            %v2239 = vand.u32 %v797, 4294901760
            %2240 = vmatpush.msra.mxu0 %v2239
            %v2241 = vand.u32 %v795, 4294901760
            %2242 = vmatpush.msra.mxu0 %v2241
            %v2243 = vand.u32 %v793, 4294901760
            %2244 = vmatpush.msra.mxu0 %v2243
            %v2245 = vand.u32 %v791, 4294901760
            %2246 = vmatpush.msra.mxu0 %v2245
            %v2247 = vand.u32 %v789, 4294901760
            %2248 = vmatpush.msra.mxu0 %v2247
            %v2249 = vand.u32 %v775, 4294901760
            %v2250 = vsub.f32 %v775, %v2249
            %v2251 = vand.u32 %v2250, 4294901760
            %v2252 = vsub.f32 %v2250, %v2251
            %v2253 = vand.u32 %v2252, 4294901760
            %2254 = vmatmul.f32.gmra.mxu0 %v2253
            %v2255 = vpop.f32.mrf.mxu0
            %v2256 = vadd.f32 0.0, %v2255
            %2257 = vdwg.mxu0
            %v2258 = vand.u32 %v819, 4294901760
            %v2259 = vsub.f32 %v819, %v2258
            %v2260 = vand.u32 %v2259, 4294901760
            %v2261 = vsub.f32 %v2259, %v2260
            %v2262 = vand.u32 %v2261, 4294901760
            %2263 = vmatpush.msra.mxu0 %v2262
            %v2264 = vand.u32 %v817, 4294901760
            %v2265 = vsub.f32 %v817, %v2264
            %v2266 = vand.u32 %v2265, 4294901760
            %v2267 = vsub.f32 %v2265, %v2266
            %v2268 = vand.u32 %v2267, 4294901760
            %2269 = vmatpush.msra.mxu0 %v2268
            %v2270 = vand.u32 %v815, 4294901760
            %v2271 = vsub.f32 %v815, %v2270
            %v2272 = vand.u32 %v2271, 4294901760
            %v2273 = vsub.f32 %v2271, %v2272
            %v2274 = vand.u32 %v2273, 4294901760
            %2275 = vmatpush.msra.mxu0 %v2274
            %v2276 = vand.u32 %v813, 4294901760
            %v2277 = vsub.f32 %v813, %v2276
            %v2278 = vand.u32 %v2277, 4294901760
            %v2279 = vsub.f32 %v2277, %v2278
            %v2280 = vand.u32 %v2279, 4294901760
            %2281 = vmatpush.msra.mxu0 %v2280
            %v2282 = vand.u32 %v811, 4294901760
            %v2283 = vsub.f32 %v811, %v2282
            %v2284 = vand.u32 %v2283, 4294901760
            %v2285 = vsub.f32 %v2283, %v2284
            %v2286 = vand.u32 %v2285, 4294901760
            %2287 = vmatpush.msra.mxu0 %v2286
            %v2288 = vand.u32 %v809, 4294901760
            %v2289 = vsub.f32 %v809, %v2288
            %v2290 = vand.u32 %v2289, 4294901760
            %v2291 = vsub.f32 %v2289, %v2290
            %v2292 = vand.u32 %v2291, 4294901760
            %2293 = vmatpush.msra.mxu0 %v2292
            %v2294 = vand.u32 %v807, 4294901760
            %v2295 = vsub.f32 %v807, %v2294
            %v2296 = vand.u32 %v2295, 4294901760
            %v2297 = vsub.f32 %v2295, %v2296
            %v2298 = vand.u32 %v2297, 4294901760
            %2299 = vmatpush.msra.mxu0 %v2298
            %v2300 = vand.u32 %v805, 4294901760
            %v2301 = vsub.f32 %v805, %v2300
            %v2302 = vand.u32 %v2301, 4294901760
            %v2303 = vsub.f32 %v2301, %v2302
            %v2304 = vand.u32 %v2303, 4294901760
            %2305 = vmatpush.msra.mxu0 %v2304
            %v2306 = vand.u32 %v803, 4294901760
            %v2307 = vsub.f32 %v803, %v2306
            %v2308 = vand.u32 %v2307, 4294901760
            %v2309 = vsub.f32 %v2307, %v2308
            %v2310 = vand.u32 %v2309, 4294901760
            %2311 = vmatpush.msra.mxu0 %v2310
            %v2312 = vand.u32 %v801, 4294901760
            %v2313 = vsub.f32 %v801, %v2312
            %v2314 = vand.u32 %v2313, 4294901760
            %v2315 = vsub.f32 %v2313, %v2314
            %v2316 = vand.u32 %v2315, 4294901760
            %2317 = vmatpush.msra.mxu0 %v2316
            %v2318 = vand.u32 %v799, 4294901760
            %v2319 = vsub.f32 %v799, %v2318
            %v2320 = vand.u32 %v2319, 4294901760
            %v2321 = vsub.f32 %v2319, %v2320
            %v2322 = vand.u32 %v2321, 4294901760
            %2323 = vmatpush.msra.mxu0 %v2322
            %v2324 = vand.u32 %v797, 4294901760
            %v2325 = vsub.f32 %v797, %v2324
            %v2326 = vand.u32 %v2325, 4294901760
            %v2327 = vsub.f32 %v2325, %v2326
            %v2328 = vand.u32 %v2327, 4294901760
            %2329 = vmatpush.msra.mxu0 %v2328
            %v2330 = vand.u32 %v795, 4294901760
            %v2331 = vsub.f32 %v795, %v2330
            %v2332 = vand.u32 %v2331, 4294901760
            %v2333 = vsub.f32 %v2331, %v2332
            %v2334 = vand.u32 %v2333, 4294901760
            %2335 = vmatpush.msra.mxu0 %v2334
            %v2336 = vand.u32 %v793, 4294901760
            %v2337 = vsub.f32 %v793, %v2336
            %v2338 = vand.u32 %v2337, 4294901760
            %v2339 = vsub.f32 %v2337, %v2338
            %v2340 = vand.u32 %v2339, 4294901760
            %2341 = vmatpush.msra.mxu0 %v2340
            %v2342 = vand.u32 %v791, 4294901760
            %v2343 = vsub.f32 %v791, %v2342
            %v2344 = vand.u32 %v2343, 4294901760
            %v2345 = vsub.f32 %v2343, %v2344
            %v2346 = vand.u32 %v2345, 4294901760
            %2347 = vmatpush.msra.mxu0 %v2346
            %v2348 = vand.u32 %v789, 4294901760
            %v2349 = vsub.f32 %v789, %v2348
            %v2350 = vand.u32 %v2349, 4294901760
            %v2351 = vsub.f32 %v2349, %v2350
            %v2352 = vand.u32 %v2351, 4294901760
            %2353 = vmatpush.msra.mxu0 %v2352
            %v2354 = vand.u32 %v775, 4294901760
            %2355 = vmatmul.f32.gmra.mxu0 %v2354
            %v2356 = vpop.f32.mrf.mxu0
            %v2357 = vadd.f32 %v2256, %v2356
            %2358 = vdwg.mxu0
            %v2359 = vand.u32 %v819, 4294901760
            %v2360 = vsub.f32 %v819, %v2359
            %2361 = vmatpush.msra.mxu0 %v2360
            %v2362 = vand.u32 %v817, 4294901760
            %v2363 = vsub.f32 %v817, %v2362
            %2364 = vmatpush.msra.mxu0 %v2363
            %v2365 = vand.u32 %v815, 4294901760
            %v2366 = vsub.f32 %v815, %v2365
            %2367 = vmatpush.msra.mxu0 %v2366
            %v2368 = vand.u32 %v813, 4294901760
            %v2369 = vsub.f32 %v813, %v2368
            %2370 = vmatpush.msra.mxu0 %v2369
            %v2371 = vand.u32 %v811, 4294901760
            %v2372 = vsub.f32 %v811, %v2371
            %2373 = vmatpush.msra.mxu0 %v2372
            %v2374 = vand.u32 %v809, 4294901760
            %v2375 = vsub.f32 %v809, %v2374
            %2376 = vmatpush.msra.mxu0 %v2375
            %v2377 = vand.u32 %v807, 4294901760
            %v2378 = vsub.f32 %v807, %v2377
            %2379 = vmatpush.msra.mxu0 %v2378
            %v2380 = vand.u32 %v805, 4294901760
            %v2381 = vsub.f32 %v805, %v2380
            %2382 = vmatpush.msra.mxu0 %v2381
            %v2383 = vand.u32 %v803, 4294901760
            %v2384 = vsub.f32 %v803, %v2383
            %2385 = vmatpush.msra.mxu0 %v2384
            %v2386 = vand.u32 %v801, 4294901760
            %v2387 = vsub.f32 %v801, %v2386
            %2388 = vmatpush.msra.mxu0 %v2387
            %v2389 = vand.u32 %v799, 4294901760
            %v2390 = vsub.f32 %v799, %v2389
            %2391 = vmatpush.msra.mxu0 %v2390
            %v2392 = vand.u32 %v797, 4294901760
            %v2393 = vsub.f32 %v797, %v2392
            %2394 = vmatpush.msra.mxu0 %v2393
            %v2395 = vand.u32 %v795, 4294901760
            %v2396 = vsub.f32 %v795, %v2395
            %2397 = vmatpush.msra.mxu0 %v2396
            %v2398 = vand.u32 %v793, 4294901760
            %v2399 = vsub.f32 %v793, %v2398
            %2400 = vmatpush.msra.mxu0 %v2399
            %v2401 = vand.u32 %v791, 4294901760
            %v2402 = vsub.f32 %v791, %v2401
            %2403 = vmatpush.msra.mxu0 %v2402
            %v2404 = vand.u32 %v789, 4294901760
            %v2405 = vsub.f32 %v789, %v2404
            %2406 = vmatpush.msra.mxu0 %v2405
            %v2407 = vand.u32 %v775, 4294901760
            %v2408 = vsub.f32 %v775, %v2407
            %2409 = vmatmul.f32.gmra.mxu0 %v2408
            %v2410 = vpop.f32.mrf.mxu0
            %v2411 = vadd.f32 %v2357, %v2410
            %2412 = vdwg.mxu0
            %v2413 = vand.u32 %v819, 4294901760
            %2414 = vmatpush.msra.mxu0 %v2413
            %v2415 = vand.u32 %v817, 4294901760
            %2416 = vmatpush.msra.mxu0 %v2415
            %v2417 = vand.u32 %v815, 4294901760
            %2418 = vmatpush.msra.mxu0 %v2417
            %v2419 = vand.u32 %v813, 4294901760
            %2420 = vmatpush.msra.mxu0 %v2419
            %v2421 = vand.u32 %v811, 4294901760
            %2422 = vmatpush.msra.mxu0 %v2421
            %v2423 = vand.u32 %v809, 4294901760
            %2424 = vmatpush.msra.mxu0 %v2423
            %v2425 = vand.u32 %v807, 4294901760
            %2426 = vmatpush.msra.mxu0 %v2425
            %v2427 = vand.u32 %v805, 4294901760
            %2428 = vmatpush.msra.mxu0 %v2427
            %v2429 = vand.u32 %v803, 4294901760
            %2430 = vmatpush.msra.mxu0 %v2429
            %v2431 = vand.u32 %v801, 4294901760
            %2432 = vmatpush.msra.mxu0 %v2431
            %v2433 = vand.u32 %v799, 4294901760
            %2434 = vmatpush.msra.mxu0 %v2433
            %v2435 = vand.u32 %v797, 4294901760
            %2436 = vmatpush.msra.mxu0 %v2435
            %v2437 = vand.u32 %v795, 4294901760
            %2438 = vmatpush.msra.mxu0 %v2437
            %v2439 = vand.u32 %v793, 4294901760
            %2440 = vmatpush.msra.mxu0 %v2439
            %v2441 = vand.u32 %v791, 4294901760
            %2442 = vmatpush.msra.mxu0 %v2441
            %v2443 = vand.u32 %v789, 4294901760
            %2444 = vmatpush.msra.mxu0 %v2443
            %v2445 = vand.u32 %v775, 4294901760
            %v2446 = vsub.f32 %v775, %v2445
            %v2447 = vand.u32 %v2446, 4294901760
            %2448 = vmatmul.f32.gmra.mxu0 %v2447
            %v2449 = vpop.f32.mrf.mxu0
            %v2450 = vadd.f32 %v2411, %v2449
            %2451 = vdwg.mxu0
            %v2452 = vand.u32 %v819, 4294901760
            %v2453 = vsub.f32 %v819, %v2452
            %v2454 = vand.u32 %v2453, 4294901760
            %2455 = vmatpush.msra.mxu0 %v2454
            %v2456 = vand.u32 %v817, 4294901760
            %v2457 = vsub.f32 %v817, %v2456
            %v2458 = vand.u32 %v2457, 4294901760
            %2459 = vmatpush.msra.mxu0 %v2458
            %v2460 = vand.u32 %v815, 4294901760
            %v2461 = vsub.f32 %v815, %v2460
            %v2462 = vand.u32 %v2461, 4294901760
            %2463 = vmatpush.msra.mxu0 %v2462
            %v2464 = vand.u32 %v813, 4294901760
            %v2465 = vsub.f32 %v813, %v2464
            %v2466 = vand.u32 %v2465, 4294901760
            %2467 = vmatpush.msra.mxu0 %v2466
            %v2468 = vand.u32 %v811, 4294901760
            %v2469 = vsub.f32 %v811, %v2468
            %v2470 = vand.u32 %v2469, 4294901760
            %2471 = vmatpush.msra.mxu0 %v2470
            %v2472 = vand.u32 %v809, 4294901760
            %v2473 = vsub.f32 %v809, %v2472
            %v2474 = vand.u32 %v2473, 4294901760
            %2475 = vmatpush.msra.mxu0 %v2474
            %v2476 = vand.u32 %v807, 4294901760
            %v2477 = vsub.f32 %v807, %v2476
            %v2478 = vand.u32 %v2477, 4294901760
            %2479 = vmatpush.msra.mxu0 %v2478
            %v2480 = vand.u32 %v805, 4294901760
            %v2481 = vsub.f32 %v805, %v2480
            %v2482 = vand.u32 %v2481, 4294901760
            %2483 = vmatpush.msra.mxu0 %v2482
            %v2484 = vand.u32 %v803, 4294901760
            %v2485 = vsub.f32 %v803, %v2484
            %v2486 = vand.u32 %v2485, 4294901760
            %2487 = vmatpush.msra.mxu0 %v2486
            %v2488 = vand.u32 %v801, 4294901760
            %v2489 = vsub.f32 %v801, %v2488
            %v2490 = vand.u32 %v2489, 4294901760
            %2491 = vmatpush.msra.mxu0 %v2490
            %v2492 = vand.u32 %v799, 4294901760
            %v2493 = vsub.f32 %v799, %v2492
            %v2494 = vand.u32 %v2493, 4294901760
            %2495 = vmatpush.msra.mxu0 %v2494
            %v2496 = vand.u32 %v797, 4294901760
            %v2497 = vsub.f32 %v797, %v2496
            %v2498 = vand.u32 %v2497, 4294901760
            %2499 = vmatpush.msra.mxu0 %v2498
            %v2500 = vand.u32 %v795, 4294901760
            %v2501 = vsub.f32 %v795, %v2500
            %v2502 = vand.u32 %v2501, 4294901760
            %2503 = vmatpush.msra.mxu0 %v2502
            %v2504 = vand.u32 %v793, 4294901760
            %v2505 = vsub.f32 %v793, %v2504
            %v2506 = vand.u32 %v2505, 4294901760
            %2507 = vmatpush.msra.mxu0 %v2506
            %v2508 = vand.u32 %v791, 4294901760
            %v2509 = vsub.f32 %v791, %v2508
            %v2510 = vand.u32 %v2509, 4294901760
            %2511 = vmatpush.msra.mxu0 %v2510
            %v2512 = vand.u32 %v789, 4294901760
            %v2513 = vsub.f32 %v789, %v2512
            %v2514 = vand.u32 %v2513, 4294901760
            %2515 = vmatpush.msra.mxu0 %v2514
            %v2516 = vand.u32 %v775, 4294901760
            %2517 = vmatmul.f32.gmra.mxu0 %v2516
            %v2518 = vpop.f32.mrf.mxu0
            %v2519 = vadd.f32 %v2450, %v2518
            %2520 = vdwg.mxu0
            %v2521 = vand.u32 %v819, 4294901760
            %2522 = vmatpush.msra.mxu0 %v2521
            %v2523 = vand.u32 %v817, 4294901760
            %2524 = vmatpush.msra.mxu0 %v2523
            %v2525 = vand.u32 %v815, 4294901760
            %2526 = vmatpush.msra.mxu0 %v2525
            %v2527 = vand.u32 %v813, 4294901760
            %2528 = vmatpush.msra.mxu0 %v2527
            %v2529 = vand.u32 %v811, 4294901760
            %2530 = vmatpush.msra.mxu0 %v2529
            %v2531 = vand.u32 %v809, 4294901760
            %2532 = vmatpush.msra.mxu0 %v2531
            %v2533 = vand.u32 %v807, 4294901760
            %2534 = vmatpush.msra.mxu0 %v2533
            %v2535 = vand.u32 %v805, 4294901760
            %2536 = vmatpush.msra.mxu0 %v2535
            %v2537 = vand.u32 %v803, 4294901760
            %2538 = vmatpush.msra.mxu0 %v2537
            %v2539 = vand.u32 %v801, 4294901760
            %2540 = vmatpush.msra.mxu0 %v2539
            %v2541 = vand.u32 %v799, 4294901760
            %2542 = vmatpush.msra.mxu0 %v2541
            %v2543 = vand.u32 %v797, 4294901760
            %2544 = vmatpush.msra.mxu0 %v2543
            %v2545 = vand.u32 %v795, 4294901760
            %2546 = vmatpush.msra.mxu0 %v2545
            %v2547 = vand.u32 %v793, 4294901760
            %2548 = vmatpush.msra.mxu0 %v2547
            %v2549 = vand.u32 %v791, 4294901760
            %2550 = vmatpush.msra.mxu0 %v2549
            %v2551 = vand.u32 %v789, 4294901760
            %2552 = vmatpush.msra.mxu0 %v2551
            %v2553 = vand.u32 %v775, 4294901760
            %2554 = vmatmul.f32.gmra.mxu0 %v2553
            %v2555 = vpop.f32.mrf.mxu0
            %v2556 = vadd.f32 %v2519, %v2555
            %2557 = vdwg.mxu0
            %v2558 = vand.u32 %v851, 4294901760
            %2559 = vmatpush.msra.mxu0 %v2558
            %v2560 = vand.u32 %v849, 4294901760
            %2561 = vmatpush.msra.mxu0 %v2560
            %v2562 = vand.u32 %v847, 4294901760
            %2563 = vmatpush.msra.mxu0 %v2562
            %v2564 = vand.u32 %v845, 4294901760
            %2565 = vmatpush.msra.mxu0 %v2564
            %v2566 = vand.u32 %v843, 4294901760
            %2567 = vmatpush.msra.mxu0 %v2566
            %v2568 = vand.u32 %v841, 4294901760
            %2569 = vmatpush.msra.mxu0 %v2568
            %v2570 = vand.u32 %v839, 4294901760
            %2571 = vmatpush.msra.mxu0 %v2570
            %v2572 = vand.u32 %v837, 4294901760
            %2573 = vmatpush.msra.mxu0 %v2572
            %v2574 = vand.u32 %v835, 4294901760
            %2575 = vmatpush.msra.mxu0 %v2574
            %v2576 = vand.u32 %v833, 4294901760
            %2577 = vmatpush.msra.mxu0 %v2576
            %v2578 = vand.u32 %v831, 4294901760
            %2579 = vmatpush.msra.mxu0 %v2578
            %v2580 = vand.u32 %v829, 4294901760
            %2581 = vmatpush.msra.mxu0 %v2580
            %v2582 = vand.u32 %v827, 4294901760
            %2583 = vmatpush.msra.mxu0 %v2582
            %v2584 = vand.u32 %v825, 4294901760
            %2585 = vmatpush.msra.mxu0 %v2584
            %v2586 = vand.u32 %v823, 4294901760
            %2587 = vmatpush.msra.mxu0 %v2586
            %v2588 = vand.u32 %v821, 4294901760
            %2589 = vmatpush.msra.mxu0 %v2588
            %v2590 = vand.u32 %v788, 4294901760
            %v2591 = vsub.f32 %v788, %v2590
            %v2592 = vand.u32 %v2591, 4294901760
            %v2593 = vsub.f32 %v2591, %v2592
            %v2594 = vand.u32 %v2593, 4294901760
            %2595 = vmatmul.f32.gmra.mxu0 %v2594
            %v2596 = vpop.f32.mrf.mxu0
            %v2597 = vadd.f32 %v2556, %v2596
            %2598 = vdwg.mxu0
            %v2599 = vand.u32 %v851, 4294901760
            %v2600 = vsub.f32 %v851, %v2599
            %v2601 = vand.u32 %v2600, 4294901760
            %v2602 = vsub.f32 %v2600, %v2601
            %v2603 = vand.u32 %v2602, 4294901760
            %2604 = vmatpush.msra.mxu0 %v2603
            %v2605 = vand.u32 %v849, 4294901760
            %v2606 = vsub.f32 %v849, %v2605
            %v2607 = vand.u32 %v2606, 4294901760
            %v2608 = vsub.f32 %v2606, %v2607
            %v2609 = vand.u32 %v2608, 4294901760
            %2610 = vmatpush.msra.mxu0 %v2609
            %v2611 = vand.u32 %v847, 4294901760
            %v2612 = vsub.f32 %v847, %v2611
            %v2613 = vand.u32 %v2612, 4294901760
            %v2614 = vsub.f32 %v2612, %v2613
            %v2615 = vand.u32 %v2614, 4294901760
            %2616 = vmatpush.msra.mxu0 %v2615
            %v2617 = vand.u32 %v845, 4294901760
            %v2618 = vsub.f32 %v845, %v2617
            %v2619 = vand.u32 %v2618, 4294901760
            %v2620 = vsub.f32 %v2618, %v2619
            %v2621 = vand.u32 %v2620, 4294901760
            %2622 = vmatpush.msra.mxu0 %v2621
            %v2623 = vand.u32 %v843, 4294901760
            %v2624 = vsub.f32 %v843, %v2623
            %v2625 = vand.u32 %v2624, 4294901760
            %v2626 = vsub.f32 %v2624, %v2625
            %v2627 = vand.u32 %v2626, 4294901760
            %2628 = vmatpush.msra.mxu0 %v2627
            %v2629 = vand.u32 %v841, 4294901760
            %v2630 = vsub.f32 %v841, %v2629
            %v2631 = vand.u32 %v2630, 4294901760
            %v2632 = vsub.f32 %v2630, %v2631
            %v2633 = vand.u32 %v2632, 4294901760
            %2634 = vmatpush.msra.mxu0 %v2633
            %v2635 = vand.u32 %v839, 4294901760
            %v2636 = vsub.f32 %v839, %v2635
            %v2637 = vand.u32 %v2636, 4294901760
            %v2638 = vsub.f32 %v2636, %v2637
            %v2639 = vand.u32 %v2638, 4294901760
            %2640 = vmatpush.msra.mxu0 %v2639
            %v2641 = vand.u32 %v837, 4294901760
            %v2642 = vsub.f32 %v837, %v2641
            %v2643 = vand.u32 %v2642, 4294901760
            %v2644 = vsub.f32 %v2642, %v2643
            %v2645 = vand.u32 %v2644, 4294901760
            %2646 = vmatpush.msra.mxu0 %v2645
            %v2647 = vand.u32 %v835, 4294901760
            %v2648 = vsub.f32 %v835, %v2647
            %v2649 = vand.u32 %v2648, 4294901760
            %v2650 = vsub.f32 %v2648, %v2649
            %v2651 = vand.u32 %v2650, 4294901760
            %2652 = vmatpush.msra.mxu0 %v2651
            %v2653 = vand.u32 %v833, 4294901760
            %v2654 = vsub.f32 %v833, %v2653
            %v2655 = vand.u32 %v2654, 4294901760
            %v2656 = vsub.f32 %v2654, %v2655
            %v2657 = vand.u32 %v2656, 4294901760
            %2658 = vmatpush.msra.mxu0 %v2657
            %v2659 = vand.u32 %v831, 4294901760
            %v2660 = vsub.f32 %v831, %v2659
            %v2661 = vand.u32 %v2660, 4294901760
            %v2662 = vsub.f32 %v2660, %v2661
            %v2663 = vand.u32 %v2662, 4294901760
            %2664 = vmatpush.msra.mxu0 %v2663
            %v2665 = vand.u32 %v829, 4294901760
            %v2666 = vsub.f32 %v829, %v2665
            %v2667 = vand.u32 %v2666, 4294901760
            %v2668 = vsub.f32 %v2666, %v2667
            %v2669 = vand.u32 %v2668, 4294901760
            %2670 = vmatpush.msra.mxu0 %v2669
            %v2671 = vand.u32 %v827, 4294901760
            %v2672 = vsub.f32 %v827, %v2671
            %v2673 = vand.u32 %v2672, 4294901760
            %v2674 = vsub.f32 %v2672, %v2673
            %v2675 = vand.u32 %v2674, 4294901760
            %2676 = vmatpush.msra.mxu0 %v2675
            %v2677 = vand.u32 %v825, 4294901760
            %v2678 = vsub.f32 %v825, %v2677
            %v2679 = vand.u32 %v2678, 4294901760
            %v2680 = vsub.f32 %v2678, %v2679
            %v2681 = vand.u32 %v2680, 4294901760
            %2682 = vmatpush.msra.mxu0 %v2681
            %v2683 = vand.u32 %v823, 4294901760
            %v2684 = vsub.f32 %v823, %v2683
            %v2685 = vand.u32 %v2684, 4294901760
            %v2686 = vsub.f32 %v2684, %v2685
            %v2687 = vand.u32 %v2686, 4294901760
            %2688 = vmatpush.msra.mxu0 %v2687
            %v2689 = vand.u32 %v821, 4294901760
            %v2690 = vsub.f32 %v821, %v2689
            %v2691 = vand.u32 %v2690, 4294901760
            %v2692 = vsub.f32 %v2690, %v2691
            %v2693 = vand.u32 %v2692, 4294901760
            %2694 = vmatpush.msra.mxu0 %v2693
            %v2695 = vand.u32 %v788, 4294901760
            %2696 = vmatmul.f32.gmra.mxu0 %v2695
            %v2697 = vpop.f32.mrf.mxu0
            %v2698 = vadd.f32 %v2597, %v2697
            %2699 = vdwg.mxu0
            %v2700 = vand.u32 %v851, 4294901760
            %v2701 = vsub.f32 %v851, %v2700
            %2702 = vmatpush.msra.mxu0 %v2701
            %v2703 = vand.u32 %v849, 4294901760
            %v2704 = vsub.f32 %v849, %v2703
            %2705 = vmatpush.msra.mxu0 %v2704
            %v2706 = vand.u32 %v847, 4294901760
            %v2707 = vsub.f32 %v847, %v2706
            %2708 = vmatpush.msra.mxu0 %v2707
            %v2709 = vand.u32 %v845, 4294901760
            %v2710 = vsub.f32 %v845, %v2709
            %2711 = vmatpush.msra.mxu0 %v2710
            %v2712 = vand.u32 %v843, 4294901760
            %v2713 = vsub.f32 %v843, %v2712
            %2714 = vmatpush.msra.mxu0 %v2713
            %v2715 = vand.u32 %v841, 4294901760
            %v2716 = vsub.f32 %v841, %v2715
            %2717 = vmatpush.msra.mxu0 %v2716
            %v2718 = vand.u32 %v839, 4294901760
            %v2719 = vsub.f32 %v839, %v2718
            %2720 = vmatpush.msra.mxu0 %v2719
            %v2721 = vand.u32 %v837, 4294901760
            %v2722 = vsub.f32 %v837, %v2721
            %2723 = vmatpush.msra.mxu0 %v2722
            %v2724 = vand.u32 %v835, 4294901760
            %v2725 = vsub.f32 %v835, %v2724
            %2726 = vmatpush.msra.mxu0 %v2725
            %v2727 = vand.u32 %v833, 4294901760
            %v2728 = vsub.f32 %v833, %v2727
            %2729 = vmatpush.msra.mxu0 %v2728
            %v2730 = vand.u32 %v831, 4294901760
            %v2731 = vsub.f32 %v831, %v2730
            %2732 = vmatpush.msra.mxu0 %v2731
            %v2733 = vand.u32 %v829, 4294901760
            %v2734 = vsub.f32 %v829, %v2733
            %2735 = vmatpush.msra.mxu0 %v2734
            %v2736 = vand.u32 %v827, 4294901760
            %v2737 = vsub.f32 %v827, %v2736
            %2738 = vmatpush.msra.mxu0 %v2737
            %v2739 = vand.u32 %v825, 4294901760
            %v2740 = vsub.f32 %v825, %v2739
            %2741 = vmatpush.msra.mxu0 %v2740
            %v2742 = vand.u32 %v823, 4294901760
            %v2743 = vsub.f32 %v823, %v2742
            %2744 = vmatpush.msra.mxu0 %v2743
            %v2745 = vand.u32 %v821, 4294901760
            %v2746 = vsub.f32 %v821, %v2745
            %2747 = vmatpush.msra.mxu0 %v2746
            %v2748 = vand.u32 %v788, 4294901760
            %v2749 = vsub.f32 %v788, %v2748
            %2750 = vmatmul.f32.gmra.mxu0 %v2749
            %v2751 = vpop.f32.mrf.mxu0
            %v2752 = vadd.f32 %v2698, %v2751
            %2753 = vdwg.mxu0
            %v2754 = vand.u32 %v851, 4294901760
            %2755 = vmatpush.msra.mxu0 %v2754
            %v2756 = vand.u32 %v849, 4294901760
            %2757 = vmatpush.msra.mxu0 %v2756
            %v2758 = vand.u32 %v847, 4294901760
            %2759 = vmatpush.msra.mxu0 %v2758
            %v2760 = vand.u32 %v845, 4294901760
            %2761 = vmatpush.msra.mxu0 %v2760
            %v2762 = vand.u32 %v843, 4294901760
            %2763 = vmatpush.msra.mxu0 %v2762
            %v2764 = vand.u32 %v841, 4294901760
            %2765 = vmatpush.msra.mxu0 %v2764
            %v2766 = vand.u32 %v839, 4294901760
            %2767 = vmatpush.msra.mxu0 %v2766
            %v2768 = vand.u32 %v837, 4294901760
            %2769 = vmatpush.msra.mxu0 %v2768
            %v2770 = vand.u32 %v835, 4294901760
            %2771 = vmatpush.msra.mxu0 %v2770
            %v2772 = vand.u32 %v833, 4294901760
            %2773 = vmatpush.msra.mxu0 %v2772
            %v2774 = vand.u32 %v831, 4294901760
            %2775 = vmatpush.msra.mxu0 %v2774
            %v2776 = vand.u32 %v829, 4294901760
            %2777 = vmatpush.msra.mxu0 %v2776
            %v2778 = vand.u32 %v827, 4294901760
            %2779 = vmatpush.msra.mxu0 %v2778
            %v2780 = vand.u32 %v825, 4294901760
            %2781 = vmatpush.msra.mxu0 %v2780
            %v2782 = vand.u32 %v823, 4294901760
            %2783 = vmatpush.msra.mxu0 %v2782
            %v2784 = vand.u32 %v821, 4294901760
            %2785 = vmatpush.msra.mxu0 %v2784
            %v2786 = vand.u32 %v788, 4294901760
            %v2787 = vsub.f32 %v788, %v2786
            %v2788 = vand.u32 %v2787, 4294901760
            %2789 = vmatmul.f32.gmra.mxu0 %v2788
            %v2790 = vpop.f32.mrf.mxu0
            %v2791 = vadd.f32 %v2752, %v2790
            %2792 = vdwg.mxu0
            %v2793 = vand.u32 %v851, 4294901760
            %v2794 = vsub.f32 %v851, %v2793
            %v2795 = vand.u32 %v2794, 4294901760
            %2796 = vmatpush.msra.mxu0 %v2795
            %v2797 = vand.u32 %v849, 4294901760
            %v2798 = vsub.f32 %v849, %v2797
            %v2799 = vand.u32 %v2798, 4294901760
            %2800 = vmatpush.msra.mxu0 %v2799
            %v2801 = vand.u32 %v847, 4294901760
            %v2802 = vsub.f32 %v847, %v2801
            %v2803 = vand.u32 %v2802, 4294901760
            %2804 = vmatpush.msra.mxu0 %v2803
            %v2805 = vand.u32 %v845, 4294901760
            %v2806 = vsub.f32 %v845, %v2805
            %v2807 = vand.u32 %v2806, 4294901760
            %2808 = vmatpush.msra.mxu0 %v2807
            %v2809 = vand.u32 %v843, 4294901760
            %v2810 = vsub.f32 %v843, %v2809
            %v2811 = vand.u32 %v2810, 4294901760
            %2812 = vmatpush.msra.mxu0 %v2811
            %v2813 = vand.u32 %v841, 4294901760
            %v2814 = vsub.f32 %v841, %v2813
            %v2815 = vand.u32 %v2814, 4294901760
            %2816 = vmatpush.msra.mxu0 %v2815
            %v2817 = vand.u32 %v839, 4294901760
            %v2818 = vsub.f32 %v839, %v2817
            %v2819 = vand.u32 %v2818, 4294901760
            %2820 = vmatpush.msra.mxu0 %v2819
            %v2821 = vand.u32 %v837, 4294901760
            %v2822 = vsub.f32 %v837, %v2821
            %v2823 = vand.u32 %v2822, 4294901760
            %2824 = vmatpush.msra.mxu0 %v2823
            %v2825 = vand.u32 %v835, 4294901760
            %v2826 = vsub.f32 %v835, %v2825
            %v2827 = vand.u32 %v2826, 4294901760
            %2828 = vmatpush.msra.mxu0 %v2827
            %v2829 = vand.u32 %v833, 4294901760
            %v2830 = vsub.f32 %v833, %v2829
            %v2831 = vand.u32 %v2830, 4294901760
            %2832 = vmatpush.msra.mxu0 %v2831
            %v2833 = vand.u32 %v831, 4294901760
            %v2834 = vsub.f32 %v831, %v2833
            %v2835 = vand.u32 %v2834, 4294901760
            %2836 = vmatpush.msra.mxu0 %v2835
            %v2837 = vand.u32 %v829, 4294901760
            %v2838 = vsub.f32 %v829, %v2837
            %v2839 = vand.u32 %v2838, 4294901760
            %2840 = vmatpush.msra.mxu0 %v2839
            %v2841 = vand.u32 %v827, 4294901760
            %v2842 = vsub.f32 %v827, %v2841
            %v2843 = vand.u32 %v2842, 4294901760
            %2844 = vmatpush.msra.mxu0 %v2843
            %v2845 = vand.u32 %v825, 4294901760
            %v2846 = vsub.f32 %v825, %v2845
            %v2847 = vand.u32 %v2846, 4294901760
            %2848 = vmatpush.msra.mxu0 %v2847
            %v2849 = vand.u32 %v823, 4294901760
            %v2850 = vsub.f32 %v823, %v2849
            %v2851 = vand.u32 %v2850, 4294901760
            %2852 = vmatpush.msra.mxu0 %v2851
            %v2853 = vand.u32 %v821, 4294901760
            %v2854 = vsub.f32 %v821, %v2853
            %v2855 = vand.u32 %v2854, 4294901760
            %2856 = vmatpush.msra.mxu0 %v2855
            %v2857 = vand.u32 %v788, 4294901760
            %2858 = vmatmul.f32.gmra.mxu0 %v2857
            %v2859 = vpop.f32.mrf.mxu0
            %v2860 = vadd.f32 %v2791, %v2859
            %2861 = vdwg.mxu0
            %v2862 = vand.u32 %v851, 4294901760
            %2863 = vmatpush.msra.mxu0 %v2862
            %v2864 = vand.u32 %v849, 4294901760
            %2865 = vmatpush.msra.mxu0 %v2864
            %v2866 = vand.u32 %v847, 4294901760
            %2867 = vmatpush.msra.mxu0 %v2866
            %v2868 = vand.u32 %v845, 4294901760
            %2869 = vmatpush.msra.mxu0 %v2868
            %v2870 = vand.u32 %v843, 4294901760
            %2871 = vmatpush.msra.mxu0 %v2870
            %v2872 = vand.u32 %v841, 4294901760
            %2873 = vmatpush.msra.mxu0 %v2872
            %v2874 = vand.u32 %v839, 4294901760
            %2875 = vmatpush.msra.mxu0 %v2874
            %v2876 = vand.u32 %v837, 4294901760
            %2877 = vmatpush.msra.mxu0 %v2876
            %v2878 = vand.u32 %v835, 4294901760
            %2879 = vmatpush.msra.mxu0 %v2878
            %v2880 = vand.u32 %v833, 4294901760
            %2881 = vmatpush.msra.mxu0 %v2880
            %v2882 = vand.u32 %v831, 4294901760
            %2883 = vmatpush.msra.mxu0 %v2882
            %v2884 = vand.u32 %v829, 4294901760
            %2885 = vmatpush.msra.mxu0 %v2884
            %v2886 = vand.u32 %v827, 4294901760
            %2887 = vmatpush.msra.mxu0 %v2886
            %v2888 = vand.u32 %v825, 4294901760
            %2889 = vmatpush.msra.mxu0 %v2888
            %v2890 = vand.u32 %v823, 4294901760
            %2891 = vmatpush.msra.mxu0 %v2890
            %v2892 = vand.u32 %v821, 4294901760
            %2893 = vmatpush.msra.mxu0 %v2892
            %v2894 = vand.u32 %v788, 4294901760
            %2895 = vmatmul.f32.gmra.mxu0 %v2894
            %v2896 = vpop.f32.mrf.mxu0
            %v2897 = vadd.f32 %v2860, %v2896
            %2898 = vdwg.mxu0
            %v2899 = vand.u32 %v820, 4294901760
            %2900 = vmatpush.msra.mxu0 %v2899
            %v2901 = vand.u32 %v818, 4294901760
            %2902 = vmatpush.msra.mxu0 %v2901
            %v2903 = vand.u32 %v816, 4294901760
            %2904 = vmatpush.msra.mxu0 %v2903
            %v2905 = vand.u32 %v814, 4294901760
            %2906 = vmatpush.msra.mxu0 %v2905
            %v2907 = vand.u32 %v812, 4294901760
            %2908 = vmatpush.msra.mxu0 %v2907
            %v2909 = vand.u32 %v810, 4294901760
            %2910 = vmatpush.msra.mxu0 %v2909
            %v2911 = vand.u32 %v808, 4294901760
            %2912 = vmatpush.msra.mxu0 %v2911
            %v2913 = vand.u32 %v806, 4294901760
            %2914 = vmatpush.msra.mxu0 %v2913
            %v2915 = vand.u32 %v804, 4294901760
            %2916 = vmatpush.msra.mxu0 %v2915
            %v2917 = vand.u32 %v802, 4294901760
            %2918 = vmatpush.msra.mxu0 %v2917
            %v2919 = vand.u32 %v800, 4294901760
            %2920 = vmatpush.msra.mxu0 %v2919
            %v2921 = vand.u32 %v798, 4294901760
            %2922 = vmatpush.msra.mxu0 %v2921
            %v2923 = vand.u32 %v796, 4294901760
            %2924 = vmatpush.msra.mxu0 %v2923
            %v2925 = vand.u32 %v794, 4294901760
            %2926 = vmatpush.msra.mxu0 %v2925
            %v2927 = vand.u32 %v792, 4294901760
            %2928 = vmatpush.msra.mxu0 %v2927
            %v2929 = vand.u32 %v790, 4294901760
            %2930 = vmatpush.msra.mxu0 %v2929
            %v2931 = vand.u32 %v775, 4294901760
            %v2932 = vsub.f32 %v775, %v2931
            %v2933 = vand.u32 %v2932, 4294901760
            %v2934 = vsub.f32 %v2932, %v2933
            %v2935 = vand.u32 %v2934, 4294901760
            %2936 = vmatmul.f32.gmra.mxu0 %v2935
            %v2937 = vpop.f32.mrf.mxu0
            %v2938 = vadd.f32 0.0, %v2937
            %2939 = vdwg.mxu0
            %v2940 = vand.u32 %v820, 4294901760
            %v2941 = vsub.f32 %v820, %v2940
            %v2942 = vand.u32 %v2941, 4294901760
            %v2943 = vsub.f32 %v2941, %v2942
            %v2944 = vand.u32 %v2943, 4294901760
            %2945 = vmatpush.msra.mxu0 %v2944
            %v2946 = vand.u32 %v818, 4294901760
            %v2947 = vsub.f32 %v818, %v2946
            %v2948 = vand.u32 %v2947, 4294901760
            %v2949 = vsub.f32 %v2947, %v2948
            %v2950 = vand.u32 %v2949, 4294901760
            %2951 = vmatpush.msra.mxu0 %v2950
            %v2952 = vand.u32 %v816, 4294901760
            %v2953 = vsub.f32 %v816, %v2952
            %v2954 = vand.u32 %v2953, 4294901760
            %v2955 = vsub.f32 %v2953, %v2954
            %v2956 = vand.u32 %v2955, 4294901760
            %2957 = vmatpush.msra.mxu0 %v2956
            %v2958 = vand.u32 %v814, 4294901760
            %v2959 = vsub.f32 %v814, %v2958
            %v2960 = vand.u32 %v2959, 4294901760
            %v2961 = vsub.f32 %v2959, %v2960
            %v2962 = vand.u32 %v2961, 4294901760
            %2963 = vmatpush.msra.mxu0 %v2962
            %v2964 = vand.u32 %v812, 4294901760
            %v2965 = vsub.f32 %v812, %v2964
            %v2966 = vand.u32 %v2965, 4294901760
            %v2967 = vsub.f32 %v2965, %v2966
            %v2968 = vand.u32 %v2967, 4294901760
            %2969 = vmatpush.msra.mxu0 %v2968
            %v2970 = vand.u32 %v810, 4294901760
            %v2971 = vsub.f32 %v810, %v2970
            %v2972 = vand.u32 %v2971, 4294901760
            %v2973 = vsub.f32 %v2971, %v2972
            %v2974 = vand.u32 %v2973, 4294901760
            %2975 = vmatpush.msra.mxu0 %v2974
            %v2976 = vand.u32 %v808, 4294901760
            %v2977 = vsub.f32 %v808, %v2976
            %v2978 = vand.u32 %v2977, 4294901760
            %v2979 = vsub.f32 %v2977, %v2978
            %v2980 = vand.u32 %v2979, 4294901760
            %2981 = vmatpush.msra.mxu0 %v2980
            %v2982 = vand.u32 %v806, 4294901760
            %v2983 = vsub.f32 %v806, %v2982
            %v2984 = vand.u32 %v2983, 4294901760
            %v2985 = vsub.f32 %v2983, %v2984
            %v2986 = vand.u32 %v2985, 4294901760
            %2987 = vmatpush.msra.mxu0 %v2986
            %v2988 = vand.u32 %v804, 4294901760
            %v2989 = vsub.f32 %v804, %v2988
            %v2990 = vand.u32 %v2989, 4294901760
            %v2991 = vsub.f32 %v2989, %v2990
            %v2992 = vand.u32 %v2991, 4294901760
            %2993 = vmatpush.msra.mxu0 %v2992
            %v2994 = vand.u32 %v802, 4294901760
            %v2995 = vsub.f32 %v802, %v2994
            %v2996 = vand.u32 %v2995, 4294901760
            %v2997 = vsub.f32 %v2995, %v2996
            %v2998 = vand.u32 %v2997, 4294901760
            %2999 = vmatpush.msra.mxu0 %v2998
            %v3000 = vand.u32 %v800, 4294901760
            %v3001 = vsub.f32 %v800, %v3000
            %v3002 = vand.u32 %v3001, 4294901760
            %v3003 = vsub.f32 %v3001, %v3002
            %v3004 = vand.u32 %v3003, 4294901760
            %3005 = vmatpush.msra.mxu0 %v3004
            %v3006 = vand.u32 %v798, 4294901760
            %v3007 = vsub.f32 %v798, %v3006
            %v3008 = vand.u32 %v3007, 4294901760
            %v3009 = vsub.f32 %v3007, %v3008
            %v3010 = vand.u32 %v3009, 4294901760
            %3011 = vmatpush.msra.mxu0 %v3010
            %v3012 = vand.u32 %v796, 4294901760
            %v3013 = vsub.f32 %v796, %v3012
            %v3014 = vand.u32 %v3013, 4294901760
            %v3015 = vsub.f32 %v3013, %v3014
            %v3016 = vand.u32 %v3015, 4294901760
            %3017 = vmatpush.msra.mxu0 %v3016
            %v3018 = vand.u32 %v794, 4294901760
            %v3019 = vsub.f32 %v794, %v3018
            %v3020 = vand.u32 %v3019, 4294901760
            %v3021 = vsub.f32 %v3019, %v3020
            %v3022 = vand.u32 %v3021, 4294901760
            %3023 = vmatpush.msra.mxu0 %v3022
            %v3024 = vand.u32 %v792, 4294901760
            %v3025 = vsub.f32 %v792, %v3024
            %v3026 = vand.u32 %v3025, 4294901760
            %v3027 = vsub.f32 %v3025, %v3026
            %v3028 = vand.u32 %v3027, 4294901760
            %3029 = vmatpush.msra.mxu0 %v3028
            %v3030 = vand.u32 %v790, 4294901760
            %v3031 = vsub.f32 %v790, %v3030
            %v3032 = vand.u32 %v3031, 4294901760
            %v3033 = vsub.f32 %v3031, %v3032
            %v3034 = vand.u32 %v3033, 4294901760
            %3035 = vmatpush.msra.mxu0 %v3034
            %v3036 = vand.u32 %v775, 4294901760
            %3037 = vmatmul.f32.gmra.mxu0 %v3036
            %v3038 = vpop.f32.mrf.mxu0
            %v3039 = vadd.f32 %v2938, %v3038
            %3040 = vdwg.mxu0
            %v3041 = vand.u32 %v820, 4294901760
            %v3042 = vsub.f32 %v820, %v3041
            %3043 = vmatpush.msra.mxu0 %v3042
            %v3044 = vand.u32 %v818, 4294901760
            %v3045 = vsub.f32 %v818, %v3044
            %3046 = vmatpush.msra.mxu0 %v3045
            %v3047 = vand.u32 %v816, 4294901760
            %v3048 = vsub.f32 %v816, %v3047
            %3049 = vmatpush.msra.mxu0 %v3048
            %v3050 = vand.u32 %v814, 4294901760
            %v3051 = vsub.f32 %v814, %v3050
            %3052 = vmatpush.msra.mxu0 %v3051
            %v3053 = vand.u32 %v812, 4294901760
            %v3054 = vsub.f32 %v812, %v3053
            %3055 = vmatpush.msra.mxu0 %v3054
            %v3056 = vand.u32 %v810, 4294901760
            %v3057 = vsub.f32 %v810, %v3056
            %3058 = vmatpush.msra.mxu0 %v3057
            %v3059 = vand.u32 %v808, 4294901760
            %v3060 = vsub.f32 %v808, %v3059
            %3061 = vmatpush.msra.mxu0 %v3060
            %v3062 = vand.u32 %v806, 4294901760
            %v3063 = vsub.f32 %v806, %v3062
            %3064 = vmatpush.msra.mxu0 %v3063
            %v3065 = vand.u32 %v804, 4294901760
            %v3066 = vsub.f32 %v804, %v3065
            %3067 = vmatpush.msra.mxu0 %v3066
            %v3068 = vand.u32 %v802, 4294901760
            %v3069 = vsub.f32 %v802, %v3068
            %3070 = vmatpush.msra.mxu0 %v3069
            %v3071 = vand.u32 %v800, 4294901760
            %v3072 = vsub.f32 %v800, %v3071
            %3073 = vmatpush.msra.mxu0 %v3072
            %v3074 = vand.u32 %v798, 4294901760
            %v3075 = vsub.f32 %v798, %v3074
            %3076 = vmatpush.msra.mxu0 %v3075
            %v3077 = vand.u32 %v796, 4294901760
            %v3078 = vsub.f32 %v796, %v3077
            %3079 = vmatpush.msra.mxu0 %v3078
            %v3080 = vand.u32 %v794, 4294901760
            %v3081 = vsub.f32 %v794, %v3080
            %3082 = vmatpush.msra.mxu0 %v3081
            %v3083 = vand.u32 %v792, 4294901760
            %v3084 = vsub.f32 %v792, %v3083
            %3085 = vmatpush.msra.mxu0 %v3084
            %v3086 = vand.u32 %v790, 4294901760
            %v3087 = vsub.f32 %v790, %v3086
            %3088 = vmatpush.msra.mxu0 %v3087
            %v3089 = vand.u32 %v775, 4294901760
            %v3090 = vsub.f32 %v775, %v3089
            %3091 = vmatmul.f32.gmra.mxu0 %v3090
            %v3092 = vpop.f32.mrf.mxu0
            %v3093 = vadd.f32 %v3039, %v3092
            %3094 = vdwg.mxu0
            %v3095 = vand.u32 %v820, 4294901760
            %3096 = vmatpush.msra.mxu0 %v3095
            %v3097 = vand.u32 %v818, 4294901760
            %3098 = vmatpush.msra.mxu0 %v3097
            %v3099 = vand.u32 %v816, 4294901760
            %3100 = vmatpush.msra.mxu0 %v3099
            %v3101 = vand.u32 %v814, 4294901760
            %3102 = vmatpush.msra.mxu0 %v3101
            %v3103 = vand.u32 %v812, 4294901760
            %3104 = vmatpush.msra.mxu0 %v3103
            %v3105 = vand.u32 %v810, 4294901760
            %3106 = vmatpush.msra.mxu0 %v3105
            %v3107 = vand.u32 %v808, 4294901760
            %3108 = vmatpush.msra.mxu0 %v3107
            %v3109 = vand.u32 %v806, 4294901760
            %3110 = vmatpush.msra.mxu0 %v3109
            %v3111 = vand.u32 %v804, 4294901760
            %3112 = vmatpush.msra.mxu0 %v3111
            %v3113 = vand.u32 %v802, 4294901760
            %3114 = vmatpush.msra.mxu0 %v3113
            %v3115 = vand.u32 %v800, 4294901760
            %3116 = vmatpush.msra.mxu0 %v3115
            %v3117 = vand.u32 %v798, 4294901760
            %3118 = vmatpush.msra.mxu0 %v3117
            %v3119 = vand.u32 %v796, 4294901760
            %3120 = vmatpush.msra.mxu0 %v3119
            %v3121 = vand.u32 %v794, 4294901760
            %3122 = vmatpush.msra.mxu0 %v3121
            %v3123 = vand.u32 %v792, 4294901760
            %3124 = vmatpush.msra.mxu0 %v3123
            %v3125 = vand.u32 %v790, 4294901760
            %3126 = vmatpush.msra.mxu0 %v3125
            %v3127 = vand.u32 %v775, 4294901760
            %v3128 = vsub.f32 %v775, %v3127
            %v3129 = vand.u32 %v3128, 4294901760
            %3130 = vmatmul.f32.gmra.mxu0 %v3129
            %v3131 = vpop.f32.mrf.mxu0
            %v3132 = vadd.f32 %v3093, %v3131
            %3133 = vdwg.mxu0
            %v3134 = vand.u32 %v820, 4294901760
            %v3135 = vsub.f32 %v820, %v3134
            %v3136 = vand.u32 %v3135, 4294901760
            %3137 = vmatpush.msra.mxu0 %v3136
            %v3138 = vand.u32 %v818, 4294901760
            %v3139 = vsub.f32 %v818, %v3138
            %v3140 = vand.u32 %v3139, 4294901760
            %3141 = vmatpush.msra.mxu0 %v3140
            %v3142 = vand.u32 %v816, 4294901760
            %v3143 = vsub.f32 %v816, %v3142
            %v3144 = vand.u32 %v3143, 4294901760
            %3145 = vmatpush.msra.mxu0 %v3144
            %v3146 = vand.u32 %v814, 4294901760
            %v3147 = vsub.f32 %v814, %v3146
            %v3148 = vand.u32 %v3147, 4294901760
            %3149 = vmatpush.msra.mxu0 %v3148
            %v3150 = vand.u32 %v812, 4294901760
            %v3151 = vsub.f32 %v812, %v3150
            %v3152 = vand.u32 %v3151, 4294901760
            %3153 = vmatpush.msra.mxu0 %v3152
            %v3154 = vand.u32 %v810, 4294901760
            %v3155 = vsub.f32 %v810, %v3154
            %v3156 = vand.u32 %v3155, 4294901760
            %3157 = vmatpush.msra.mxu0 %v3156
            %v3158 = vand.u32 %v808, 4294901760
            %v3159 = vsub.f32 %v808, %v3158
            %v3160 = vand.u32 %v3159, 4294901760
            %3161 = vmatpush.msra.mxu0 %v3160
            %v3162 = vand.u32 %v806, 4294901760
            %v3163 = vsub.f32 %v806, %v3162
            %v3164 = vand.u32 %v3163, 4294901760
            %3165 = vmatpush.msra.mxu0 %v3164
            %v3166 = vand.u32 %v804, 4294901760
            %v3167 = vsub.f32 %v804, %v3166
            %v3168 = vand.u32 %v3167, 4294901760
            %3169 = vmatpush.msra.mxu0 %v3168
            %v3170 = vand.u32 %v802, 4294901760
            %v3171 = vsub.f32 %v802, %v3170
            %v3172 = vand.u32 %v3171, 4294901760
            %3173 = vmatpush.msra.mxu0 %v3172
            %v3174 = vand.u32 %v800, 4294901760
            %v3175 = vsub.f32 %v800, %v3174
            %v3176 = vand.u32 %v3175, 4294901760
            %3177 = vmatpush.msra.mxu0 %v3176
            %v3178 = vand.u32 %v798, 4294901760
            %v3179 = vsub.f32 %v798, %v3178
            %v3180 = vand.u32 %v3179, 4294901760
            %3181 = vmatpush.msra.mxu0 %v3180
            %v3182 = vand.u32 %v796, 4294901760
            %v3183 = vsub.f32 %v796, %v3182
            %v3184 = vand.u32 %v3183, 4294901760
            %3185 = vmatpush.msra.mxu0 %v3184
            %v3186 = vand.u32 %v794, 4294901760
            %v3187 = vsub.f32 %v794, %v3186
            %v3188 = vand.u32 %v3187, 4294901760
            %3189 = vmatpush.msra.mxu0 %v3188
            %v3190 = vand.u32 %v792, 4294901760
            %v3191 = vsub.f32 %v792, %v3190
            %v3192 = vand.u32 %v3191, 4294901760
            %3193 = vmatpush.msra.mxu0 %v3192
            %v3194 = vand.u32 %v790, 4294901760
            %v3195 = vsub.f32 %v790, %v3194
            %v3196 = vand.u32 %v3195, 4294901760
            %3197 = vmatpush.msra.mxu0 %v3196
            %v3198 = vand.u32 %v775, 4294901760
            %3199 = vmatmul.f32.gmra.mxu0 %v3198
            %v3200 = vpop.f32.mrf.mxu0
            %v3201 = vadd.f32 %v3132, %v3200
            %3202 = vdwg.mxu0
            %v3203 = vand.u32 %v820, 4294901760
            %3204 = vmatpush.msra.mxu0 %v3203
            %v3205 = vand.u32 %v818, 4294901760
            %3206 = vmatpush.msra.mxu0 %v3205
            %v3207 = vand.u32 %v816, 4294901760
            %3208 = vmatpush.msra.mxu0 %v3207
            %v3209 = vand.u32 %v814, 4294901760
            %3210 = vmatpush.msra.mxu0 %v3209
            %v3211 = vand.u32 %v812, 4294901760
            %3212 = vmatpush.msra.mxu0 %v3211
            %v3213 = vand.u32 %v810, 4294901760
            %3214 = vmatpush.msra.mxu0 %v3213
            %v3215 = vand.u32 %v808, 4294901760
            %3216 = vmatpush.msra.mxu0 %v3215
            %v3217 = vand.u32 %v806, 4294901760
            %3218 = vmatpush.msra.mxu0 %v3217
            %v3219 = vand.u32 %v804, 4294901760
            %3220 = vmatpush.msra.mxu0 %v3219
            %v3221 = vand.u32 %v802, 4294901760
            %3222 = vmatpush.msra.mxu0 %v3221
            %v3223 = vand.u32 %v800, 4294901760
            %3224 = vmatpush.msra.mxu0 %v3223
            %v3225 = vand.u32 %v798, 4294901760
            %3226 = vmatpush.msra.mxu0 %v3225
            %v3227 = vand.u32 %v796, 4294901760
            %3228 = vmatpush.msra.mxu0 %v3227
            %v3229 = vand.u32 %v794, 4294901760
            %3230 = vmatpush.msra.mxu0 %v3229
            %v3231 = vand.u32 %v792, 4294901760
            %3232 = vmatpush.msra.mxu0 %v3231
            %v3233 = vand.u32 %v790, 4294901760
            %3234 = vmatpush.msra.mxu0 %v3233
            %v3235 = vand.u32 %v775, 4294901760
            %3236 = vmatmul.f32.gmra.mxu0 %v3235
            %v3237 = vpop.f32.mrf.mxu0
            %v3238 = vadd.f32 %v3201, %v3237
            %3239 = vdwg.mxu0
            %v3240 = vand.u32 %v852, 4294901760
            %3241 = vmatpush.msra.mxu0 %v3240
            %v3242 = vand.u32 %v850, 4294901760
            %3243 = vmatpush.msra.mxu0 %v3242
            %v3244 = vand.u32 %v848, 4294901760
            %3245 = vmatpush.msra.mxu0 %v3244
            %v3246 = vand.u32 %v846, 4294901760
            %3247 = vmatpush.msra.mxu0 %v3246
            %v3248 = vand.u32 %v844, 4294901760
            %3249 = vmatpush.msra.mxu0 %v3248
            %v3250 = vand.u32 %v842, 4294901760
            %3251 = vmatpush.msra.mxu0 %v3250
            %v3252 = vand.u32 %v840, 4294901760
            %3253 = vmatpush.msra.mxu0 %v3252
            %v3254 = vand.u32 %v838, 4294901760
            %3255 = vmatpush.msra.mxu0 %v3254
            %v3256 = vand.u32 %v836, 4294901760
            %3257 = vmatpush.msra.mxu0 %v3256
            %v3258 = vand.u32 %v834, 4294901760
            %3259 = vmatpush.msra.mxu0 %v3258
            %v3260 = vand.u32 %v832, 4294901760
            %3261 = vmatpush.msra.mxu0 %v3260
            %v3262 = vand.u32 %v830, 4294901760
            %3263 = vmatpush.msra.mxu0 %v3262
            %v3264 = vand.u32 %v828, 4294901760
            %3265 = vmatpush.msra.mxu0 %v3264
            %v3266 = vand.u32 %v826, 4294901760
            %3267 = vmatpush.msra.mxu0 %v3266
            %v3268 = vand.u32 %v824, 4294901760
            %3269 = vmatpush.msra.mxu0 %v3268
            %v3270 = vand.u32 %v822, 4294901760
            %3271 = vmatpush.msra.mxu0 %v3270
            %v3272 = vand.u32 %v788, 4294901760
            %v3273 = vsub.f32 %v788, %v3272
            %v3274 = vand.u32 %v3273, 4294901760
            %v3275 = vsub.f32 %v3273, %v3274
            %v3276 = vand.u32 %v3275, 4294901760
            %3277 = vmatmul.f32.gmra.mxu0 %v3276
            %v3278 = vpop.f32.mrf.mxu0
            %v3279 = vadd.f32 %v3238, %v3278
            %3280 = vdwg.mxu0
            %v3281 = vand.u32 %v852, 4294901760
            %v3282 = vsub.f32 %v852, %v3281
            %v3283 = vand.u32 %v3282, 4294901760
            %v3284 = vsub.f32 %v3282, %v3283
            %v3285 = vand.u32 %v3284, 4294901760
            %3286 = vmatpush.msra.mxu0 %v3285
            %v3287 = vand.u32 %v850, 4294901760
            %v3288 = vsub.f32 %v850, %v3287
            %v3289 = vand.u32 %v3288, 4294901760
            %v3290 = vsub.f32 %v3288, %v3289
            %v3291 = vand.u32 %v3290, 4294901760
            %3292 = vmatpush.msra.mxu0 %v3291
            %v3293 = vand.u32 %v848, 4294901760
            %v3294 = vsub.f32 %v848, %v3293
            %v3295 = vand.u32 %v3294, 4294901760
            %v3296 = vsub.f32 %v3294, %v3295
            %v3297 = vand.u32 %v3296, 4294901760
            %3298 = vmatpush.msra.mxu0 %v3297
            %v3299 = vand.u32 %v846, 4294901760
            %v3300 = vsub.f32 %v846, %v3299
            %v3301 = vand.u32 %v3300, 4294901760
            %v3302 = vsub.f32 %v3300, %v3301
            %v3303 = vand.u32 %v3302, 4294901760
            %3304 = vmatpush.msra.mxu0 %v3303
            %v3305 = vand.u32 %v844, 4294901760
            %v3306 = vsub.f32 %v844, %v3305
            %v3307 = vand.u32 %v3306, 4294901760
            %v3308 = vsub.f32 %v3306, %v3307
            %v3309 = vand.u32 %v3308, 4294901760
            %3310 = vmatpush.msra.mxu0 %v3309
            %v3311 = vand.u32 %v842, 4294901760
            %v3312 = vsub.f32 %v842, %v3311
            %v3313 = vand.u32 %v3312, 4294901760
            %v3314 = vsub.f32 %v3312, %v3313
            %v3315 = vand.u32 %v3314, 4294901760
            %3316 = vmatpush.msra.mxu0 %v3315
            %v3317 = vand.u32 %v840, 4294901760
            %v3318 = vsub.f32 %v840, %v3317
            %v3319 = vand.u32 %v3318, 4294901760
            %v3320 = vsub.f32 %v3318, %v3319
            %v3321 = vand.u32 %v3320, 4294901760
            %3322 = vmatpush.msra.mxu0 %v3321
            %v3323 = vand.u32 %v838, 4294901760
            %v3324 = vsub.f32 %v838, %v3323
            %v3325 = vand.u32 %v3324, 4294901760
            %v3326 = vsub.f32 %v3324, %v3325
            %v3327 = vand.u32 %v3326, 4294901760
            %3328 = vmatpush.msra.mxu0 %v3327
            %v3329 = vand.u32 %v836, 4294901760
            %v3330 = vsub.f32 %v836, %v3329
            %v3331 = vand.u32 %v3330, 4294901760
            %v3332 = vsub.f32 %v3330, %v3331
            %v3333 = vand.u32 %v3332, 4294901760
            %3334 = vmatpush.msra.mxu0 %v3333
            %v3335 = vand.u32 %v834, 4294901760
            %v3336 = vsub.f32 %v834, %v3335
            %v3337 = vand.u32 %v3336, 4294901760
            %v3338 = vsub.f32 %v3336, %v3337
            %v3339 = vand.u32 %v3338, 4294901760
            %3340 = vmatpush.msra.mxu0 %v3339
            %v3341 = vand.u32 %v832, 4294901760
            %v3342 = vsub.f32 %v832, %v3341
            %v3343 = vand.u32 %v3342, 4294901760
            %v3344 = vsub.f32 %v3342, %v3343
            %v3345 = vand.u32 %v3344, 4294901760
            %3346 = vmatpush.msra.mxu0 %v3345
            %v3347 = vand.u32 %v830, 4294901760
            %v3348 = vsub.f32 %v830, %v3347
            %v3349 = vand.u32 %v3348, 4294901760
            %v3350 = vsub.f32 %v3348, %v3349
            %v3351 = vand.u32 %v3350, 4294901760
            %3352 = vmatpush.msra.mxu0 %v3351
            %v3353 = vand.u32 %v828, 4294901760
            %v3354 = vsub.f32 %v828, %v3353
            %v3355 = vand.u32 %v3354, 4294901760
            %v3356 = vsub.f32 %v3354, %v3355
            %v3357 = vand.u32 %v3356, 4294901760
            %3358 = vmatpush.msra.mxu0 %v3357
            %v3359 = vand.u32 %v826, 4294901760
            %v3360 = vsub.f32 %v826, %v3359
            %v3361 = vand.u32 %v3360, 4294901760
            %v3362 = vsub.f32 %v3360, %v3361
            %v3363 = vand.u32 %v3362, 4294901760
            %3364 = vmatpush.msra.mxu0 %v3363
            %v3365 = vand.u32 %v824, 4294901760
            %v3366 = vsub.f32 %v824, %v3365
            %v3367 = vand.u32 %v3366, 4294901760
            %v3368 = vsub.f32 %v3366, %v3367
            %v3369 = vand.u32 %v3368, 4294901760
            %3370 = vmatpush.msra.mxu0 %v3369
            %v3371 = vand.u32 %v822, 4294901760
            %v3372 = vsub.f32 %v822, %v3371
            %v3373 = vand.u32 %v3372, 4294901760
            %v3374 = vsub.f32 %v3372, %v3373
            %v3375 = vand.u32 %v3374, 4294901760
            %3376 = vmatpush.msra.mxu0 %v3375
            %v3377 = vand.u32 %v788, 4294901760
            %3378 = vmatmul.f32.gmra.mxu0 %v3377
            %v3379 = vpop.f32.mrf.mxu0
            %v3380 = vadd.f32 %v3279, %v3379
            %3381 = vdwg.mxu0
            %v3382 = vand.u32 %v852, 4294901760
            %v3383 = vsub.f32 %v852, %v3382
            %3384 = vmatpush.msra.mxu0 %v3383
            %v3385 = vand.u32 %v850, 4294901760
            %v3386 = vsub.f32 %v850, %v3385
            %3387 = vmatpush.msra.mxu0 %v3386
            %v3388 = vand.u32 %v848, 4294901760
            %v3389 = vsub.f32 %v848, %v3388
            %3390 = vmatpush.msra.mxu0 %v3389
            %v3391 = vand.u32 %v846, 4294901760
            %v3392 = vsub.f32 %v846, %v3391
            %3393 = vmatpush.msra.mxu0 %v3392
            %v3394 = vand.u32 %v844, 4294901760
            %v3395 = vsub.f32 %v844, %v3394
            %3396 = vmatpush.msra.mxu0 %v3395
            %v3397 = vand.u32 %v842, 4294901760
            %v3398 = vsub.f32 %v842, %v3397
            %3399 = vmatpush.msra.mxu0 %v3398
            %v3400 = vand.u32 %v840, 4294901760
            %v3401 = vsub.f32 %v840, %v3400
            %3402 = vmatpush.msra.mxu0 %v3401
            %v3403 = vand.u32 %v838, 4294901760
            %v3404 = vsub.f32 %v838, %v3403
            %3405 = vmatpush.msra.mxu0 %v3404
            %v3406 = vand.u32 %v836, 4294901760
            %v3407 = vsub.f32 %v836, %v3406
            %3408 = vmatpush.msra.mxu0 %v3407
            %v3409 = vand.u32 %v834, 4294901760
            %v3410 = vsub.f32 %v834, %v3409
            %3411 = vmatpush.msra.mxu0 %v3410
            %v3412 = vand.u32 %v832, 4294901760
            %v3413 = vsub.f32 %v832, %v3412
            %3414 = vmatpush.msra.mxu0 %v3413
            %v3415 = vand.u32 %v830, 4294901760
            %v3416 = vsub.f32 %v830, %v3415
            %3417 = vmatpush.msra.mxu0 %v3416
            %v3418 = vand.u32 %v828, 4294901760
            %v3419 = vsub.f32 %v828, %v3418
            %3420 = vmatpush.msra.mxu0 %v3419
            %v3421 = vand.u32 %v826, 4294901760
            %v3422 = vsub.f32 %v826, %v3421
            %3423 = vmatpush.msra.mxu0 %v3422
            %v3424 = vand.u32 %v824, 4294901760
            %v3425 = vsub.f32 %v824, %v3424
            %3426 = vmatpush.msra.mxu0 %v3425
            %v3427 = vand.u32 %v822, 4294901760
            %v3428 = vsub.f32 %v822, %v3427
            %3429 = vmatpush.msra.mxu0 %v3428
            %v3430 = vand.u32 %v788, 4294901760
            %v3431 = vsub.f32 %v788, %v3430
            %3432 = vmatmul.f32.gmra.mxu0 %v3431
            %v3433 = vpop.f32.mrf.mxu0
            %v3434 = vadd.f32 %v3380, %v3433
            %3435 = vdwg.mxu0
            %v3436 = vand.u32 %v852, 4294901760
            %3437 = vmatpush.msra.mxu0 %v3436
            %v3438 = vand.u32 %v850, 4294901760
            %3439 = vmatpush.msra.mxu0 %v3438
            %v3440 = vand.u32 %v848, 4294901760
            %3441 = vmatpush.msra.mxu0 %v3440
            %v3442 = vand.u32 %v846, 4294901760
            %3443 = vmatpush.msra.mxu0 %v3442
            %v3444 = vand.u32 %v844, 4294901760
            %3445 = vmatpush.msra.mxu0 %v3444
            %v3446 = vand.u32 %v842, 4294901760
            %3447 = vmatpush.msra.mxu0 %v3446
            %v3448 = vand.u32 %v840, 4294901760
            %3449 = vmatpush.msra.mxu0 %v3448
            %v3450 = vand.u32 %v838, 4294901760
            %3451 = vmatpush.msra.mxu0 %v3450
            %v3452 = vand.u32 %v836, 4294901760
            %3453 = vmatpush.msra.mxu0 %v3452
            %v3454 = vand.u32 %v834, 4294901760
            %3455 = vmatpush.msra.mxu0 %v3454
            %v3456 = vand.u32 %v832, 4294901760
            %3457 = vmatpush.msra.mxu0 %v3456
            %v3458 = vand.u32 %v830, 4294901760
            %3459 = vmatpush.msra.mxu0 %v3458
            %v3460 = vand.u32 %v828, 4294901760
            %3461 = vmatpush.msra.mxu0 %v3460
            %v3462 = vand.u32 %v826, 4294901760
            %3463 = vmatpush.msra.mxu0 %v3462
            %v3464 = vand.u32 %v824, 4294901760
            %3465 = vmatpush.msra.mxu0 %v3464
            %v3466 = vand.u32 %v822, 4294901760
            %3467 = vmatpush.msra.mxu0 %v3466
            %v3468 = vand.u32 %v788, 4294901760
            %v3469 = vsub.f32 %v788, %v3468
            %v3470 = vand.u32 %v3469, 4294901760
            %3471 = vmatmul.f32.gmra.mxu0 %v3470
            %v3472 = vpop.f32.mrf.mxu0
            %v3473 = vadd.f32 %v3434, %v3472
            %3474 = vdwg.mxu0
            %v3475 = vand.u32 %v852, 4294901760
            %v3476 = vsub.f32 %v852, %v3475
            %v3477 = vand.u32 %v3476, 4294901760
            %3478 = vmatpush.msra.mxu0 %v3477
            %v3479 = vand.u32 %v850, 4294901760
            %v3480 = vsub.f32 %v850, %v3479
            %v3481 = vand.u32 %v3480, 4294901760
            %3482 = vmatpush.msra.mxu0 %v3481
            %v3483 = vand.u32 %v848, 4294901760
            %v3484 = vsub.f32 %v848, %v3483
            %v3485 = vand.u32 %v3484, 4294901760
            %3486 = vmatpush.msra.mxu0 %v3485
            %v3487 = vand.u32 %v846, 4294901760
            %v3488 = vsub.f32 %v846, %v3487
            %v3489 = vand.u32 %v3488, 4294901760
            %3490 = vmatpush.msra.mxu0 %v3489
            %v3491 = vand.u32 %v844, 4294901760
            %v3492 = vsub.f32 %v844, %v3491
            %v3493 = vand.u32 %v3492, 4294901760
            %3494 = vmatpush.msra.mxu0 %v3493
            %v3495 = vand.u32 %v842, 4294901760
            %v3496 = vsub.f32 %v842, %v3495
            %v3497 = vand.u32 %v3496, 4294901760
            %3498 = vmatpush.msra.mxu0 %v3497
            %v3499 = vand.u32 %v840, 4294901760
            %v3500 = vsub.f32 %v840, %v3499
            %v3501 = vand.u32 %v3500, 4294901760
            %3502 = vmatpush.msra.mxu0 %v3501
            %v3503 = vand.u32 %v838, 4294901760
            %v3504 = vsub.f32 %v838, %v3503
            %v3505 = vand.u32 %v3504, 4294901760
            %3506 = vmatpush.msra.mxu0 %v3505
            %v3507 = vand.u32 %v836, 4294901760
            %v3508 = vsub.f32 %v836, %v3507
            %v3509 = vand.u32 %v3508, 4294901760
            %3510 = vmatpush.msra.mxu0 %v3509
            %v3511 = vand.u32 %v834, 4294901760
            %v3512 = vsub.f32 %v834, %v3511
            %v3513 = vand.u32 %v3512, 4294901760
            %3514 = vmatpush.msra.mxu0 %v3513
            %v3515 = vand.u32 %v832, 4294901760
            %v3516 = vsub.f32 %v832, %v3515
            %v3517 = vand.u32 %v3516, 4294901760
            %3518 = vmatpush.msra.mxu0 %v3517
            %v3519 = vand.u32 %v830, 4294901760
            %v3520 = vsub.f32 %v830, %v3519
            %v3521 = vand.u32 %v3520, 4294901760
            %3522 = vmatpush.msra.mxu0 %v3521
            %v3523 = vand.u32 %v828, 4294901760
            %v3524 = vsub.f32 %v828, %v3523
            %v3525 = vand.u32 %v3524, 4294901760
            %3526 = vmatpush.msra.mxu0 %v3525
            %v3527 = vand.u32 %v826, 4294901760
            %v3528 = vsub.f32 %v826, %v3527
            %v3529 = vand.u32 %v3528, 4294901760
            %3530 = vmatpush.msra.mxu0 %v3529
            %v3531 = vand.u32 %v824, 4294901760
            %v3532 = vsub.f32 %v824, %v3531
            %v3533 = vand.u32 %v3532, 4294901760
            %3534 = vmatpush.msra.mxu0 %v3533
            %v3535 = vand.u32 %v822, 4294901760
            %v3536 = vsub.f32 %v822, %v3535
            %v3537 = vand.u32 %v3536, 4294901760
            %3538 = vmatpush.msra.mxu0 %v3537
            %v3539 = vand.u32 %v788, 4294901760
            %3540 = vmatmul.f32.gmra.mxu0 %v3539
            %v3541 = vpop.f32.mrf.mxu0
            %v3542 = vadd.f32 %v3473, %v3541
            %3543 = vdwg.mxu0
            %v3544 = vand.u32 %v852, 4294901760
            %3545 = vmatpush.msra.mxu0 %v3544
            %v3546 = vand.u32 %v850, 4294901760
            %3547 = vmatpush.msra.mxu0 %v3546
            %v3548 = vand.u32 %v848, 4294901760
            %3549 = vmatpush.msra.mxu0 %v3548
            %v3550 = vand.u32 %v846, 4294901760
            %3551 = vmatpush.msra.mxu0 %v3550
            %v3552 = vand.u32 %v844, 4294901760
            %3553 = vmatpush.msra.mxu0 %v3552
            %v3554 = vand.u32 %v842, 4294901760
            %3555 = vmatpush.msra.mxu0 %v3554
            %v3556 = vand.u32 %v840, 4294901760
            %3557 = vmatpush.msra.mxu0 %v3556
            %v3558 = vand.u32 %v838, 4294901760
            %3559 = vmatpush.msra.mxu0 %v3558
            %v3560 = vand.u32 %v836, 4294901760
            %3561 = vmatpush.msra.mxu0 %v3560
            %v3562 = vand.u32 %v834, 4294901760
            %3563 = vmatpush.msra.mxu0 %v3562
            %v3564 = vand.u32 %v832, 4294901760
            %3565 = vmatpush.msra.mxu0 %v3564
            %v3566 = vand.u32 %v830, 4294901760
            %3567 = vmatpush.msra.mxu0 %v3566
            %v3568 = vand.u32 %v828, 4294901760
            %3569 = vmatpush.msra.mxu0 %v3568
            %v3570 = vand.u32 %v826, 4294901760
            %3571 = vmatpush.msra.mxu0 %v3570
            %v3572 = vand.u32 %v824, 4294901760
            %3573 = vmatpush.msra.mxu0 %v3572
            %v3574 = vand.u32 %v822, 4294901760
            %3575 = vmatpush.msra.mxu0 %v3574
            %v3576 = vand.u32 %v788, 4294901760
            %3577 = vmatmul.f32.gmra.mxu0 %v3576
            %v3578 = vpop.f32.mrf.mxu0
            %v3579 = vadd.f32 %v3542, %v3578
            %3580 = vdwg.mxu0
            %v3581 = vmax.f32 %v2897, 1.0
            %v3582 = vmax.f32 %v3579, 1.0
            %v3583 = vrcp.pop %v3581
            %v3584 = vmul.f32 %v3581, %v3583
            %v3585 = vsub.f32 1.0, %v3584
            %v3586 = vmul.f32 %v3583, %v3585
            %v3587 = vadd.f32 %v3583, %v3586
            %vm3588 = vweird.f32 %v3581
            %vm3589 = vweird.f32 %v3583
            %vm3590 = vmor %vm3588, %vm3589
            %v3591 = vsel %vm3590, %v3583, %v3587
            %v3592 = vand.u32 2147483647, %v3581
            %vm3593 = vcmp.eq.f32.partialorder %v3592, 8.507059e+37
            %v3594 = vand.u32 %v3581, 2147483648
            %v3595 = vor.u32 1.1754944e-38, %v3594
            %v3596 = vsel %vm3593, %v3595, %v3591
            %v3597 = vmul.f32 %v1533, %v3596
            %v3598 = vrcp.pop %v3582
            %v3599 = vmul.f32 %v3582, %v3598
            %v3600 = vsub.f32 1.0, %v3599
            %v3601 = vmul.f32 %v3598, %v3600
            %v3602 = vadd.f32 %v3598, %v3601
            %vm3603 = vweird.f32 %v3582
            %vm3604 = vweird.f32 %v3598
            %vm3605 = vmor %vm3603, %vm3604
            %v3606 = vsel %vm3605, %v3598, %v3602
            %v3607 = vand.u32 2147483647, %v3582
            %vm3608 = vcmp.eq.f32.partialorder %v3607, 8.507059e+37
            %v3609 = vand.u32 %v3582, 2147483648
            %v3610 = vor.u32 1.1754944e-38, %v3609
            %v3611 = vsel %vm3608, %v3610, %v3606
            %v3612 = vmul.f32 %v2215, %v3611
            %v3615 = vrot.slane %v3612, 7
            %vm3616 = vcmask 1040384
            %v3617 = vsel %vm3616, %v3597, %v3615
            %3619 = vst.msk [vmem:[#allocation4] sm:$0x3] %vm718, %v3617
          $region68: #{tpu_custom_call.1} parent=63 // pred_fallthru
            _
          %v3620 = vld [vmem:[#allocation4] sm:$0x3]
          %v3622 = vperm.slane %v3620, 0
          %v3623 = vperm.slane %v3620, 1
          %v3626 = vsub.f32 %v520, %v3622
          %v3627 = vsub.f32 %v549, %v3623
          %v3628 = vsub.f32 %v522, %v3622
          %v3629 = vsub.f32 %v551, %v3623
          %v3630 = vsub.f32 %v525, %v3622
          %v3631 = vsub.f32 %v554, %v3623
          %v3632 = vsub.f32 %v527, %v3622
          %v3633 = vsub.f32 %v556, %v3623
          %v3634 = vsub.f32 %v530, %v3622
          %v3635 = vsub.f32 %v559, %v3623
          %v3636 = vsub.f32 %v532, %v3622
          %v3637 = vsub.f32 %v561, %v3623
          %v3638 = vsub.f32 %v535, %v3622
          %v3639 = vsub.f32 %v564, %v3623
          %v3640 = vsub.f32 %v537, %v3622
          %v3641 = vsub.f32 %v566, %v3623
          %v3642 = vmul.f32 %v3626, %v647
          %v3643 = vmul.f32 %v3627, %v676
          %v3644 = vmul.f32 %v3628, %v649
          %v3645 = vmul.f32 %v3629, %v678
          %v3646 = vmul.f32 %v3630, %v652
          %v3647 = vmul.f32 %v3631, %v681
          %v3648 = vmul.f32 %v3632, %v654
          %v3649 = vmul.f32 %v3633, %v683
          %v3650 = vmul.f32 %v3634, %v657
          %v3651 = vmul.f32 %v3635, %v686
          %v3652 = vmul.f32 %v3636, %v659
          %v3653 = vmul.f32 %v3637, %v688
          %v3654 = vmul.f32 %v3638, %v662
          %v3655 = vmul.f32 %v3639, %v691
          %v3656 = vmul.f32 %v3640, %v664
          %v3657 = vmul.f32 %v3641, %v693
          %v3658 = vld [vmem:[#allocation2] sm:$0x3]
          %v3659 = vadd.f32 %v3642, %v3644
          %v3660 = vadd.f32 %v3659, %v3646
          %v3661 = vadd.f32 %v3660, %v3648
          %v3662 = vadd.f32 %v3661, %v3650
          %v3663 = vadd.f32 %v3662, %v3652
          %v3664 = vadd.f32 %v3663, %v3654
          %v3665 = vadd.f32 %v3664, %v3656
          %v3666 = vrot.slane %v3665, 4
          %v3667 = vadd.f32 %v3665, %v3666
          %v3668 = vrot.slane %v3667, 2
          %v3669 = vadd.f32 %v3667, %v3668
          %v3670 = vrot.slane %v3669, 1
          %v3671 = vadd.f32 %v3669, %v3670
          %v3672 = vadd.f32 %v3643, %v3645
          %v3673 = vadd.f32 %v3672, %v3647
          %v3674 = vadd.f32 %v3673, %v3649
          %v3675 = vadd.f32 %v3674, %v3651
          %v3676 = vadd.f32 %v3675, %v3653
          %v3677 = vadd.f32 %v3676, %v3655
          %v3678 = vadd.f32 %v3677, %v3657
          %v3679 = vrot.slane %v3678, 4
          %v3680 = vadd.f32 %v3678, %v3679
          %v3681 = vrot.slane %v3680, 2
          %v3682 = vadd.f32 %v3680, %v3681
          %v3683 = vrot.slane %v3682, 1
          %v3684 = vadd.f32 %v3682, %v3683
          %v3687 = vrot.slane %v3684, 7
          %vm3688 = vcmask 1040384
          %v3689 = vsel %vm3688, %v3671, %v3687
          %v3691 = vadd.f32 %v3658, %v3689
          %v3692 = vlaneseq
          %vm3693 = vcmp.ge.s32.totalorder %v3692, 0
          %vm3694 = vcmp.lt.s32.totalorder %v3692, 256
          %vm3695 = vmand %vm3693, %vm3694
          %3696 = vst.msk [vmem:[#allocation2] sm:$0x3] %vm3695, %v3691
          %v3697 = vld [vmem:[#allocation3] sm:$0x3]
          %v3698 = vmul.f32 %v3642, %v3642
          %v3699 = vmul.f32 %v3643, %v3643
          %v3700 = vmul.f32 %v3644, %v3644
          %v3701 = vmul.f32 %v3645, %v3645
          %v3702 = vmul.f32 %v3646, %v3646
          %v3703 = vmul.f32 %v3647, %v3647
          %v3704 = vmul.f32 %v3648, %v3648
          %v3705 = vmul.f32 %v3649, %v3649
          %v3706 = vmul.f32 %v3650, %v3650
          %v3707 = vmul.f32 %v3651, %v3651
          %v3708 = vmul.f32 %v3652, %v3652
          %v3709 = vmul.f32 %v3653, %v3653
          %v3710 = vmul.f32 %v3654, %v3654
          %v3711 = vmul.f32 %v3655, %v3655
          %v3712 = vmul.f32 %v3656, %v3656
          %v3713 = vmul.f32 %v3657, %v3657
          %v3714 = vadd.f32 %v3698, %v3700
          %v3715 = vadd.f32 %v3714, %v3702
          %v3716 = vadd.f32 %v3715, %v3704
          %v3717 = vadd.f32 %v3716, %v3706
          %v3718 = vadd.f32 %v3717, %v3708
          %v3719 = vadd.f32 %v3718, %v3710
          %v3720 = vadd.f32 %v3719, %v3712
          %v3721 = vrot.slane %v3720, 4
          %v3722 = vadd.f32 %v3720, %v3721
          %v3723 = vrot.slane %v3722, 2
          %v3724 = vadd.f32 %v3722, %v3723
          %v3725 = vrot.slane %v3724, 1
          %v3726 = vadd.f32 %v3724, %v3725
          %v3727 = vadd.f32 %v3699, %v3701
          %v3728 = vadd.f32 %v3727, %v3703
          %v3729 = vadd.f32 %v3728, %v3705
          %v3730 = vadd.f32 %v3729, %v3707
          %v3731 = vadd.f32 %v3730, %v3709
          %v3732 = vadd.f32 %v3731, %v3711
          %v3733 = vadd.f32 %v3732, %v3713
          %v3734 = vrot.slane %v3733, 4
          %v3735 = vadd.f32 %v3733, %v3734
          %v3736 = vrot.slane %v3735, 2
          %v3737 = vadd.f32 %v3735, %v3736
          %v3738 = vrot.slane %v3737, 1
          %v3739 = vadd.f32 %v3737, %v3738
          %v3742 = vrot.slane %v3739, 7
          %v3743 = vsel %vm3688, %v3726, %v3742
          %v3745 = vadd.f32 %v3697, %v3743
          %3746 = vst.msk [vmem:[#allocation3] sm:$0x3] %vm3695, %v3745
          %p3747 = scmp.eq.s32.totalorder %s28, 1
          // Predicated region
          $region69: #{tpu_custom_call.1} parent=63 // pred_check
            %p3748 = pneg %p3747
          $region70: #{tpu_custom_call.1} parent=63 // pred_check_branch
            %3750 = sbr.rel (%p3748) target = $region72
          $region71: #{tpu_custom_call.1} parent=63 // pred_region
            %v3751 = vld [vmem:[#allocation2] sm:$0x3]
            %v3752 = vld [vmem:[#allocation12] sm:$0xff]
            %v3753 = vld [vmem:[#allocation12 + $0x8] sm:$0xff]
            %v3754 = vld [vmem:[#allocation12 + $0x10] sm:$0xff]
            %v3755 = vld [vmem:[#allocation12 + $0x18] sm:$0xff]
            %v3756 = vld [vmem:[#allocation12 + $0x20] sm:$0xff]
            %v3757 = vld [vmem:[#allocation12 + $0x28] sm:$0xff]
            %v3758 = vld [vmem:[#allocation12 + $0x30] sm:$0xff]
            %v3759 = vld [vmem:[#allocation12 + $0x38] sm:$0xff]
            %v3760 = vld [vmem:[#allocation12 + $0x40] sm:$0xff]
            %v3761 = vld [vmem:[#allocation12 + $0x48] sm:$0xff]
            %v3762 = vld [vmem:[#allocation12 + $0x50] sm:$0xff]
            %v3763 = vld [vmem:[#allocation12 + $0x58] sm:$0xff]
            %v3764 = vld [vmem:[#allocation12 + $0x60] sm:$0xff]
            %v3765 = vld [vmem:[#allocation12 + $0x68] sm:$0xff]
            %v3766 = vld [vmem:[#allocation12 + $0x70] sm:$0xff]
            %v3767 = vld [vmem:[#allocation12 + $0x78] sm:$0xff]
            %v3768 = vld [vmem:[#allocation12 + $0x80] sm:$0xff]
            %v3769 = vld [vmem:[#allocation12 + $0x88] sm:$0xff]
            %v3770 = vld [vmem:[#allocation12 + $0x90] sm:$0xff]
            %v3771 = vld [vmem:[#allocation12 + $0x98] sm:$0xff]
            %v3772 = vld [vmem:[#allocation12 + $0xa0] sm:$0xff]
            %v3773 = vld [vmem:[#allocation12 + $0xa8] sm:$0xff]
            %v3774 = vld [vmem:[#allocation12 + $0xb0] sm:$0xff]
            %v3775 = vld [vmem:[#allocation12 + $0xb8] sm:$0xff]
            %v3776 = vld [vmem:[#allocation12 + $0xc0] sm:$0xff]
            %v3777 = vld [vmem:[#allocation12 + $0xc8] sm:$0xff]
            %v3778 = vld [vmem:[#allocation12 + $0xd0] sm:$0xff]
            %v3779 = vld [vmem:[#allocation12 + $0xd8] sm:$0xff]
            %v3780 = vld [vmem:[#allocation12 + $0xe0] sm:$0xff]
            %v3781 = vld [vmem:[#allocation12 + $0xe8] sm:$0xff]
            %v3782 = vld [vmem:[#allocation12 + $0xf0] sm:$0xff]
            %v3783 = vld [vmem:[#allocation12 + $0xf8] sm:$0xff]
            %v3784 = vld [vmem:[#allocation12 + $0x100] sm:$0xff]
            %v3785 = vld [vmem:[#allocation12 + $0x108] sm:$0xff]
            %v3786 = vld [vmem:[#allocation12 + $0x110] sm:$0xff]
            %v3787 = vld [vmem:[#allocation12 + $0x118] sm:$0xff]
            %v3788 = vld [vmem:[#allocation12 + $0x120] sm:$0xff]
            %v3789 = vld [vmem:[#allocation12 + $0x128] sm:$0xff]
            %v3790 = vld [vmem:[#allocation12 + $0x130] sm:$0xff]
            %v3791 = vld [vmem:[#allocation12 + $0x138] sm:$0xff]
            %v3792 = vld [vmem:[#allocation12 + $0x140] sm:$0xff]
            %v3793 = vld [vmem:[#allocation12 + $0x148] sm:$0xff]
            %v3794 = vld [vmem:[#allocation12 + $0x150] sm:$0xff]
            %v3795 = vld [vmem:[#allocation12 + $0x158] sm:$0xff]
            %v3796 = vld [vmem:[#allocation12 + $0x160] sm:$0xff]
            %v3797 = vld [vmem:[#allocation12 + $0x168] sm:$0xff]
            %v3798 = vld [vmem:[#allocation12 + $0x170] sm:$0xff]
            %v3799 = vld [vmem:[#allocation12 + $0x178] sm:$0xff]
            %v3800 = vld [vmem:[#allocation12 + $0x180] sm:$0xff]
            %v3801 = vld [vmem:[#allocation12 + $0x188] sm:$0xff]
            %v3802 = vld [vmem:[#allocation12 + $0x190] sm:$0xff]
            %v3803 = vld [vmem:[#allocation12 + $0x198] sm:$0xff]
            %v3804 = vld [vmem:[#allocation12 + $0x1a0] sm:$0xff]
            %v3805 = vld [vmem:[#allocation12 + $0x1a8] sm:$0xff]
            %v3806 = vld [vmem:[#allocation12 + $0x1b0] sm:$0xff]
            %v3807 = vld [vmem:[#allocation12 + $0x1b8] sm:$0xff]
            %v3808 = vld [vmem:[#allocation12 + $0x1c0] sm:$0xff]
            %v3809 = vld [vmem:[#allocation12 + $0x1c8] sm:$0xff]
            %v3810 = vld [vmem:[#allocation12 + $0x1d0] sm:$0xff]
            %v3811 = vld [vmem:[#allocation12 + $0x1d8] sm:$0xff]
            %v3812 = vld [vmem:[#allocation12 + $0x1e0] sm:$0xff]
            %v3813 = vld [vmem:[#allocation12 + $0x1e8] sm:$0xff]
            %v3814 = vld [vmem:[#allocation12 + $0x1f0] sm:$0xff]
            %v3815 = vld [vmem:[#allocation12 + $0x1f8] sm:$0xff]
            %v3817 = vperm.slane %v3751, 0
            %v3818 = vperm.slane %v3751, 1
            %v3821 = vand.u32 %v3782, 4294901760
            %3822 = vmatpush.msra.mxu0 %v3821
            %v3823 = vand.u32 %v3780, 4294901760
            %3824 = vmatpush.msra.mxu0 %v3823
            %v3825 = vand.u32 %v3778, 4294901760
            %3826 = vmatpush.msra.mxu0 %v3825
            %v3827 = vand.u32 %v3776, 4294901760
            %3828 = vmatpush.msra.mxu0 %v3827
            %v3829 = vand.u32 %v3774, 4294901760
            %3830 = vmatpush.msra.mxu0 %v3829
            %v3831 = vand.u32 %v3772, 4294901760
            %3832 = vmatpush.msra.mxu0 %v3831
            %v3833 = vand.u32 %v3770, 4294901760
            %3834 = vmatpush.msra.mxu0 %v3833
            %v3835 = vand.u32 %v3768, 4294901760
            %3836 = vmatpush.msra.mxu0 %v3835
            %v3837 = vand.u32 %v3766, 4294901760
            %3838 = vmatpush.msra.mxu0 %v3837
            %v3839 = vand.u32 %v3764, 4294901760
            %3840 = vmatpush.msra.mxu0 %v3839
            %v3841 = vand.u32 %v3762, 4294901760
            %3842 = vmatpush.msra.mxu0 %v3841
            %v3843 = vand.u32 %v3760, 4294901760
            %3844 = vmatpush.msra.mxu0 %v3843
            %v3845 = vand.u32 %v3758, 4294901760
            %3846 = vmatpush.msra.mxu0 %v3845
            %v3847 = vand.u32 %v3756, 4294901760
            %3848 = vmatpush.msra.mxu0 %v3847
            %v3849 = vand.u32 %v3754, 4294901760
            %3850 = vmatpush.msra.mxu0 %v3849
            %v3851 = vand.u32 %v3752, 4294901760
            %3852 = vmatpush.msra.mxu0 %v3851
            %v3853 = vand.u32 %v3817, 4294901760
            %v3854 = vsub.f32 %v3817, %v3853
            %v3855 = vand.u32 %v3854, 4294901760
            %v3856 = vsub.f32 %v3854, %v3855
            %v3857 = vand.u32 %v3856, 4294901760
            %3858 = vmatmul.f32.gmra.mxu0 %v3857
            %v3859 = vpop.f32.mrf.mxu0
            %v3860 = vadd.f32 0.0, %v3859
            %3861 = vdwg.mxu0
            %v3862 = vand.u32 %v3782, 4294901760
            %v3863 = vsub.f32 %v3782, %v3862
            %v3864 = vand.u32 %v3863, 4294901760
            %v3865 = vsub.f32 %v3863, %v3864
            %v3866 = vand.u32 %v3865, 4294901760
            %3867 = vmatpush.msra.mxu0 %v3866
            %v3868 = vand.u32 %v3780, 4294901760
            %v3869 = vsub.f32 %v3780, %v3868
            %v3870 = vand.u32 %v3869, 4294901760
            %v3871 = vsub.f32 %v3869, %v3870
            %v3872 = vand.u32 %v3871, 4294901760
            %3873 = vmatpush.msra.mxu0 %v3872
            %v3874 = vand.u32 %v3778, 4294901760
            %v3875 = vsub.f32 %v3778, %v3874
            %v3876 = vand.u32 %v3875, 4294901760
            %v3877 = vsub.f32 %v3875, %v3876
            %v3878 = vand.u32 %v3877, 4294901760
            %3879 = vmatpush.msra.mxu0 %v3878
            %v3880 = vand.u32 %v3776, 4294901760
            %v3881 = vsub.f32 %v3776, %v3880
            %v3882 = vand.u32 %v3881, 4294901760
            %v3883 = vsub.f32 %v3881, %v3882
            %v3884 = vand.u32 %v3883, 4294901760
            %3885 = vmatpush.msra.mxu0 %v3884
            %v3886 = vand.u32 %v3774, 4294901760
            %v3887 = vsub.f32 %v3774, %v3886
            %v3888 = vand.u32 %v3887, 4294901760
            %v3889 = vsub.f32 %v3887, %v3888
            %v3890 = vand.u32 %v3889, 4294901760
            %3891 = vmatpush.msra.mxu0 %v3890
            %v3892 = vand.u32 %v3772, 4294901760
            %v3893 = vsub.f32 %v3772, %v3892
            %v3894 = vand.u32 %v3893, 4294901760
            %v3895 = vsub.f32 %v3893, %v3894
            %v3896 = vand.u32 %v3895, 4294901760
            %3897 = vmatpush.msra.mxu0 %v3896
            %v3898 = vand.u32 %v3770, 4294901760
            %v3899 = vsub.f32 %v3770, %v3898
            %v3900 = vand.u32 %v3899, 4294901760
            %v3901 = vsub.f32 %v3899, %v3900
            %v3902 = vand.u32 %v3901, 4294901760
            %3903 = vmatpush.msra.mxu0 %v3902
            %v3904 = vand.u32 %v3768, 4294901760
            %v3905 = vsub.f32 %v3768, %v3904
            %v3906 = vand.u32 %v3905, 4294901760
            %v3907 = vsub.f32 %v3905, %v3906
            %v3908 = vand.u32 %v3907, 4294901760
            %3909 = vmatpush.msra.mxu0 %v3908
            %v3910 = vand.u32 %v3766, 4294901760
            %v3911 = vsub.f32 %v3766, %v3910
            %v3912 = vand.u32 %v3911, 4294901760
            %v3913 = vsub.f32 %v3911, %v3912
            %v3914 = vand.u32 %v3913, 4294901760
            %3915 = vmatpush.msra.mxu0 %v3914
            %v3916 = vand.u32 %v3764, 4294901760
            %v3917 = vsub.f32 %v3764, %v3916
            %v3918 = vand.u32 %v3917, 4294901760
            %v3919 = vsub.f32 %v3917, %v3918
            %v3920 = vand.u32 %v3919, 4294901760
            %3921 = vmatpush.msra.mxu0 %v3920
            %v3922 = vand.u32 %v3762, 4294901760
            %v3923 = vsub.f32 %v3762, %v3922
            %v3924 = vand.u32 %v3923, 4294901760
            %v3925 = vsub.f32 %v3923, %v3924
            %v3926 = vand.u32 %v3925, 4294901760
            %3927 = vmatpush.msra.mxu0 %v3926
            %v3928 = vand.u32 %v3760, 4294901760
            %v3929 = vsub.f32 %v3760, %v3928
            %v3930 = vand.u32 %v3929, 4294901760
            %v3931 = vsub.f32 %v3929, %v3930
            %v3932 = vand.u32 %v3931, 4294901760
            %3933 = vmatpush.msra.mxu0 %v3932
            %v3934 = vand.u32 %v3758, 4294901760
            %v3935 = vsub.f32 %v3758, %v3934
            %v3936 = vand.u32 %v3935, 4294901760
            %v3937 = vsub.f32 %v3935, %v3936
            %v3938 = vand.u32 %v3937, 4294901760
            %3939 = vmatpush.msra.mxu0 %v3938
            %v3940 = vand.u32 %v3756, 4294901760
            %v3941 = vsub.f32 %v3756, %v3940
            %v3942 = vand.u32 %v3941, 4294901760
            %v3943 = vsub.f32 %v3941, %v3942
            %v3944 = vand.u32 %v3943, 4294901760
            %3945 = vmatpush.msra.mxu0 %v3944
            %v3946 = vand.u32 %v3754, 4294901760
            %v3947 = vsub.f32 %v3754, %v3946
            %v3948 = vand.u32 %v3947, 4294901760
            %v3949 = vsub.f32 %v3947, %v3948
            %v3950 = vand.u32 %v3949, 4294901760
            %3951 = vmatpush.msra.mxu0 %v3950
            %v3952 = vand.u32 %v3752, 4294901760
            %v3953 = vsub.f32 %v3752, %v3952
            %v3954 = vand.u32 %v3953, 4294901760
            %v3955 = vsub.f32 %v3953, %v3954
            %v3956 = vand.u32 %v3955, 4294901760
            %3957 = vmatpush.msra.mxu0 %v3956
            %v3958 = vand.u32 %v3817, 4294901760
            %3959 = vmatmul.f32.gmra.mxu0 %v3958
            %v3960 = vpop.f32.mrf.mxu0
            %v3961 = vadd.f32 %v3860, %v3960
            %3962 = vdwg.mxu0
            %v3963 = vand.u32 %v3782, 4294901760
            %v3964 = vsub.f32 %v3782, %v3963
            %3965 = vmatpush.msra.mxu0 %v3964
            %v3966 = vand.u32 %v3780, 4294901760
            %v3967 = vsub.f32 %v3780, %v3966
            %3968 = vmatpush.msra.mxu0 %v3967
            %v3969 = vand.u32 %v3778, 4294901760
            %v3970 = vsub.f32 %v3778, %v3969
            %3971 = vmatpush.msra.mxu0 %v3970
            %v3972 = vand.u32 %v3776, 4294901760
            %v3973 = vsub.f32 %v3776, %v3972
            %3974 = vmatpush.msra.mxu0 %v3973
            %v3975 = vand.u32 %v3774, 4294901760
            %v3976 = vsub.f32 %v3774, %v3975
            %3977 = vmatpush.msra.mxu0 %v3976
            %v3978 = vand.u32 %v3772, 4294901760
            %v3979 = vsub.f32 %v3772, %v3978
            %3980 = vmatpush.msra.mxu0 %v3979
            %v3981 = vand.u32 %v3770, 4294901760
            %v3982 = vsub.f32 %v3770, %v3981
            %3983 = vmatpush.msra.mxu0 %v3982
            %v3984 = vand.u32 %v3768, 4294901760
            %v3985 = vsub.f32 %v3768, %v3984
            %3986 = vmatpush.msra.mxu0 %v3985
            %v3987 = vand.u32 %v3766, 4294901760
            %v3988 = vsub.f32 %v3766, %v3987
            %3989 = vmatpush.msra.mxu0 %v3988
            %v3990 = vand.u32 %v3764, 4294901760
            %v3991 = vsub.f32 %v3764, %v3990
            %3992 = vmatpush.msra.mxu0 %v3991
            %v3993 = vand.u32 %v3762, 4294901760
            %v3994 = vsub.f32 %v3762, %v3993
            %3995 = vmatpush.msra.mxu0 %v3994
            %v3996 = vand.u32 %v3760, 4294901760
            %v3997 = vsub.f32 %v3760, %v3996
            %3998 = vmatpush.msra.mxu0 %v3997
            %v3999 = vand.u32 %v3758, 4294901760
            %v4000 = vsub.f32 %v3758, %v3999
            %4001 = vmatpush.msra.mxu0 %v4000
            %v4002 = vand.u32 %v3756, 4294901760
            %v4003 = vsub.f32 %v3756, %v4002
            %4004 = vmatpush.msra.mxu0 %v4003
            %v4005 = vand.u32 %v3754, 4294901760
            %v4006 = vsub.f32 %v3754, %v4005
            %4007 = vmatpush.msra.mxu0 %v4006
            %v4008 = vand.u32 %v3752, 4294901760
            %v4009 = vsub.f32 %v3752, %v4008
            %4010 = vmatpush.msra.mxu0 %v4009
            %v4011 = vand.u32 %v3817, 4294901760
            %v4012 = vsub.f32 %v3817, %v4011
            %4013 = vmatmul.f32.gmra.mxu0 %v4012
            %v4014 = vpop.f32.mrf.mxu0
            %v4015 = vadd.f32 %v3961, %v4014
            %4016 = vdwg.mxu0
            %v4017 = vand.u32 %v3782, 4294901760
            %4018 = vmatpush.msra.mxu0 %v4017
            %v4019 = vand.u32 %v3780, 4294901760
            %4020 = vmatpush.msra.mxu0 %v4019
            %v4021 = vand.u32 %v3778, 4294901760
            %4022 = vmatpush.msra.mxu0 %v4021
            %v4023 = vand.u32 %v3776, 4294901760
            %4024 = vmatpush.msra.mxu0 %v4023
            %v4025 = vand.u32 %v3774, 4294901760
            %4026 = vmatpush.msra.mxu0 %v4025
            %v4027 = vand.u32 %v3772, 4294901760
            %4028 = vmatpush.msra.mxu0 %v4027
            %v4029 = vand.u32 %v3770, 4294901760
            %4030 = vmatpush.msra.mxu0 %v4029
            %v4031 = vand.u32 %v3768, 4294901760
            %4032 = vmatpush.msra.mxu0 %v4031
            %v4033 = vand.u32 %v3766, 4294901760
            %4034 = vmatpush.msra.mxu0 %v4033
            %v4035 = vand.u32 %v3764, 4294901760
            %4036 = vmatpush.msra.mxu0 %v4035
            %v4037 = vand.u32 %v3762, 4294901760
            %4038 = vmatpush.msra.mxu0 %v4037
            %v4039 = vand.u32 %v3760, 4294901760
            %4040 = vmatpush.msra.mxu0 %v4039
            %v4041 = vand.u32 %v3758, 4294901760
            %4042 = vmatpush.msra.mxu0 %v4041
            %v4043 = vand.u32 %v3756, 4294901760
            %4044 = vmatpush.msra.mxu0 %v4043
            %v4045 = vand.u32 %v3754, 4294901760
            %4046 = vmatpush.msra.mxu0 %v4045
            %v4047 = vand.u32 %v3752, 4294901760
            %4048 = vmatpush.msra.mxu0 %v4047
            %v4049 = vand.u32 %v3817, 4294901760
            %v4050 = vsub.f32 %v3817, %v4049
            %v4051 = vand.u32 %v4050, 4294901760
            %4052 = vmatmul.f32.gmra.mxu0 %v4051
            %v4053 = vpop.f32.mrf.mxu0
            %v4054 = vadd.f32 %v4015, %v4053
            %4055 = vdwg.mxu0
            %v4056 = vand.u32 %v3782, 4294901760
            %v4057 = vsub.f32 %v3782, %v4056
            %v4058 = vand.u32 %v4057, 4294901760
            %4059 = vmatpush.msra.mxu0 %v4058
            %v4060 = vand.u32 %v3780, 4294901760
            %v4061 = vsub.f32 %v3780, %v4060
            %v4062 = vand.u32 %v4061, 4294901760
            %4063 = vmatpush.msra.mxu0 %v4062
            %v4064 = vand.u32 %v3778, 4294901760
            %v4065 = vsub.f32 %v3778, %v4064
            %v4066 = vand.u32 %v4065, 4294901760
            %4067 = vmatpush.msra.mxu0 %v4066
            %v4068 = vand.u32 %v3776, 4294901760
            %v4069 = vsub.f32 %v3776, %v4068
            %v4070 = vand.u32 %v4069, 4294901760
            %4071 = vmatpush.msra.mxu0 %v4070
            %v4072 = vand.u32 %v3774, 4294901760
            %v4073 = vsub.f32 %v3774, %v4072
            %v4074 = vand.u32 %v4073, 4294901760
            %4075 = vmatpush.msra.mxu0 %v4074
            %v4076 = vand.u32 %v3772, 4294901760
            %v4077 = vsub.f32 %v3772, %v4076
            %v4078 = vand.u32 %v4077, 4294901760
            %4079 = vmatpush.msra.mxu0 %v4078
            %v4080 = vand.u32 %v3770, 4294901760
            %v4081 = vsub.f32 %v3770, %v4080
            %v4082 = vand.u32 %v4081, 4294901760
            %4083 = vmatpush.msra.mxu0 %v4082
            %v4084 = vand.u32 %v3768, 4294901760
            %v4085 = vsub.f32 %v3768, %v4084
            %v4086 = vand.u32 %v4085, 4294901760
            %4087 = vmatpush.msra.mxu0 %v4086
            %v4088 = vand.u32 %v3766, 4294901760
            %v4089 = vsub.f32 %v3766, %v4088
            %v4090 = vand.u32 %v4089, 4294901760
            %4091 = vmatpush.msra.mxu0 %v4090
            %v4092 = vand.u32 %v3764, 4294901760
            %v4093 = vsub.f32 %v3764, %v4092
            %v4094 = vand.u32 %v4093, 4294901760
            %4095 = vmatpush.msra.mxu0 %v4094
            %v4096 = vand.u32 %v3762, 4294901760
            %v4097 = vsub.f32 %v3762, %v4096
            %v4098 = vand.u32 %v4097, 4294901760
            %4099 = vmatpush.msra.mxu0 %v4098
            %v4100 = vand.u32 %v3760, 4294901760
            %v4101 = vsub.f32 %v3760, %v4100
            %v4102 = vand.u32 %v4101, 4294901760
            %4103 = vmatpush.msra.mxu0 %v4102
            %v4104 = vand.u32 %v3758, 4294901760
            %v4105 = vsub.f32 %v3758, %v4104
            %v4106 = vand.u32 %v4105, 4294901760
            %4107 = vmatpush.msra.mxu0 %v4106
            %v4108 = vand.u32 %v3756, 4294901760
            %v4109 = vsub.f32 %v3756, %v4108
            %v4110 = vand.u32 %v4109, 4294901760
            %4111 = vmatpush.msra.mxu0 %v4110
            %v4112 = vand.u32 %v3754, 4294901760
            %v4113 = vsub.f32 %v3754, %v4112
            %v4114 = vand.u32 %v4113, 4294901760
            %4115 = vmatpush.msra.mxu0 %v4114
            %v4116 = vand.u32 %v3752, 4294901760
            %v4117 = vsub.f32 %v3752, %v4116
            %v4118 = vand.u32 %v4117, 4294901760
            %4119 = vmatpush.msra.mxu0 %v4118
            %v4120 = vand.u32 %v3817, 4294901760
            %4121 = vmatmul.f32.gmra.mxu0 %v4120
            %v4122 = vpop.f32.mrf.mxu0
            %v4123 = vadd.f32 %v4054, %v4122
            %4124 = vdwg.mxu0
            %v4125 = vand.u32 %v3782, 4294901760
            %4126 = vmatpush.msra.mxu0 %v4125
            %v4127 = vand.u32 %v3780, 4294901760
            %4128 = vmatpush.msra.mxu0 %v4127
            %v4129 = vand.u32 %v3778, 4294901760
            %4130 = vmatpush.msra.mxu0 %v4129
            %v4131 = vand.u32 %v3776, 4294901760
            %4132 = vmatpush.msra.mxu0 %v4131
            %v4133 = vand.u32 %v3774, 4294901760
            %4134 = vmatpush.msra.mxu0 %v4133
            %v4135 = vand.u32 %v3772, 4294901760
            %4136 = vmatpush.msra.mxu0 %v4135
            %v4137 = vand.u32 %v3770, 4294901760
            %4138 = vmatpush.msra.mxu0 %v4137
            %v4139 = vand.u32 %v3768, 4294901760
            %4140 = vmatpush.msra.mxu0 %v4139
            %v4141 = vand.u32 %v3766, 4294901760
            %4142 = vmatpush.msra.mxu0 %v4141
            %v4143 = vand.u32 %v3764, 4294901760
            %4144 = vmatpush.msra.mxu0 %v4143
            %v4145 = vand.u32 %v3762, 4294901760
            %4146 = vmatpush.msra.mxu0 %v4145
            %v4147 = vand.u32 %v3760, 4294901760
            %4148 = vmatpush.msra.mxu0 %v4147
            %v4149 = vand.u32 %v3758, 4294901760
            %4150 = vmatpush.msra.mxu0 %v4149
            %v4151 = vand.u32 %v3756, 4294901760
            %4152 = vmatpush.msra.mxu0 %v4151
            %v4153 = vand.u32 %v3754, 4294901760
            %4154 = vmatpush.msra.mxu0 %v4153
            %v4155 = vand.u32 %v3752, 4294901760
            %4156 = vmatpush.msra.mxu0 %v4155
            %v4157 = vand.u32 %v3817, 4294901760
            %4158 = vmatmul.f32.gmra.mxu0 %v4157
            %v4159 = vpop.f32.mrf.mxu0
            %v4160 = vadd.f32 %v4123, %v4159
            %4161 = vdwg.mxu0
            %v4162 = vand.u32 %v3814, 4294901760
            %4163 = vmatpush.msra.mxu0 %v4162
            %v4164 = vand.u32 %v3812, 4294901760
            %4165 = vmatpush.msra.mxu0 %v4164
            %v4166 = vand.u32 %v3810, 4294901760
            %4167 = vmatpush.msra.mxu0 %v4166
            %v4168 = vand.u32 %v3808, 4294901760
            %4169 = vmatpush.msra.mxu0 %v4168
            %v4170 = vand.u32 %v3806, 4294901760
            %4171 = vmatpush.msra.mxu0 %v4170
            %v4172 = vand.u32 %v3804, 4294901760
            %4173 = vmatpush.msra.mxu0 %v4172
            %v4174 = vand.u32 %v3802, 4294901760
            %4175 = vmatpush.msra.mxu0 %v4174
            %v4176 = vand.u32 %v3800, 4294901760
            %4177 = vmatpush.msra.mxu0 %v4176
            %v4178 = vand.u32 %v3798, 4294901760
            %4179 = vmatpush.msra.mxu0 %v4178
            %v4180 = vand.u32 %v3796, 4294901760
            %4181 = vmatpush.msra.mxu0 %v4180
            %v4182 = vand.u32 %v3794, 4294901760
            %4183 = vmatpush.msra.mxu0 %v4182
            %v4184 = vand.u32 %v3792, 4294901760
            %4185 = vmatpush.msra.mxu0 %v4184
            %v4186 = vand.u32 %v3790, 4294901760
            %4187 = vmatpush.msra.mxu0 %v4186
            %v4188 = vand.u32 %v3788, 4294901760
            %4189 = vmatpush.msra.mxu0 %v4188
            %v4190 = vand.u32 %v3786, 4294901760
            %4191 = vmatpush.msra.mxu0 %v4190
            %v4192 = vand.u32 %v3784, 4294901760
            %4193 = vmatpush.msra.mxu0 %v4192
            %v4194 = vand.u32 %v3818, 4294901760
            %v4195 = vsub.f32 %v3818, %v4194
            %v4196 = vand.u32 %v4195, 4294901760
            %v4197 = vsub.f32 %v4195, %v4196
            %v4198 = vand.u32 %v4197, 4294901760
            %4199 = vmatmul.f32.gmra.mxu0 %v4198
            %v4200 = vpop.f32.mrf.mxu0
            %v4201 = vadd.f32 %v4160, %v4200
            %4202 = vdwg.mxu0
            %v4203 = vand.u32 %v3814, 4294901760
            %v4204 = vsub.f32 %v3814, %v4203
            %v4205 = vand.u32 %v4204, 4294901760
            %v4206 = vsub.f32 %v4204, %v4205
            %v4207 = vand.u32 %v4206, 4294901760
            %4208 = vmatpush.msra.mxu0 %v4207
            %v4209 = vand.u32 %v3812, 4294901760
            %v4210 = vsub.f32 %v3812, %v4209
            %v4211 = vand.u32 %v4210, 4294901760
            %v4212 = vsub.f32 %v4210, %v4211
            %v4213 = vand.u32 %v4212, 4294901760
            %4214 = vmatpush.msra.mxu0 %v4213
            %v4215 = vand.u32 %v3810, 4294901760
            %v4216 = vsub.f32 %v3810, %v4215
            %v4217 = vand.u32 %v4216, 4294901760
            %v4218 = vsub.f32 %v4216, %v4217
            %v4219 = vand.u32 %v4218, 4294901760
            %4220 = vmatpush.msra.mxu0 %v4219
            %v4221 = vand.u32 %v3808, 4294901760
            %v4222 = vsub.f32 %v3808, %v4221
            %v4223 = vand.u32 %v4222, 4294901760
            %v4224 = vsub.f32 %v4222, %v4223
            %v4225 = vand.u32 %v4224, 4294901760
            %4226 = vmatpush.msra.mxu0 %v4225
            %v4227 = vand.u32 %v3806, 4294901760
            %v4228 = vsub.f32 %v3806, %v4227
            %v4229 = vand.u32 %v4228, 4294901760
            %v4230 = vsub.f32 %v4228, %v4229
            %v4231 = vand.u32 %v4230, 4294901760
            %4232 = vmatpush.msra.mxu0 %v4231
            %v4233 = vand.u32 %v3804, 4294901760
            %v4234 = vsub.f32 %v3804, %v4233
            %v4235 = vand.u32 %v4234, 4294901760
            %v4236 = vsub.f32 %v4234, %v4235
            %v4237 = vand.u32 %v4236, 4294901760
            %4238 = vmatpush.msra.mxu0 %v4237
            %v4239 = vand.u32 %v3802, 4294901760
            %v4240 = vsub.f32 %v3802, %v4239
            %v4241 = vand.u32 %v4240, 4294901760
            %v4242 = vsub.f32 %v4240, %v4241
            %v4243 = vand.u32 %v4242, 4294901760
            %4244 = vmatpush.msra.mxu0 %v4243
            %v4245 = vand.u32 %v3800, 4294901760
            %v4246 = vsub.f32 %v3800, %v4245
            %v4247 = vand.u32 %v4246, 4294901760
            %v4248 = vsub.f32 %v4246, %v4247
            %v4249 = vand.u32 %v4248, 4294901760
            %4250 = vmatpush.msra.mxu0 %v4249
            %v4251 = vand.u32 %v3798, 4294901760
            %v4252 = vsub.f32 %v3798, %v4251
            %v4253 = vand.u32 %v4252, 4294901760
            %v4254 = vsub.f32 %v4252, %v4253
            %v4255 = vand.u32 %v4254, 4294901760
            %4256 = vmatpush.msra.mxu0 %v4255
            %v4257 = vand.u32 %v3796, 4294901760
            %v4258 = vsub.f32 %v3796, %v4257
            %v4259 = vand.u32 %v4258, 4294901760
            %v4260 = vsub.f32 %v4258, %v4259
            %v4261 = vand.u32 %v4260, 4294901760
            %4262 = vmatpush.msra.mxu0 %v4261
            %v4263 = vand.u32 %v3794, 4294901760
            %v4264 = vsub.f32 %v3794, %v4263
            %v4265 = vand.u32 %v4264, 4294901760
            %v4266 = vsub.f32 %v4264, %v4265
            %v4267 = vand.u32 %v4266, 4294901760
            %4268 = vmatpush.msra.mxu0 %v4267
            %v4269 = vand.u32 %v3792, 4294901760
            %v4270 = vsub.f32 %v3792, %v4269
            %v4271 = vand.u32 %v4270, 4294901760
            %v4272 = vsub.f32 %v4270, %v4271
            %v4273 = vand.u32 %v4272, 4294901760
            %4274 = vmatpush.msra.mxu0 %v4273
            %v4275 = vand.u32 %v3790, 4294901760
            %v4276 = vsub.f32 %v3790, %v4275
            %v4277 = vand.u32 %v4276, 4294901760
            %v4278 = vsub.f32 %v4276, %v4277
            %v4279 = vand.u32 %v4278, 4294901760
            %4280 = vmatpush.msra.mxu0 %v4279
            %v4281 = vand.u32 %v3788, 4294901760
            %v4282 = vsub.f32 %v3788, %v4281
            %v4283 = vand.u32 %v4282, 4294901760
            %v4284 = vsub.f32 %v4282, %v4283
            %v4285 = vand.u32 %v4284, 4294901760
            %4286 = vmatpush.msra.mxu0 %v4285
            %v4287 = vand.u32 %v3786, 4294901760
            %v4288 = vsub.f32 %v3786, %v4287
            %v4289 = vand.u32 %v4288, 4294901760
            %v4290 = vsub.f32 %v4288, %v4289
            %v4291 = vand.u32 %v4290, 4294901760
            %4292 = vmatpush.msra.mxu0 %v4291
            %v4293 = vand.u32 %v3784, 4294901760
            %v4294 = vsub.f32 %v3784, %v4293
            %v4295 = vand.u32 %v4294, 4294901760
            %v4296 = vsub.f32 %v4294, %v4295
            %v4297 = vand.u32 %v4296, 4294901760
            %4298 = vmatpush.msra.mxu0 %v4297
            %v4299 = vand.u32 %v3818, 4294901760
            %4300 = vmatmul.f32.gmra.mxu0 %v4299
            %v4301 = vpop.f32.mrf.mxu0
            %v4302 = vadd.f32 %v4201, %v4301
            %4303 = vdwg.mxu0
            %v4304 = vand.u32 %v3814, 4294901760
            %v4305 = vsub.f32 %v3814, %v4304
            %4306 = vmatpush.msra.mxu0 %v4305
            %v4307 = vand.u32 %v3812, 4294901760
            %v4308 = vsub.f32 %v3812, %v4307
            %4309 = vmatpush.msra.mxu0 %v4308
            %v4310 = vand.u32 %v3810, 4294901760
            %v4311 = vsub.f32 %v3810, %v4310
            %4312 = vmatpush.msra.mxu0 %v4311
            %v4313 = vand.u32 %v3808, 4294901760
            %v4314 = vsub.f32 %v3808, %v4313
            %4315 = vmatpush.msra.mxu0 %v4314
            %v4316 = vand.u32 %v3806, 4294901760
            %v4317 = vsub.f32 %v3806, %v4316
            %4318 = vmatpush.msra.mxu0 %v4317
            %v4319 = vand.u32 %v3804, 4294901760
            %v4320 = vsub.f32 %v3804, %v4319
            %4321 = vmatpush.msra.mxu0 %v4320
            %v4322 = vand.u32 %v3802, 4294901760
            %v4323 = vsub.f32 %v3802, %v4322
            %4324 = vmatpush.msra.mxu0 %v4323
            %v4325 = vand.u32 %v3800, 4294901760
            %v4326 = vsub.f32 %v3800, %v4325
            %4327 = vmatpush.msra.mxu0 %v4326
            %v4328 = vand.u32 %v3798, 4294901760
            %v4329 = vsub.f32 %v3798, %v4328
            %4330 = vmatpush.msra.mxu0 %v4329
            %v4331 = vand.u32 %v3796, 4294901760
            %v4332 = vsub.f32 %v3796, %v4331
            %4333 = vmatpush.msra.mxu0 %v4332
            %v4334 = vand.u32 %v3794, 4294901760
            %v4335 = vsub.f32 %v3794, %v4334
            %4336 = vmatpush.msra.mxu0 %v4335
            %v4337 = vand.u32 %v3792, 4294901760
            %v4338 = vsub.f32 %v3792, %v4337
            %4339 = vmatpush.msra.mxu0 %v4338
            %v4340 = vand.u32 %v3790, 4294901760
            %v4341 = vsub.f32 %v3790, %v4340
            %4342 = vmatpush.msra.mxu0 %v4341
            %v4343 = vand.u32 %v3788, 4294901760
            %v4344 = vsub.f32 %v3788, %v4343
            %4345 = vmatpush.msra.mxu0 %v4344
            %v4346 = vand.u32 %v3786, 4294901760
            %v4347 = vsub.f32 %v3786, %v4346
            %4348 = vmatpush.msra.mxu0 %v4347
            %v4349 = vand.u32 %v3784, 4294901760
            %v4350 = vsub.f32 %v3784, %v4349
            %4351 = vmatpush.msra.mxu0 %v4350
            %v4352 = vand.u32 %v3818, 4294901760
            %v4353 = vsub.f32 %v3818, %v4352
            %4354 = vmatmul.f32.gmra.mxu0 %v4353
            %v4355 = vpop.f32.mrf.mxu0
            %v4356 = vadd.f32 %v4302, %v4355
            %4357 = vdwg.mxu0
            %v4358 = vand.u32 %v3814, 4294901760
            %4359 = vmatpush.msra.mxu0 %v4358
            %v4360 = vand.u32 %v3812, 4294901760
            %4361 = vmatpush.msra.mxu0 %v4360
            %v4362 = vand.u32 %v3810, 4294901760
            %4363 = vmatpush.msra.mxu0 %v4362
            %v4364 = vand.u32 %v3808, 4294901760
            %4365 = vmatpush.msra.mxu0 %v4364
            %v4366 = vand.u32 %v3806, 4294901760
            %4367 = vmatpush.msra.mxu0 %v4366
            %v4368 = vand.u32 %v3804, 4294901760
            %4369 = vmatpush.msra.mxu0 %v4368
            %v4370 = vand.u32 %v3802, 4294901760
            %4371 = vmatpush.msra.mxu0 %v4370
            %v4372 = vand.u32 %v3800, 4294901760
            %4373 = vmatpush.msra.mxu0 %v4372
            %v4374 = vand.u32 %v3798, 4294901760
            %4375 = vmatpush.msra.mxu0 %v4374
            %v4376 = vand.u32 %v3796, 4294901760
            %4377 = vmatpush.msra.mxu0 %v4376
            %v4378 = vand.u32 %v3794, 4294901760
            %4379 = vmatpush.msra.mxu0 %v4378
            %v4380 = vand.u32 %v3792, 4294901760
            %4381 = vmatpush.msra.mxu0 %v4380
            %v4382 = vand.u32 %v3790, 4294901760
            %4383 = vmatpush.msra.mxu0 %v4382
            %v4384 = vand.u32 %v3788, 4294901760
            %4385 = vmatpush.msra.mxu0 %v4384
            %v4386 = vand.u32 %v3786, 4294901760
            %4387 = vmatpush.msra.mxu0 %v4386
            %v4388 = vand.u32 %v3784, 4294901760
            %4389 = vmatpush.msra.mxu0 %v4388
            %v4390 = vand.u32 %v3818, 4294901760
            %v4391 = vsub.f32 %v3818, %v4390
            %v4392 = vand.u32 %v4391, 4294901760
            %4393 = vmatmul.f32.gmra.mxu0 %v4392
            %v4394 = vpop.f32.mrf.mxu0
            %v4395 = vadd.f32 %v4356, %v4394
            %4396 = vdwg.mxu0
            %v4397 = vand.u32 %v3814, 4294901760
            %v4398 = vsub.f32 %v3814, %v4397
            %v4399 = vand.u32 %v4398, 4294901760
            %4400 = vmatpush.msra.mxu0 %v4399
            %v4401 = vand.u32 %v3812, 4294901760
            %v4402 = vsub.f32 %v3812, %v4401
            %v4403 = vand.u32 %v4402, 4294901760
            %4404 = vmatpush.msra.mxu0 %v4403
            %v4405 = vand.u32 %v3810, 4294901760
            %v4406 = vsub.f32 %v3810, %v4405
            %v4407 = vand.u32 %v4406, 4294901760
            %4408 = vmatpush.msra.mxu0 %v4407
            %v4409 = vand.u32 %v3808, 4294901760
            %v4410 = vsub.f32 %v3808, %v4409
            %v4411 = vand.u32 %v4410, 4294901760
            %4412 = vmatpush.msra.mxu0 %v4411
            %v4413 = vand.u32 %v3806, 4294901760
            %v4414 = vsub.f32 %v3806, %v4413
            %v4415 = vand.u32 %v4414, 4294901760
            %4416 = vmatpush.msra.mxu0 %v4415
            %v4417 = vand.u32 %v3804, 4294901760
            %v4418 = vsub.f32 %v3804, %v4417
            %v4419 = vand.u32 %v4418, 4294901760
            %4420 = vmatpush.msra.mxu0 %v4419
            %v4421 = vand.u32 %v3802, 4294901760
            %v4422 = vsub.f32 %v3802, %v4421
            %v4423 = vand.u32 %v4422, 4294901760
            %4424 = vmatpush.msra.mxu0 %v4423
            %v4425 = vand.u32 %v3800, 4294901760
            %v4426 = vsub.f32 %v3800, %v4425
            %v4427 = vand.u32 %v4426, 4294901760
            %4428 = vmatpush.msra.mxu0 %v4427
            %v4429 = vand.u32 %v3798, 4294901760
            %v4430 = vsub.f32 %v3798, %v4429
            %v4431 = vand.u32 %v4430, 4294901760
            %4432 = vmatpush.msra.mxu0 %v4431
            %v4433 = vand.u32 %v3796, 4294901760
            %v4434 = vsub.f32 %v3796, %v4433
            %v4435 = vand.u32 %v4434, 4294901760
            %4436 = vmatpush.msra.mxu0 %v4435
            %v4437 = vand.u32 %v3794, 4294901760
            %v4438 = vsub.f32 %v3794, %v4437
            %v4439 = vand.u32 %v4438, 4294901760
            %4440 = vmatpush.msra.mxu0 %v4439
            %v4441 = vand.u32 %v3792, 4294901760
            %v4442 = vsub.f32 %v3792, %v4441
            %v4443 = vand.u32 %v4442, 4294901760
            %4444 = vmatpush.msra.mxu0 %v4443
            %v4445 = vand.u32 %v3790, 4294901760
            %v4446 = vsub.f32 %v3790, %v4445
            %v4447 = vand.u32 %v4446, 4294901760
            %4448 = vmatpush.msra.mxu0 %v4447
            %v4449 = vand.u32 %v3788, 4294901760
            %v4450 = vsub.f32 %v3788, %v4449
            %v4451 = vand.u32 %v4450, 4294901760
            %4452 = vmatpush.msra.mxu0 %v4451
            %v4453 = vand.u32 %v3786, 4294901760
            %v4454 = vsub.f32 %v3786, %v4453
            %v4455 = vand.u32 %v4454, 4294901760
            %4456 = vmatpush.msra.mxu0 %v4455
            %v4457 = vand.u32 %v3784, 4294901760
            %v4458 = vsub.f32 %v3784, %v4457
            %v4459 = vand.u32 %v4458, 4294901760
            %4460 = vmatpush.msra.mxu0 %v4459
            %v4461 = vand.u32 %v3818, 4294901760
            %4462 = vmatmul.f32.gmra.mxu0 %v4461
            %v4463 = vpop.f32.mrf.mxu0
            %v4464 = vadd.f32 %v4395, %v4463
            %4465 = vdwg.mxu0
            %v4466 = vand.u32 %v3814, 4294901760
            %4467 = vmatpush.msra.mxu0 %v4466
            %v4468 = vand.u32 %v3812, 4294901760
            %4469 = vmatpush.msra.mxu0 %v4468
            %v4470 = vand.u32 %v3810, 4294901760
            %4471 = vmatpush.msra.mxu0 %v4470
            %v4472 = vand.u32 %v3808, 4294901760
            %4473 = vmatpush.msra.mxu0 %v4472
            %v4474 = vand.u32 %v3806, 4294901760
            %4475 = vmatpush.msra.mxu0 %v4474
            %v4476 = vand.u32 %v3804, 4294901760
            %4477 = vmatpush.msra.mxu0 %v4476
            %v4478 = vand.u32 %v3802, 4294901760
            %4479 = vmatpush.msra.mxu0 %v4478
            %v4480 = vand.u32 %v3800, 4294901760
            %4481 = vmatpush.msra.mxu0 %v4480
            %v4482 = vand.u32 %v3798, 4294901760
            %4483 = vmatpush.msra.mxu0 %v4482
            %v4484 = vand.u32 %v3796, 4294901760
            %4485 = vmatpush.msra.mxu0 %v4484
            %v4486 = vand.u32 %v3794, 4294901760
            %4487 = vmatpush.msra.mxu0 %v4486
            %v4488 = vand.u32 %v3792, 4294901760
            %4489 = vmatpush.msra.mxu0 %v4488
            %v4490 = vand.u32 %v3790, 4294901760
            %4491 = vmatpush.msra.mxu0 %v4490
            %v4492 = vand.u32 %v3788, 4294901760
            %4493 = vmatpush.msra.mxu0 %v4492
            %v4494 = vand.u32 %v3786, 4294901760
            %4495 = vmatpush.msra.mxu0 %v4494
            %v4496 = vand.u32 %v3784, 4294901760
            %4497 = vmatpush.msra.mxu0 %v4496
            %v4498 = vand.u32 %v3818, 4294901760
            %4499 = vmatmul.f32.gmra.mxu0 %v4498
            %v4500 = vpop.f32.mrf.mxu0
            %v4501 = vadd.f32 %v4464, %v4500
            %4502 = vdwg.mxu0
            %v4503 = vand.u32 %v3783, 4294901760
            %4504 = vmatpush.msra.mxu0 %v4503
            %v4505 = vand.u32 %v3781, 4294901760
            %4506 = vmatpush.msra.mxu0 %v4505
            %v4507 = vand.u32 %v3779, 4294901760
            %4508 = vmatpush.msra.mxu0 %v4507
            %v4509 = vand.u32 %v3777, 4294901760
            %4510 = vmatpush.msra.mxu0 %v4509
            %v4511 = vand.u32 %v3775, 4294901760
            %4512 = vmatpush.msra.mxu0 %v4511
            %v4513 = vand.u32 %v3773, 4294901760
            %4514 = vmatpush.msra.mxu0 %v4513
            %v4515 = vand.u32 %v3771, 4294901760
            %4516 = vmatpush.msra.mxu0 %v4515
            %v4517 = vand.u32 %v3769, 4294901760
            %4518 = vmatpush.msra.mxu0 %v4517
            %v4519 = vand.u32 %v3767, 4294901760
            %4520 = vmatpush.msra.mxu0 %v4519
            %v4521 = vand.u32 %v3765, 4294901760
            %4522 = vmatpush.msra.mxu0 %v4521
            %v4523 = vand.u32 %v3763, 4294901760
            %4524 = vmatpush.msra.mxu0 %v4523
            %v4525 = vand.u32 %v3761, 4294901760
            %4526 = vmatpush.msra.mxu0 %v4525
            %v4527 = vand.u32 %v3759, 4294901760
            %4528 = vmatpush.msra.mxu0 %v4527
            %v4529 = vand.u32 %v3757, 4294901760
            %4530 = vmatpush.msra.mxu0 %v4529
            %v4531 = vand.u32 %v3755, 4294901760
            %4532 = vmatpush.msra.mxu0 %v4531
            %v4533 = vand.u32 %v3753, 4294901760
            %4534 = vmatpush.msra.mxu0 %v4533
            %v4535 = vand.u32 %v3817, 4294901760
            %v4536 = vsub.f32 %v3817, %v4535
            %v4537 = vand.u32 %v4536, 4294901760
            %v4538 = vsub.f32 %v4536, %v4537
            %v4539 = vand.u32 %v4538, 4294901760
            %4540 = vmatmul.f32.gmra.mxu0 %v4539
            %v4541 = vpop.f32.mrf.mxu0
            %v4542 = vadd.f32 0.0, %v4541
            %4543 = vdwg.mxu0
            %v4544 = vand.u32 %v3783, 4294901760
            %v4545 = vsub.f32 %v3783, %v4544
            %v4546 = vand.u32 %v4545, 4294901760
            %v4547 = vsub.f32 %v4545, %v4546
            %v4548 = vand.u32 %v4547, 4294901760
            %4549 = vmatpush.msra.mxu0 %v4548
            %v4550 = vand.u32 %v3781, 4294901760
            %v4551 = vsub.f32 %v3781, %v4550
            %v4552 = vand.u32 %v4551, 4294901760
            %v4553 = vsub.f32 %v4551, %v4552
            %v4554 = vand.u32 %v4553, 4294901760
            %4555 = vmatpush.msra.mxu0 %v4554
            %v4556 = vand.u32 %v3779, 4294901760
            %v4557 = vsub.f32 %v3779, %v4556
            %v4558 = vand.u32 %v4557, 4294901760
            %v4559 = vsub.f32 %v4557, %v4558
            %v4560 = vand.u32 %v4559, 4294901760
            %4561 = vmatpush.msra.mxu0 %v4560
            %v4562 = vand.u32 %v3777, 4294901760
            %v4563 = vsub.f32 %v3777, %v4562
            %v4564 = vand.u32 %v4563, 4294901760
            %v4565 = vsub.f32 %v4563, %v4564
            %v4566 = vand.u32 %v4565, 4294901760
            %4567 = vmatpush.msra.mxu0 %v4566
            %v4568 = vand.u32 %v3775, 4294901760
            %v4569 = vsub.f32 %v3775, %v4568
            %v4570 = vand.u32 %v4569, 4294901760
            %v4571 = vsub.f32 %v4569, %v4570
            %v4572 = vand.u32 %v4571, 4294901760
            %4573 = vmatpush.msra.mxu0 %v4572
            %v4574 = vand.u32 %v3773, 4294901760
            %v4575 = vsub.f32 %v3773, %v4574
            %v4576 = vand.u32 %v4575, 4294901760
            %v4577 = vsub.f32 %v4575, %v4576
            %v4578 = vand.u32 %v4577, 4294901760
            %4579 = vmatpush.msra.mxu0 %v4578
            %v4580 = vand.u32 %v3771, 4294901760
            %v4581 = vsub.f32 %v3771, %v4580
            %v4582 = vand.u32 %v4581, 4294901760
            %v4583 = vsub.f32 %v4581, %v4582
            %v4584 = vand.u32 %v4583, 4294901760
            %4585 = vmatpush.msra.mxu0 %v4584
            %v4586 = vand.u32 %v3769, 4294901760
            %v4587 = vsub.f32 %v3769, %v4586
            %v4588 = vand.u32 %v4587, 4294901760
            %v4589 = vsub.f32 %v4587, %v4588
            %v4590 = vand.u32 %v4589, 4294901760
            %4591 = vmatpush.msra.mxu0 %v4590
            %v4592 = vand.u32 %v3767, 4294901760
            %v4593 = vsub.f32 %v3767, %v4592
            %v4594 = vand.u32 %v4593, 4294901760
            %v4595 = vsub.f32 %v4593, %v4594
            %v4596 = vand.u32 %v4595, 4294901760
            %4597 = vmatpush.msra.mxu0 %v4596
            %v4598 = vand.u32 %v3765, 4294901760
            %v4599 = vsub.f32 %v3765, %v4598
            %v4600 = vand.u32 %v4599, 4294901760
            %v4601 = vsub.f32 %v4599, %v4600
            %v4602 = vand.u32 %v4601, 4294901760
            %4603 = vmatpush.msra.mxu0 %v4602
            %v4604 = vand.u32 %v3763, 4294901760
            %v4605 = vsub.f32 %v3763, %v4604
            %v4606 = vand.u32 %v4605, 4294901760
            %v4607 = vsub.f32 %v4605, %v4606
            %v4608 = vand.u32 %v4607, 4294901760
            %4609 = vmatpush.msra.mxu0 %v4608
            %v4610 = vand.u32 %v3761, 4294901760
            %v4611 = vsub.f32 %v3761, %v4610
            %v4612 = vand.u32 %v4611, 4294901760
            %v4613 = vsub.f32 %v4611, %v4612
            %v4614 = vand.u32 %v4613, 4294901760
            %4615 = vmatpush.msra.mxu0 %v4614
            %v4616 = vand.u32 %v3759, 4294901760
            %v4617 = vsub.f32 %v3759, %v4616
            %v4618 = vand.u32 %v4617, 4294901760
            %v4619 = vsub.f32 %v4617, %v4618
            %v4620 = vand.u32 %v4619, 4294901760
            %4621 = vmatpush.msra.mxu0 %v4620
            %v4622 = vand.u32 %v3757, 4294901760
            %v4623 = vsub.f32 %v3757, %v4622
            %v4624 = vand.u32 %v4623, 4294901760
            %v4625 = vsub.f32 %v4623, %v4624
            %v4626 = vand.u32 %v4625, 4294901760
            %4627 = vmatpush.msra.mxu0 %v4626
            %v4628 = vand.u32 %v3755, 4294901760
            %v4629 = vsub.f32 %v3755, %v4628
            %v4630 = vand.u32 %v4629, 4294901760
            %v4631 = vsub.f32 %v4629, %v4630
            %v4632 = vand.u32 %v4631, 4294901760
            %4633 = vmatpush.msra.mxu0 %v4632
            %v4634 = vand.u32 %v3753, 4294901760
            %v4635 = vsub.f32 %v3753, %v4634
            %v4636 = vand.u32 %v4635, 4294901760
            %v4637 = vsub.f32 %v4635, %v4636
            %v4638 = vand.u32 %v4637, 4294901760
            %4639 = vmatpush.msra.mxu0 %v4638
            %v4640 = vand.u32 %v3817, 4294901760
            %4641 = vmatmul.f32.gmra.mxu0 %v4640
            %v4642 = vpop.f32.mrf.mxu0
            %v4643 = vadd.f32 %v4542, %v4642
            %4644 = vdwg.mxu0
            %v4645 = vand.u32 %v3783, 4294901760
            %v4646 = vsub.f32 %v3783, %v4645
            %4647 = vmatpush.msra.mxu0 %v4646
            %v4648 = vand.u32 %v3781, 4294901760
            %v4649 = vsub.f32 %v3781, %v4648
            %4650 = vmatpush.msra.mxu0 %v4649
            %v4651 = vand.u32 %v3779, 4294901760
            %v4652 = vsub.f32 %v3779, %v4651
            %4653 = vmatpush.msra.mxu0 %v4652
            %v4654 = vand.u32 %v3777, 4294901760
            %v4655 = vsub.f32 %v3777, %v4654
            %4656 = vmatpush.msra.mxu0 %v4655
            %v4657 = vand.u32 %v3775, 4294901760
            %v4658 = vsub.f32 %v3775, %v4657
            %4659 = vmatpush.msra.mxu0 %v4658
            %v4660 = vand.u32 %v3773, 4294901760
            %v4661 = vsub.f32 %v3773, %v4660
            %4662 = vmatpush.msra.mxu0 %v4661
            %v4663 = vand.u32 %v3771, 4294901760
            %v4664 = vsub.f32 %v3771, %v4663
            %4665 = vmatpush.msra.mxu0 %v4664
            %v4666 = vand.u32 %v3769, 4294901760
            %v4667 = vsub.f32 %v3769, %v4666
            %4668 = vmatpush.msra.mxu0 %v4667
            %v4669 = vand.u32 %v3767, 4294901760
            %v4670 = vsub.f32 %v3767, %v4669
            %4671 = vmatpush.msra.mxu0 %v4670
            %v4672 = vand.u32 %v3765, 4294901760
            %v4673 = vsub.f32 %v3765, %v4672
            %4674 = vmatpush.msra.mxu0 %v4673
            %v4675 = vand.u32 %v3763, 4294901760
            %v4676 = vsub.f32 %v3763, %v4675
            %4677 = vmatpush.msra.mxu0 %v4676
            %v4678 = vand.u32 %v3761, 4294901760
            %v4679 = vsub.f32 %v3761, %v4678
            %4680 = vmatpush.msra.mxu0 %v4679
            %v4681 = vand.u32 %v3759, 4294901760
            %v4682 = vsub.f32 %v3759, %v4681
            %4683 = vmatpush.msra.mxu0 %v4682
            %v4684 = vand.u32 %v3757, 4294901760
            %v4685 = vsub.f32 %v3757, %v4684
            %4686 = vmatpush.msra.mxu0 %v4685
            %v4687 = vand.u32 %v3755, 4294901760
            %v4688 = vsub.f32 %v3755, %v4687
            %4689 = vmatpush.msra.mxu0 %v4688
            %v4690 = vand.u32 %v3753, 4294901760
            %v4691 = vsub.f32 %v3753, %v4690
            %4692 = vmatpush.msra.mxu0 %v4691
            %v4693 = vand.u32 %v3817, 4294901760
            %v4694 = vsub.f32 %v3817, %v4693
            %4695 = vmatmul.f32.gmra.mxu0 %v4694
            %v4696 = vpop.f32.mrf.mxu0
            %v4697 = vadd.f32 %v4643, %v4696
            %4698 = vdwg.mxu0
            %v4699 = vand.u32 %v3783, 4294901760
            %4700 = vmatpush.msra.mxu0 %v4699
            %v4701 = vand.u32 %v3781, 4294901760
            %4702 = vmatpush.msra.mxu0 %v4701
            %v4703 = vand.u32 %v3779, 4294901760
            %4704 = vmatpush.msra.mxu0 %v4703
            %v4705 = vand.u32 %v3777, 4294901760
            %4706 = vmatpush.msra.mxu0 %v4705
            %v4707 = vand.u32 %v3775, 4294901760
            %4708 = vmatpush.msra.mxu0 %v4707
            %v4709 = vand.u32 %v3773, 4294901760
            %4710 = vmatpush.msra.mxu0 %v4709
            %v4711 = vand.u32 %v3771, 4294901760
            %4712 = vmatpush.msra.mxu0 %v4711
            %v4713 = vand.u32 %v3769, 4294901760
            %4714 = vmatpush.msra.mxu0 %v4713
            %v4715 = vand.u32 %v3767, 4294901760
            %4716 = vmatpush.msra.mxu0 %v4715
            %v4717 = vand.u32 %v3765, 4294901760
            %4718 = vmatpush.msra.mxu0 %v4717
            %v4719 = vand.u32 %v3763, 4294901760
            %4720 = vmatpush.msra.mxu0 %v4719
            %v4721 = vand.u32 %v3761, 4294901760
            %4722 = vmatpush.msra.mxu0 %v4721
            %v4723 = vand.u32 %v3759, 4294901760
            %4724 = vmatpush.msra.mxu0 %v4723
            %v4725 = vand.u32 %v3757, 4294901760
            %4726 = vmatpush.msra.mxu0 %v4725
            %v4727 = vand.u32 %v3755, 4294901760
            %4728 = vmatpush.msra.mxu0 %v4727
            %v4729 = vand.u32 %v3753, 4294901760
            %4730 = vmatpush.msra.mxu0 %v4729
            %v4731 = vand.u32 %v3817, 4294901760
            %v4732 = vsub.f32 %v3817, %v4731
            %v4733 = vand.u32 %v4732, 4294901760
            %4734 = vmatmul.f32.gmra.mxu0 %v4733
            %v4735 = vpop.f32.mrf.mxu0
            %v4736 = vadd.f32 %v4697, %v4735
            %4737 = vdwg.mxu0
            %v4738 = vand.u32 %v3783, 4294901760
            %v4739 = vsub.f32 %v3783, %v4738
            %v4740 = vand.u32 %v4739, 4294901760
            %4741 = vmatpush.msra.mxu0 %v4740
            %v4742 = vand.u32 %v3781, 4294901760
            %v4743 = vsub.f32 %v3781, %v4742
            %v4744 = vand.u32 %v4743, 4294901760
            %4745 = vmatpush.msra.mxu0 %v4744
            %v4746 = vand.u32 %v3779, 4294901760
            %v4747 = vsub.f32 %v3779, %v4746
            %v4748 = vand.u32 %v4747, 4294901760
            %4749 = vmatpush.msra.mxu0 %v4748
            %v4750 = vand.u32 %v3777, 4294901760
            %v4751 = vsub.f32 %v3777, %v4750
            %v4752 = vand.u32 %v4751, 4294901760
            %4753 = vmatpush.msra.mxu0 %v4752
            %v4754 = vand.u32 %v3775, 4294901760
            %v4755 = vsub.f32 %v3775, %v4754
            %v4756 = vand.u32 %v4755, 4294901760
            %4757 = vmatpush.msra.mxu0 %v4756
            %v4758 = vand.u32 %v3773, 4294901760
            %v4759 = vsub.f32 %v3773, %v4758
            %v4760 = vand.u32 %v4759, 4294901760
            %4761 = vmatpush.msra.mxu0 %v4760
            %v4762 = vand.u32 %v3771, 4294901760
            %v4763 = vsub.f32 %v3771, %v4762
            %v4764 = vand.u32 %v4763, 4294901760
            %4765 = vmatpush.msra.mxu0 %v4764
            %v4766 = vand.u32 %v3769, 4294901760
            %v4767 = vsub.f32 %v3769, %v4766
            %v4768 = vand.u32 %v4767, 4294901760
            %4769 = vmatpush.msra.mxu0 %v4768
            %v4770 = vand.u32 %v3767, 4294901760
            %v4771 = vsub.f32 %v3767, %v4770
            %v4772 = vand.u32 %v4771, 4294901760
            %4773 = vmatpush.msra.mxu0 %v4772
            %v4774 = vand.u32 %v3765, 4294901760
            %v4775 = vsub.f32 %v3765, %v4774
            %v4776 = vand.u32 %v4775, 4294901760
            %4777 = vmatpush.msra.mxu0 %v4776
            %v4778 = vand.u32 %v3763, 4294901760
            %v4779 = vsub.f32 %v3763, %v4778
            %v4780 = vand.u32 %v4779, 4294901760
            %4781 = vmatpush.msra.mxu0 %v4780
            %v4782 = vand.u32 %v3761, 4294901760
            %v4783 = vsub.f32 %v3761, %v4782
            %v4784 = vand.u32 %v4783, 4294901760
            %4785 = vmatpush.msra.mxu0 %v4784
            %v4786 = vand.u32 %v3759, 4294901760
            %v4787 = vsub.f32 %v3759, %v4786
            %v4788 = vand.u32 %v4787, 4294901760
            %4789 = vmatpush.msra.mxu0 %v4788
            %v4790 = vand.u32 %v3757, 4294901760
            %v4791 = vsub.f32 %v3757, %v4790
            %v4792 = vand.u32 %v4791, 4294901760
            %4793 = vmatpush.msra.mxu0 %v4792
            %v4794 = vand.u32 %v3755, 4294901760
            %v4795 = vsub.f32 %v3755, %v4794
            %v4796 = vand.u32 %v4795, 4294901760
            %4797 = vmatpush.msra.mxu0 %v4796
            %v4798 = vand.u32 %v3753, 4294901760
            %v4799 = vsub.f32 %v3753, %v4798
            %v4800 = vand.u32 %v4799, 4294901760
            %4801 = vmatpush.msra.mxu0 %v4800
            %v4802 = vand.u32 %v3817, 4294901760
            %4803 = vmatmul.f32.gmra.mxu0 %v4802
            %v4804 = vpop.f32.mrf.mxu0
            %v4805 = vadd.f32 %v4736, %v4804
            %4806 = vdwg.mxu0
            %v4807 = vand.u32 %v3783, 4294901760
            %4808 = vmatpush.msra.mxu0 %v4807
            %v4809 = vand.u32 %v3781, 4294901760
            %4810 = vmatpush.msra.mxu0 %v4809
            %v4811 = vand.u32 %v3779, 4294901760
            %4812 = vmatpush.msra.mxu0 %v4811
            %v4813 = vand.u32 %v3777, 4294901760
            %4814 = vmatpush.msra.mxu0 %v4813
            %v4815 = vand.u32 %v3775, 4294901760
            %4816 = vmatpush.msra.mxu0 %v4815
            %v4817 = vand.u32 %v3773, 4294901760
            %4818 = vmatpush.msra.mxu0 %v4817
            %v4819 = vand.u32 %v3771, 4294901760
            %4820 = vmatpush.msra.mxu0 %v4819
            %v4821 = vand.u32 %v3769, 4294901760
            %4822 = vmatpush.msra.mxu0 %v4821
            %v4823 = vand.u32 %v3767, 4294901760
            %4824 = vmatpush.msra.mxu0 %v4823
            %v4825 = vand.u32 %v3765, 4294901760
            %4826 = vmatpush.msra.mxu0 %v4825
            %v4827 = vand.u32 %v3763, 4294901760
            %4828 = vmatpush.msra.mxu0 %v4827
            %v4829 = vand.u32 %v3761, 4294901760
            %4830 = vmatpush.msra.mxu0 %v4829
            %v4831 = vand.u32 %v3759, 4294901760
            %4832 = vmatpush.msra.mxu0 %v4831
            %v4833 = vand.u32 %v3757, 4294901760
            %4834 = vmatpush.msra.mxu0 %v4833
            %v4835 = vand.u32 %v3755, 4294901760
            %4836 = vmatpush.msra.mxu0 %v4835
            %v4837 = vand.u32 %v3753, 4294901760
            %4838 = vmatpush.msra.mxu0 %v4837
            %v4839 = vand.u32 %v3817, 4294901760
            %4840 = vmatmul.f32.gmra.mxu0 %v4839
            %v4841 = vpop.f32.mrf.mxu0
            %v4842 = vadd.f32 %v4805, %v4841
            %4843 = vdwg.mxu0
            %v4844 = vand.u32 %v3815, 4294901760
            %4845 = vmatpush.msra.mxu0 %v4844
            %v4846 = vand.u32 %v3813, 4294901760
            %4847 = vmatpush.msra.mxu0 %v4846
            %v4848 = vand.u32 %v3811, 4294901760
            %4849 = vmatpush.msra.mxu0 %v4848
            %v4850 = vand.u32 %v3809, 4294901760
            %4851 = vmatpush.msra.mxu0 %v4850
            %v4852 = vand.u32 %v3807, 4294901760
            %4853 = vmatpush.msra.mxu0 %v4852
            %v4854 = vand.u32 %v3805, 4294901760
            %4855 = vmatpush.msra.mxu0 %v4854
            %v4856 = vand.u32 %v3803, 4294901760
            %4857 = vmatpush.msra.mxu0 %v4856
            %v4858 = vand.u32 %v3801, 4294901760
            %4859 = vmatpush.msra.mxu0 %v4858
            %v4860 = vand.u32 %v3799, 4294901760
            %4861 = vmatpush.msra.mxu0 %v4860
            %v4862 = vand.u32 %v3797, 4294901760
            %4863 = vmatpush.msra.mxu0 %v4862
            %v4864 = vand.u32 %v3795, 4294901760
            %4865 = vmatpush.msra.mxu0 %v4864
            %v4866 = vand.u32 %v3793, 4294901760
            %4867 = vmatpush.msra.mxu0 %v4866
            %v4868 = vand.u32 %v3791, 4294901760
            %4869 = vmatpush.msra.mxu0 %v4868
            %v4870 = vand.u32 %v3789, 4294901760
            %4871 = vmatpush.msra.mxu0 %v4870
            %v4872 = vand.u32 %v3787, 4294901760
            %4873 = vmatpush.msra.mxu0 %v4872
            %v4874 = vand.u32 %v3785, 4294901760
            %4875 = vmatpush.msra.mxu0 %v4874
            %v4876 = vand.u32 %v3818, 4294901760
            %v4877 = vsub.f32 %v3818, %v4876
            %v4878 = vand.u32 %v4877, 4294901760
            %v4879 = vsub.f32 %v4877, %v4878
            %v4880 = vand.u32 %v4879, 4294901760
            %4881 = vmatmul.f32.gmra.mxu0 %v4880
            %v4882 = vpop.f32.mrf.mxu0
            %v4883 = vadd.f32 %v4842, %v4882
            %4884 = vdwg.mxu0
            %v4885 = vand.u32 %v3815, 4294901760
            %v4886 = vsub.f32 %v3815, %v4885
            %v4887 = vand.u32 %v4886, 4294901760
            %v4888 = vsub.f32 %v4886, %v4887
            %v4889 = vand.u32 %v4888, 4294901760
            %4890 = vmatpush.msra.mxu0 %v4889
            %v4891 = vand.u32 %v3813, 4294901760
            %v4892 = vsub.f32 %v3813, %v4891
            %v4893 = vand.u32 %v4892, 4294901760
            %v4894 = vsub.f32 %v4892, %v4893
            %v4895 = vand.u32 %v4894, 4294901760
            %4896 = vmatpush.msra.mxu0 %v4895
            %v4897 = vand.u32 %v3811, 4294901760
            %v4898 = vsub.f32 %v3811, %v4897
            %v4899 = vand.u32 %v4898, 4294901760
            %v4900 = vsub.f32 %v4898, %v4899
            %v4901 = vand.u32 %v4900, 4294901760
            %4902 = vmatpush.msra.mxu0 %v4901
            %v4903 = vand.u32 %v3809, 4294901760
            %v4904 = vsub.f32 %v3809, %v4903
            %v4905 = vand.u32 %v4904, 4294901760
            %v4906 = vsub.f32 %v4904, %v4905
            %v4907 = vand.u32 %v4906, 4294901760
            %4908 = vmatpush.msra.mxu0 %v4907
            %v4909 = vand.u32 %v3807, 4294901760
            %v4910 = vsub.f32 %v3807, %v4909
            %v4911 = vand.u32 %v4910, 4294901760
            %v4912 = vsub.f32 %v4910, %v4911
            %v4913 = vand.u32 %v4912, 4294901760
            %4914 = vmatpush.msra.mxu0 %v4913
            %v4915 = vand.u32 %v3805, 4294901760
            %v4916 = vsub.f32 %v3805, %v4915
            %v4917 = vand.u32 %v4916, 4294901760
            %v4918 = vsub.f32 %v4916, %v4917
            %v4919 = vand.u32 %v4918, 4294901760
            %4920 = vmatpush.msra.mxu0 %v4919
            %v4921 = vand.u32 %v3803, 4294901760
            %v4922 = vsub.f32 %v3803, %v4921
            %v4923 = vand.u32 %v4922, 4294901760
            %v4924 = vsub.f32 %v4922, %v4923
            %v4925 = vand.u32 %v4924, 4294901760
            %4926 = vmatpush.msra.mxu0 %v4925
            %v4927 = vand.u32 %v3801, 4294901760
            %v4928 = vsub.f32 %v3801, %v4927
            %v4929 = vand.u32 %v4928, 4294901760
            %v4930 = vsub.f32 %v4928, %v4929
            %v4931 = vand.u32 %v4930, 4294901760
            %4932 = vmatpush.msra.mxu0 %v4931
            %v4933 = vand.u32 %v3799, 4294901760
            %v4934 = vsub.f32 %v3799, %v4933
            %v4935 = vand.u32 %v4934, 4294901760
            %v4936 = vsub.f32 %v4934, %v4935
            %v4937 = vand.u32 %v4936, 4294901760
            %4938 = vmatpush.msra.mxu0 %v4937
            %v4939 = vand.u32 %v3797, 4294901760
            %v4940 = vsub.f32 %v3797, %v4939
            %v4941 = vand.u32 %v4940, 4294901760
            %v4942 = vsub.f32 %v4940, %v4941
            %v4943 = vand.u32 %v4942, 4294901760
            %4944 = vmatpush.msra.mxu0 %v4943
            %v4945 = vand.u32 %v3795, 4294901760
            %v4946 = vsub.f32 %v3795, %v4945
            %v4947 = vand.u32 %v4946, 4294901760
            %v4948 = vsub.f32 %v4946, %v4947
            %v4949 = vand.u32 %v4948, 4294901760
            %4950 = vmatpush.msra.mxu0 %v4949
            %v4951 = vand.u32 %v3793, 4294901760
            %v4952 = vsub.f32 %v3793, %v4951
            %v4953 = vand.u32 %v4952, 4294901760
            %v4954 = vsub.f32 %v4952, %v4953
            %v4955 = vand.u32 %v4954, 4294901760
            %4956 = vmatpush.msra.mxu0 %v4955
            %v4957 = vand.u32 %v3791, 4294901760
            %v4958 = vsub.f32 %v3791, %v4957
            %v4959 = vand.u32 %v4958, 4294901760
            %v4960 = vsub.f32 %v4958, %v4959
            %v4961 = vand.u32 %v4960, 4294901760
            %4962 = vmatpush.msra.mxu0 %v4961
            %v4963 = vand.u32 %v3789, 4294901760
            %v4964 = vsub.f32 %v3789, %v4963
            %v4965 = vand.u32 %v4964, 4294901760
            %v4966 = vsub.f32 %v4964, %v4965
            %v4967 = vand.u32 %v4966, 4294901760
            %4968 = vmatpush.msra.mxu0 %v4967
            %v4969 = vand.u32 %v3787, 4294901760
            %v4970 = vsub.f32 %v3787, %v4969
            %v4971 = vand.u32 %v4970, 4294901760
            %v4972 = vsub.f32 %v4970, %v4971
            %v4973 = vand.u32 %v4972, 4294901760
            %4974 = vmatpush.msra.mxu0 %v4973
            %v4975 = vand.u32 %v3785, 4294901760
            %v4976 = vsub.f32 %v3785, %v4975
            %v4977 = vand.u32 %v4976, 4294901760
            %v4978 = vsub.f32 %v4976, %v4977
            %v4979 = vand.u32 %v4978, 4294901760
            %4980 = vmatpush.msra.mxu0 %v4979
            %v4981 = vand.u32 %v3818, 4294901760
            %4982 = vmatmul.f32.gmra.mxu0 %v4981
            %v4983 = vpop.f32.mrf.mxu0
            %v4984 = vadd.f32 %v4883, %v4983
            %4985 = vdwg.mxu0
            %v4986 = vand.u32 %v3815, 4294901760
            %v4987 = vsub.f32 %v3815, %v4986
            %4988 = vmatpush.msra.mxu0 %v4987
            %v4989 = vand.u32 %v3813, 4294901760
            %v4990 = vsub.f32 %v3813, %v4989
            %4991 = vmatpush.msra.mxu0 %v4990
            %v4992 = vand.u32 %v3811, 4294901760
            %v4993 = vsub.f32 %v3811, %v4992
            %4994 = vmatpush.msra.mxu0 %v4993
            %v4995 = vand.u32 %v3809, 4294901760
            %v4996 = vsub.f32 %v3809, %v4995
            %4997 = vmatpush.msra.mxu0 %v4996
            %v4998 = vand.u32 %v3807, 4294901760
            %v4999 = vsub.f32 %v3807, %v4998
            %5000 = vmatpush.msra.mxu0 %v4999
            %v5001 = vand.u32 %v3805, 4294901760
            %v5002 = vsub.f32 %v3805, %v5001
            %5003 = vmatpush.msra.mxu0 %v5002
            %v5004 = vand.u32 %v3803, 4294901760
            %v5005 = vsub.f32 %v3803, %v5004
            %5006 = vmatpush.msra.mxu0 %v5005
            %v5007 = vand.u32 %v3801, 4294901760
            %v5008 = vsub.f32 %v3801, %v5007
            %5009 = vmatpush.msra.mxu0 %v5008
            %v5010 = vand.u32 %v3799, 4294901760
            %v5011 = vsub.f32 %v3799, %v5010
            %5012 = vmatpush.msra.mxu0 %v5011
            %v5013 = vand.u32 %v3797, 4294901760
            %v5014 = vsub.f32 %v3797, %v5013
            %5015 = vmatpush.msra.mxu0 %v5014
            %v5016 = vand.u32 %v3795, 4294901760
            %v5017 = vsub.f32 %v3795, %v5016
            %5018 = vmatpush.msra.mxu0 %v5017
            %v5019 = vand.u32 %v3793, 4294901760
            %v5020 = vsub.f32 %v3793, %v5019
            %5021 = vmatpush.msra.mxu0 %v5020
            %v5022 = vand.u32 %v3791, 4294901760
            %v5023 = vsub.f32 %v3791, %v5022
            %5024 = vmatpush.msra.mxu0 %v5023
            %v5025 = vand.u32 %v3789, 4294901760
            %v5026 = vsub.f32 %v3789, %v5025
            %5027 = vmatpush.msra.mxu0 %v5026
            %v5028 = vand.u32 %v3787, 4294901760
            %v5029 = vsub.f32 %v3787, %v5028
            %5030 = vmatpush.msra.mxu0 %v5029
            %v5031 = vand.u32 %v3785, 4294901760
            %v5032 = vsub.f32 %v3785, %v5031
            %5033 = vmatpush.msra.mxu0 %v5032
            %v5034 = vand.u32 %v3818, 4294901760
            %v5035 = vsub.f32 %v3818, %v5034
            %5036 = vmatmul.f32.gmra.mxu0 %v5035
            %v5037 = vpop.f32.mrf.mxu0
            %v5038 = vadd.f32 %v4984, %v5037
            %5039 = vdwg.mxu0
            %v5040 = vand.u32 %v3815, 4294901760
            %5041 = vmatpush.msra.mxu0 %v5040
            %v5042 = vand.u32 %v3813, 4294901760
            %5043 = vmatpush.msra.mxu0 %v5042
            %v5044 = vand.u32 %v3811, 4294901760
            %5045 = vmatpush.msra.mxu0 %v5044
            %v5046 = vand.u32 %v3809, 4294901760
            %5047 = vmatpush.msra.mxu0 %v5046
            %v5048 = vand.u32 %v3807, 4294901760
            %5049 = vmatpush.msra.mxu0 %v5048
            %v5050 = vand.u32 %v3805, 4294901760
            %5051 = vmatpush.msra.mxu0 %v5050
            %v5052 = vand.u32 %v3803, 4294901760
            %5053 = vmatpush.msra.mxu0 %v5052
            %v5054 = vand.u32 %v3801, 4294901760
            %5055 = vmatpush.msra.mxu0 %v5054
            %v5056 = vand.u32 %v3799, 4294901760
            %5057 = vmatpush.msra.mxu0 %v5056
            %v5058 = vand.u32 %v3797, 4294901760
            %5059 = vmatpush.msra.mxu0 %v5058
            %v5060 = vand.u32 %v3795, 4294901760
            %5061 = vmatpush.msra.mxu0 %v5060
            %v5062 = vand.u32 %v3793, 4294901760
            %5063 = vmatpush.msra.mxu0 %v5062
            %v5064 = vand.u32 %v3791, 4294901760
            %5065 = vmatpush.msra.mxu0 %v5064
            %v5066 = vand.u32 %v3789, 4294901760
            %5067 = vmatpush.msra.mxu0 %v5066
            %v5068 = vand.u32 %v3787, 4294901760
            %5069 = vmatpush.msra.mxu0 %v5068
            %v5070 = vand.u32 %v3785, 4294901760
            %5071 = vmatpush.msra.mxu0 %v5070
            %v5072 = vand.u32 %v3818, 4294901760
            %v5073 = vsub.f32 %v3818, %v5072
            %v5074 = vand.u32 %v5073, 4294901760
            %5075 = vmatmul.f32.gmra.mxu0 %v5074
            %v5076 = vpop.f32.mrf.mxu0
            %v5077 = vadd.f32 %v5038, %v5076
            %5078 = vdwg.mxu0
            %v5079 = vand.u32 %v3815, 4294901760
            %v5080 = vsub.f32 %v3815, %v5079
            %v5081 = vand.u32 %v5080, 4294901760
            %5082 = vmatpush.msra.mxu0 %v5081
            %v5083 = vand.u32 %v3813, 4294901760
            %v5084 = vsub.f32 %v3813, %v5083
            %v5085 = vand.u32 %v5084, 4294901760
            %5086 = vmatpush.msra.mxu0 %v5085
            %v5087 = vand.u32 %v3811, 4294901760
            %v5088 = vsub.f32 %v3811, %v5087
            %v5089 = vand.u32 %v5088, 4294901760
            %5090 = vmatpush.msra.mxu0 %v5089
            %v5091 = vand.u32 %v3809, 4294901760
            %v5092 = vsub.f32 %v3809, %v5091
            %v5093 = vand.u32 %v5092, 4294901760
            %5094 = vmatpush.msra.mxu0 %v5093
            %v5095 = vand.u32 %v3807, 4294901760
            %v5096 = vsub.f32 %v3807, %v5095
            %v5097 = vand.u32 %v5096, 4294901760
            %5098 = vmatpush.msra.mxu0 %v5097
            %v5099 = vand.u32 %v3805, 4294901760
            %v5100 = vsub.f32 %v3805, %v5099
            %v5101 = vand.u32 %v5100, 4294901760
            %5102 = vmatpush.msra.mxu0 %v5101
            %v5103 = vand.u32 %v3803, 4294901760
            %v5104 = vsub.f32 %v3803, %v5103
            %v5105 = vand.u32 %v5104, 4294901760
            %5106 = vmatpush.msra.mxu0 %v5105
            %v5107 = vand.u32 %v3801, 4294901760
            %v5108 = vsub.f32 %v3801, %v5107
            %v5109 = vand.u32 %v5108, 4294901760
            %5110 = vmatpush.msra.mxu0 %v5109
            %v5111 = vand.u32 %v3799, 4294901760
            %v5112 = vsub.f32 %v3799, %v5111
            %v5113 = vand.u32 %v5112, 4294901760
            %5114 = vmatpush.msra.mxu0 %v5113
            %v5115 = vand.u32 %v3797, 4294901760
            %v5116 = vsub.f32 %v3797, %v5115
            %v5117 = vand.u32 %v5116, 4294901760
            %5118 = vmatpush.msra.mxu0 %v5117
            %v5119 = vand.u32 %v3795, 4294901760
            %v5120 = vsub.f32 %v3795, %v5119
            %v5121 = vand.u32 %v5120, 4294901760
            %5122 = vmatpush.msra.mxu0 %v5121
            %v5123 = vand.u32 %v3793, 4294901760
            %v5124 = vsub.f32 %v3793, %v5123
            %v5125 = vand.u32 %v5124, 4294901760
            %5126 = vmatpush.msra.mxu0 %v5125
            %v5127 = vand.u32 %v3791, 4294901760
            %v5128 = vsub.f32 %v3791, %v5127
            %v5129 = vand.u32 %v5128, 4294901760
            %5130 = vmatpush.msra.mxu0 %v5129
            %v5131 = vand.u32 %v3789, 4294901760
            %v5132 = vsub.f32 %v3789, %v5131
            %v5133 = vand.u32 %v5132, 4294901760
            %5134 = vmatpush.msra.mxu0 %v5133
            %v5135 = vand.u32 %v3787, 4294901760
            %v5136 = vsub.f32 %v3787, %v5135
            %v5137 = vand.u32 %v5136, 4294901760
            %5138 = vmatpush.msra.mxu0 %v5137
            %v5139 = vand.u32 %v3785, 4294901760
            %v5140 = vsub.f32 %v3785, %v5139
            %v5141 = vand.u32 %v5140, 4294901760
            %5142 = vmatpush.msra.mxu0 %v5141
            %v5143 = vand.u32 %v3818, 4294901760
            %5144 = vmatmul.f32.gmra.mxu0 %v5143
            %v5145 = vpop.f32.mrf.mxu0
            %v5146 = vadd.f32 %v5077, %v5145
            %5147 = vdwg.mxu0
            %v5148 = vand.u32 %v3815, 4294901760
            %5149 = vmatpush.msra.mxu0 %v5148
            %v5150 = vand.u32 %v3813, 4294901760
            %5151 = vmatpush.msra.mxu0 %v5150
            %v5152 = vand.u32 %v3811, 4294901760
            %5153 = vmatpush.msra.mxu0 %v5152
            %v5154 = vand.u32 %v3809, 4294901760
            %5155 = vmatpush.msra.mxu0 %v5154
            %v5156 = vand.u32 %v3807, 4294901760
            %5157 = vmatpush.msra.mxu0 %v5156
            %v5158 = vand.u32 %v3805, 4294901760
            %5159 = vmatpush.msra.mxu0 %v5158
            %v5160 = vand.u32 %v3803, 4294901760
            %5161 = vmatpush.msra.mxu0 %v5160
            %v5162 = vand.u32 %v3801, 4294901760
            %5163 = vmatpush.msra.mxu0 %v5162
            %v5164 = vand.u32 %v3799, 4294901760
            %5165 = vmatpush.msra.mxu0 %v5164
            %v5166 = vand.u32 %v3797, 4294901760
            %5167 = vmatpush.msra.mxu0 %v5166
            %v5168 = vand.u32 %v3795, 4294901760
            %5169 = vmatpush.msra.mxu0 %v5168
            %v5170 = vand.u32 %v3793, 4294901760
            %5171 = vmatpush.msra.mxu0 %v5170
            %v5172 = vand.u32 %v3791, 4294901760
            %5173 = vmatpush.msra.mxu0 %v5172
            %v5174 = vand.u32 %v3789, 4294901760
            %5175 = vmatpush.msra.mxu0 %v5174
            %v5176 = vand.u32 %v3787, 4294901760
            %5177 = vmatpush.msra.mxu0 %v5176
            %v5178 = vand.u32 %v3785, 4294901760
            %5179 = vmatpush.msra.mxu0 %v5178
            %v5180 = vand.u32 %v3818, 4294901760
            %5181 = vmatmul.f32.gmra.mxu0 %v5180
            %v5182 = vpop.f32.mrf.mxu0
            %v5183 = vadd.f32 %v5146, %v5182
            %5184 = vdwg.mxu0
            %v5185 = vld [vmem:[#allocation3] sm:$0x3]
            %v5187 = vperm.slane %v5185, 0
            %v5188 = vperm.slane %v5185, 1
            %v5191 = vand.u32 %v3782, 4294901760
            %5192 = vmatpush.msra.mxu0 %v5191
            %v5193 = vand.u32 %v3780, 4294901760
            %5194 = vmatpush.msra.mxu0 %v5193
            %v5195 = vand.u32 %v3778, 4294901760
            %5196 = vmatpush.msra.mxu0 %v5195
            %v5197 = vand.u32 %v3776, 4294901760
            %5198 = vmatpush.msra.mxu0 %v5197
            %v5199 = vand.u32 %v3774, 4294901760
            %5200 = vmatpush.msra.mxu0 %v5199
            %v5201 = vand.u32 %v3772, 4294901760
            %5202 = vmatpush.msra.mxu0 %v5201
            %v5203 = vand.u32 %v3770, 4294901760
            %5204 = vmatpush.msra.mxu0 %v5203
            %v5205 = vand.u32 %v3768, 4294901760
            %5206 = vmatpush.msra.mxu0 %v5205
            %v5207 = vand.u32 %v3766, 4294901760
            %5208 = vmatpush.msra.mxu0 %v5207
            %v5209 = vand.u32 %v3764, 4294901760
            %5210 = vmatpush.msra.mxu0 %v5209
            %v5211 = vand.u32 %v3762, 4294901760
            %5212 = vmatpush.msra.mxu0 %v5211
            %v5213 = vand.u32 %v3760, 4294901760
            %5214 = vmatpush.msra.mxu0 %v5213
            %v5215 = vand.u32 %v3758, 4294901760
            %5216 = vmatpush.msra.mxu0 %v5215
            %v5217 = vand.u32 %v3756, 4294901760
            %5218 = vmatpush.msra.mxu0 %v5217
            %v5219 = vand.u32 %v3754, 4294901760
            %5220 = vmatpush.msra.mxu0 %v5219
            %v5221 = vand.u32 %v3752, 4294901760
            %5222 = vmatpush.msra.mxu0 %v5221
            %v5223 = vand.u32 %v5187, 4294901760
            %v5224 = vsub.f32 %v5187, %v5223
            %v5225 = vand.u32 %v5224, 4294901760
            %v5226 = vsub.f32 %v5224, %v5225
            %v5227 = vand.u32 %v5226, 4294901760
            %5228 = vmatmul.f32.gmra.mxu0 %v5227
            %v5229 = vpop.f32.mrf.mxu0
            %v5230 = vadd.f32 0.0, %v5229
            %5231 = vdwg.mxu0
            %v5232 = vand.u32 %v3782, 4294901760
            %v5233 = vsub.f32 %v3782, %v5232
            %v5234 = vand.u32 %v5233, 4294901760
            %v5235 = vsub.f32 %v5233, %v5234
            %v5236 = vand.u32 %v5235, 4294901760
            %5237 = vmatpush.msra.mxu0 %v5236
            %v5238 = vand.u32 %v3780, 4294901760
            %v5239 = vsub.f32 %v3780, %v5238
            %v5240 = vand.u32 %v5239, 4294901760
            %v5241 = vsub.f32 %v5239, %v5240
            %v5242 = vand.u32 %v5241, 4294901760
            %5243 = vmatpush.msra.mxu0 %v5242
            %v5244 = vand.u32 %v3778, 4294901760
            %v5245 = vsub.f32 %v3778, %v5244
            %v5246 = vand.u32 %v5245, 4294901760
            %v5247 = vsub.f32 %v5245, %v5246
            %v5248 = vand.u32 %v5247, 4294901760
            %5249 = vmatpush.msra.mxu0 %v5248
            %v5250 = vand.u32 %v3776, 4294901760
            %v5251 = vsub.f32 %v3776, %v5250
            %v5252 = vand.u32 %v5251, 4294901760
            %v5253 = vsub.f32 %v5251, %v5252
            %v5254 = vand.u32 %v5253, 4294901760
            %5255 = vmatpush.msra.mxu0 %v5254
            %v5256 = vand.u32 %v3774, 4294901760
            %v5257 = vsub.f32 %v3774, %v5256
            %v5258 = vand.u32 %v5257, 4294901760
            %v5259 = vsub.f32 %v5257, %v5258
            %v5260 = vand.u32 %v5259, 4294901760
            %5261 = vmatpush.msra.mxu0 %v5260
            %v5262 = vand.u32 %v3772, 4294901760
            %v5263 = vsub.f32 %v3772, %v5262
            %v5264 = vand.u32 %v5263, 4294901760
            %v5265 = vsub.f32 %v5263, %v5264
            %v5266 = vand.u32 %v5265, 4294901760
            %5267 = vmatpush.msra.mxu0 %v5266
            %v5268 = vand.u32 %v3770, 4294901760
            %v5269 = vsub.f32 %v3770, %v5268
            %v5270 = vand.u32 %v5269, 4294901760
            %v5271 = vsub.f32 %v5269, %v5270
            %v5272 = vand.u32 %v5271, 4294901760
            %5273 = vmatpush.msra.mxu0 %v5272
            %v5274 = vand.u32 %v3768, 4294901760
            %v5275 = vsub.f32 %v3768, %v5274
            %v5276 = vand.u32 %v5275, 4294901760
            %v5277 = vsub.f32 %v5275, %v5276
            %v5278 = vand.u32 %v5277, 4294901760
            %5279 = vmatpush.msra.mxu0 %v5278
            %v5280 = vand.u32 %v3766, 4294901760
            %v5281 = vsub.f32 %v3766, %v5280
            %v5282 = vand.u32 %v5281, 4294901760
            %v5283 = vsub.f32 %v5281, %v5282
            %v5284 = vand.u32 %v5283, 4294901760
            %5285 = vmatpush.msra.mxu0 %v5284
            %v5286 = vand.u32 %v3764, 4294901760
            %v5287 = vsub.f32 %v3764, %v5286
            %v5288 = vand.u32 %v5287, 4294901760
            %v5289 = vsub.f32 %v5287, %v5288
            %v5290 = vand.u32 %v5289, 4294901760
            %5291 = vmatpush.msra.mxu0 %v5290
            %v5292 = vand.u32 %v3762, 4294901760
            %v5293 = vsub.f32 %v3762, %v5292
            %v5294 = vand.u32 %v5293, 4294901760
            %v5295 = vsub.f32 %v5293, %v5294
            %v5296 = vand.u32 %v5295, 4294901760
            %5297 = vmatpush.msra.mxu0 %v5296
            %v5298 = vand.u32 %v3760, 4294901760
            %v5299 = vsub.f32 %v3760, %v5298
            %v5300 = vand.u32 %v5299, 4294901760
            %v5301 = vsub.f32 %v5299, %v5300
            %v5302 = vand.u32 %v5301, 4294901760
            %5303 = vmatpush.msra.mxu0 %v5302
            %v5304 = vand.u32 %v3758, 4294901760
            %v5305 = vsub.f32 %v3758, %v5304
            %v5306 = vand.u32 %v5305, 4294901760
            %v5307 = vsub.f32 %v5305, %v5306
            %v5308 = vand.u32 %v5307, 4294901760
            %5309 = vmatpush.msra.mxu0 %v5308
            %v5310 = vand.u32 %v3756, 4294901760
            %v5311 = vsub.f32 %v3756, %v5310
            %v5312 = vand.u32 %v5311, 4294901760
            %v5313 = vsub.f32 %v5311, %v5312
            %v5314 = vand.u32 %v5313, 4294901760
            %5315 = vmatpush.msra.mxu0 %v5314
            %v5316 = vand.u32 %v3754, 4294901760
            %v5317 = vsub.f32 %v3754, %v5316
            %v5318 = vand.u32 %v5317, 4294901760
            %v5319 = vsub.f32 %v5317, %v5318
            %v5320 = vand.u32 %v5319, 4294901760
            %5321 = vmatpush.msra.mxu0 %v5320
            %v5322 = vand.u32 %v3752, 4294901760
            %v5323 = vsub.f32 %v3752, %v5322
            %v5324 = vand.u32 %v5323, 4294901760
            %v5325 = vsub.f32 %v5323, %v5324
            %v5326 = vand.u32 %v5325, 4294901760
            %5327 = vmatpush.msra.mxu0 %v5326
            %v5328 = vand.u32 %v5187, 4294901760
            %5329 = vmatmul.f32.gmra.mxu0 %v5328
            %v5330 = vpop.f32.mrf.mxu0
            %v5331 = vadd.f32 %v5230, %v5330
            %5332 = vdwg.mxu0
            %v5333 = vand.u32 %v3782, 4294901760
            %v5334 = vsub.f32 %v3782, %v5333
            %5335 = vmatpush.msra.mxu0 %v5334
            %v5336 = vand.u32 %v3780, 4294901760
            %v5337 = vsub.f32 %v3780, %v5336
            %5338 = vmatpush.msra.mxu0 %v5337
            %v5339 = vand.u32 %v3778, 4294901760
            %v5340 = vsub.f32 %v3778, %v5339
            %5341 = vmatpush.msra.mxu0 %v5340
            %v5342 = vand.u32 %v3776, 4294901760
            %v5343 = vsub.f32 %v3776, %v5342
            %5344 = vmatpush.msra.mxu0 %v5343
            %v5345 = vand.u32 %v3774, 4294901760
            %v5346 = vsub.f32 %v3774, %v5345
            %5347 = vmatpush.msra.mxu0 %v5346
            %v5348 = vand.u32 %v3772, 4294901760
            %v5349 = vsub.f32 %v3772, %v5348
            %5350 = vmatpush.msra.mxu0 %v5349
            %v5351 = vand.u32 %v3770, 4294901760
            %v5352 = vsub.f32 %v3770, %v5351
            %5353 = vmatpush.msra.mxu0 %v5352
            %v5354 = vand.u32 %v3768, 4294901760
            %v5355 = vsub.f32 %v3768, %v5354
            %5356 = vmatpush.msra.mxu0 %v5355
            %v5357 = vand.u32 %v3766, 4294901760
            %v5358 = vsub.f32 %v3766, %v5357
            %5359 = vmatpush.msra.mxu0 %v5358
            %v5360 = vand.u32 %v3764, 4294901760
            %v5361 = vsub.f32 %v3764, %v5360
            %5362 = vmatpush.msra.mxu0 %v5361
            %v5363 = vand.u32 %v3762, 4294901760
            %v5364 = vsub.f32 %v3762, %v5363
            %5365 = vmatpush.msra.mxu0 %v5364
            %v5366 = vand.u32 %v3760, 4294901760
            %v5367 = vsub.f32 %v3760, %v5366
            %5368 = vmatpush.msra.mxu0 %v5367
            %v5369 = vand.u32 %v3758, 4294901760
            %v5370 = vsub.f32 %v3758, %v5369
            %5371 = vmatpush.msra.mxu0 %v5370
            %v5372 = vand.u32 %v3756, 4294901760
            %v5373 = vsub.f32 %v3756, %v5372
            %5374 = vmatpush.msra.mxu0 %v5373
            %v5375 = vand.u32 %v3754, 4294901760
            %v5376 = vsub.f32 %v3754, %v5375
            %5377 = vmatpush.msra.mxu0 %v5376
            %v5378 = vand.u32 %v3752, 4294901760
            %v5379 = vsub.f32 %v3752, %v5378
            %5380 = vmatpush.msra.mxu0 %v5379
            %v5381 = vand.u32 %v5187, 4294901760
            %v5382 = vsub.f32 %v5187, %v5381
            %5383 = vmatmul.f32.gmra.mxu0 %v5382
            %v5384 = vpop.f32.mrf.mxu0
            %v5385 = vadd.f32 %v5331, %v5384
            %5386 = vdwg.mxu0
            %v5387 = vand.u32 %v3782, 4294901760
            %5388 = vmatpush.msra.mxu0 %v5387
            %v5389 = vand.u32 %v3780, 4294901760
            %5390 = vmatpush.msra.mxu0 %v5389
            %v5391 = vand.u32 %v3778, 4294901760
            %5392 = vmatpush.msra.mxu0 %v5391
            %v5393 = vand.u32 %v3776, 4294901760
            %5394 = vmatpush.msra.mxu0 %v5393
            %v5395 = vand.u32 %v3774, 4294901760
            %5396 = vmatpush.msra.mxu0 %v5395
            %v5397 = vand.u32 %v3772, 4294901760
            %5398 = vmatpush.msra.mxu0 %v5397
            %v5399 = vand.u32 %v3770, 4294901760
            %5400 = vmatpush.msra.mxu0 %v5399
            %v5401 = vand.u32 %v3768, 4294901760
            %5402 = vmatpush.msra.mxu0 %v5401
            %v5403 = vand.u32 %v3766, 4294901760
            %5404 = vmatpush.msra.mxu0 %v5403
            %v5405 = vand.u32 %v3764, 4294901760
            %5406 = vmatpush.msra.mxu0 %v5405
            %v5407 = vand.u32 %v3762, 4294901760
            %5408 = vmatpush.msra.mxu0 %v5407
            %v5409 = vand.u32 %v3760, 4294901760
            %5410 = vmatpush.msra.mxu0 %v5409
            %v5411 = vand.u32 %v3758, 4294901760
            %5412 = vmatpush.msra.mxu0 %v5411
            %v5413 = vand.u32 %v3756, 4294901760
            %5414 = vmatpush.msra.mxu0 %v5413
            %v5415 = vand.u32 %v3754, 4294901760
            %5416 = vmatpush.msra.mxu0 %v5415
            %v5417 = vand.u32 %v3752, 4294901760
            %5418 = vmatpush.msra.mxu0 %v5417
            %v5419 = vand.u32 %v5187, 4294901760
            %v5420 = vsub.f32 %v5187, %v5419
            %v5421 = vand.u32 %v5420, 4294901760
            %5422 = vmatmul.f32.gmra.mxu0 %v5421
            %v5423 = vpop.f32.mrf.mxu0
            %v5424 = vadd.f32 %v5385, %v5423
            %5425 = vdwg.mxu0
            %v5426 = vand.u32 %v3782, 4294901760
            %v5427 = vsub.f32 %v3782, %v5426
            %v5428 = vand.u32 %v5427, 4294901760
            %5429 = vmatpush.msra.mxu0 %v5428
            %v5430 = vand.u32 %v3780, 4294901760
            %v5431 = vsub.f32 %v3780, %v5430
            %v5432 = vand.u32 %v5431, 4294901760
            %5433 = vmatpush.msra.mxu0 %v5432
            %v5434 = vand.u32 %v3778, 4294901760
            %v5435 = vsub.f32 %v3778, %v5434
            %v5436 = vand.u32 %v5435, 4294901760
            %5437 = vmatpush.msra.mxu0 %v5436
            %v5438 = vand.u32 %v3776, 4294901760
            %v5439 = vsub.f32 %v3776, %v5438
            %v5440 = vand.u32 %v5439, 4294901760
            %5441 = vmatpush.msra.mxu0 %v5440
            %v5442 = vand.u32 %v3774, 4294901760
            %v5443 = vsub.f32 %v3774, %v5442
            %v5444 = vand.u32 %v5443, 4294901760
            %5445 = vmatpush.msra.mxu0 %v5444
            %v5446 = vand.u32 %v3772, 4294901760
            %v5447 = vsub.f32 %v3772, %v5446
            %v5448 = vand.u32 %v5447, 4294901760
            %5449 = vmatpush.msra.mxu0 %v5448
            %v5450 = vand.u32 %v3770, 4294901760
            %v5451 = vsub.f32 %v3770, %v5450
            %v5452 = vand.u32 %v5451, 4294901760
            %5453 = vmatpush.msra.mxu0 %v5452
            %v5454 = vand.u32 %v3768, 4294901760
            %v5455 = vsub.f32 %v3768, %v5454
            %v5456 = vand.u32 %v5455, 4294901760
            %5457 = vmatpush.msra.mxu0 %v5456
            %v5458 = vand.u32 %v3766, 4294901760
            %v5459 = vsub.f32 %v3766, %v5458
            %v5460 = vand.u32 %v5459, 4294901760
            %5461 = vmatpush.msra.mxu0 %v5460
            %v5462 = vand.u32 %v3764, 4294901760
            %v5463 = vsub.f32 %v3764, %v5462
            %v5464 = vand.u32 %v5463, 4294901760
            %5465 = vmatpush.msra.mxu0 %v5464
            %v5466 = vand.u32 %v3762, 4294901760
            %v5467 = vsub.f32 %v3762, %v5466
            %v5468 = vand.u32 %v5467, 4294901760
            %5469 = vmatpush.msra.mxu0 %v5468
            %v5470 = vand.u32 %v3760, 4294901760
            %v5471 = vsub.f32 %v3760, %v5470
            %v5472 = vand.u32 %v5471, 4294901760
            %5473 = vmatpush.msra.mxu0 %v5472
            %v5474 = vand.u32 %v3758, 4294901760
            %v5475 = vsub.f32 %v3758, %v5474
            %v5476 = vand.u32 %v5475, 4294901760
            %5477 = vmatpush.msra.mxu0 %v5476
            %v5478 = vand.u32 %v3756, 4294901760
            %v5479 = vsub.f32 %v3756, %v5478
            %v5480 = vand.u32 %v5479, 4294901760
            %5481 = vmatpush.msra.mxu0 %v5480
            %v5482 = vand.u32 %v3754, 4294901760
            %v5483 = vsub.f32 %v3754, %v5482
            %v5484 = vand.u32 %v5483, 4294901760
            %5485 = vmatpush.msra.mxu0 %v5484
            %v5486 = vand.u32 %v3752, 4294901760
            %v5487 = vsub.f32 %v3752, %v5486
            %v5488 = vand.u32 %v5487, 4294901760
            %5489 = vmatpush.msra.mxu0 %v5488
            %v5490 = vand.u32 %v5187, 4294901760
            %5491 = vmatmul.f32.gmra.mxu0 %v5490
            %v5492 = vpop.f32.mrf.mxu0
            %v5493 = vadd.f32 %v5424, %v5492
            %5494 = vdwg.mxu0
            %v5495 = vand.u32 %v3782, 4294901760
            %5496 = vmatpush.msra.mxu0 %v5495
            %v5497 = vand.u32 %v3780, 4294901760
            %5498 = vmatpush.msra.mxu0 %v5497
            %v5499 = vand.u32 %v3778, 4294901760
            %5500 = vmatpush.msra.mxu0 %v5499
            %v5501 = vand.u32 %v3776, 4294901760
            %5502 = vmatpush.msra.mxu0 %v5501
            %v5503 = vand.u32 %v3774, 4294901760
            %5504 = vmatpush.msra.mxu0 %v5503
            %v5505 = vand.u32 %v3772, 4294901760
            %5506 = vmatpush.msra.mxu0 %v5505
            %v5507 = vand.u32 %v3770, 4294901760
            %5508 = vmatpush.msra.mxu0 %v5507
            %v5509 = vand.u32 %v3768, 4294901760
            %5510 = vmatpush.msra.mxu0 %v5509
            %v5511 = vand.u32 %v3766, 4294901760
            %5512 = vmatpush.msra.mxu0 %v5511
            %v5513 = vand.u32 %v3764, 4294901760
            %5514 = vmatpush.msra.mxu0 %v5513
            %v5515 = vand.u32 %v3762, 4294901760
            %5516 = vmatpush.msra.mxu0 %v5515
            %v5517 = vand.u32 %v3760, 4294901760
            %5518 = vmatpush.msra.mxu0 %v5517
            %v5519 = vand.u32 %v3758, 4294901760
            %5520 = vmatpush.msra.mxu0 %v5519
            %v5521 = vand.u32 %v3756, 4294901760
            %5522 = vmatpush.msra.mxu0 %v5521
            %v5523 = vand.u32 %v3754, 4294901760
            %5524 = vmatpush.msra.mxu0 %v5523
            %v5525 = vand.u32 %v3752, 4294901760
            %5526 = vmatpush.msra.mxu0 %v5525
            %v5527 = vand.u32 %v5187, 4294901760
            %5528 = vmatmul.f32.gmra.mxu0 %v5527
            %v5529 = vpop.f32.mrf.mxu0
            %v5530 = vadd.f32 %v5493, %v5529
            %5531 = vdwg.mxu0
            %v5532 = vand.u32 %v3814, 4294901760
            %5533 = vmatpush.msra.mxu0 %v5532
            %v5534 = vand.u32 %v3812, 4294901760
            %5535 = vmatpush.msra.mxu0 %v5534
            %v5536 = vand.u32 %v3810, 4294901760
            %5537 = vmatpush.msra.mxu0 %v5536
            %v5538 = vand.u32 %v3808, 4294901760
            %5539 = vmatpush.msra.mxu0 %v5538
            %v5540 = vand.u32 %v3806, 4294901760
            %5541 = vmatpush.msra.mxu0 %v5540
            %v5542 = vand.u32 %v3804, 4294901760
            %5543 = vmatpush.msra.mxu0 %v5542
            %v5544 = vand.u32 %v3802, 4294901760
            %5545 = vmatpush.msra.mxu0 %v5544
            %v5546 = vand.u32 %v3800, 4294901760
            %5547 = vmatpush.msra.mxu0 %v5546
            %v5548 = vand.u32 %v3798, 4294901760
            %5549 = vmatpush.msra.mxu0 %v5548
            %v5550 = vand.u32 %v3796, 4294901760
            %5551 = vmatpush.msra.mxu0 %v5550
            %v5552 = vand.u32 %v3794, 4294901760
            %5553 = vmatpush.msra.mxu0 %v5552
            %v5554 = vand.u32 %v3792, 4294901760
            %5555 = vmatpush.msra.mxu0 %v5554
            %v5556 = vand.u32 %v3790, 4294901760
            %5557 = vmatpush.msra.mxu0 %v5556
            %v5558 = vand.u32 %v3788, 4294901760
            %5559 = vmatpush.msra.mxu0 %v5558
            %v5560 = vand.u32 %v3786, 4294901760
            %5561 = vmatpush.msra.mxu0 %v5560
            %v5562 = vand.u32 %v3784, 4294901760
            %5563 = vmatpush.msra.mxu0 %v5562
            %v5564 = vand.u32 %v5188, 4294901760
            %v5565 = vsub.f32 %v5188, %v5564
            %v5566 = vand.u32 %v5565, 4294901760
            %v5567 = vsub.f32 %v5565, %v5566
            %v5568 = vand.u32 %v5567, 4294901760
            %5569 = vmatmul.f32.gmra.mxu0 %v5568
            %v5570 = vpop.f32.mrf.mxu0
            %v5571 = vadd.f32 %v5530, %v5570
            %5572 = vdwg.mxu0
            %v5573 = vand.u32 %v3814, 4294901760
            %v5574 = vsub.f32 %v3814, %v5573
            %v5575 = vand.u32 %v5574, 4294901760
            %v5576 = vsub.f32 %v5574, %v5575
            %v5577 = vand.u32 %v5576, 4294901760
            %5578 = vmatpush.msra.mxu0 %v5577
            %v5579 = vand.u32 %v3812, 4294901760
            %v5580 = vsub.f32 %v3812, %v5579
            %v5581 = vand.u32 %v5580, 4294901760
            %v5582 = vsub.f32 %v5580, %v5581
            %v5583 = vand.u32 %v5582, 4294901760
            %5584 = vmatpush.msra.mxu0 %v5583
            %v5585 = vand.u32 %v3810, 4294901760
            %v5586 = vsub.f32 %v3810, %v5585
            %v5587 = vand.u32 %v5586, 4294901760
            %v5588 = vsub.f32 %v5586, %v5587
            %v5589 = vand.u32 %v5588, 4294901760
            %5590 = vmatpush.msra.mxu0 %v5589
            %v5591 = vand.u32 %v3808, 4294901760
            %v5592 = vsub.f32 %v3808, %v5591
            %v5593 = vand.u32 %v5592, 4294901760
            %v5594 = vsub.f32 %v5592, %v5593
            %v5595 = vand.u32 %v5594, 4294901760
            %5596 = vmatpush.msra.mxu0 %v5595
            %v5597 = vand.u32 %v3806, 4294901760
            %v5598 = vsub.f32 %v3806, %v5597
            %v5599 = vand.u32 %v5598, 4294901760
            %v5600 = vsub.f32 %v5598, %v5599
            %v5601 = vand.u32 %v5600, 4294901760
            %5602 = vmatpush.msra.mxu0 %v5601
            %v5603 = vand.u32 %v3804, 4294901760
            %v5604 = vsub.f32 %v3804, %v5603
            %v5605 = vand.u32 %v5604, 4294901760
            %v5606 = vsub.f32 %v5604, %v5605
            %v5607 = vand.u32 %v5606, 4294901760
            %5608 = vmatpush.msra.mxu0 %v5607
            %v5609 = vand.u32 %v3802, 4294901760
            %v5610 = vsub.f32 %v3802, %v5609
            %v5611 = vand.u32 %v5610, 4294901760
            %v5612 = vsub.f32 %v5610, %v5611
            %v5613 = vand.u32 %v5612, 4294901760
            %5614 = vmatpush.msra.mxu0 %v5613
            %v5615 = vand.u32 %v3800, 4294901760
            %v5616 = vsub.f32 %v3800, %v5615
            %v5617 = vand.u32 %v5616, 4294901760
            %v5618 = vsub.f32 %v5616, %v5617
            %v5619 = vand.u32 %v5618, 4294901760
            %5620 = vmatpush.msra.mxu0 %v5619
            %v5621 = vand.u32 %v3798, 4294901760
            %v5622 = vsub.f32 %v3798, %v5621
            %v5623 = vand.u32 %v5622, 4294901760
            %v5624 = vsub.f32 %v5622, %v5623
            %v5625 = vand.u32 %v5624, 4294901760
            %5626 = vmatpush.msra.mxu0 %v5625
            %v5627 = vand.u32 %v3796, 4294901760
            %v5628 = vsub.f32 %v3796, %v5627
            %v5629 = vand.u32 %v5628, 4294901760
            %v5630 = vsub.f32 %v5628, %v5629
            %v5631 = vand.u32 %v5630, 4294901760
            %5632 = vmatpush.msra.mxu0 %v5631
            %v5633 = vand.u32 %v3794, 4294901760
            %v5634 = vsub.f32 %v3794, %v5633
            %v5635 = vand.u32 %v5634, 4294901760
            %v5636 = vsub.f32 %v5634, %v5635
            %v5637 = vand.u32 %v5636, 4294901760
            %5638 = vmatpush.msra.mxu0 %v5637
            %v5639 = vand.u32 %v3792, 4294901760
            %v5640 = vsub.f32 %v3792, %v5639
            %v5641 = vand.u32 %v5640, 4294901760
            %v5642 = vsub.f32 %v5640, %v5641
            %v5643 = vand.u32 %v5642, 4294901760
            %5644 = vmatpush.msra.mxu0 %v5643
            %v5645 = vand.u32 %v3790, 4294901760
            %v5646 = vsub.f32 %v3790, %v5645
            %v5647 = vand.u32 %v5646, 4294901760
            %v5648 = vsub.f32 %v5646, %v5647
            %v5649 = vand.u32 %v5648, 4294901760
            %5650 = vmatpush.msra.mxu0 %v5649
            %v5651 = vand.u32 %v3788, 4294901760
            %v5652 = vsub.f32 %v3788, %v5651
            %v5653 = vand.u32 %v5652, 4294901760
            %v5654 = vsub.f32 %v5652, %v5653
            %v5655 = vand.u32 %v5654, 4294901760
            %5656 = vmatpush.msra.mxu0 %v5655
            %v5657 = vand.u32 %v3786, 4294901760
            %v5658 = vsub.f32 %v3786, %v5657
            %v5659 = vand.u32 %v5658, 4294901760
            %v5660 = vsub.f32 %v5658, %v5659
            %v5661 = vand.u32 %v5660, 4294901760
            %5662 = vmatpush.msra.mxu0 %v5661
            %v5663 = vand.u32 %v3784, 4294901760
            %v5664 = vsub.f32 %v3784, %v5663
            %v5665 = vand.u32 %v5664, 4294901760
            %v5666 = vsub.f32 %v5664, %v5665
            %v5667 = vand.u32 %v5666, 4294901760
            %5668 = vmatpush.msra.mxu0 %v5667
            %v5669 = vand.u32 %v5188, 4294901760
            %5670 = vmatmul.f32.gmra.mxu0 %v5669
            %v5671 = vpop.f32.mrf.mxu0
            %v5672 = vadd.f32 %v5571, %v5671
            %5673 = vdwg.mxu0
            %v5674 = vand.u32 %v3814, 4294901760
            %v5675 = vsub.f32 %v3814, %v5674
            %5676 = vmatpush.msra.mxu0 %v5675
            %v5677 = vand.u32 %v3812, 4294901760
            %v5678 = vsub.f32 %v3812, %v5677
            %5679 = vmatpush.msra.mxu0 %v5678
            %v5680 = vand.u32 %v3810, 4294901760
            %v5681 = vsub.f32 %v3810, %v5680
            %5682 = vmatpush.msra.mxu0 %v5681
            %v5683 = vand.u32 %v3808, 4294901760
            %v5684 = vsub.f32 %v3808, %v5683
            %5685 = vmatpush.msra.mxu0 %v5684
            %v5686 = vand.u32 %v3806, 4294901760
            %v5687 = vsub.f32 %v3806, %v5686
            %5688 = vmatpush.msra.mxu0 %v5687
            %v5689 = vand.u32 %v3804, 4294901760
            %v5690 = vsub.f32 %v3804, %v5689
            %5691 = vmatpush.msra.mxu0 %v5690
            %v5692 = vand.u32 %v3802, 4294901760
            %v5693 = vsub.f32 %v3802, %v5692
            %5694 = vmatpush.msra.mxu0 %v5693
            %v5695 = vand.u32 %v3800, 4294901760
            %v5696 = vsub.f32 %v3800, %v5695
            %5697 = vmatpush.msra.mxu0 %v5696
            %v5698 = vand.u32 %v3798, 4294901760
            %v5699 = vsub.f32 %v3798, %v5698
            %5700 = vmatpush.msra.mxu0 %v5699
            %v5701 = vand.u32 %v3796, 4294901760
            %v5702 = vsub.f32 %v3796, %v5701
            %5703 = vmatpush.msra.mxu0 %v5702
            %v5704 = vand.u32 %v3794, 4294901760
            %v5705 = vsub.f32 %v3794, %v5704
            %5706 = vmatpush.msra.mxu0 %v5705
            %v5707 = vand.u32 %v3792, 4294901760
            %v5708 = vsub.f32 %v3792, %v5707
            %5709 = vmatpush.msra.mxu0 %v5708
            %v5710 = vand.u32 %v3790, 4294901760
            %v5711 = vsub.f32 %v3790, %v5710
            %5712 = vmatpush.msra.mxu0 %v5711
            %v5713 = vand.u32 %v3788, 4294901760
            %v5714 = vsub.f32 %v3788, %v5713
            %5715 = vmatpush.msra.mxu0 %v5714
            %v5716 = vand.u32 %v3786, 4294901760
            %v5717 = vsub.f32 %v3786, %v5716
            %5718 = vmatpush.msra.mxu0 %v5717
            %v5719 = vand.u32 %v3784, 4294901760
            %v5720 = vsub.f32 %v3784, %v5719
            %5721 = vmatpush.msra.mxu0 %v5720
            %v5722 = vand.u32 %v5188, 4294901760
            %v5723 = vsub.f32 %v5188, %v5722
            %5724 = vmatmul.f32.gmra.mxu0 %v5723
            %v5725 = vpop.f32.mrf.mxu0
            %v5726 = vadd.f32 %v5672, %v5725
            %5727 = vdwg.mxu0
            %v5728 = vand.u32 %v3814, 4294901760
            %5729 = vmatpush.msra.mxu0 %v5728
            %v5730 = vand.u32 %v3812, 4294901760
            %5731 = vmatpush.msra.mxu0 %v5730
            %v5732 = vand.u32 %v3810, 4294901760
            %5733 = vmatpush.msra.mxu0 %v5732
            %v5734 = vand.u32 %v3808, 4294901760
            %5735 = vmatpush.msra.mxu0 %v5734
            %v5736 = vand.u32 %v3806, 4294901760
            %5737 = vmatpush.msra.mxu0 %v5736
            %v5738 = vand.u32 %v3804, 4294901760
            %5739 = vmatpush.msra.mxu0 %v5738
            %v5740 = vand.u32 %v3802, 4294901760
            %5741 = vmatpush.msra.mxu0 %v5740
            %v5742 = vand.u32 %v3800, 4294901760
            %5743 = vmatpush.msra.mxu0 %v5742
            %v5744 = vand.u32 %v3798, 4294901760
            %5745 = vmatpush.msra.mxu0 %v5744
            %v5746 = vand.u32 %v3796, 4294901760
            %5747 = vmatpush.msra.mxu0 %v5746
            %v5748 = vand.u32 %v3794, 4294901760
            %5749 = vmatpush.msra.mxu0 %v5748
            %v5750 = vand.u32 %v3792, 4294901760
            %5751 = vmatpush.msra.mxu0 %v5750
            %v5752 = vand.u32 %v3790, 4294901760
            %5753 = vmatpush.msra.mxu0 %v5752
            %v5754 = vand.u32 %v3788, 4294901760
            %5755 = vmatpush.msra.mxu0 %v5754
            %v5756 = vand.u32 %v3786, 4294901760
            %5757 = vmatpush.msra.mxu0 %v5756
            %v5758 = vand.u32 %v3784, 4294901760
            %5759 = vmatpush.msra.mxu0 %v5758
            %v5760 = vand.u32 %v5188, 4294901760
            %v5761 = vsub.f32 %v5188, %v5760
            %v5762 = vand.u32 %v5761, 4294901760
            %5763 = vmatmul.f32.gmra.mxu0 %v5762
            %v5764 = vpop.f32.mrf.mxu0
            %v5765 = vadd.f32 %v5726, %v5764
            %5766 = vdwg.mxu0
            %v5767 = vand.u32 %v3814, 4294901760
            %v5768 = vsub.f32 %v3814, %v5767
            %v5769 = vand.u32 %v5768, 4294901760
            %5770 = vmatpush.msra.mxu0 %v5769
            %v5771 = vand.u32 %v3812, 4294901760
            %v5772 = vsub.f32 %v3812, %v5771
            %v5773 = vand.u32 %v5772, 4294901760
            %5774 = vmatpush.msra.mxu0 %v5773
            %v5775 = vand.u32 %v3810, 4294901760
            %v5776 = vsub.f32 %v3810, %v5775
            %v5777 = vand.u32 %v5776, 4294901760
            %5778 = vmatpush.msra.mxu0 %v5777
            %v5779 = vand.u32 %v3808, 4294901760
            %v5780 = vsub.f32 %v3808, %v5779
            %v5781 = vand.u32 %v5780, 4294901760
            %5782 = vmatpush.msra.mxu0 %v5781
            %v5783 = vand.u32 %v3806, 4294901760
            %v5784 = vsub.f32 %v3806, %v5783
            %v5785 = vand.u32 %v5784, 4294901760
            %5786 = vmatpush.msra.mxu0 %v5785
            %v5787 = vand.u32 %v3804, 4294901760
            %v5788 = vsub.f32 %v3804, %v5787
            %v5789 = vand.u32 %v5788, 4294901760
            %5790 = vmatpush.msra.mxu0 %v5789
            %v5791 = vand.u32 %v3802, 4294901760
            %v5792 = vsub.f32 %v3802, %v5791
            %v5793 = vand.u32 %v5792, 4294901760
            %5794 = vmatpush.msra.mxu0 %v5793
            %v5795 = vand.u32 %v3800, 4294901760
            %v5796 = vsub.f32 %v3800, %v5795
            %v5797 = vand.u32 %v5796, 4294901760
            %5798 = vmatpush.msra.mxu0 %v5797
            %v5799 = vand.u32 %v3798, 4294901760
            %v5800 = vsub.f32 %v3798, %v5799
            %v5801 = vand.u32 %v5800, 4294901760
            %5802 = vmatpush.msra.mxu0 %v5801
            %v5803 = vand.u32 %v3796, 4294901760
            %v5804 = vsub.f32 %v3796, %v5803
            %v5805 = vand.u32 %v5804, 4294901760
            %5806 = vmatpush.msra.mxu0 %v5805
            %v5807 = vand.u32 %v3794, 4294901760
            %v5808 = vsub.f32 %v3794, %v5807
            %v5809 = vand.u32 %v5808, 4294901760
            %5810 = vmatpush.msra.mxu0 %v5809
            %v5811 = vand.u32 %v3792, 4294901760
            %v5812 = vsub.f32 %v3792, %v5811
            %v5813 = vand.u32 %v5812, 4294901760
            %5814 = vmatpush.msra.mxu0 %v5813
            %v5815 = vand.u32 %v3790, 4294901760
            %v5816 = vsub.f32 %v3790, %v5815
            %v5817 = vand.u32 %v5816, 4294901760
            %5818 = vmatpush.msra.mxu0 %v5817
            %v5819 = vand.u32 %v3788, 4294901760
            %v5820 = vsub.f32 %v3788, %v5819
            %v5821 = vand.u32 %v5820, 4294901760
            %5822 = vmatpush.msra.mxu0 %v5821
            %v5823 = vand.u32 %v3786, 4294901760
            %v5824 = vsub.f32 %v3786, %v5823
            %v5825 = vand.u32 %v5824, 4294901760
            %5826 = vmatpush.msra.mxu0 %v5825
            %v5827 = vand.u32 %v3784, 4294901760
            %v5828 = vsub.f32 %v3784, %v5827
            %v5829 = vand.u32 %v5828, 4294901760
            %5830 = vmatpush.msra.mxu0 %v5829
            %v5831 = vand.u32 %v5188, 4294901760
            %5832 = vmatmul.f32.gmra.mxu0 %v5831
            %v5833 = vpop.f32.mrf.mxu0
            %v5834 = vadd.f32 %v5765, %v5833
            %5835 = vdwg.mxu0
            %v5836 = vand.u32 %v3814, 4294901760
            %5837 = vmatpush.msra.mxu0 %v5836
            %v5838 = vand.u32 %v3812, 4294901760
            %5839 = vmatpush.msra.mxu0 %v5838
            %v5840 = vand.u32 %v3810, 4294901760
            %5841 = vmatpush.msra.mxu0 %v5840
            %v5842 = vand.u32 %v3808, 4294901760
            %5843 = vmatpush.msra.mxu0 %v5842
            %v5844 = vand.u32 %v3806, 4294901760
            %5845 = vmatpush.msra.mxu0 %v5844
            %v5846 = vand.u32 %v3804, 4294901760
            %5847 = vmatpush.msra.mxu0 %v5846
            %v5848 = vand.u32 %v3802, 4294901760
            %5849 = vmatpush.msra.mxu0 %v5848
            %v5850 = vand.u32 %v3800, 4294901760
            %5851 = vmatpush.msra.mxu0 %v5850
            %v5852 = vand.u32 %v3798, 4294901760
            %5853 = vmatpush.msra.mxu0 %v5852
            %v5854 = vand.u32 %v3796, 4294901760
            %5855 = vmatpush.msra.mxu0 %v5854
            %v5856 = vand.u32 %v3794, 4294901760
            %5857 = vmatpush.msra.mxu0 %v5856
            %v5858 = vand.u32 %v3792, 4294901760
            %5859 = vmatpush.msra.mxu0 %v5858
            %v5860 = vand.u32 %v3790, 4294901760
            %5861 = vmatpush.msra.mxu0 %v5860
            %v5862 = vand.u32 %v3788, 4294901760
            %5863 = vmatpush.msra.mxu0 %v5862
            %v5864 = vand.u32 %v3786, 4294901760
            %5865 = vmatpush.msra.mxu0 %v5864
            %v5866 = vand.u32 %v3784, 4294901760
            %5867 = vmatpush.msra.mxu0 %v5866
            %v5868 = vand.u32 %v5188, 4294901760
            %5869 = vmatmul.f32.gmra.mxu0 %v5868
            %v5870 = vpop.f32.mrf.mxu0
            %v5871 = vadd.f32 %v5834, %v5870
            %5872 = vdwg.mxu0
            %v5873 = vand.u32 %v3783, 4294901760
            %5874 = vmatpush.msra.mxu0 %v5873
            %v5875 = vand.u32 %v3781, 4294901760
            %5876 = vmatpush.msra.mxu0 %v5875
            %v5877 = vand.u32 %v3779, 4294901760
            %5878 = vmatpush.msra.mxu0 %v5877
            %v5879 = vand.u32 %v3777, 4294901760
            %5880 = vmatpush.msra.mxu0 %v5879
            %v5881 = vand.u32 %v3775, 4294901760
            %5882 = vmatpush.msra.mxu0 %v5881
            %v5883 = vand.u32 %v3773, 4294901760
            %5884 = vmatpush.msra.mxu0 %v5883
            %v5885 = vand.u32 %v3771, 4294901760
            %5886 = vmatpush.msra.mxu0 %v5885
            %v5887 = vand.u32 %v3769, 4294901760
            %5888 = vmatpush.msra.mxu0 %v5887
            %v5889 = vand.u32 %v3767, 4294901760
            %5890 = vmatpush.msra.mxu0 %v5889
            %v5891 = vand.u32 %v3765, 4294901760
            %5892 = vmatpush.msra.mxu0 %v5891
            %v5893 = vand.u32 %v3763, 4294901760
            %5894 = vmatpush.msra.mxu0 %v5893
            %v5895 = vand.u32 %v3761, 4294901760
            %5896 = vmatpush.msra.mxu0 %v5895
            %v5897 = vand.u32 %v3759, 4294901760
            %5898 = vmatpush.msra.mxu0 %v5897
            %v5899 = vand.u32 %v3757, 4294901760
            %5900 = vmatpush.msra.mxu0 %v5899
            %v5901 = vand.u32 %v3755, 4294901760
            %5902 = vmatpush.msra.mxu0 %v5901
            %v5903 = vand.u32 %v3753, 4294901760
            %5904 = vmatpush.msra.mxu0 %v5903
            %v5905 = vand.u32 %v5187, 4294901760
            %v5906 = vsub.f32 %v5187, %v5905
            %v5907 = vand.u32 %v5906, 4294901760
            %v5908 = vsub.f32 %v5906, %v5907
            %v5909 = vand.u32 %v5908, 4294901760
            %5910 = vmatmul.f32.gmra.mxu0 %v5909
            %v5911 = vpop.f32.mrf.mxu0
            %v5912 = vadd.f32 0.0, %v5911
            %5913 = vdwg.mxu0
            %v5914 = vand.u32 %v3783, 4294901760
            %v5915 = vsub.f32 %v3783, %v5914
            %v5916 = vand.u32 %v5915, 4294901760
            %v5917 = vsub.f32 %v5915, %v5916
            %v5918 = vand.u32 %v5917, 4294901760
            %5919 = vmatpush.msra.mxu0 %v5918
            %v5920 = vand.u32 %v3781, 4294901760
            %v5921 = vsub.f32 %v3781, %v5920
            %v5922 = vand.u32 %v5921, 4294901760
            %v5923 = vsub.f32 %v5921, %v5922
            %v5924 = vand.u32 %v5923, 4294901760
            %5925 = vmatpush.msra.mxu0 %v5924
            %v5926 = vand.u32 %v3779, 4294901760
            %v5927 = vsub.f32 %v3779, %v5926
            %v5928 = vand.u32 %v5927, 4294901760
            %v5929 = vsub.f32 %v5927, %v5928
            %v5930 = vand.u32 %v5929, 4294901760
            %5931 = vmatpush.msra.mxu0 %v5930
            %v5932 = vand.u32 %v3777, 4294901760
            %v5933 = vsub.f32 %v3777, %v5932
            %v5934 = vand.u32 %v5933, 4294901760
            %v5935 = vsub.f32 %v5933, %v5934
            %v5936 = vand.u32 %v5935, 4294901760
            %5937 = vmatpush.msra.mxu0 %v5936
            %v5938 = vand.u32 %v3775, 4294901760
            %v5939 = vsub.f32 %v3775, %v5938
            %v5940 = vand.u32 %v5939, 4294901760
            %v5941 = vsub.f32 %v5939, %v5940
            %v5942 = vand.u32 %v5941, 4294901760
            %5943 = vmatpush.msra.mxu0 %v5942
            %v5944 = vand.u32 %v3773, 4294901760
            %v5945 = vsub.f32 %v3773, %v5944
            %v5946 = vand.u32 %v5945, 4294901760
            %v5947 = vsub.f32 %v5945, %v5946
            %v5948 = vand.u32 %v5947, 4294901760
            %5949 = vmatpush.msra.mxu0 %v5948
            %v5950 = vand.u32 %v3771, 4294901760
            %v5951 = vsub.f32 %v3771, %v5950
            %v5952 = vand.u32 %v5951, 4294901760
            %v5953 = vsub.f32 %v5951, %v5952
            %v5954 = vand.u32 %v5953, 4294901760
            %5955 = vmatpush.msra.mxu0 %v5954
            %v5956 = vand.u32 %v3769, 4294901760
            %v5957 = vsub.f32 %v3769, %v5956
            %v5958 = vand.u32 %v5957, 4294901760
            %v5959 = vsub.f32 %v5957, %v5958
            %v5960 = vand.u32 %v5959, 4294901760
            %5961 = vmatpush.msra.mxu0 %v5960
            %v5962 = vand.u32 %v3767, 4294901760
            %v5963 = vsub.f32 %v3767, %v5962
            %v5964 = vand.u32 %v5963, 4294901760
            %v5965 = vsub.f32 %v5963, %v5964
            %v5966 = vand.u32 %v5965, 4294901760
            %5967 = vmatpush.msra.mxu0 %v5966
            %v5968 = vand.u32 %v3765, 4294901760
            %v5969 = vsub.f32 %v3765, %v5968
            %v5970 = vand.u32 %v5969, 4294901760
            %v5971 = vsub.f32 %v5969, %v5970
            %v5972 = vand.u32 %v5971, 4294901760
            %5973 = vmatpush.msra.mxu0 %v5972
            %v5974 = vand.u32 %v3763, 4294901760
            %v5975 = vsub.f32 %v3763, %v5974
            %v5976 = vand.u32 %v5975, 4294901760
            %v5977 = vsub.f32 %v5975, %v5976
            %v5978 = vand.u32 %v5977, 4294901760
            %5979 = vmatpush.msra.mxu0 %v5978
            %v5980 = vand.u32 %v3761, 4294901760
            %v5981 = vsub.f32 %v3761, %v5980
            %v5982 = vand.u32 %v5981, 4294901760
            %v5983 = vsub.f32 %v5981, %v5982
            %v5984 = vand.u32 %v5983, 4294901760
            %5985 = vmatpush.msra.mxu0 %v5984
            %v5986 = vand.u32 %v3759, 4294901760
            %v5987 = vsub.f32 %v3759, %v5986
            %v5988 = vand.u32 %v5987, 4294901760
            %v5989 = vsub.f32 %v5987, %v5988
            %v5990 = vand.u32 %v5989, 4294901760
            %5991 = vmatpush.msra.mxu0 %v5990
            %v5992 = vand.u32 %v3757, 4294901760
            %v5993 = vsub.f32 %v3757, %v5992
            %v5994 = vand.u32 %v5993, 4294901760
            %v5995 = vsub.f32 %v5993, %v5994
            %v5996 = vand.u32 %v5995, 4294901760
            %5997 = vmatpush.msra.mxu0 %v5996
            %v5998 = vand.u32 %v3755, 4294901760
            %v5999 = vsub.f32 %v3755, %v5998
            %v6000 = vand.u32 %v5999, 4294901760
            %v6001 = vsub.f32 %v5999, %v6000
            %v6002 = vand.u32 %v6001, 4294901760
            %6003 = vmatpush.msra.mxu0 %v6002
            %v6004 = vand.u32 %v3753, 4294901760
            %v6005 = vsub.f32 %v3753, %v6004
            %v6006 = vand.u32 %v6005, 4294901760
            %v6007 = vsub.f32 %v6005, %v6006
            %v6008 = vand.u32 %v6007, 4294901760
            %6009 = vmatpush.msra.mxu0 %v6008
            %v6010 = vand.u32 %v5187, 4294901760
            %6011 = vmatmul.f32.gmra.mxu0 %v6010
            %v6012 = vpop.f32.mrf.mxu0
            %v6013 = vadd.f32 %v5912, %v6012
            %6014 = vdwg.mxu0
            %v6015 = vand.u32 %v3783, 4294901760
            %v6016 = vsub.f32 %v3783, %v6015
            %6017 = vmatpush.msra.mxu0 %v6016
            %v6018 = vand.u32 %v3781, 4294901760
            %v6019 = vsub.f32 %v3781, %v6018
            %6020 = vmatpush.msra.mxu0 %v6019
            %v6021 = vand.u32 %v3779, 4294901760
            %v6022 = vsub.f32 %v3779, %v6021
            %6023 = vmatpush.msra.mxu0 %v6022
            %v6024 = vand.u32 %v3777, 4294901760
            %v6025 = vsub.f32 %v3777, %v6024
            %6026 = vmatpush.msra.mxu0 %v6025
            %v6027 = vand.u32 %v3775, 4294901760
            %v6028 = vsub.f32 %v3775, %v6027
            %6029 = vmatpush.msra.mxu0 %v6028
            %v6030 = vand.u32 %v3773, 4294901760
            %v6031 = vsub.f32 %v3773, %v6030
            %6032 = vmatpush.msra.mxu0 %v6031
            %v6033 = vand.u32 %v3771, 4294901760
            %v6034 = vsub.f32 %v3771, %v6033
            %6035 = vmatpush.msra.mxu0 %v6034
            %v6036 = vand.u32 %v3769, 4294901760
            %v6037 = vsub.f32 %v3769, %v6036
            %6038 = vmatpush.msra.mxu0 %v6037
            %v6039 = vand.u32 %v3767, 4294901760
            %v6040 = vsub.f32 %v3767, %v6039
            %6041 = vmatpush.msra.mxu0 %v6040
            %v6042 = vand.u32 %v3765, 4294901760
            %v6043 = vsub.f32 %v3765, %v6042
            %6044 = vmatpush.msra.mxu0 %v6043
            %v6045 = vand.u32 %v3763, 4294901760
            %v6046 = vsub.f32 %v3763, %v6045
            %6047 = vmatpush.msra.mxu0 %v6046
            %v6048 = vand.u32 %v3761, 4294901760
            %v6049 = vsub.f32 %v3761, %v6048
            %6050 = vmatpush.msra.mxu0 %v6049
            %v6051 = vand.u32 %v3759, 4294901760
            %v6052 = vsub.f32 %v3759, %v6051
            %6053 = vmatpush.msra.mxu0 %v6052
            %v6054 = vand.u32 %v3757, 4294901760
            %v6055 = vsub.f32 %v3757, %v6054
            %6056 = vmatpush.msra.mxu0 %v6055
            %v6057 = vand.u32 %v3755, 4294901760
            %v6058 = vsub.f32 %v3755, %v6057
            %6059 = vmatpush.msra.mxu0 %v6058
            %v6060 = vand.u32 %v3753, 4294901760
            %v6061 = vsub.f32 %v3753, %v6060
            %6062 = vmatpush.msra.mxu0 %v6061
            %v6063 = vand.u32 %v5187, 4294901760
            %v6064 = vsub.f32 %v5187, %v6063
            %6065 = vmatmul.f32.gmra.mxu0 %v6064
            %v6066 = vpop.f32.mrf.mxu0
            %v6067 = vadd.f32 %v6013, %v6066
            %6068 = vdwg.mxu0
            %v6069 = vand.u32 %v3783, 4294901760
            %6070 = vmatpush.msra.mxu0 %v6069
            %v6071 = vand.u32 %v3781, 4294901760
            %6072 = vmatpush.msra.mxu0 %v6071
            %v6073 = vand.u32 %v3779, 4294901760
            %6074 = vmatpush.msra.mxu0 %v6073
            %v6075 = vand.u32 %v3777, 4294901760
            %6076 = vmatpush.msra.mxu0 %v6075
            %v6077 = vand.u32 %v3775, 4294901760
            %6078 = vmatpush.msra.mxu0 %v6077
            %v6079 = vand.u32 %v3773, 4294901760
            %6080 = vmatpush.msra.mxu0 %v6079
            %v6081 = vand.u32 %v3771, 4294901760
            %6082 = vmatpush.msra.mxu0 %v6081
            %v6083 = vand.u32 %v3769, 4294901760
            %6084 = vmatpush.msra.mxu0 %v6083
            %v6085 = vand.u32 %v3767, 4294901760
            %6086 = vmatpush.msra.mxu0 %v6085
            %v6087 = vand.u32 %v3765, 4294901760
            %6088 = vmatpush.msra.mxu0 %v6087
            %v6089 = vand.u32 %v3763, 4294901760
            %6090 = vmatpush.msra.mxu0 %v6089
            %v6091 = vand.u32 %v3761, 4294901760
            %6092 = vmatpush.msra.mxu0 %v6091
            %v6093 = vand.u32 %v3759, 4294901760
            %6094 = vmatpush.msra.mxu0 %v6093
            %v6095 = vand.u32 %v3757, 4294901760
            %6096 = vmatpush.msra.mxu0 %v6095
            %v6097 = vand.u32 %v3755, 4294901760
            %6098 = vmatpush.msra.mxu0 %v6097
            %v6099 = vand.u32 %v3753, 4294901760
            %6100 = vmatpush.msra.mxu0 %v6099
            %v6101 = vand.u32 %v5187, 4294901760
            %v6102 = vsub.f32 %v5187, %v6101
            %v6103 = vand.u32 %v6102, 4294901760
            %6104 = vmatmul.f32.gmra.mxu0 %v6103
            %v6105 = vpop.f32.mrf.mxu0
            %v6106 = vadd.f32 %v6067, %v6105
            %6107 = vdwg.mxu0
            %v6108 = vand.u32 %v3783, 4294901760
            %v6109 = vsub.f32 %v3783, %v6108
            %v6110 = vand.u32 %v6109, 4294901760
            %6111 = vmatpush.msra.mxu0 %v6110
            %v6112 = vand.u32 %v3781, 4294901760
            %v6113 = vsub.f32 %v3781, %v6112
            %v6114 = vand.u32 %v6113, 4294901760
            %6115 = vmatpush.msra.mxu0 %v6114
            %v6116 = vand.u32 %v3779, 4294901760
            %v6117 = vsub.f32 %v3779, %v6116
            %v6118 = vand.u32 %v6117, 4294901760
            %6119 = vmatpush.msra.mxu0 %v6118
            %v6120 = vand.u32 %v3777, 4294901760
            %v6121 = vsub.f32 %v3777, %v6120
            %v6122 = vand.u32 %v6121, 4294901760
            %6123 = vmatpush.msra.mxu0 %v6122
            %v6124 = vand.u32 %v3775, 4294901760
            %v6125 = vsub.f32 %v3775, %v6124
            %v6126 = vand.u32 %v6125, 4294901760
            %6127 = vmatpush.msra.mxu0 %v6126
            %v6128 = vand.u32 %v3773, 4294901760
            %v6129 = vsub.f32 %v3773, %v6128
            %v6130 = vand.u32 %v6129, 4294901760
            %6131 = vmatpush.msra.mxu0 %v6130
            %v6132 = vand.u32 %v3771, 4294901760
            %v6133 = vsub.f32 %v3771, %v6132
            %v6134 = vand.u32 %v6133, 4294901760
            %6135 = vmatpush.msra.mxu0 %v6134
            %v6136 = vand.u32 %v3769, 4294901760
            %v6137 = vsub.f32 %v3769, %v6136
            %v6138 = vand.u32 %v6137, 4294901760
            %6139 = vmatpush.msra.mxu0 %v6138
            %v6140 = vand.u32 %v3767, 4294901760
            %v6141 = vsub.f32 %v3767, %v6140
            %v6142 = vand.u32 %v6141, 4294901760
            %6143 = vmatpush.msra.mxu0 %v6142
            %v6144 = vand.u32 %v3765, 4294901760
            %v6145 = vsub.f32 %v3765, %v6144
            %v6146 = vand.u32 %v6145, 4294901760
            %6147 = vmatpush.msra.mxu0 %v6146
            %v6148 = vand.u32 %v3763, 4294901760
            %v6149 = vsub.f32 %v3763, %v6148
            %v6150 = vand.u32 %v6149, 4294901760
            %6151 = vmatpush.msra.mxu0 %v6150
            %v6152 = vand.u32 %v3761, 4294901760
            %v6153 = vsub.f32 %v3761, %v6152
            %v6154 = vand.u32 %v6153, 4294901760
            %6155 = vmatpush.msra.mxu0 %v6154
            %v6156 = vand.u32 %v3759, 4294901760
            %v6157 = vsub.f32 %v3759, %v6156
            %v6158 = vand.u32 %v6157, 4294901760
            %6159 = vmatpush.msra.mxu0 %v6158
            %v6160 = vand.u32 %v3757, 4294901760
            %v6161 = vsub.f32 %v3757, %v6160
            %v6162 = vand.u32 %v6161, 4294901760
            %6163 = vmatpush.msra.mxu0 %v6162
            %v6164 = vand.u32 %v3755, 4294901760
            %v6165 = vsub.f32 %v3755, %v6164
            %v6166 = vand.u32 %v6165, 4294901760
            %6167 = vmatpush.msra.mxu0 %v6166
            %v6168 = vand.u32 %v3753, 4294901760
            %v6169 = vsub.f32 %v3753, %v6168
            %v6170 = vand.u32 %v6169, 4294901760
            %6171 = vmatpush.msra.mxu0 %v6170
            %v6172 = vand.u32 %v5187, 4294901760
            %6173 = vmatmul.f32.gmra.mxu0 %v6172
            %v6174 = vpop.f32.mrf.mxu0
            %v6175 = vadd.f32 %v6106, %v6174
            %6176 = vdwg.mxu0
            %v6177 = vand.u32 %v3783, 4294901760
            %6178 = vmatpush.msra.mxu0 %v6177
            %v6179 = vand.u32 %v3781, 4294901760
            %6180 = vmatpush.msra.mxu0 %v6179
            %v6181 = vand.u32 %v3779, 4294901760
            %6182 = vmatpush.msra.mxu0 %v6181
            %v6183 = vand.u32 %v3777, 4294901760
            %6184 = vmatpush.msra.mxu0 %v6183
            %v6185 = vand.u32 %v3775, 4294901760
            %6186 = vmatpush.msra.mxu0 %v6185
            %v6187 = vand.u32 %v3773, 4294901760
            %6188 = vmatpush.msra.mxu0 %v6187
            %v6189 = vand.u32 %v3771, 4294901760
            %6190 = vmatpush.msra.mxu0 %v6189
            %v6191 = vand.u32 %v3769, 4294901760
            %6192 = vmatpush.msra.mxu0 %v6191
            %v6193 = vand.u32 %v3767, 4294901760
            %6194 = vmatpush.msra.mxu0 %v6193
            %v6195 = vand.u32 %v3765, 4294901760
            %6196 = vmatpush.msra.mxu0 %v6195
            %v6197 = vand.u32 %v3763, 4294901760
            %6198 = vmatpush.msra.mxu0 %v6197
            %v6199 = vand.u32 %v3761, 4294901760
            %6200 = vmatpush.msra.mxu0 %v6199
            %v6201 = vand.u32 %v3759, 4294901760
            %6202 = vmatpush.msra.mxu0 %v6201
            %v6203 = vand.u32 %v3757, 4294901760
            %6204 = vmatpush.msra.mxu0 %v6203
            %v6205 = vand.u32 %v3755, 4294901760
            %6206 = vmatpush.msra.mxu0 %v6205
            %v6207 = vand.u32 %v3753, 4294901760
            %6208 = vmatpush.msra.mxu0 %v6207
            %v6209 = vand.u32 %v5187, 4294901760
            %6210 = vmatmul.f32.gmra.mxu0 %v6209
            %v6211 = vpop.f32.mrf.mxu0
            %v6212 = vadd.f32 %v6175, %v6211
            %6213 = vdwg.mxu0
            %v6214 = vand.u32 %v3815, 4294901760
            %6215 = vmatpush.msra.mxu0 %v6214
            %v6216 = vand.u32 %v3813, 4294901760
            %6217 = vmatpush.msra.mxu0 %v6216
            %v6218 = vand.u32 %v3811, 4294901760
            %6219 = vmatpush.msra.mxu0 %v6218
            %v6220 = vand.u32 %v3809, 4294901760
            %6221 = vmatpush.msra.mxu0 %v6220
            %v6222 = vand.u32 %v3807, 4294901760
            %6223 = vmatpush.msra.mxu0 %v6222
            %v6224 = vand.u32 %v3805, 4294901760
            %6225 = vmatpush.msra.mxu0 %v6224
            %v6226 = vand.u32 %v3803, 4294901760
            %6227 = vmatpush.msra.mxu0 %v6226
            %v6228 = vand.u32 %v3801, 4294901760
            %6229 = vmatpush.msra.mxu0 %v6228
            %v6230 = vand.u32 %v3799, 4294901760
            %6231 = vmatpush.msra.mxu0 %v6230
            %v6232 = vand.u32 %v3797, 4294901760
            %6233 = vmatpush.msra.mxu0 %v6232
            %v6234 = vand.u32 %v3795, 4294901760
            %6235 = vmatpush.msra.mxu0 %v6234
            %v6236 = vand.u32 %v3793, 4294901760
            %6237 = vmatpush.msra.mxu0 %v6236
            %v6238 = vand.u32 %v3791, 4294901760
            %6239 = vmatpush.msra.mxu0 %v6238
            %v6240 = vand.u32 %v3789, 4294901760
            %6241 = vmatpush.msra.mxu0 %v6240
            %v6242 = vand.u32 %v3787, 4294901760
            %6243 = vmatpush.msra.mxu0 %v6242
            %v6244 = vand.u32 %v3785, 4294901760
            %6245 = vmatpush.msra.mxu0 %v6244
            %v6246 = vand.u32 %v5188, 4294901760
            %v6247 = vsub.f32 %v5188, %v6246
            %v6248 = vand.u32 %v6247, 4294901760
            %v6249 = vsub.f32 %v6247, %v6248
            %v6250 = vand.u32 %v6249, 4294901760
            %6251 = vmatmul.f32.gmra.mxu0 %v6250
            %v6252 = vpop.f32.mrf.mxu0
            %v6253 = vadd.f32 %v6212, %v6252
            %6254 = vdwg.mxu0
            %v6255 = vand.u32 %v3815, 4294901760
            %v6256 = vsub.f32 %v3815, %v6255
            %v6257 = vand.u32 %v6256, 4294901760
            %v6258 = vsub.f32 %v6256, %v6257
            %v6259 = vand.u32 %v6258, 4294901760
            %6260 = vmatpush.msra.mxu0 %v6259
            %v6261 = vand.u32 %v3813, 4294901760
            %v6262 = vsub.f32 %v3813, %v6261
            %v6263 = vand.u32 %v6262, 4294901760
            %v6264 = vsub.f32 %v6262, %v6263
            %v6265 = vand.u32 %v6264, 4294901760
            %6266 = vmatpush.msra.mxu0 %v6265
            %v6267 = vand.u32 %v3811, 4294901760
            %v6268 = vsub.f32 %v3811, %v6267
            %v6269 = vand.u32 %v6268, 4294901760
            %v6270 = vsub.f32 %v6268, %v6269
            %v6271 = vand.u32 %v6270, 4294901760
            %6272 = vmatpush.msra.mxu0 %v6271
            %v6273 = vand.u32 %v3809, 4294901760
            %v6274 = vsub.f32 %v3809, %v6273
            %v6275 = vand.u32 %v6274, 4294901760
            %v6276 = vsub.f32 %v6274, %v6275
            %v6277 = vand.u32 %v6276, 4294901760
            %6278 = vmatpush.msra.mxu0 %v6277
            %v6279 = vand.u32 %v3807, 4294901760
            %v6280 = vsub.f32 %v3807, %v6279
            %v6281 = vand.u32 %v6280, 4294901760
            %v6282 = vsub.f32 %v6280, %v6281
            %v6283 = vand.u32 %v6282, 4294901760
            %6284 = vmatpush.msra.mxu0 %v6283
            %v6285 = vand.u32 %v3805, 4294901760
            %v6286 = vsub.f32 %v3805, %v6285
            %v6287 = vand.u32 %v6286, 4294901760
            %v6288 = vsub.f32 %v6286, %v6287
            %v6289 = vand.u32 %v6288, 4294901760
            %6290 = vmatpush.msra.mxu0 %v6289
            %v6291 = vand.u32 %v3803, 4294901760
            %v6292 = vsub.f32 %v3803, %v6291
            %v6293 = vand.u32 %v6292, 4294901760
            %v6294 = vsub.f32 %v6292, %v6293
            %v6295 = vand.u32 %v6294, 4294901760
            %6296 = vmatpush.msra.mxu0 %v6295
            %v6297 = vand.u32 %v3801, 4294901760
            %v6298 = vsub.f32 %v3801, %v6297
            %v6299 = vand.u32 %v6298, 4294901760
            %v6300 = vsub.f32 %v6298, %v6299
            %v6301 = vand.u32 %v6300, 4294901760
            %6302 = vmatpush.msra.mxu0 %v6301
            %v6303 = vand.u32 %v3799, 4294901760
            %v6304 = vsub.f32 %v3799, %v6303
            %v6305 = vand.u32 %v6304, 4294901760
            %v6306 = vsub.f32 %v6304, %v6305
            %v6307 = vand.u32 %v6306, 4294901760
            %6308 = vmatpush.msra.mxu0 %v6307
            %v6309 = vand.u32 %v3797, 4294901760
            %v6310 = vsub.f32 %v3797, %v6309
            %v6311 = vand.u32 %v6310, 4294901760
            %v6312 = vsub.f32 %v6310, %v6311
            %v6313 = vand.u32 %v6312, 4294901760
            %6314 = vmatpush.msra.mxu0 %v6313
            %v6315 = vand.u32 %v3795, 4294901760
            %v6316 = vsub.f32 %v3795, %v6315
            %v6317 = vand.u32 %v6316, 4294901760
            %v6318 = vsub.f32 %v6316, %v6317
            %v6319 = vand.u32 %v6318, 4294901760
            %6320 = vmatpush.msra.mxu0 %v6319
            %v6321 = vand.u32 %v3793, 4294901760
            %v6322 = vsub.f32 %v3793, %v6321
            %v6323 = vand.u32 %v6322, 4294901760
            %v6324 = vsub.f32 %v6322, %v6323
            %v6325 = vand.u32 %v6324, 4294901760
            %6326 = vmatpush.msra.mxu0 %v6325
            %v6327 = vand.u32 %v3791, 4294901760
            %v6328 = vsub.f32 %v3791, %v6327
            %v6329 = vand.u32 %v6328, 4294901760
            %v6330 = vsub.f32 %v6328, %v6329
            %v6331 = vand.u32 %v6330, 4294901760
            %6332 = vmatpush.msra.mxu0 %v6331
            %v6333 = vand.u32 %v3789, 4294901760
            %v6334 = vsub.f32 %v3789, %v6333
            %v6335 = vand.u32 %v6334, 4294901760
            %v6336 = vsub.f32 %v6334, %v6335
            %v6337 = vand.u32 %v6336, 4294901760
            %6338 = vmatpush.msra.mxu0 %v6337
            %v6339 = vand.u32 %v3787, 4294901760
            %v6340 = vsub.f32 %v3787, %v6339
            %v6341 = vand.u32 %v6340, 4294901760
            %v6342 = vsub.f32 %v6340, %v6341
            %v6343 = vand.u32 %v6342, 4294901760
            %6344 = vmatpush.msra.mxu0 %v6343
            %v6345 = vand.u32 %v3785, 4294901760
            %v6346 = vsub.f32 %v3785, %v6345
            %v6347 = vand.u32 %v6346, 4294901760
            %v6348 = vsub.f32 %v6346, %v6347
            %v6349 = vand.u32 %v6348, 4294901760
            %6350 = vmatpush.msra.mxu0 %v6349
            %v6351 = vand.u32 %v5188, 4294901760
            %6352 = vmatmul.f32.gmra.mxu0 %v6351
            %v6353 = vpop.f32.mrf.mxu0
            %v6354 = vadd.f32 %v6253, %v6353
            %6355 = vdwg.mxu0
            %v6356 = vand.u32 %v3815, 4294901760
            %v6357 = vsub.f32 %v3815, %v6356
            %6358 = vmatpush.msra.mxu0 %v6357
            %v6359 = vand.u32 %v3813, 4294901760
            %v6360 = vsub.f32 %v3813, %v6359
            %6361 = vmatpush.msra.mxu0 %v6360
            %v6362 = vand.u32 %v3811, 4294901760
            %v6363 = vsub.f32 %v3811, %v6362
            %6364 = vmatpush.msra.mxu0 %v6363
            %v6365 = vand.u32 %v3809, 4294901760
            %v6366 = vsub.f32 %v3809, %v6365
            %6367 = vmatpush.msra.mxu0 %v6366
            %v6368 = vand.u32 %v3807, 4294901760
            %v6369 = vsub.f32 %v3807, %v6368
            %6370 = vmatpush.msra.mxu0 %v6369
            %v6371 = vand.u32 %v3805, 4294901760
            %v6372 = vsub.f32 %v3805, %v6371
            %6373 = vmatpush.msra.mxu0 %v6372
            %v6374 = vand.u32 %v3803, 4294901760
            %v6375 = vsub.f32 %v3803, %v6374
            %6376 = vmatpush.msra.mxu0 %v6375
            %v6377 = vand.u32 %v3801, 4294901760
            %v6378 = vsub.f32 %v3801, %v6377
            %6379 = vmatpush.msra.mxu0 %v6378
            %v6380 = vand.u32 %v3799, 4294901760
            %v6381 = vsub.f32 %v3799, %v6380
            %6382 = vmatpush.msra.mxu0 %v6381
            %v6383 = vand.u32 %v3797, 4294901760
            %v6384 = vsub.f32 %v3797, %v6383
            %6385 = vmatpush.msra.mxu0 %v6384
            %v6386 = vand.u32 %v3795, 4294901760
            %v6387 = vsub.f32 %v3795, %v6386
            %6388 = vmatpush.msra.mxu0 %v6387
            %v6389 = vand.u32 %v3793, 4294901760
            %v6390 = vsub.f32 %v3793, %v6389
            %6391 = vmatpush.msra.mxu0 %v6390
            %v6392 = vand.u32 %v3791, 4294901760
            %v6393 = vsub.f32 %v3791, %v6392
            %6394 = vmatpush.msra.mxu0 %v6393
            %v6395 = vand.u32 %v3789, 4294901760
            %v6396 = vsub.f32 %v3789, %v6395
            %6397 = vmatpush.msra.mxu0 %v6396
            %v6398 = vand.u32 %v3787, 4294901760
            %v6399 = vsub.f32 %v3787, %v6398
            %6400 = vmatpush.msra.mxu0 %v6399
            %v6401 = vand.u32 %v3785, 4294901760
            %v6402 = vsub.f32 %v3785, %v6401
            %6403 = vmatpush.msra.mxu0 %v6402
            %v6404 = vand.u32 %v5188, 4294901760
            %v6405 = vsub.f32 %v5188, %v6404
            %6406 = vmatmul.f32.gmra.mxu0 %v6405
            %v6407 = vpop.f32.mrf.mxu0
            %v6408 = vadd.f32 %v6354, %v6407
            %6409 = vdwg.mxu0
            %v6410 = vand.u32 %v3815, 4294901760
            %6411 = vmatpush.msra.mxu0 %v6410
            %v6412 = vand.u32 %v3813, 4294901760
            %6413 = vmatpush.msra.mxu0 %v6412
            %v6414 = vand.u32 %v3811, 4294901760
            %6415 = vmatpush.msra.mxu0 %v6414
            %v6416 = vand.u32 %v3809, 4294901760
            %6417 = vmatpush.msra.mxu0 %v6416
            %v6418 = vand.u32 %v3807, 4294901760
            %6419 = vmatpush.msra.mxu0 %v6418
            %v6420 = vand.u32 %v3805, 4294901760
            %6421 = vmatpush.msra.mxu0 %v6420
            %v6422 = vand.u32 %v3803, 4294901760
            %6423 = vmatpush.msra.mxu0 %v6422
            %v6424 = vand.u32 %v3801, 4294901760
            %6425 = vmatpush.msra.mxu0 %v6424
            %v6426 = vand.u32 %v3799, 4294901760
            %6427 = vmatpush.msra.mxu0 %v6426
            %v6428 = vand.u32 %v3797, 4294901760
            %6429 = vmatpush.msra.mxu0 %v6428
            %v6430 = vand.u32 %v3795, 4294901760
            %6431 = vmatpush.msra.mxu0 %v6430
            %v6432 = vand.u32 %v3793, 4294901760
            %6433 = vmatpush.msra.mxu0 %v6432
            %v6434 = vand.u32 %v3791, 4294901760
            %6435 = vmatpush.msra.mxu0 %v6434
            %v6436 = vand.u32 %v3789, 4294901760
            %6437 = vmatpush.msra.mxu0 %v6436
            %v6438 = vand.u32 %v3787, 4294901760
            %6439 = vmatpush.msra.mxu0 %v6438
            %v6440 = vand.u32 %v3785, 4294901760
            %6441 = vmatpush.msra.mxu0 %v6440
            %v6442 = vand.u32 %v5188, 4294901760
            %v6443 = vsub.f32 %v5188, %v6442
            %v6444 = vand.u32 %v6443, 4294901760
            %6445 = vmatmul.f32.gmra.mxu0 %v6444
            %v6446 = vpop.f32.mrf.mxu0
            %v6447 = vadd.f32 %v6408, %v6446
            %6448 = vdwg.mxu0
            %v6449 = vand.u32 %v3815, 4294901760
            %v6450 = vsub.f32 %v3815, %v6449
            %v6451 = vand.u32 %v6450, 4294901760
            %6452 = vmatpush.msra.mxu0 %v6451
            %v6453 = vand.u32 %v3813, 4294901760
            %v6454 = vsub.f32 %v3813, %v6453
            %v6455 = vand.u32 %v6454, 4294901760
            %6456 = vmatpush.msra.mxu0 %v6455
            %v6457 = vand.u32 %v3811, 4294901760
            %v6458 = vsub.f32 %v3811, %v6457
            %v6459 = vand.u32 %v6458, 4294901760
            %6460 = vmatpush.msra.mxu0 %v6459
            %v6461 = vand.u32 %v3809, 4294901760
            %v6462 = vsub.f32 %v3809, %v6461
            %v6463 = vand.u32 %v6462, 4294901760
            %6464 = vmatpush.msra.mxu0 %v6463
            %v6465 = vand.u32 %v3807, 4294901760
            %v6466 = vsub.f32 %v3807, %v6465
            %v6467 = vand.u32 %v6466, 4294901760
            %6468 = vmatpush.msra.mxu0 %v6467
            %v6469 = vand.u32 %v3805, 4294901760
            %v6470 = vsub.f32 %v3805, %v6469
            %v6471 = vand.u32 %v6470, 4294901760
            %6472 = vmatpush.msra.mxu0 %v6471
            %v6473 = vand.u32 %v3803, 4294901760
            %v6474 = vsub.f32 %v3803, %v6473
            %v6475 = vand.u32 %v6474, 4294901760
            %6476 = vmatpush.msra.mxu0 %v6475
            %v6477 = vand.u32 %v3801, 4294901760
            %v6478 = vsub.f32 %v3801, %v6477
            %v6479 = vand.u32 %v6478, 4294901760
            %6480 = vmatpush.msra.mxu0 %v6479
            %v6481 = vand.u32 %v3799, 4294901760
            %v6482 = vsub.f32 %v3799, %v6481
            %v6483 = vand.u32 %v6482, 4294901760
            %6484 = vmatpush.msra.mxu0 %v6483
            %v6485 = vand.u32 %v3797, 4294901760
            %v6486 = vsub.f32 %v3797, %v6485
            %v6487 = vand.u32 %v6486, 4294901760
            %6488 = vmatpush.msra.mxu0 %v6487
            %v6489 = vand.u32 %v3795, 4294901760
            %v6490 = vsub.f32 %v3795, %v6489
            %v6491 = vand.u32 %v6490, 4294901760
            %6492 = vmatpush.msra.mxu0 %v6491
            %v6493 = vand.u32 %v3793, 4294901760
            %v6494 = vsub.f32 %v3793, %v6493
            %v6495 = vand.u32 %v6494, 4294901760
            %6496 = vmatpush.msra.mxu0 %v6495
            %v6497 = vand.u32 %v3791, 4294901760
            %v6498 = vsub.f32 %v3791, %v6497
            %v6499 = vand.u32 %v6498, 4294901760
            %6500 = vmatpush.msra.mxu0 %v6499
            %v6501 = vand.u32 %v3789, 4294901760
            %v6502 = vsub.f32 %v3789, %v6501
            %v6503 = vand.u32 %v6502, 4294901760
            %6504 = vmatpush.msra.mxu0 %v6503
            %v6505 = vand.u32 %v3787, 4294901760
            %v6506 = vsub.f32 %v3787, %v6505
            %v6507 = vand.u32 %v6506, 4294901760
            %6508 = vmatpush.msra.mxu0 %v6507
            %v6509 = vand.u32 %v3785, 4294901760
            %v6510 = vsub.f32 %v3785, %v6509
            %v6511 = vand.u32 %v6510, 4294901760
            %6512 = vmatpush.msra.mxu0 %v6511
            %v6513 = vand.u32 %v5188, 4294901760
            %6514 = vmatmul.f32.gmra.mxu0 %v6513
            %v6515 = vpop.f32.mrf.mxu0
            %v6516 = vadd.f32 %v6447, %v6515
            %6517 = vdwg.mxu0
            %v6518 = vand.u32 %v3815, 4294901760
            %6519 = vmatpush.msra.mxu0 %v6518
            %v6520 = vand.u32 %v3813, 4294901760
            %6521 = vmatpush.msra.mxu0 %v6520
            %v6522 = vand.u32 %v3811, 4294901760
            %6523 = vmatpush.msra.mxu0 %v6522
            %v6524 = vand.u32 %v3809, 4294901760
            %6525 = vmatpush.msra.mxu0 %v6524
            %v6526 = vand.u32 %v3807, 4294901760
            %6527 = vmatpush.msra.mxu0 %v6526
            %v6528 = vand.u32 %v3805, 4294901760
            %6529 = vmatpush.msra.mxu0 %v6528
            %v6530 = vand.u32 %v3803, 4294901760
            %6531 = vmatpush.msra.mxu0 %v6530
            %v6532 = vand.u32 %v3801, 4294901760
            %6533 = vmatpush.msra.mxu0 %v6532
            %v6534 = vand.u32 %v3799, 4294901760
            %6535 = vmatpush.msra.mxu0 %v6534
            %v6536 = vand.u32 %v3797, 4294901760
            %6537 = vmatpush.msra.mxu0 %v6536
            %v6538 = vand.u32 %v3795, 4294901760
            %6539 = vmatpush.msra.mxu0 %v6538
            %v6540 = vand.u32 %v3793, 4294901760
            %6541 = vmatpush.msra.mxu0 %v6540
            %v6542 = vand.u32 %v3791, 4294901760
            %6543 = vmatpush.msra.mxu0 %v6542
            %v6544 = vand.u32 %v3789, 4294901760
            %6545 = vmatpush.msra.mxu0 %v6544
            %v6546 = vand.u32 %v3787, 4294901760
            %6547 = vmatpush.msra.mxu0 %v6546
            %v6548 = vand.u32 %v3785, 4294901760
            %6549 = vmatpush.msra.mxu0 %v6548
            %v6550 = vand.u32 %v5188, 4294901760
            %6551 = vmatmul.f32.gmra.mxu0 %v6550
            %v6552 = vpop.f32.mrf.mxu0
            %v6553 = vadd.f32 %v6516, %v6552
            %6554 = vdwg.mxu0
            %v6555 = vmul.f32 %v4501, 0.00048828125
            %v6556 = vmul.f32 %v5183, 0.00048828125
            %v6557 = vld [vmem:[#allocation4] sm:$0x3]
            %v6560 = vrot.slane %v6556, 7
            %v6561 = vsel %vm3688, %v6555, %v6560
            %v6563 = vadd.f32 %v6557, %v6561
            %v6564 = vmul.f32 %v5871, 0.00048828125
            %v6565 = vmul.f32 %v6553, 0.00048828125
            %v6566 = vmul.f32 %v6555, %v6555
            %v6567 = vmul.f32 %v6556, %v6556
            %v6568 = vsub.f32 %v6564, %v6566
            %v6569 = vsub.f32 %v6565, %v6567
            %v6570 = vmax.f32 %v6568, 0.0
            %v6571 = vmax.f32 %v6569, 0.0
            %v6572 = vadd.f32 %v6570, 1e-05
            %v6573 = vadd.f32 %v6571, 1e-05
            %v6574 = vrsqrt.pop %v6572
            %v6575 = vmul.f32 %v6574, %v6572
            %v6576 = vmul.f32 %v6575, %v6574
            %v6577 = vmul.f32 0.5, %v6576
            %v6578 = vsub.f32 1.5, %v6577
            %v6579 = vmul.f32 %v6574, %v6578
            %vm6580 = vweird.f32 %v6572
            %vm6581 = vweird.f32 %v6574
            %vm6582 = vmor %vm6580, %vm6581
            %v6583 = vsel %vm6582, %v6574, %v6579
            %v6584 = vrsqrt.pop %v6573
            %v6585 = vmul.f32 %v6584, %v6573
            %v6586 = vmul.f32 %v6585, %v6584
            %v6587 = vmul.f32 0.5, %v6586
            %v6588 = vsub.f32 1.5, %v6587
            %v6589 = vmul.f32 %v6584, %v6588
            %vm6590 = vweird.f32 %v6573
            %vm6591 = vweird.f32 %v6584
            %vm6592 = vmor %vm6590, %vm6591
            %v6593 = vsel %vm6592, %v6584, %v6589
            %v6594 = vld [vmem:[%s4] sm:$0x3]
            %v6597 = vrot.slane %v6593, 7
            %v6598 = vsel %vm3688, %v6583, %v6597
            %v6600 = vmul.f32 %v6594, %v6598
            %6601 = vst.msk [vmem:[#allocation5] sm:$0x3] %vm3695, %v6600
            %v6602 = vld [vmem:[%s5] sm:$0x3]
            %v6603 = vld [vmem:[#allocation5] sm:$0x3]
            %v6604 = vmul.f32 %v6563, %v6603
            %v6605 = vsub.f32 %v6602, %v6604
            %6606 = vst.msk [vmem:[#allocation6] sm:$0x3] %vm3695, %v6605
          $region72: #{tpu_custom_call.1} parent=63 // pred_fallthru
            _
        $region64: #{tpu_custom_call.1} parent=47 // pred_fallthru
          _
        %p6607 = scmp.eq.s32.totalorder %s27, 1
        // Predicated region
        $region73: #{tpu_custom_call.1} parent=47 // pred_check
          %p6608 = pneg %p6607
        $region74: #{tpu_custom_call.1} parent=47 // pred_check_branch
          %6610 = sbr.rel (%p6608) target = $region76
        $region75: #{tpu_custom_call.1} parent=47 // pred_region
          %v6611 = vld [vmem:[#allocation5] sm:$0x3]
          %v6613 = vperm.slane %v6611, 0
          %v6614 = vperm.slane %v6611, 1
          %v6617 = vmul.f32 %v520, %v6613
          %v6618 = vmul.f32 %v549, %v6614
          %v6619 = vmul.f32 %v522, %v6613
          %v6620 = vmul.f32 %v551, %v6614
          %v6621 = vmul.f32 %v525, %v6613
          %v6622 = vmul.f32 %v554, %v6614
          %v6623 = vmul.f32 %v527, %v6613
          %v6624 = vmul.f32 %v556, %v6614
          %v6625 = vmul.f32 %v530, %v6613
          %v6626 = vmul.f32 %v559, %v6614
          %v6627 = vmul.f32 %v532, %v6613
          %v6628 = vmul.f32 %v561, %v6614
          %v6629 = vmul.f32 %v535, %v6613
          %v6630 = vmul.f32 %v564, %v6614
          %v6631 = vmul.f32 %v537, %v6613
          %v6632 = vmul.f32 %v566, %v6614
          %v6633 = vld [vmem:[#allocation6] sm:$0x3]
          %v6635 = vperm.slane %v6633, 0
          %v6636 = vperm.slane %v6633, 1
          %v6639 = vadd.f32 %v6617, %v6635
          %v6640 = vadd.f32 %v6618, %v6636
          %v6641 = vadd.f32 %v6619, %v6635
          %v6642 = vadd.f32 %v6620, %v6636
          %v6643 = vadd.f32 %v6621, %v6635
          %v6644 = vadd.f32 %v6622, %v6636
          %v6645 = vadd.f32 %v6623, %v6635
          %v6646 = vadd.f32 %v6624, %v6636
          %v6647 = vadd.f32 %v6625, %v6635
          %v6648 = vadd.f32 %v6626, %v6636
          %v6649 = vadd.f32 %v6627, %v6635
          %v6650 = vadd.f32 %v6628, %v6636
          %v6651 = vadd.f32 %v6629, %v6635
          %v6652 = vadd.f32 %v6630, %v6636
          %v6653 = vadd.f32 %v6631, %v6635
          %v6654 = vadd.f32 %v6632, %v6636
          %v6655 = vmax.f32 %v6639, 0.0
          %v6656 = vmax.f32 %v6640, 0.0
          %v6657 = vmax.f32 %v6641, 0.0
          %v6658 = vmax.f32 %v6642, 0.0
          %v6659 = vmax.f32 %v6643, 0.0
          %v6660 = vmax.f32 %v6644, 0.0
          %v6661 = vmax.f32 %v6645, 0.0
          %v6662 = vmax.f32 %v6646, 0.0
          %v6663 = vmax.f32 %v6647, 0.0
          %v6664 = vmax.f32 %v6648, 0.0
          %v6665 = vmax.f32 %v6649, 0.0
          %v6666 = vmax.f32 %v6650, 0.0
          %v6667 = vmax.f32 %v6651, 0.0
          %v6668 = vmax.f32 %v6652, 0.0
          %v6669 = vmax.f32 %v6653, 0.0
          %v6670 = vmax.f32 %v6654, 0.0
          %6671 = vst [vmem:[%s362] sm:$0xff] %v6655
          %6672 = vst [vmem:[%s362 + $0x8] sm:$0xff] %v6656
          %6673 = vst [vmem:[%s362 + $0x10] sm:$0xff] %v6657
          %6674 = vst [vmem:[%s362 + $0x18] sm:$0xff] %v6658
          %6675 = vst [vmem:[%s362 + $0x20] sm:$0xff] %v6659
          %6676 = vst [vmem:[%s362 + $0x28] sm:$0xff] %v6660
          %6677 = vst [vmem:[%s362 + $0x30] sm:$0xff] %v6661
          %6678 = vst [vmem:[%s362 + $0x38] sm:$0xff] %v6662
          %6679 = vst [vmem:[%s362 + $0x40] sm:$0xff] %v6663
          %6680 = vst [vmem:[%s362 + $0x48] sm:$0xff] %v6664
          %6681 = vst [vmem:[%s362 + $0x50] sm:$0xff] %v6665
          %6682 = vst [vmem:[%s362 + $0x58] sm:$0xff] %v6666
          %6683 = vst [vmem:[%s362 + $0x60] sm:$0xff] %v6667
          %6684 = vst [vmem:[%s362 + $0x68] sm:$0xff] %v6668
          %6685 = vst [vmem:[%s362 + $0x70] sm:$0xff] %v6669
          %6686 = vst [vmem:[%s362 + $0x78] sm:$0xff] %v6670
        $region76: #{tpu_custom_call.1} parent=47 // pred_fallthru
          _
        %s6687 = sand.u32 %s206, 1
        %s6688 = scalar_lea.sflag [#allocation9], %s6687
        %s6689 = sand.u32 %s206, 1
        %s6690 = smul.addr %s6689, 128
        %s6691 = scalar_lea.vmem [#allocation13], %s6690
        // Predicated region
        $region77: #{tpu_custom_call.1} parent=47 // pred_check
          %p6692 = pneg %p216
        $region78: #{tpu_custom_call.1} parent=47 // pred_check_branch
          %6694 = sbr.rel (%p6692) target = $region80
        $region79: #{tpu_custom_call.1} parent=47 // pred_region
          %s6695 = smul.u32 %s28, %s27
          %s6696 = smul.u32 8, %s6695
          %6698 = vsyncadd %s6688, 0
          %s6699 = smul.addr %s6696, 2
          %s6700 = smul.addr %s6699, 8
          %s6701 = scalar_lea.hbm %s7, %s6700
          %s6702 = sshll.u32 %s6691, 4
          %s6703 = int_to_ptr.vmem [resolvable:$true] %s6702
          %s6704 = sshll.u32 %s6701, 4
          %s6705 = int_to_ptr.hbm [resolvable:$true] %s6704
          %6710 = dma.vmem_to_hbm [thread:$0]  %s6703, 2048, %s6705, %s6688, 256, 256, 16
        $region80: #{tpu_custom_call.1} parent=47 // pred_fallthru
          _
      $region48: #{tpu_custom_call.1} parent=5 // pred_fallthru
        _
      %p6711 = scmp.le.s32.totalorder 2, %s18
      // Predicated region
      $region81: #{tpu_custom_call.1} parent=5 // pred_check
        %p6712 = pneg %p6711
      $region82: #{tpu_custom_call.1} parent=5 // pred_check_branch
        %6714 = sbr.rel (%p6712) target = $region84
      $region83: #{tpu_custom_call.1} parent=5 // pred_region
        %s6715 = ssub.s32 %s18, 2
        // Predicated region
        $region85: #{tpu_custom_call.1} parent=83 // pred_check
          %p6716 = pneg %p222
        $region86: #{tpu_custom_call.1} parent=83 // pred_check_branch
          %6718 = sbr.rel (%p6716) target = $region88
        $region87: #{tpu_custom_call.1} parent=83 // pred_region
          %s6719 = sand.u32 %s207, 1
          %s6720 = scalar_lea.sflag [#allocation9], %s6719
          %s6721 = sand.u32 %s207, 1
          %s6722 = smul.addr %s6721, 128
          %s6723 = scalar_lea.vmem [#allocation13], %s6722
          %6725 = dma.done %s6720, 2048
        $region88: #{tpu_custom_call.1} parent=83 // pred_fallthru
          _
      $region84: #{tpu_custom_call.1} parent=5 // pred_fallthru
        _
    $region6: #{tpu_custom_call.1} parent=1 // loop_footer
      %s22 = sadd.s32 1, %s18
    $region7: #{tpu_custom_call.1} parent=1 // loop_footer_branch
      %17 = sbr.rel target = $region3
    $region8: #{tpu_custom_call.1} parent=1 // loop_exit
      _
    %6726 = vsyncpa [#allocation8], 1
    %s6727 = scalar_lea.sflag [#allocation8], 1
    %6728 = vsyncpa %s6727, 1
    %6729 = vsyncpa [#allocation11], 1
    %6730 = vsyncpa [#allocation9], 1
    %s6731 = scalar_lea.sflag [#allocation9], 1
    %6732 = vsyncpa %s6731, 1

</llo_original>
